<compile_context>
chip_gen: v7x
topology: tpu7x:2x2x1
jax: 0.10.0
libtpu: 0.0.40
codegen_flags: <defaults>
</compile_context>

<pallas_src>
import functools

import jax
import jax.numpy as jnp
from jax import lax
from jax.experimental import pallas as pl
from jax.experimental.pallas import tpu as pltpu

EPS = 1e-6          # matches vn_layers EPS
NEG_SLOPE = 0.2     # VNLinearLeakyReLU default negative_slope


def _round_up(v, m):
    return (v + m - 1) // m * m


# ----------------------------- VMEM budgeting -------------------------------

@functools.lru_cache(maxsize=None)
def _vmem_budgets():
    phys = 64 << 20                                   # v7x-safe default
    try:
        info = pltpu.get_tpu_info()
        phys = int(getattr(info, "vmem_capacity_bytes", phys))
    except Exception:
        pass
    # Working-set budget (leaves headroom for Mosaic internals / pipelining),
    # and the scoped-VMEM limit handed to the compiler.
    budget = min(int(phys * 0.45), 56 << 20)
    limit = min(int(phys * 0.80), 100 << 20)
    return budget, limit


def _edge_vmem_bytes(kb, tn, cin, cout_p):
    # Accounts for Mosaic lane padding of the Cin-minor bf16 blocks.
    lane_cin = _round_up(cin, 128)
    sub_tn = _round_up(tn, 16)
    nbr = 2 * kb * 3 * sub_tn * lane_cin * 2          # double-buffered bf16 block
    ctr = 2 * 3 * sub_tn * lane_cin * 2
    out = 2 * 3 * tn * cout_p * 4                     # resident f32 accumulator
    ctrpd = 3 * tn * 2 * cout_p * 4                   # center-projection scratch
    trans = 4 * 3 * tn * 2 * cout_p * 4               # in-flight f32 transients
    return nbr + ctr + out + ctrpd + trans


def _pick_edge_tiles(k, n, cin, cout_p, budget):
    tn_cands = [d for d in range(min(n, 512), 0, -1)
                if n % d == 0 and (d % 8 == 0 or d == n)]
    if not tn_cands:
        tn_cands = [n]
    for tn in tn_cands:
        for kb in range(k, 0, -1):
            if k % kb:
                continue
            if _edge_vmem_bytes(kb, tn, cin, cout_p) <= budget:
                return kb, tn
    return 1, tn_cands[-1]


def _pick_tile_n(n, cap=512):
    for t in range(min(n, cap), 0, -1):
        if n % t == 0 and (t % 8 == 0 or t == n):
            return t
    return n


# ----------------------------- Pallas kernels ------------------------------

def _knn_score_kernel(rows_ref, xt_ref, colsq_ref, o_ref):
    # rows: [TM, D]; xt: [D, N]; colsq: [1, N]; o: [TM, N]
    inner = jnp.dot(rows_ref[...], xt_ref[...], preferred_element_type=jnp.float32)
    # score[n, m] = 2 x_n.x_m - ||x_m||^2 ; the row-constant -||x_n||^2 of the
    # reference pairwise distance is dropped (does not change per-row top-k).
    o_ref[...] = 2.0 * inner - colsq_ref[...]


def knn_scores(x_nd, x_t, colsq):
    # x_nd: [B, N, D] f32; x_t: [B, D, N] f32; colsq: [B, 1, N] f32.
    B, N, D = x_nd.shape
    _, vmem_limit = _vmem_budgets()
    TM = N
    if N > 512:
        for cand in (512, 256, 128, 64, 32, 16, 8):
            if N % cand == 0:
                TM = cand
                break
    return pl.pallas_call(
        _knn_score_kernel,
        out_shape=jax.ShapeDtypeStruct((B, N, N), jnp.float32),
        grid=(B, N // TM),
        in_specs=[pl.BlockSpec((None, TM, D), lambda b, i: (b, i, 0)),
                  pl.BlockSpec((None, D, N), lambda b, i: (b, 0, 0)),
                  pl.BlockSpec((None, 1, N), lambda b, i: (b, 0, 0))],
        out_specs=pl.BlockSpec((None, TM, N), lambda b, i: (b, i, 0)),
        compiler_params=pltpu.CompilerParams(
            dimension_semantics=("parallel", "parallel"),
            vmem_limit_bytes=vmem_limit),
    )(x_nd, x_t, colsq)


def _vn_leaky_core(p, d):
    # p: [3, T, Cout_p] f32, d: [3, T, Cout_p or 1] f32; xyz axis is axis 0.
    # out = ns*p + (1-ns)*(mask*p + (1-mask)*(p - (dot/(|d|^2+eps))*d))
    #     = p - (1-ns)*(dot<0)*(dot/(|d|^2+eps))*d
    dot = jnp.sum(p * d, axis=0, keepdims=True)
    dnorm = jnp.sum(d * d, axis=0, keepdims=True)
    scale = jnp.where(dot < 0.0, dot, 0.0) * pl.reciprocal(dnorm + EPS, approx=True)
    return p - (1.0 - NEG_SLOPE) * scale * d


def _edge_conv_kernel(nbr_ref, ctr_ref, wn_ref, wc_ref, o_ref, ctr_pd_ref,
                      *, kb, k, cout_p, unroll):
    # nbr_ref   : [KB, 3, TN, Cin]   bf16  (KB gathered neighbors, N-tile TN)
    # ctr_ref   : [3, TN, Cin]       bf16  (per-point features, constant over k)
    # wn_ref    : [Cin, 2*cout_p]    bf16  (fused [Wf_a | Wd_a], neighbor term)
    # wc_ref    : [Cin, 2*cout_p]    bf16  (fused [Wf_b-Wf_a | Wd_b-Wd_a], center)
    # o_ref     : [3, TN, cout_p]    f32   (k-resident accumulator; mean over k)
    # ctr_pd_ref: [3, TN, 2*cout_p]  f32   scratch (center projection per N-tile)
    jt = pl.program_id(2)
    cin = nbr_ref.shape[-1]
    cout2 = 2 * cout_p

    def project(x3, w):
        # x3: [3, TN, Cin] bf16 -> [3, TN, 2*cout_p] f32
        if cin == 1:
            # rank-1 projection on the VPU; avoids a degenerate K=1 MXU matmul.
            return x3.astype(jnp.float32) * w.astype(jnp.float32).reshape(1, 1, cout2)
        t3, tn, _ = x3.shape
        return jnp.dot(x3.reshape(t3 * tn, cin), w,
                       preferred_element_type=jnp.float32).reshape(t3, tn, cout2)

    @pl.when(jt == 0)
    def _init():
        o_ref[...] = jnp.zeros_like(o_ref)
        ctr_pd_ref[...] = project(ctr_ref[...], wc_ref[...])

    def body(ji, carry):
        pd = project(nbr_ref[ji], wn_ref[...]) + ctr_pd_ref[...]
        p = pd[..., :cout_p]                           # tile-aligned split
        d = pd[..., cout_p:]
        o_ref[...] = o_ref[...] + _vn_leaky_core(p, d)
        return carry

    lax.fori_loop(0, kb, body, 0, unroll=unroll)

    @pl.when(jt == pl.num_programs(2) - 1)
    def _fin():
        o_ref[...] = o_ref[...] * (1.0 / k)            # mean over k


def vn_edge_conv_mean_k(nbr, ctr, w_nbr, w_ctr, cout_p):
    # nbr: [B, k, 3, N, Cin] bf16; ctr: [B, 3, N, Cin] bf16;
    # w_nbr / w_ctr: [Cin, 2*cout_p] bf16.  Returns [B, 3, N, cout_p] f32.
    B, k, _, N, Cin = nbr.shape
    budget, vmem_limit = _vmem_budgets()
    kb, tn = _pick_edge_tiles(k, N, Cin, cout_p, budget)
    kernel = functools.partial(_edge_conv_kernel, kb=kb, k=k, cout_p=cout_p,
                               unroll=(kb if kb <= 4 else 2))
    return pl.pallas_call(
        kernel,
        out_shape=jax.ShapeDtypeStruct((B, 3, N, cout_p), jnp.float32),
        grid=(B, N // tn, k // kb),
        in_specs=[
            pl.BlockSpec((None, kb, 3, tn, Cin), lambda b, nt, jt: (b, jt, 0, nt, 0)),
            pl.BlockSpec((None, 3, tn, Cin), lambda b, nt, jt: (b, 0, nt, 0)),
            pl.BlockSpec((Cin, 2 * cout_p), lambda b, nt, jt: (0, 0)),
            pl.BlockSpec((Cin, 2 * cout_p), lambda b, nt, jt: (0, 0)),
        ],
        out_specs=pl.BlockSpec((None, 3, tn, cout_p),
                               lambda b, nt, jt: (b, 0, nt, 0)),
        scratch_shapes=[pltpu.VMEM((3, tn, 2 * cout_p), jnp.float32)],
        compiler_params=pltpu.CompilerParams(
            dimension_semantics=("parallel", "parallel", "arbitrary"),
            vmem_limit_bytes=vmem_limit),
    )(nbr, ctr, w_nbr, w_ctr)


def _point_conv_kernel(x_ref, w_ref, o_ref, *, cout_p, n_total):
    # x_ref: [3, TNP, Cin] bf16; w_ref: [Cin, cout_p + 128] bf16 (shared dir in
    # column cout_p); o_ref: [3, cout_p] f32 (accumulated mean over N).
    nt = pl.program_id(1)

    @pl.when(nt == 0)
    def _init():
        o_ref[...] = jnp.zeros_like(o_ref)

    t3, tnp, cin = x_ref.shape
    cout2 = w_ref.shape[-1]
    pd = jnp.dot(x_ref[...].reshape(t3 * tnp, cin), w_ref[...],
                 preferred_element_type=jnp.float32).reshape(t3, tnp, cout2)
    p = pd[..., :cout_p]
    d = pd[..., cout_p:cout_p + 1]                     # shared direction column
    out = _vn_leaky_core(p, d)                         # [3, TNP, cout_p]
    o_ref[...] = o_ref[...] + jnp.sum(out, axis=1)     # sum over this N-tile

    @pl.when(nt == pl.num_programs(1) - 1)
    def _fin():
        o_ref[...] = o_ref[...] * (1.0 / n_total)      # mean over N


def vn_point_conv_mean_n(x, w_cat, cout_p):
    # x: [B, 3, N, Cin] f32.  Returns [B, 3, cout_p] f32 (mean over N fused).
    B, _, N, Cin = x.shape
    _, vmem_limit = _vmem_budgets()
    xb = x.astype(jnp.bfloat16)
    tnp = _pick_tile_n(N)
    kernel = functools.partial(_point_conv_kernel, cout_p=cout_p, n_total=N)
    return pl.pallas_call(
        kernel,
        out_shape=jax.ShapeDtypeStruct((B, 3, cout_p), jnp.float32),
        grid=(B, N // tnp),
        in_specs=[pl.BlockSpec((None, 3, tnp, Cin), lambda b, nt: (b, 0, nt, 0)),
                  pl.BlockSpec(w_cat.shape, lambda b, nt: (0, 0))],
        out_specs=pl.BlockSpec((None, 3, cout_p), lambda b, nt: (b, 0, 0)),
        compiler_params=pltpu.CompilerParams(
            dimension_semantics=("parallel", "arbitrary"),
            vmem_limit_bytes=vmem_limit),
    )(xb, w_cat)


# ------------------------------- JAX glue ----------------------------------

def get_graph_feature_neighbors(x_, k):
    # x_: [B, 3, N, C] f32.  Returns
    #   nbr [B, k, 3, N, C] bf16  (gathered neighbor features)
    #   ctr [B, 3, N, C]    bf16  (per-point / center features)
    # The PyTorch edge feature cat(nbr - ctr, ctr) is never materialized; the
    # projection is split by linearity inside the edge-conv kernel.
    B, _, N, C = x_.shape
    x_nd = jnp.transpose(x_, (0, 2, 1, 3)).reshape(B, N, 3 * C)     # [B, N, 3C]
    colsq = jnp.sum(x_nd * x_nd, axis=-1)[:, None, :]               # [B, 1, N]
    dpad = _round_up(3 * C, 8) - 3 * C
    if dpad:
        x_nd = jnp.pad(x_nd, ((0, 0), (0, 0), (0, dpad)))
    x_t = jnp.transpose(x_nd, (0, 2, 1))                            # [B, D, N]
    scores = knn_scores(x_nd, x_t, colsq)                           # Pallas
    # TODO(synk): top-k neighbor selection stays in XLA (no clean Pallas top-k).
    idx = lax.top_k(scores, k)[1]                                   # [B, N, k]
    # Fold the xyz axis into the gather indices so the gather emits the kernel's
    # [B, k, 3, N, C] layout directly (no HBM transpose of the big nbr tensor).
    # TODO(synk): the data-dependent gather itself stays in XLA; a static
    # BlockSpec index_map cannot express a per-(point, neighbor) row gather.
    xb = x_.astype(jnp.bfloat16)
    src = xb.reshape(B, 3 * N, C)
    idx3 = (jnp.arange(3, dtype=idx.dtype)[None, None, :, None] * N
            + jnp.transpose(idx, (0, 2, 1))[:, :, None, :])         # [B, k, 3, N]
    nbr = jax.vmap(lambda s, i: s[i])(src, idx3.reshape(B, k * 3 * N))
    return nbr.reshape(B, k, 3, N, C), xb


def _pad_cols(w, cols):
    return jnp.pad(w, ((0, 0), (0, cols - w.shape[1])))


def _make_edge_weights(key, cin, cout):
    # VNLinearLeakyReLU(2*cin, cout): nn.Linear(bias=False) weights split into
    # neighbor/center halves (linearity of cat(nbr-ctr, ctr) @ W), fused
    # [Wf | Wd] along columns, zero-padded to lane-dense cout_p, bf16.
    cout_p = _round_up(cout, 128)
    k1, k2 = jax.random.split(key)
    bound = (2.0 * cin) ** -0.5
    wf = jax.random.uniform(k1, (cout, 2 * cin), jnp.float32, -bound, bound)
    wd = jax.random.uniform(k2, (cout, 2 * cin), jnp.float32, -bound, bound)
    wa_f, wb_f = wf[:, :cin].T, wf[:, cin:].T                       # [cin, cout]
    wa_d, wb_d = wd[:, :cin].T, wd[:, cin:].T
    w_nbr = jnp.concatenate([_pad_cols(wa_f, cout_p), _pad_cols(wa_d, cout_p)], 1)
    w_ctr = jnp.concatenate([_pad_cols(wb_f - wa_f, cout_p),
                             _pad_cols(wb_d - wa_d, cout_p)], 1)
    return (w_nbr.astype(jnp.bfloat16), w_ctr.astype(jnp.bfloat16), cout, cout_p)


def _make_point_weights(key, cin, cout):
    # Last layer: share_nonlinearity=True -> a single direction channel, kept as
    # one column (sliced + broadcast in-kernel instead of tiling across cout).
    cout_p = _round_up(cout, 128)
    k1, k2 = jax.random.split(key)
    bound = float(cin) ** -0.5
    wf = jax.random.uniform(k1, (cout, cin), jnp.float32, -bound, bound)
    wd = jax.random.uniform(k2, (1, cin), jnp.float32, -bound, bound)
    w_cat = jnp.concatenate([_pad_cols(wf.T, cout_p), _pad_cols(wd.T, 128)], 1)
    return (w_cat.astype(jnp.bfloat16), cout, cout_p)


def init_params(key, dims):
    # Mirrors VNDGCNNEncoder.__init__: VNLinearLeakyReLU(2*prev, dim) edge convs,
    # then VNLinearLeakyReLU(sum(dims[1:-1]), dims[-1], share_nonlinearity=True).
    assert dims[0] == 1, "dims[0] must be 1 (x.unsqueeze(1))"
    edge_params = []
    prev = dims[0]
    for d in dims[1:-1]:
        key, sub = jax.random.split(key)
        edge_params.append(_make_edge_weights(sub, prev, d))
        prev = d
    key, sub = jax.random.split(key)
    last_param = _make_point_weights(sub, sum(dims[1:-1]), dims[-1])
    return edge_params, last_param


def vn_dgcnn_encoder(x, params, num_neighbors):
    # x: [B, 3, N]  (same as the PyTorch forward input, before unsqueeze(1))
    edge_params, last_param = params
    x_ = x[:, :, :, None].astype(jnp.float32)                       # [B, 3, N, 1]
    xs = []
    for (w_nbr, w_ctr, cout, cout_p) in edge_params:
        nbr, ctr = get_graph_feature_neighbors(x_, num_neighbors)
        y = vn_edge_conv_mean_k(nbr, ctr, w_nbr, w_ctr, cout_p)     # [B,3,N,cout_p]
        x_ = y[..., :cout]                                          # drop zero pad
        xs.append(x_)
    xcat = jnp.concatenate(xs, axis=-1)                             # [B,3,N,sum]
    w_cat, cout_l, cout_lp = last_param
    out = vn_point_conv_mean_n(xcat, w_cat, cout_lp)                # [B,3,cout_lp]
    return jnp.transpose(out[..., :cout_l], (0, 2, 1))              # [B, C_last, 3]


# --------------------------------- main -------------------------------------

if __name__ == "__main__":
    # Small shapes consistent with the module (default dims [1,21,21,42,85,341]
    # scaled down; dims[0] must stay 1 because of x.unsqueeze(1)).
    dims = [1, 8, 8, 16, 32, 64]
    num_neighbors = 4
    B, N = 2, 16

    key = jax.random.PRNGKey(0)
    kx, kp = jax.random.split(key)
    x = jax.random.normal(kx, (B, 3, N), jnp.float32)
    params = init_params(kp, dims)

    fwd = jax.jit(functools.partial(vn_dgcnn_encoder, params=params,
                                    num_neighbors=num_neighbors))
    out = jax.block_until_ready(fwd(x))

    assert out.shape == (B, dims[-1], 3), out.shape
    assert bool(jnp.all(jnp.isfinite(out)))
    print("KERNEL_OK")
</pallas_src>

<mosaic_0001>
module attributes {stable_mosaic.version = 11 : i64} {
  func.func @_knn_score_kernel(%arg0: i32, %arg1: i32, %arg2: memref<1x16x8xf32, #tpu.memory_space<vmem>>, %arg3: memref<1x8x16xf32, #tpu.memory_space<vmem>>, %arg4: memref<1x1x16xf32, #tpu.memory_space<vmem>>, %arg5: memref<1x16x16xf32, #tpu.memory_space<vmem>>) attributes {dimension_semantics = [#tpu.dimension_semantics<parallel>, #tpu.dimension_semantics<parallel>], iteration_bounds = array<i64: 2, 1>, scalar_prefetch = 0 : i64, scratch_operands = 0 : i64, tpu.core_type = #tpu.core_type<tc>, window_params = [{transform_indices = @transform_0, window_bounds = array<i64: 1, 16, 8>}, {transform_indices = @transform_1, window_bounds = array<i64: 1, 8, 16>}, {transform_indices = @transform_2, window_bounds = array<i64: 1, 1, 16>}, {transform_indices = @transform_3, window_bounds = array<i64: 1, 16, 16>}]} {
    %c0 = arith.constant 0 : index
    %c0_0 = arith.constant 0 : index
    %c0_1 = arith.constant 0 : index
    %0 = vector.load %arg2[%c0, %c0_0, %c0_1] : memref<1x16x8xf32, #tpu.memory_space<vmem>>, vector<1x16x8xf32>
    %1 = vector.shape_cast %0 : vector<1x16x8xf32> to vector<16x8xf32>
    %c0_2 = arith.constant 0 : index
    %c0_3 = arith.constant 0 : index
    %c0_4 = arith.constant 0 : index
    %2 = vector.load %arg3[%c0_2, %c0_3, %c0_4] : memref<1x8x16xf32, #tpu.memory_space<vmem>>, vector<1x8x16xf32>
    %3 = vector.shape_cast %2 : vector<1x8x16xf32> to vector<8x16xf32>
    %cst = arith.constant dense<0.000000e+00> : vector<16x16xf32>
    %4 = tpu.matmul %1, %3, %cst {dimension_numbers = #tpu.dot_dimension_numbers<[1], [0], [0], [1], [0, 0, 1, 1], [], []>} : vector<16x8xf32>, vector<8x16xf32>, vector<16x16xf32> -> vector<16x16xf32>
    %cst_5 = arith.constant 2.000000e+00 : f32
    %5 = vector.broadcast %cst_5 : f32 to vector<16x16xf32>
    %6 = arith.mulf %5, %4 : vector<16x16xf32>
    %c0_6 = arith.constant 0 : index
    %c0_7 = arith.constant 0 : index
    %c0_8 = arith.constant 0 : index
    %7 = vector.load %arg4[%c0_6, %c0_7, %c0_8] : memref<1x1x16xf32, #tpu.memory_space<vmem>>, vector<1x1x16xf32>
    %8 = vector.shape_cast %7 : vector<1x1x16xf32> to vector<1x16xf32>
    %9 = vector.broadcast %8 : vector<1x16xf32> to vector<16x16xf32>
    %10 = arith.subf %6, %9 : vector<16x16xf32>
    %c0_9 = arith.constant 0 : index
    %c0_10 = arith.constant 0 : index
    %c0_11 = arith.constant 0 : index
    %11 = vector.load %arg5[%c0_9, %c0_10, %c0_11] : memref<1x16x16xf32, #tpu.memory_space<vmem>>, vector<1x16x16xf32>
    %12 = vector.shape_cast %11 : vector<1x16x16xf32> to vector<16x16xf32>
    %13 = vector.shape_cast %10 : vector<16x16xf32> to vector<1x16x16xf32>
    tpu.vector_store %arg5[%c0_9, %c0_10, %c0_11], %13 {strides = array<i32>} : memref<1x16x16xf32, #tpu.memory_space<vmem>>, vector<1x16x16xf32>,
    return
  }
  func.func @transform_0(%arg0: i32, %arg1: i32) -> (i32, i32, i32) {
    %c0_i32 = arith.constant 0 : i32
    %c0_i32_0 = arith.constant 0 : i32
    return %arg0, %arg1, %c0_i32 : i32, i32, i32
  }
  func.func @transform_1(%arg0: i32, %arg1: i32) -> (i32, i32, i32) {
    %c0_i32 = arith.constant 0 : i32
    %c0_i32_0 = arith.constant 0 : i32
    %c0_i32_1 = arith.constant 0 : i32
    return %arg0, %c0_i32, %c0_i32_0 : i32, i32, i32
  }
  func.func @transform_2(%arg0: i32, %arg1: i32) -> (i32, i32, i32) {
    %c0_i32 = arith.constant 0 : i32
    %c0_i32_0 = arith.constant 0 : i32
    %c0_i32_1 = arith.constant 0 : i32
    return %arg0, %c0_i32, %c0_i32_0 : i32, i32, i32
  }
  func.func @transform_3(%arg0: i32, %arg1: i32) -> (i32, i32, i32) {
    %c0_i32 = arith.constant 0 : i32
    %c0_i32_0 = arith.constant 0 : i32
    return %arg0, %arg1, %c0_i32 : i32, i32, i32
  }
}

module attributes {stable_mosaic.version = 11 : i64} {
  func.func @_edge_conv_kernel(%arg0: i32, %arg1: i32, %arg2: i32, %arg3: memref<1x4x3x16x1xbf16, #tpu.memory_space<vmem>>, %arg4: memref<1x3x16x1xbf16, #tpu.memory_space<vmem>>, %arg5: memref<1x256xbf16, #tpu.memory_space<vmem>>, %arg6: memref<1x256xbf16, #tpu.memory_space<vmem>>, %arg7: memref<1x3x16x128xf32, #tpu.memory_space<vmem>>, %arg8: memref<3x16x256xf32, #tpu.memory_space<vmem>>) attributes {dimension_semantics = [#tpu.dimension_semantics<parallel>, #tpu.dimension_semantics<parallel>, #tpu.dimension_semantics<arbitrary>], iteration_bounds = array<i64: 2, 1, 1>, scalar_prefetch = 0 : i64, scratch_operands = 1 : i64, tpu.core_type = #tpu.core_type<tc>, window_params = [{transform_indices = @transform_0, window_bounds = array<i64: 1, 4, 3, 16, 1>}, {transform_indices = @transform_1, window_bounds = array<i64: 1, 3, 16, 1>}, {pipeline_mode = #tpu.pipeline_mode<synchronous>, transform_indices = @transform_2, window_bounds = array<i64: 1, 256>}, {pipeline_mode = #tpu.pipeline_mode<synchronous>, transform_indices = @transform_3, window_bounds = array<i64: 1, 256>}, {transform_indices = @transform_4, window_bounds = array<i64: 1, 3, 16, 128>}]} {
    %c0_i32 = arith.constant 0 : i32
    %0 = arith.cmpi eq, %arg2, %c0_i32 : i32
    %1 = arith.extui %0 : i1 to i32
    %c0_i32_0 = arith.constant 0 : i32
    %2 = arith.cmpi ne, %1, %c0_i32_0 : i32
    scf.if %2 {
      %cst_94 = arith.constant 0.000000e+00 : f32
      %162 = vector.broadcast %cst_94 : f32 to vector<3x16x128xf32>
      %c0_95 = arith.constant 0 : index
      %c0_96 = arith.constant 0 : index
      %c0_97 = arith.constant 0 : index
      %c0_98 = arith.constant 0 : index
      %163 = vector.load %arg7[%c0_95, %c0_96, %c0_97, %c0_98] : memref<1x3x16x128xf32, #tpu.memory_space<vmem>>, vector<1x3x16x128xf32>
      %164 = vector.shape_cast %163 : vector<1x3x16x128xf32> to vector<3x16x128xf32>
      %165 = vector.shape_cast %162 : vector<3x16x128xf32> to vector<1x3x16x128xf32>
      tpu.vector_store %arg7[%c0_95, %c0_96, %c0_97, %c0_98], %165 {strides = array<i32>} : memref<1x3x16x128xf32, #tpu.memory_space<vmem>>, vector<1x3x16x128xf32>,
      %c0_99 = arith.constant 0 : index
      %c0_100 = arith.constant 0 : index
      %c0_101 = arith.constant 0 : index
      %c0_102 = arith.constant 0 : index
      %166 = vector.load %arg4[%c0_99, %c0_100, %c0_101, %c0_102] : memref<1x3x16x1xbf16, #tpu.memory_space<vmem>>, vector<1x3x16x1xbf16>
      %167 = vector.shape_cast %166 : vector<1x3x16x1xbf16> to vector<3x16x1xbf16>
      %c0_103 = arith.constant 0 : index
      %c0_104 = arith.constant 0 : index
      %168 = vector.load %arg6[%c0_103, %c0_104] : memref<1x256xbf16, #tpu.memory_space<vmem>>, vector<1x256xbf16>
      %169 = arith.extf %167 : vector<3x16x1xbf16> to vector<3x16x1xf32>
      %170 = arith.extf %168 : vector<1x256xbf16> to vector<1x256xf32>
      %171 = vector.shape_cast %170 : vector<1x256xf32> to vector<1x1x256xf32>
      %172 = vector.broadcast %169 : vector<3x16x1xf32> to vector<3x16x256xf32>
      %173 = vector.broadcast %171 : vector<1x1x256xf32> to vector<3x16x256xf32>
      %174 = arith.mulf %172, %173 : vector<3x16x256xf32>
      %c0_105 = arith.constant 0 : index
      %c0_106 = arith.constant 0 : index
      %c0_107 = arith.constant 0 : index
      %175 = vector.load %arg8[%c0_105, %c0_106, %c0_107] : memref<3x16x256xf32, #tpu.memory_space<vmem>>, vector<3x16x256xf32>
      tpu.vector_store %arg8[%c0_105, %c0_106, %c0_107], %174 {strides = array<i32>} : memref<3x16x256xf32, #tpu.memory_space<vmem>>, vector<3x16x256xf32>,
    } else {
    }
    %c0_i32_1 = arith.constant 0 : i32
    %c0 = arith.constant 0 : index
    %3 = arith.index_cast %c0_i32_1 : i32 to index
    %c0_2 = arith.constant 0 : index
    %c0_3 = arith.constant 0 : index
    %c0_4 = arith.constant 0 : index
    %4 = vector.load %arg3[%c0, %3, %c0_2, %c0_3, %c0_4] : memref<1x4x3x16x1xbf16, #tpu.memory_space<vmem>>, vector<1x1x3x16x1xbf16>
    %5 = vector.shape_cast %4 : vector<1x1x3x16x1xbf16> to vector<3x16x1xbf16>
    %c0_5 = arith.constant 0 : index
    %c0_6 = arith.constant 0 : index
    %6 = vector.load %arg5[%c0_5, %c0_6] : memref<1x256xbf16, #tpu.memory_space<vmem>>, vector<1x256xbf16>
    %7 = arith.extf %5 : vector<3x16x1xbf16> to vector<3x16x1xf32>
    %8 = arith.extf %6 : vector<1x256xbf16> to vector<1x256xf32>
    %9 = vector.shape_cast %8 : vector<1x256xf32> to vector<1x1x256xf32>
    %10 = vector.broadcast %7 : vector<3x16x1xf32> to vector<3x16x256xf32>
    %11 = vector.broadcast %9 : vector<1x1x256xf32> to vector<3x16x256xf32>
    %12 = arith.mulf %10, %11 : vector<3x16x256xf32>
    %c0_7 = arith.constant 0 : index
    %c0_8 = arith.constant 0 : index
    %c0_9 = arith.constant 0 : index
    %13 = vector.load %arg8[%c0_7, %c0_8, %c0_9] : memref<3x16x256xf32, #tpu.memory_space<vmem>>, vector<3x16x256xf32>
    %14 = arith.addf %12, %13 : vector<3x16x256xf32>
    %15 = vector.extract_strided_slice %14 {offsets = [0, 0, 0], sizes = [3, 16, 128], strides = [1, 1, 1]} : vector<3x16x256xf32> to vector<3x16x128xf32>
    %16 = vector.extract_strided_slice %14 {offsets = [0, 0, 128], sizes = [3, 16, 128], strides = [1, 1, 1]} : vector<3x16x256xf32> to vector<3x16x128xf32>
    %c0_10 = arith.constant 0 : index
    %c0_11 = arith.constant 0 : index
    %c0_12 = arith.constant 0 : index
    %c0_13 = arith.constant 0 : index
    %17 = vector.load %arg7[%c0_10, %c0_11, %c0_12, %c0_13] : memref<1x3x16x128xf32, #tpu.memory_space<vmem>>, vector<1x3x16x128xf32>
    %18 = vector.shape_cast %17 : vector<1x3x16x128xf32> to vector<3x16x128xf32>
    %19 = arith.mulf %15, %16 : vector<3x16x128xf32>
    %cst = arith.constant dense<0.000000e+00> : vector<16x128xf32>
    %20 = vector.multi_reduction <add>, %19, %cst [0] : vector<3x16x128xf32> to vector<16x128xf32>
    %21 = vector.shape_cast %20 : vector<16x128xf32> to vector<1x16x128xf32>
    %22 = arith.mulf %16, %16 : vector<3x16x128xf32>
    %cst_14 = arith.constant dense<0.000000e+00> : vector<16x128xf32>
    %23 = vector.multi_reduction <add>, %22, %cst_14 [0] : vector<3x16x128xf32> to vector<16x128xf32>
    %24 = vector.shape_cast %23 : vector<16x128xf32> to vector<1x16x128xf32>
    %cst_15 = arith.constant 0.000000e+00 : f32
    %25 = vector.broadcast %cst_15 : f32 to vector<1x16x128xf32>
    %26 = arith.cmpf olt, %21, %25 : vector<1x16x128xf32>
    %cst_16 = arith.constant 0.000000e+00 : f32
    %27 = vector.broadcast %cst_16 : f32 to vector<1x16x128xf32>
    %28 = arith.select %26, %21, %27 : vector<1x16x128xi1>, vector<1x16x128xf32>
    %cst_17 = arith.constant 9.99999997E-7 : f32
    %29 = vector.broadcast %cst_17 : f32 to vector<1x16x128xf32>
    %30 = arith.addf %24, %29 : vector<1x16x128xf32>
    %31 = tpu.reciprocal %30 {approx = true} : vector<1x16x128xf32> -> vector<1x16x128xf32>
    %32 = arith.mulf %28, %31 : vector<1x16x128xf32>
    %cst_18 = arith.constant 8.000000e-01 : f32
    %33 = vector.broadcast %cst_18 : f32 to vector<1x16x128xf32>
    %34 = arith.mulf %33, %32 : vector<1x16x128xf32>
    %35 = vector.broadcast %34 : vector<1x16x128xf32> to vector<3x16x128xf32>
    %36 = arith.mulf %35, %16 : vector<3x16x128xf32>
    %37 = arith.subf %15, %36 : vector<3x16x128xf32>
    %38 = arith.addf %18, %37 : vector<3x16x128xf32>
    %c0_19 = arith.constant 0 : index
    %c0_20 = arith.constant 0 : index
    %c0_21 = arith.constant 0 : index
    %c0_22 = arith.constant 0 : index
    %39 = vector.load %arg7[%c0_19, %c0_20, %c0_21, %c0_22] : memref<1x3x16x128xf32, #tpu.memory_space<vmem>>, vector<1x3x16x128xf32>
    %40 = vector.shape_cast %39 : vector<1x3x16x128xf32> to vector<3x16x128xf32>
    %41 = vector.shape_cast %38 : vector<3x16x128xf32> to vector<1x3x16x128xf32>
    tpu.vector_store %arg7[%c0_19, %c0_20, %c0_21, %c0_22], %41 {strides = array<i32>} : memref<1x3x16x128xf32, #tpu.memory_space<vmem>>, vector<1x3x16x128xf32>,
    %c1_i32 = arith.constant 1 : i32
    %c0_23 = arith.constant 0 : index
    %42 = arith.index_cast %c1_i32 : i32 to index
    %c0_24 = arith.constant 0 : index
    %c0_25 = arith.constant 0 : index
    %c0_26 = arith.constant 0 : index
    %43 = vector.load %arg3[%c0_23, %42, %c0_24, %c0_25, %c0_26] : memref<1x4x3x16x1xbf16, #tpu.memory_space<vmem>>, vector<1x1x3x16x1xbf16>
    %44 = vector.shape_cast %43 : vector<1x1x3x16x1xbf16> to vector<3x16x1xbf16>
    %c0_27 = arith.constant 0 : index
    %c0_28 = arith.constant 0 : index
    %45 = vector.load %arg5[%c0_27, %c0_28] : memref<1x256xbf16, #tpu.memory_space<vmem>>, vector<1x256xbf16>
    %46 = arith.extf %44 : vector<3x16x1xbf16> to vector<3x16x1xf32>
    %47 = arith.extf %45 : vector<1x256xbf16> to vector<1x256xf32>
    %48 = vector.shape_cast %47 : vector<1x256xf32> to vector<1x1x256xf32>
    %49 = vector.broadcast %46 : vector<3x16x1xf32> to vector<3x16x256xf32>
    %50 = vector.broadcast %48 : vector<1x1x256xf32> to vector<3x16x256xf32>
    %51 = arith.mulf %49, %50 : vector<3x16x256xf32>
    %c0_29 = arith.constant 0 : index
    %c0_30 = arith.constant 0 : index
    %c0_31 = arith.constant 0 : index
    %52 = vector.load %arg8[%c0_29, %c0_30, %c0_31] : memref<3x16x256xf32, #tpu.memory_space<vmem>>, vector<3x16x256xf32>
    %53 = arith.addf %51, %52 : vector<3x16x256xf32>
    %54 = vector.extract_strided_slice %53 {offsets = [0, 0, 0], sizes = [3, 16, 128], strides = [1, 1, 1]} : vector<3x16x256xf32> to vector<3x16x128xf32>
    %55 = vector.extract_strided_slice %53 {offsets = [0, 0, 128], sizes = [3, 16, 128], strides = [1, 1, 1]} : vector<3x16x256xf32> to vector<3x16x128xf32>
    %c0_32 = arith.constant 0 : index
    %c0_33 = arith.constant 0 : index
    %c0_34 = arith.constant 0 : index
    %c0_35 = arith.constant 0 : index
    %56 = vector.load %arg7[%c0_32, %c0_33, %c0_34, %c0_35] : memref<1x3x16x128xf32, #tpu.memory_space<vmem>>, vector<1x3x16x128xf32>
    %57 = vector.shape_cast %56 : vector<1x3x16x128xf32> to vector<3x16x128xf32>
    %58 = arith.mulf %54, %55 : vector<3x16x128xf32>
    %cst_36 = arith.constant dense<0.000000e+00> : vector<16x128xf32>
    %59 = vector.multi_reduction <add>, %58, %cst_36 [0] : vector<3x16x128xf32> to vector<16x128xf32>
    %60 = vector.shape_cast %59 : vector<16x128xf32> to vector<1x16x128xf32>
    %61 = arith.mulf %55, %55 : vector<3x16x128xf32>
    %cst_37 = arith.constant dense<0.000000e+00> : vector<16x128xf32>
    %62 = vector.multi_reduction <add>, %61, %cst_37 [0] : vector<3x16x128xf32> to vector<16x128xf32>
    %63 = vector.shape_cast %62 : vector<16x128xf32> to vector<1x16x128xf32>
    %cst_38 = arith.constant 0.000000e+00 : f32
    %64 = vector.broadcast %cst_38 : f32 to vector<1x16x128xf32>
    %65 = arith.cmpf olt, %60, %64 : vector<1x16x128xf32>
    %cst_39 = arith.constant 0.000000e+00 : f32
    %66 = vector.broadcast %cst_39 : f32 to vector<1x16x128xf32>
    %67 = arith.select %65, %60, %66 : vector<1x16x128xi1>, vector<1x16x128xf32>
    %cst_40 = arith.constant 9.99999997E-7 : f32
    %68 = vector.broadcast %cst_40 : f32 to vector<1x16x128xf32>
    %69 = arith.addf %63, %68 : vector<1x16x128xf32>
    %70 = tpu.reciprocal %69 {approx = true} : vector<1x16x128xf32> -> vector<1x16x128xf32>
    %71 = arith.mulf %67, %70 : vector<1x16x128xf32>
    %cst_41 = arith.constant 8.000000e-01 : f32
    %72 = vector.broadcast %cst_41 : f32 to vector<1x16x128xf32>
    %73 = arith.mulf %72, %71 : vector<1x16x128xf32>
    %74 = vector.broadcast %73 : vector<1x16x128xf32> to vector<3x16x128xf32>
    %75 = arith.mulf %74, %55 : vector<3x16x128xf32>
    %76 = arith.subf %54, %75 : vector<3x16x128xf32>
    %77 = arith.addf %57, %76 : vector<3x16x128xf32>
    %c0_42 = arith.constant 0 : index
    %c0_43 = arith.constant 0 : index
    %c0_44 = arith.constant 0 : index
    %c0_45 = arith.constant 0 : index
    %78 = vector.load %arg7[%c0_42, %c0_43, %c0_44, %c0_45] : memref<1x3x16x128xf32, #tpu.memory_space<vmem>>, vector<1x3x16x128xf32>
    %79 = vector.shape_cast %78 : vector<1x3x16x128xf32> to vector<3x16x128xf32>
    %80 = vector.shape_cast %77 : vector<3x16x128xf32> to vector<1x3x16x128xf32>
    tpu.vector_store %arg7[%c0_42, %c0_43, %c0_44, %c0_45], %80 {strides = array<i32>} : memref<1x3x16x128xf32, #tpu.memory_space<vmem>>, vector<1x3x16x128xf32>,
    %c2_i32 = arith.constant 2 : i32
    %c0_46 = arith.constant 0 : index
    %81 = arith.index_cast %c2_i32 : i32 to index
    %c0_47 = arith.constant 0 : index
    %c0_48 = arith.constant 0 : index
    %c0_49 = arith.constant 0 : index
    %82 = vector.load %arg3[%c0_46, %81, %c0_47, %c0_48, %c0_49] : memref<1x4x3x16x1xbf16, #tpu.memory_space<vmem>>, vector<1x1x3x16x1xbf16>
    %83 = vector.shape_cast %82 : vector<1x1x3x16x1xbf16> to vector<3x16x1xbf16>
    %c0_50 = arith.constant 0 : index
    %c0_51 = arith.constant 0 : index
    %84 = vector.load %arg5[%c0_50, %c0_51] : memref<1x256xbf16, #tpu.memory_space<vmem>>, vector<1x256xbf16>
    %85 = arith.extf %83 : vector<3x16x1xbf16> to vector<3x16x1xf32>
    %86 = arith.extf %84 : vector<1x256xbf16> to vector<1x256xf32>
    %87 = vector.shape_cast %86 : vector<1x256xf32> to vector<1x1x256xf32>
    %88 = vector.broadcast %85 : vector<3x16x1xf32> to vector<3x16x256xf32>
    %89 = vector.broadcast %87 : vector<1x1x256xf32> to vector<3x16x256xf32>
    %90 = arith.mulf %88, %89 : vector<3x16x256xf32>
    %c0_52 = arith.constant 0 : index
    %c0_53 = arith.constant 0 : index
    %c0_54 = arith.constant 0 : index
    %91 = vector.load %arg8[%c0_52, %c0_53, %c0_54] : memref<3x16x256xf32, #tpu.memory_space<vmem>>, vector<3x16x256xf32>
    %92 = arith.addf %90, %91 : vector<3x16x256xf32>
    %93 = vector.extract_strided_slice %92 {offsets = [0, 0, 0], sizes = [3, 16, 128], strides = [1, 1, 1]} : vector<3x16x256xf32> to vector<3x16x128xf32>
    %94 = vector.extract_strided_slice %92 {offsets = [0, 0, 128], sizes = [3, 16, 128], strides = [1, 1, 1]} : vector<3x16x256xf32> to vector<3x16x128xf32>
    %c0_55 = arith.constant 0 : index
    %c0_56 = arith.constant 0 : index
    %c0_57 = arith.constant 0 : index
    %c0_58 = arith.constant 0 : index
    %95 = vector.load %arg7[%c0_55, %c0_56, %c0_57, %c0_58] : memref<1x3x16x128xf32, #tpu.memory_space<vmem>>, vector<1x3x16x128xf32>
    %96 = vector.shape_cast %95 : vector<1x3x16x128xf32> to vector<3x16x128xf32>
    %97 = arith.mulf %93, %94 : vector<3x16x128xf32>
    %cst_59 = arith.constant dense<0.000000e+00> : vector<16x128xf32>
    %98 = vector.multi_reduction <add>, %97, %cst_59 [0] : vector<3x16x128xf32> to vector<16x128xf32>
    %99 = vector.shape_cast %98 : vector<16x128xf32> to vector<1x16x128xf32>
    %100 = arith.mulf %94, %94 : vector<3x16x128xf32>
    %cst_60 = arith.constant dense<0.000000e+00> : vector<16x128xf32>
    %101 = vector.multi_reduction <add>, %100, %cst_60 [0] : vector<3x16x128xf32> to vector<16x128xf32>
    %102 = vector.shape_cast %101 : vector<16x128xf32> to vector<1x16x128xf32>
    %cst_61 = arith.constant 0.000000e+00 : f32
    %103 = vector.broadcast %cst_61 : f32 to vector<1x16x128xf32>
    %104 = arith.cmpf olt, %99, %103 : vector<1x16x128xf32>
    %cst_62 = arith.constant 0.000000e+00 : f32
    %105 = vector.broadcast %cst_62 : f32 to vector<1x16x128xf32>
    %106 = arith.select %104, %99, %105 : vector<1x16x128xi1>, vector<1x16x128xf32>
    %cst_63 = arith.constant 9.99999997E-7 : f32
    %107 = vector.broadcast %cst_63 : f32 to vector<1x16x128xf32>
    %108 = arith.addf %102, %107 : vector<1x16x128xf32>
    %109 = tpu.reciprocal %108 {approx = true} : vector<1x16x128xf32> -> vector<1x16x128xf32>
    %110 = arith.mulf %106, %109 : vector<1x16x128xf32>
    %cst_64 = arith.constant 8.000000e-01 : f32
    %111 = vector.broadcast %cst_64 : f32 to vector<1x16x128xf32>
    %112 = arith.mulf %111, %110 : vector<1x16x128xf32>
    %113 = vector.broadcast %112 : vector<1x16x128xf32> to vector<3x16x128xf32>
    %114 = arith.mulf %113, %94 : vector<3x16x128xf32>
    %115 = arith.subf %93, %114 : vector<3x16x128xf32>
    %116 = arith.addf %96, %115 : vector<3x16x128xf32>
    %c0_65 = arith.constant 0 : index
    %c0_66 = arith.constant 0 : index
    %c0_67 = arith.constant 0 : index
    %c0_68 = arith.constant 0 : index
    %117 = vector.load %arg7[%c0_65, %c0_66, %c0_67, %c0_68] : memref<1x3x16x128xf32, #tpu.memory_space<vmem>>, vector<1x3x16x128xf32>
    %118 = vector.shape_cast %117 : vector<1x3x16x128xf32> to vector<3x16x128xf32>
    %119 = vector.shape_cast %116 : vector<3x16x128xf32> to vector<1x3x16x128xf32>
    tpu.vector_store %arg7[%c0_65, %c0_66, %c0_67, %c0_68], %119 {strides = array<i32>} : memref<1x3x16x128xf32, #tpu.memory_space<vmem>>, vector<1x3x16x128xf32>,
    %c3_i32 = arith.constant 3 : i32
    %c0_69 = arith.constant 0 : index
    %120 = arith.index_cast %c3_i32 : i32 to index
    %c0_70 = arith.constant 0 : index
    %c0_71 = arith.constant 0 : index
    %c0_72 = arith.constant 0 : index
    %121 = vector.load %arg3[%c0_69, %120, %c0_70, %c0_71, %c0_72] : memref<1x4x3x16x1xbf16, #tpu.memory_space<vmem>>, vector<1x1x3x16x1xbf16>
    %122 = vector.shape_cast %121 : vector<1x1x3x16x1xbf16> to vector<3x16x1xbf16>
    %c0_73 = arith.constant 0 : index
    %c0_74 = arith.constant 0 : index
    %123 = vector.load %arg5[%c0_73, %c0_74] : memref<1x256xbf16, #tpu.memory_space<vmem>>, vector<1x256xbf16>
    %124 = arith.extf %122 : vector<3x16x1xbf16> to vector<3x16x1xf32>
    %125 = arith.extf %123 : vector<1x256xbf16> to vector<1x256xf32>
    %126 = vector.shape_cast %125 : vector<1x256xf32> to vector<1x1x256xf32>
    %127 = vector.broadcast %124 : vector<3x16x1xf32> to vector<3x16x256xf32>
    %128 = vector.broadcast %126 : vector<1x1x256xf32> to vector<3x16x256xf32>
    %129 = arith.mulf %127, %128 : vector<3x16x256xf32>
    %c0_75 = arith.constant 0 : index
    %c0_76 = arith.constant 0 : index
    %c0_77 = arith.constant 0 : index
    %130 = vector.load %arg8[%c0_75, %c0_76, %c0_77] : memref<3x16x256xf32, #tpu.memory_space<vmem>>, vector<3x16x256xf32>
    %131 = arith.addf %129, %130 : vector<3x16x256xf32>
    %132 = vector.extract_strided_slice %131 {offsets = [0, 0, 0], sizes = [3, 16, 128], strides = [1, 1, 1]} : vector<3x16x256xf32> to vector<3x16x128xf32>
    %133 = vector.extract_strided_slice %131 {offsets = [0, 0, 128], sizes = [3, 16, 128], strides = [1, 1, 1]} : vector<3x16x256xf32> to vector<3x16x128xf32>
    %c0_78 = arith.constant 0 : index
    %c0_79 = arith.constant 0 : index
    %c0_80 = arith.constant 0 : index
    %c0_81 = arith.constant 0 : index
    %134 = vector.load %arg7[%c0_78, %c0_79, %c0_80, %c0_81] : memref<1x3x16x128xf32, #tpu.memory_space<vmem>>, vector<1x3x16x128xf32>
    %135 = vector.shape_cast %134 : vector<1x3x16x128xf32> to vector<3x16x128xf32>
    %136 = arith.mulf %132, %133 : vector<3x16x128xf32>
    %cst_82 = arith.constant dense<0.000000e+00> : vector<16x128xf32>
    %137 = vector.multi_reduction <add>, %136, %cst_82 [0] : vector<3x16x128xf32> to vector<16x128xf32>
    %138 = vector.shape_cast %137 : vector<16x128xf32> to vector<1x16x128xf32>
    %139 = arith.mulf %133, %133 : vector<3x16x128xf32>
    %cst_83 = arith.constant dense<0.000000e+00> : vector<16x128xf32>
    %140 = vector.multi_reduction <add>, %139, %cst_83 [0] : vector<3x16x128xf32> to vector<16x128xf32>
    %141 = vector.shape_cast %140 : vector<16x128xf32> to vector<1x16x128xf32>
    %cst_84 = arith.constant 0.000000e+00 : f32
    %142 = vector.broadcast %cst_84 : f32 to vector<1x16x128xf32>
    %143 = arith.cmpf olt, %138, %142 : vector<1x16x128xf32>
    %cst_85 = arith.constant 0.000000e+00 : f32
    %144 = vector.broadcast %cst_85 : f32 to vector<1x16x128xf32>
    %145 = arith.select %143, %138, %144 : vector<1x16x128xi1>, vector<1x16x128xf32>
    %cst_86 = arith.constant 9.99999997E-7 : f32
    %146 = vector.broadcast %cst_86 : f32 to vector<1x16x128xf32>
    %147 = arith.addf %141, %146 : vector<1x16x128xf32>
    %148 = tpu.reciprocal %147 {approx = true} : vector<1x16x128xf32> -> vector<1x16x128xf32>
    %149 = arith.mulf %145, %148 : vector<1x16x128xf32>
    %cst_87 = arith.constant 8.000000e-01 : f32
    %150 = vector.broadcast %cst_87 : f32 to vector<1x16x128xf32>
    %151 = arith.mulf %150, %149 : vector<1x16x128xf32>
    %152 = vector.broadcast %151 : vector<1x16x128xf32> to vector<3x16x128xf32>
    %153 = arith.mulf %152, %133 : vector<3x16x128xf32>
    %154 = arith.subf %132, %153 : vector<3x16x128xf32>
    %155 = arith.addf %135, %154 : vector<3x16x128xf32>
    %c0_88 = arith.constant 0 : index
    %c0_89 = arith.constant 0 : index
    %c0_90 = arith.constant 0 : index
    %c0_91 = arith.constant 0 : index
    %156 = vector.load %arg7[%c0_88, %c0_89, %c0_90, %c0_91] : memref<1x3x16x128xf32, #tpu.memory_space<vmem>>, vector<1x3x16x128xf32>
    %157 = vector.shape_cast %156 : vector<1x3x16x128xf32> to vector<3x16x128xf32>
    %158 = vector.shape_cast %155 : vector<3x16x128xf32> to vector<1x3x16x128xf32>
    tpu.vector_store %arg7[%c0_88, %c0_89, %c0_90, %c0_91], %158 {strides = array<i32>} : memref<1x3x16x128xf32, #tpu.memory_space<vmem>>, vector<1x3x16x128xf32>,
    %c4_i32 = arith.constant 4 : i32
    %c0_i32_92 = arith.constant 0 : i32
    %159 = arith.cmpi eq, %arg2, %c0_i32_92 : i32
    %160 = arith.extui %159 : i1 to i32
    %c0_i32_93 = arith.constant 0 : i32
    %161 = arith.cmpi ne, %160, %c0_i32_93 : i32
    scf.if %161 {
      %c0_94 = arith.constant 0 : index
      %c0_95 = arith.constant 0 : index
      %c0_96 = arith.constant 0 : index
      %c0_97 = arith.constant 0 : index
      %162 = vector.load %arg7[%c0_94, %c0_95, %c0_96, %c0_97] : memref<1x3x16x128xf32, #tpu.memory_space<vmem>>, vector<1x3x16x128xf32>
      %163 = vector.shape_cast %162 : vector<1x3x16x128xf32> to vector<3x16x128xf32>
      %cst_98 = arith.constant 2.500000e-01 : f32
      %164 = vector.broadcast %cst_98 : f32 to vector<3x16x128xf32>
      %165 = arith.mulf %163, %164 : vector<3x16x128xf32>
      %c0_99 = arith.constant 0 : index
      %c0_100 = arith.constant 0 : index
      %c0_101 = arith.constant 0 : index
      %c0_102 = arith.constant 0 : index
      %166 = vector.load %arg7[%c0_99, %c0_100, %c0_101, %c0_102] : memref<1x3x16x128xf32, #tpu.memory_space<vmem>>, vector<1x3x16x128xf32>
      %167 = vector.shape_cast %166 : vector<1x3x16x128xf32> to vector<3x16x128xf32>
      %168 = vector.shape_cast %165 : vector<3x16x128xf32> to vector<1x3x16x128xf32>
      tpu.vector_store %arg7[%c0_99, %c0_100, %c0_101, %c0_102], %168 {strides = array<i32>} : memref<1x3x16x128xf32, #tpu.memory_space<vmem>>, vector<1x3x16x128xf32>,
    } else {
    }
    return
  }
  func.func @transform_0(%arg0: i32, %arg1: i32, %arg2: i32) -> (i32, i32, i32, i32, i32) {
    %c0_i32 = arith.constant 0 : i32
    %c0_i32_0 = arith.constant 0 : i32
    %c0_i32_1 = arith.constant 0 : i32
    return %arg0, %arg2, %c0_i32, %arg1, %c0_i32_0 : i32, i32, i32, i32, i32
  }
  func.func @transform_1(%arg0: i32, %arg1: i32, %arg2: i32) -> (i32, i32, i32, i32) {
    %c0_i32 = arith.constant 0 : i32
    %c0_i32_0 = arith.constant 0 : i32
    %c0_i32_1 = arith.constant 0 : i32
    return %arg0, %c0_i32, %arg1, %c0_i32_0 : i32, i32, i32, i32
  }
  func.func @transform_2(%arg0: i32, %arg1: i32, %arg2: i32) -> (i32, i32) {
    %c0_i32 = arith.constant 0 : i32
    %c0_i32_0 = arith.constant 0 : i32
    %c0_i32_1 = arith.constant 0 : i32
    return %c0_i32, %c0_i32_0 : i32, i32
  }
  func.func @transform_3(%arg0: i32, %arg1: i32, %arg2: i32) -> (i32, i32) {
    %c0_i32 = arith.constant 0 : i32
    %c0_i32_0 = arith.constant 0 : i32
    %c0_i32_1 = arith.constant 0 : i32
    return %c0_i32, %c0_i32_0 : i32, i32
  }
  func.func @transform_4(%arg0: i32, %arg1: i32, %arg2: i32) -> (i32, i32, i32, i32) {
    %c0_i32 = arith.constant 0 : i32
    %c0_i32_0 = arith.constant 0 : i32
    %c0_i32_1 = arith.constant 0 : i32
    return %arg0, %c0_i32, %arg1, %c0_i32_0 : i32, i32, i32, i32
  }
}

module attributes {stable_mosaic.version = 11 : i64} {
  func.func @_knn_score_kernel(%arg0: i32, %arg1: i32, %arg2: memref<1x16x24xf32, #tpu.memory_space<vmem>>, %arg3: memref<1x24x16xf32, #tpu.memory_space<vmem>>, %arg4: memref<1x1x16xf32, #tpu.memory_space<vmem>>, %arg5: memref<1x16x16xf32, #tpu.memory_space<vmem>>) attributes {dimension_semantics = [#tpu.dimension_semantics<parallel>, #tpu.dimension_semantics<parallel>], iteration_bounds = array<i64: 2, 1>, scalar_prefetch = 0 : i64, scratch_operands = 0 : i64, tpu.core_type = #tpu.core_type<tc>, window_params = [{transform_indices = @transform_0, window_bounds = array<i64: 1, 16, 24>}, {transform_indices = @transform_1, window_bounds = array<i64: 1, 24, 16>}, {transform_indices = @transform_2, window_bounds = array<i64: 1, 1, 16>}, {transform_indices = @transform_3, window_bounds = array<i64: 1, 16, 16>}]} {
    %c0 = arith.constant 0 : index
    %c0_0 = arith.constant 0 : index
    %c0_1 = arith.constant 0 : index
    %0 = vector.load %arg2[%c0, %c0_0, %c0_1] : memref<1x16x24xf32, #tpu.memory_space<vmem>>, vector<1x16x24xf32>
    %1 = vector.shape_cast %0 : vector<1x16x24xf32> to vector<16x24xf32>
    %c0_2 = arith.constant 0 : index
    %c0_3 = arith.constant 0 : index
    %c0_4 = arith.constant 0 : index
    %2 = vector.load %arg3[%c0_2, %c0_3, %c0_4] : memref<1x24x16xf32, #tpu.memory_space<vmem>>, vector<1x24x16xf32>
    %3 = vector.shape_cast %2 : vector<1x24x16xf32> to vector<24x16xf32>
    %cst = arith.constant dense<0.000000e+00> : vector<16x16xf32>
    %4 = tpu.matmul %1, %3, %cst {dimension_numbers = #tpu.dot_dimension_numbers<[1], [0], [0], [1], [0, 0, 1, 1], [], []>} : vector<16x24xf32>, vector<24x16xf32>, vector<16x16xf32> -> vector<16x16xf32>
    %cst_5 = arith.constant 2.000000e+00 : f32
    %5 = vector.broadcast %cst_5 : f32 to vector<16x16xf32>
    %6 = arith.mulf %5, %4 : vector<16x16xf32>
    %c0_6 = arith.constant 0 : index
    %c0_7 = arith.constant 0 : index
    %c0_8 = arith.constant 0 : index
    %7 = vector.load %arg4[%c0_6, %c0_7, %c0_8] : memref<1x1x16xf32, #tpu.memory_space<vmem>>, vector<1x1x16xf32>
    %8 = vector.shape_cast %7 : vector<1x1x16xf32> to vector<1x16xf32>
    %9 = vector.broadcast %8 : vector<1x16xf32> to vector<16x16xf32>
    %10 = arith.subf %6, %9 : vector<16x16xf32>
    %c0_9 = arith.constant 0 : index
    %c0_10 = arith.constant 0 : index
    %c0_11 = arith.constant 0 : index
    %11 = vector.load %arg5[%c0_9, %c0_10, %c0_11] : memref<1x16x16xf32, #tpu.memory_space<vmem>>, vector<1x16x16xf32>
    %12 = vector.shape_cast %11 : vector<1x16x16xf32> to vector<16x16xf32>
    %13 = vector.shape_cast %10 : vector<16x16xf32> to vector<1x16x16xf32>
    tpu.vector_store %arg5[%c0_9, %c0_10, %c0_11], %13 {strides = array<i32>} : memref<1x16x16xf32, #tpu.memory_space<vmem>>, vector<1x16x16xf32>,
    return
  }
  func.func @transform_0(%arg0: i32, %arg1: i32) -> (i32, i32, i32) {
    %c0_i32 = arith.constant 0 : i32
    %c0_i32_0 = arith.constant 0 : i32
    return %arg0, %arg1, %c0_i32 : i32, i32, i32
  }
  func.func @transform_1(%arg0: i32, %arg1: i32) -> (i32, i32, i32) {
    %c0_i32 = arith.constant 0 : i32
    %c0_i32_0 = arith.constant 0 : i32
    %c0_i32_1 = arith.constant 0 : i32
    return %arg0, %c0_i32, %c0_i32_0 : i32, i32, i32
  }
  func.func @transform_2(%arg0: i32, %arg1: i32) -> (i32, i32, i32) {
    %c0_i32 = arith.constant 0 : i32
    %c0_i32_0 = arith.constant 0 : i32
    %c0_i32_1 = arith.constant 0 : i32
    return %arg0, %c0_i32, %c0_i32_0 : i32, i32, i32
  }
  func.func @transform_3(%arg0: i32, %arg1: i32) -> (i32, i32, i32) {
    %c0_i32 = arith.constant 0 : i32
    %c0_i32_0 = arith.constant 0 : i32
    return %arg0, %arg1, %c0_i32 : i32, i32, i32
  }
}

module attributes {stable_mosaic.version = 11 : i64} {
  func.func @_edge_conv_kernel(%arg0: i32, %arg1: i32, %arg2: i32, %arg3: memref<1x4x3x16x8xbf16, #tpu.memory_space<vmem>>, %arg4: memref<1x3x16x8xbf16, #tpu.memory_space<vmem>>, %arg5: memref<8x256xbf16, #tpu.memory_space<vmem>>, %arg6: memref<8x256xbf16, #tpu.memory_space<vmem>>, %arg7: memref<1x3x16x128xf32, #tpu.memory_space<vmem>>, %arg8: memref<3x16x256xf32, #tpu.memory_space<vmem>>) attributes {dimension_semantics = [#tpu.dimension_semantics<parallel>, #tpu.dimension_semantics<parallel>, #tpu.dimension_semantics<arbitrary>], iteration_bounds = array<i64: 2, 1, 1>, scalar_prefetch = 0 : i64, scratch_operands = 1 : i64, tpu.core_type = #tpu.core_type<tc>, window_params = [{transform_indices = @transform_0, window_bounds = array<i64: 1, 4, 3, 16, 8>}, {transform_indices = @transform_1, window_bounds = array<i64: 1, 3, 16, 8>}, {pipeline_mode = #tpu.pipeline_mode<synchronous>, transform_indices = @transform_2, window_bounds = array<i64: 8, 256>}, {pipeline_mode = #tpu.pipeline_mode<synchronous>, transform_indices = @transform_3, window_bounds = array<i64: 8, 256>}, {transform_indices = @transform_4, window_bounds = array<i64: 1, 3, 16, 128>}]} {
    %c0_i32 = arith.constant 0 : i32
    %0 = arith.cmpi eq, %arg2, %c0_i32 : i32
    %1 = arith.extui %0 : i1 to i32
    %c0_i32_0 = arith.constant 0 : i32
    %2 = arith.cmpi ne, %1, %c0_i32_0 : i32
    scf.if %2 {
      %cst_98 = arith.constant 0.000000e+00 : f32
      %150 = vector.broadcast %cst_98 : f32 to vector<3x16x128xf32>
      %c0_99 = arith.constant 0 : index
      %c0_100 = arith.constant 0 : index
      %c0_101 = arith.constant 0 : index
      %c0_102 = arith.constant 0 : index
      %151 = vector.load %arg7[%c0_99, %c0_100, %c0_101, %c0_102] : memref<1x3x16x128xf32, #tpu.memory_space<vmem>>, vector<1x3x16x128xf32>
      %152 = vector.shape_cast %151 : vector<1x3x16x128xf32> to vector<3x16x128xf32>
      %153 = vector.shape_cast %150 : vector<3x16x128xf32> to vector<1x3x16x128xf32>
      tpu.vector_store %arg7[%c0_99, %c0_100, %c0_101, %c0_102], %153 {strides = array<i32>} : memref<1x3x16x128xf32, #tpu.memory_space<vmem>>, vector<1x3x16x128xf32>,
      %c0_103 = arith.constant 0 : index
      %c0_104 = arith.constant 0 : index
      %c0_105 = arith.constant 0 : index
      %c0_106 = arith.constant 0 : index
      %154 = vector.load %arg4[%c0_103, %c0_104, %c0_105, %c0_106] : memref<1x3x16x8xbf16, #tpu.memory_space<vmem>>, vector<1x3x16x8xbf16>
      %155 = vector.shape_cast %154 : vector<1x3x16x8xbf16> to vector<3x16x8xbf16>
      %c0_107 = arith.constant 0 : index
      %c0_108 = arith.constant 0 : index
      %156 = vector.load %arg6[%c0_107, %c0_108] : memref<8x256xbf16, #tpu.memory_space<vmem>>, vector<8x256xbf16>
      %157 = vector.shape_cast %155 : vector<3x16x8xbf16> to vector<48x8xbf16>
      %cst_109 = arith.constant dense<0.000000e+00> : vector<48x256xf32>
      %158 = tpu.matmul %157, %156, %cst_109 {dimension_numbers = #tpu.dot_dimension_numbers<[1], [0], [0], [1], [0, 0, 1, 1], [], []>} : vector<48x8xbf16>, vector<8x256xbf16>, vector<48x256xf32> -> vector<48x256xf32>
      %159 = vector.shape_cast %158 : vector<48x256xf32> to vector<3x16x256xf32>
      %c0_110 = arith.constant 0 : index
      %c0_111 = arith.constant 0 : index
      %c0_112 = arith.constant 0 : index
      %160 = vector.load %arg8[%c0_110, %c0_111, %c0_112] : memref<3x16x256xf32, #tpu.memory_space<vmem>>, vector<3x16x256xf32>
      tpu.vector_store %arg8[%c0_110, %c0_111, %c0_112], %159 {strides = array<i32>} : memref<3x16x256xf32, #tpu.memory_space<vmem>>, vector<3x16x256xf32>,
    } else {
    }
    %c0_i32_1 = arith.constant 0 : i32
    %c0 = arith.constant 0 : index
    %3 = arith.index_cast %c0_i32_1 : i32 to index
    %c0_2 = arith.constant 0 : index
    %c0_3 = arith.constant 0 : index
    %c0_4 = arith.constant 0 : index
    %4 = vector.load %arg3[%c0, %3, %c0_2, %c0_3, %c0_4] : memref<1x4x3x16x8xbf16, #tpu.memory_space<vmem>>, vector<1x1x3x16x8xbf16>
    %5 = vector.shape_cast %4 : vector<1x1x3x16x8xbf16> to vector<3x16x8xbf16>
    %c0_5 = arith.constant 0 : index
    %c0_6 = arith.constant 0 : index
    %6 = vector.load %arg5[%c0_5, %c0_6] : memref<8x256xbf16, #tpu.memory_space<vmem>>, vector<8x256xbf16>
    %7 = vector.shape_cast %5 : vector<3x16x8xbf16> to vector<48x8xbf16>
    %cst = arith.constant dense<0.000000e+00> : vector<48x256xf32>
    %8 = tpu.matmul %7, %6, %cst {dimension_numbers = #tpu.dot_dimension_numbers<[1], [0], [0], [1], [0, 0, 1, 1], [], []>} : vector<48x8xbf16>, vector<8x256xbf16>, vector<48x256xf32> -> vector<48x256xf32>
    %9 = vector.shape_cast %8 : vector<48x256xf32> to vector<3x16x256xf32>
    %c0_7 = arith.constant 0 : index
    %c0_8 = arith.constant 0 : index
    %c0_9 = arith.constant 0 : index
    %10 = vector.load %arg8[%c0_7, %c0_8, %c0_9] : memref<3x16x256xf32, #tpu.memory_space<vmem>>, vector<3x16x256xf32>
    %11 = arith.addf %9, %10 : vector<3x16x256xf32>
    %12 = vector.extract_strided_slice %11 {offsets = [0, 0, 0], sizes = [3, 16, 128], strides = [1, 1, 1]} : vector<3x16x256xf32> to vector<3x16x128xf32>
    %13 = vector.extract_strided_slice %11 {offsets = [0, 0, 128], sizes = [3, 16, 128], strides = [1, 1, 1]} : vector<3x16x256xf32> to vector<3x16x128xf32>
    %c0_10 = arith.constant 0 : index
    %c0_11 = arith.constant 0 : index
    %c0_12 = arith.constant 0 : index
    %c0_13 = arith.constant 0 : index
    %14 = vector.load %arg7[%c0_10, %c0_11, %c0_12, %c0_13] : memref<1x3x16x128xf32, #tpu.memory_space<vmem>>, vector<1x3x16x128xf32>
    %15 = vector.shape_cast %14 : vector<1x3x16x128xf32> to vector<3x16x128xf32>
    %16 = arith.mulf %12, %13 : vector<3x16x128xf32>
    %cst_14 = arith.constant dense<0.000000e+00> : vector<16x128xf32>
    %17 = vector.multi_reduction <add>, %16, %cst_14 [0] : vector<3x16x128xf32> to vector<16x128xf32>
    %18 = vector.shape_cast %17 : vector<16x128xf32> to vector<1x16x128xf32>
    %19 = arith.mulf %13, %13 : vector<3x16x128xf32>
    %cst_15 = arith.constant dense<0.000000e+00> : vector<16x128xf32>
    %20 = vector.multi_reduction <add>, %19, %cst_15 [0] : vector<3x16x128xf32> to vector<16x128xf32>
    %21 = vector.shape_cast %20 : vector<16x128xf32> to vector<1x16x128xf32>
    %cst_16 = arith.constant 0.000000e+00 : f32
    %22 = vector.broadcast %cst_16 : f32 to vector<1x16x128xf32>
    %23 = arith.cmpf olt, %18, %22 : vector<1x16x128xf32>
    %cst_17 = arith.constant 0.000000e+00 : f32
    %24 = vector.broadcast %cst_17 : f32 to vector<1x16x128xf32>
    %25 = arith.select %23, %18, %24 : vector<1x16x128xi1>, vector<1x16x128xf32>
    %cst_18 = arith.constant 9.99999997E-7 : f32
    %26 = vector.broadcast %cst_18 : f32 to vector<1x16x128xf32>
    %27 = arith.addf %21, %26 : vector<1x16x128xf32>
    %28 = tpu.reciprocal %27 {approx = true} : vector<1x16x128xf32> -> vector<1x16x128xf32>
    %29 = arith.mulf %25, %28 : vector<1x16x128xf32>
    %cst_19 = arith.constant 8.000000e-01 : f32
    %30 = vector.broadcast %cst_19 : f32 to vector<1x16x128xf32>
    %31 = arith.mulf %30, %29 : vector<1x16x128xf32>
    %32 = vector.broadcast %31 : vector<1x16x128xf32> to vector<3x16x128xf32>
    %33 = arith.mulf %32, %13 : vector<3x16x128xf32>
    %34 = arith.subf %12, %33 : vector<3x16x128xf32>
    %35 = arith.addf %15, %34 : vector<3x16x128xf32>
    %c0_20 = arith.constant 0 : index
    %c0_21 = arith.constant 0 : index
    %c0_22 = arith.constant 0 : index
    %c0_23 = arith.constant 0 : index
    %36 = vector.load %arg7[%c0_20, %c0_21, %c0_22, %c0_23] : memref<1x3x16x128xf32, #tpu.memory_space<vmem>>, vector<1x3x16x128xf32>
    %37 = vector.shape_cast %36 : vector<1x3x16x128xf32> to vector<3x16x128xf32>
    %38 = vector.shape_cast %35 : vector<3x16x128xf32> to vector<1x3x16x128xf32>
    tpu.vector_store %arg7[%c0_20, %c0_21, %c0_22, %c0_23], %38 {strides = array<i32>} : memref<1x3x16x128xf32, #tpu.memory_space<vmem>>, vector<1x3x16x128xf32>,
    %c1_i32 = arith.constant 1 : i32
    %c0_24 = arith.constant 0 : index
    %39 = arith.index_cast %c1_i32 : i32 to index
    %c0_25 = arith.constant 0 : index
    %c0_26 = arith.constant 0 : index
    %c0_27 = arith.constant 0 : index
    %40 = vector.load %arg3[%c0_24, %39, %c0_25, %c0_26, %c0_27] : memref<1x4x3x16x8xbf16, #tpu.memory_space<vmem>>, vector<1x1x3x16x8xbf16>
    %41 = vector.shape_cast %40 : vector<1x1x3x16x8xbf16> to vector<3x16x8xbf16>
    %c0_28 = arith.constant 0 : index
    %c0_29 = arith.constant 0 : index
    %42 = vector.load %arg5[%c0_28, %c0_29] : memref<8x256xbf16, #tpu.memory_space<vmem>>, vector<8x256xbf16>
    %43 = vector.shape_cast %41 : vector<3x16x8xbf16> to vector<48x8xbf16>
    %cst_30 = arith.constant dense<0.000000e+00> : vector<48x256xf32>
    %44 = tpu.matmul %43, %42, %cst_30 {dimension_numbers = #tpu.dot_dimension_numbers<[1], [0], [0], [1], [0, 0, 1, 1], [], []>} : vector<48x8xbf16>, vector<8x256xbf16>, vector<48x256xf32> -> vector<48x256xf32>
    %45 = vector.shape_cast %44 : vector<48x256xf32> to vector<3x16x256xf32>
    %c0_31 = arith.constant 0 : index
    %c0_32 = arith.constant 0 : index
    %c0_33 = arith.constant 0 : index
    %46 = vector.load %arg8[%c0_31, %c0_32, %c0_33] : memref<3x16x256xf32, #tpu.memory_space<vmem>>, vector<3x16x256xf32>
    %47 = arith.addf %45, %46 : vector<3x16x256xf32>
    %48 = vector.extract_strided_slice %47 {offsets = [0, 0, 0], sizes = [3, 16, 128], strides = [1, 1, 1]} : vector<3x16x256xf32> to vector<3x16x128xf32>
    %49 = vector.extract_strided_slice %47 {offsets = [0, 0, 128], sizes = [3, 16, 128], strides = [1, 1, 1]} : vector<3x16x256xf32> to vector<3x16x128xf32>
    %c0_34 = arith.constant 0 : index
    %c0_35 = arith.constant 0 : index
    %c0_36 = arith.constant 0 : index
    %c0_37 = arith.constant 0 : index
    %50 = vector.load %arg7[%c0_34, %c0_35, %c0_36, %c0_37] : memref<1x3x16x128xf32, #tpu.memory_space<vmem>>, vector<1x3x16x128xf32>
    %51 = vector.shape_cast %50 : vector<1x3x16x128xf32> to vector<3x16x128xf32>
    %52 = arith.mulf %48, %49 : vector<3x16x128xf32>
    %cst_38 = arith.constant dense<0.000000e+00> : vector<16x128xf32>
    %53 = vector.multi_reduction <add>, %52, %cst_38 [0] : vector<3x16x128xf32> to vector<16x128xf32>
    %54 = vector.shape_cast %53 : vector<16x128xf32> to vector<1x16x128xf32>
    %55 = arith.mulf %49, %49 : vector<3x16x128xf32>
    %cst_39 = arith.constant dense<0.000000e+00> : vector<16x128xf32>
    %56 = vector.multi_reduction <add>, %55, %cst_39 [0] : vector<3x16x128xf32> to vector<16x128xf32>
    %57 = vector.shape_cast %56 : vector<16x128xf32> to vector<1x16x128xf32>
    %cst_40 = arith.constant 0.000000e+00 : f32
    %58 = vector.broadcast %cst_40 : f32 to vector<1x16x128xf32>
    %59 = arith.cmpf olt, %54, %58 : vector<1x16x128xf32>
    %cst_41 = arith.constant 0.000000e+00 : f32
    %60 = vector.broadcast %cst_41 : f32 to vector<1x16x128xf32>
    %61 = arith.select %59, %54, %60 : vector<1x16x128xi1>, vector<1x16x128xf32>
    %cst_42 = arith.constant 9.99999997E-7 : f32
    %62 = vector.broadcast %cst_42 : f32 to vector<1x16x128xf32>
    %63 = arith.addf %57, %62 : vector<1x16x128xf32>
    %64 = tpu.reciprocal %63 {approx = true} : vector<1x16x128xf32> -> vector<1x16x128xf32>
    %65 = arith.mulf %61, %64 : vector<1x16x128xf32>
    %cst_43 = arith.constant 8.000000e-01 : f32
    %66 = vector.broadcast %cst_43 : f32 to vector<1x16x128xf32>
    %67 = arith.mulf %66, %65 : vector<1x16x128xf32>
    %68 = vector.broadcast %67 : vector<1x16x128xf32> to vector<3x16x128xf32>
    %69 = arith.mulf %68, %49 : vector<3x16x128xf32>
    %70 = arith.subf %48, %69 : vector<3x16x128xf32>
    %71 = arith.addf %51, %70 : vector<3x16x128xf32>
    %c0_44 = arith.constant 0 : index
    %c0_45 = arith.constant 0 : index
    %c0_46 = arith.constant 0 : index
    %c0_47 = arith.constant 0 : index
    %72 = vector.load %arg7[%c0_44, %c0_45, %c0_46, %c0_47] : memref<1x3x16x128xf32, #tpu.memory_space<vmem>>, vector<1x3x16x128xf32>
    %73 = vector.shape_cast %72 : vector<1x3x16x128xf32> to vector<3x16x128xf32>
    %74 = vector.shape_cast %71 : vector<3x16x128xf32> to vector<1x3x16x128xf32>
    tpu.vector_store %arg7[%c0_44, %c0_45, %c0_46, %c0_47], %74 {strides = array<i32>} : memref<1x3x16x128xf32, #tpu.memory_space<vmem>>, vector<1x3x16x128xf32>,
    %c2_i32 = arith.constant 2 : i32
    %c0_48 = arith.constant 0 : index
    %75 = arith.index_cast %c2_i32 : i32 to index
    %c0_49 = arith.constant 0 : index
    %c0_50 = arith.constant 0 : index
    %c0_51 = arith.constant 0 : index
    %76 = vector.load %arg3[%c0_48, %75, %c0_49, %c0_50, %c0_51] : memref<1x4x3x16x8xbf16, #tpu.memory_space<vmem>>, vector<1x1x3x16x8xbf16>
    %77 = vector.shape_cast %76 : vector<1x1x3x16x8xbf16> to vector<3x16x8xbf16>
    %c0_52 = arith.constant 0 : index
    %c0_53 = arith.constant 0 : index
    %78 = vector.load %arg5[%c0_52, %c0_53] : memref<8x256xbf16, #tpu.memory_space<vmem>>, vector<8x256xbf16>
    %79 = vector.shape_cast %77 : vector<3x16x8xbf16> to vector<48x8xbf16>
    %cst_54 = arith.constant dense<0.000000e+00> : vector<48x256xf32>
    %80 = tpu.matmul %79, %78, %cst_54 {dimension_numbers = #tpu.dot_dimension_numbers<[1], [0], [0], [1], [0, 0, 1, 1], [], []>} : vector<48x8xbf16>, vector<8x256xbf16>, vector<48x256xf32> -> vector<48x256xf32>
    %81 = vector.shape_cast %80 : vector<48x256xf32> to vector<3x16x256xf32>
    %c0_55 = arith.constant 0 : index
    %c0_56 = arith.constant 0 : index
    %c0_57 = arith.constant 0 : index
    %82 = vector.load %arg8[%c0_55, %c0_56, %c0_57] : memref<3x16x256xf32, #tpu.memory_space<vmem>>, vector<3x16x256xf32>
    %83 = arith.addf %81, %82 : vector<3x16x256xf32>
    %84 = vector.extract_strided_slice %83 {offsets = [0, 0, 0], sizes = [3, 16, 128], strides = [1, 1, 1]} : vector<3x16x256xf32> to vector<3x16x128xf32>
    %85 = vector.extract_strided_slice %83 {offsets = [0, 0, 128], sizes = [3, 16, 128], strides = [1, 1, 1]} : vector<3x16x256xf32> to vector<3x16x128xf32>
    %c0_58 = arith.constant 0 : index
    %c0_59 = arith.constant 0 : index
    %c0_60 = arith.constant 0 : index
    %c0_61 = arith.constant 0 : index
    %86 = vector.load %arg7[%c0_58, %c0_59, %c0_60, %c0_61] : memref<1x3x16x128xf32, #tpu.memory_space<vmem>>, vector<1x3x16x128xf32>
    %87 = vector.shape_cast %86 : vector<1x3x16x128xf32> to vector<3x16x128xf32>
    %88 = arith.mulf %84, %85 : vector<3x16x128xf32>
    %cst_62 = arith.constant dense<0.000000e+00> : vector<16x128xf32>
    %89 = vector.multi_reduction <add>, %88, %cst_62 [0] : vector<3x16x128xf32> to vector<16x128xf32>
    %90 = vector.shape_cast %89 : vector<16x128xf32> to vector<1x16x128xf32>
    %91 = arith.mulf %85, %85 : vector<3x16x128xf32>
    %cst_63 = arith.constant dense<0.000000e+00> : vector<16x128xf32>
    %92 = vector.multi_reduction <add>, %91, %cst_63 [0] : vector<3x16x128xf32> to vector<16x128xf32>
    %93 = vector.shape_cast %92 : vector<16x128xf32> to vector<1x16x128xf32>
    %cst_64 = arith.constant 0.000000e+00 : f32
    %94 = vector.broadcast %cst_64 : f32 to vector<1x16x128xf32>
    %95 = arith.cmpf olt, %90, %94 : vector<1x16x128xf32>
    %cst_65 = arith.constant 0.000000e+00 : f32
    %96 = vector.broadcast %cst_65 : f32 to vector<1x16x128xf32>
    %97 = arith.select %95, %90, %96 : vector<1x16x128xi1>, vector<1x16x128xf32>
    %cst_66 = arith.constant 9.99999997E-7 : f32
    %98 = vector.broadcast %cst_66 : f32 to vector<1x16x128xf32>
    %99 = arith.addf %93, %98 : vector<1x16x128xf32>
    %100 = tpu.reciprocal %99 {approx = true} : vector<1x16x128xf32> -> vector<1x16x128xf32>
    %101 = arith.mulf %97, %100 : vector<1x16x128xf32>
    %cst_67 = arith.constant 8.000000e-01 : f32
    %102 = vector.broadcast %cst_67 : f32 to vector<1x16x128xf32>
    %103 = arith.mulf %102, %101 : vector<1x16x128xf32>
    %104 = vector.broadcast %103 : vector<1x16x128xf32> to vector<3x16x128xf32>
    %105 = arith.mulf %104, %85 : vector<3x16x128xf32>
    %106 = arith.subf %84, %105 : vector<3x16x128xf32>
    %107 = arith.addf %87, %106 : vector<3x16x128xf32>
    %c0_68 = arith.constant 0 : index
    %c0_69 = arith.constant 0 : index
    %c0_70 = arith.constant 0 : index
    %c0_71 = arith.constant 0 : index
    %108 = vector.load %arg7[%c0_68, %c0_69, %c0_70, %c0_71] : memref<1x3x16x128xf32, #tpu.memory_space<vmem>>, vector<1x3x16x128xf32>
    %109 = vector.shape_cast %108 : vector<1x3x16x128xf32> to vector<3x16x128xf32>
    %110 = vector.shape_cast %107 : vector<3x16x128xf32> to vector<1x3x16x128xf32>
    tpu.vector_store %arg7[%c0_68, %c0_69, %c0_70, %c0_71], %110 {strides = array<i32>} : memref<1x3x16x128xf32, #tpu.memory_space<vmem>>, vector<1x3x16x128xf32>,
    %c3_i32 = arith.constant 3 : i32
    %c0_72 = arith.constant 0 : index
    %111 = arith.index_cast %c3_i32 : i32 to index
    %c0_73 = arith.constant 0 : index
    %c0_74 = arith.constant 0 : index
    %c0_75 = arith.constant 0 : index
    %112 = vector.load %arg3[%c0_72, %111, %c0_73, %c0_74, %c0_75] : memref<1x4x3x16x8xbf16, #tpu.memory_space<vmem>>, vector<1x1x3x16x8xbf16>
    %113 = vector.shape_cast %112 : vector<1x1x3x16x8xbf16> to vector<3x16x8xbf16>
    %c0_76 = arith.constant 0 : index
    %c0_77 = arith.constant 0 : index
    %114 = vector.load %arg5[%c0_76, %c0_77] : memref<8x256xbf16, #tpu.memory_space<vmem>>, vector<8x256xbf16>
    %115 = vector.shape_cast %113 : vector<3x16x8xbf16> to vector<48x8xbf16>
    %cst_78 = arith.constant dense<0.000000e+00> : vector<48x256xf32>
    %116 = tpu.matmul %115, %114, %cst_78 {dimension_numbers = #tpu.dot_dimension_numbers<[1], [0], [0], [1], [0, 0, 1, 1], [], []>} : vector<48x8xbf16>, vector<8x256xbf16>, vector<48x256xf32> -> vector<48x256xf32>
    %117 = vector.shape_cast %116 : vector<48x256xf32> to vector<3x16x256xf32>
    %c0_79 = arith.constant 0 : index
    %c0_80 = arith.constant 0 : index
    %c0_81 = arith.constant 0 : index
    %118 = vector.load %arg8[%c0_79, %c0_80, %c0_81] : memref<3x16x256xf32, #tpu.memory_space<vmem>>, vector<3x16x256xf32>
    %119 = arith.addf %117, %118 : vector<3x16x256xf32>
    %120 = vector.extract_strided_slice %119 {offsets = [0, 0, 0], sizes = [3, 16, 128], strides = [1, 1, 1]} : vector<3x16x256xf32> to vector<3x16x128xf32>
    %121 = vector.extract_strided_slice %119 {offsets = [0, 0, 128], sizes = [3, 16, 128], strides = [1, 1, 1]} : vector<3x16x256xf32> to vector<3x16x128xf32>
    %c0_82 = arith.constant 0 : index
    %c0_83 = arith.constant 0 : index
    %c0_84 = arith.constant 0 : index
    %c0_85 = arith.constant 0 : index
    %122 = vector.load %arg7[%c0_82, %c0_83, %c0_84, %c0_85] : memref<1x3x16x128xf32, #tpu.memory_space<vmem>>, vector<1x3x16x128xf32>
    %123 = vector.shape_cast %122 : vector<1x3x16x128xf32> to vector<3x16x128xf32>
    %124 = arith.mulf %120, %121 : vector<3x16x128xf32>
    %cst_86 = arith.constant dense<0.000000e+00> : vector<16x128xf32>
    %125 = vector.multi_reduction <add>, %124, %cst_86 [0] : vector<3x16x128xf32> to vector<16x128xf32>
    %126 = vector.shape_cast %125 : vector<16x128xf32> to vector<1x16x128xf32>
    %127 = arith.mulf %121, %121 : vector<3x16x128xf32>
    %cst_87 = arith.constant dense<0.000000e+00> : vector<16x128xf32>
    %128 = vector.multi_reduction <add>, %127, %cst_87 [0] : vector<3x16x128xf32> to vector<16x128xf32>
    %129 = vector.shape_cast %128 : vector<16x128xf32> to vector<1x16x128xf32>
    %cst_88 = arith.constant 0.000000e+00 : f32
    %130 = vector.broadcast %cst_88 : f32 to vector<1x16x128xf32>
    %131 = arith.cmpf olt, %126, %130 : vector<1x16x128xf32>
    %cst_89 = arith.constant 0.000000e+00 : f32
    %132 = vector.broadcast %cst_89 : f32 to vector<1x16x128xf32>
    %133 = arith.select %131, %126, %132 : vector<1x16x128xi1>, vector<1x16x128xf32>
    %cst_90 = arith.constant 9.99999997E-7 : f32
    %134 = vector.broadcast %cst_90 : f32 to vector<1x16x128xf32>
    %135 = arith.addf %129, %134 : vector<1x16x128xf32>
    %136 = tpu.reciprocal %135 {approx = true} : vector<1x16x128xf32> -> vector<1x16x128xf32>
    %137 = arith.mulf %133, %136 : vector<1x16x128xf32>
    %cst_91 = arith.constant 8.000000e-01 : f32
    %138 = vector.broadcast %cst_91 : f32 to vector<1x16x128xf32>
    %139 = arith.mulf %138, %137 : vector<1x16x128xf32>
    %140 = vector.broadcast %139 : vector<1x16x128xf32> to vector<3x16x128xf32>
    %141 = arith.mulf %140, %121 : vector<3x16x128xf32>
    %142 = arith.subf %120, %141 : vector<3x16x128xf32>
    %143 = arith.addf %123, %142 : vector<3x16x128xf32>
    %c0_92 = arith.constant 0 : index
    %c0_93 = arith.constant 0 : index
    %c0_94 = arith.constant 0 : index
    %c0_95 = arith.constant 0 : index
    %144 = vector.load %arg7[%c0_92, %c0_93, %c0_94, %c0_95] : memref<1x3x16x128xf32, #tpu.memory_space<vmem>>, vector<1x3x16x128xf32>
    %145 = vector.shape_cast %144 : vector<1x3x16x128xf32> to vector<3x16x128xf32>
    %146 = vector.shape_cast %143 : vector<3x16x128xf32> to vector<1x3x16x128xf32>
    tpu.vector_store %arg7[%c0_92, %c0_93, %c0_94, %c0_95], %146 {strides = array<i32>} : memref<1x3x16x128xf32, #tpu.memory_space<vmem>>, vector<1x3x16x128xf32>,
    %c4_i32 = arith.constant 4 : i32
    %c0_i32_96 = arith.constant 0 : i32
    %147 = arith.cmpi eq, %arg2, %c0_i32_96 : i32
    %148 = arith.extui %147 : i1 to i32
    %c0_i32_97 = arith.constant 0 : i32
    %149 = arith.cmpi ne, %148, %c0_i32_97 : i32
    scf.if %149 {
      %c0_98 = arith.constant 0 : index
      %c0_99 = arith.constant 0 : index
      %c0_100 = arith.constant 0 : index
      %c0_101 = arith.constant 0 : index
      %150 = vector.load %arg7[%c0_98, %c0_99, %c0_100, %c0_101] : memref<1x3x16x128xf32, #tpu.memory_space<vmem>>, vector<1x3x16x128xf32>
      %151 = vector.shape_cast %150 : vector<1x3x16x128xf32> to vector<3x16x128xf32>
      %cst_102 = arith.constant 2.500000e-01 : f32
      %152 = vector.broadcast %cst_102 : f32 to vector<3x16x128xf32>
      %153 = arith.mulf %151, %152 : vector<3x16x128xf32>
      %c0_103 = arith.constant 0 : index
      %c0_104 = arith.constant 0 : index
      %c0_105 = arith.constant 0 : index
      %c0_106 = arith.constant 0 : index
      %154 = vector.load %arg7[%c0_103, %c0_104, %c0_105, %c0_106] : memref<1x3x16x128xf32, #tpu.memory_space<vmem>>, vector<1x3x16x128xf32>
      %155 = vector.shape_cast %154 : vector<1x3x16x128xf32> to vector<3x16x128xf32>
      %156 = vector.shape_cast %153 : vector<3x16x128xf32> to vector<1x3x16x128xf32>
      tpu.vector_store %arg7[%c0_103, %c0_104, %c0_105, %c0_106], %156 {strides = array<i32>} : memref<1x3x16x128xf32, #tpu.memory_space<vmem>>, vector<1x3x16x128xf32>,
    } else {
    }
    return
  }
  func.func @transform_0(%arg0: i32, %arg1: i32, %arg2: i32) -> (i32, i32, i32, i32, i32) {
    %c0_i32 = arith.constant 0 : i32
    %c0_i32_0 = arith.constant 0 : i32
    %c0_i32_1 = arith.constant 0 : i32
    return %arg0, %arg2, %c0_i32, %arg1, %c0_i32_0 : i32, i32, i32, i32, i32
  }
  func.func @transform_1(%arg0: i32, %arg1: i32, %arg2: i32) -> (i32, i32, i32, i32) {
    %c0_i32 = arith.constant 0 : i32
    %c0_i32_0 = arith.constant 0 : i32
    %c0_i32_1 = arith.constant 0 : i32
    return %arg0, %c0_i32, %arg1, %c0_i32_0 : i32, i32, i32, i32
  }
  func.func @transform_2(%arg0: i32, %arg1: i32, %arg2: i32) -> (i32, i32) {
    %c0_i32 = arith.constant 0 : i32
    %c0_i32_0 = arith.constant 0 : i32
    %c0_i32_1 = arith.constant 0 : i32
    return %c0_i32, %c0_i32_0 : i32, i32
  }
  func.func @transform_3(%arg0: i32, %arg1: i32, %arg2: i32) -> (i32, i32) {
    %c0_i32 = arith.constant 0 : i32
    %c0_i32_0 = arith.constant 0 : i32
    %c0_i32_1 = arith.constant 0 : i32
    return %c0_i32, %c0_i32_0 : i32, i32
  }
  func.func @transform_4(%arg0: i32, %arg1: i32, %arg2: i32) -> (i32, i32, i32, i32) {
    %c0_i32 = arith.constant 0 : i32
    %c0_i32_0 = arith.constant 0 : i32
    %c0_i32_1 = arith.constant 0 : i32
    return %arg0, %c0_i32, %arg1, %c0_i32_0 : i32, i32, i32, i32
  }
}

module attributes {stable_mosaic.version = 11 : i64} {
  func.func @_knn_score_kernel(%arg0: i32, %arg1: i32, %arg2: memref<1x16x48xf32, #tpu.memory_space<vmem>>, %arg3: memref<1x48x16xf32, #tpu.memory_space<vmem>>, %arg4: memref<1x1x16xf32, #tpu.memory_space<vmem>>, %arg5: memref<1x16x16xf32, #tpu.memory_space<vmem>>) attributes {dimension_semantics = [#tpu.dimension_semantics<parallel>, #tpu.dimension_semantics<parallel>], iteration_bounds = array<i64: 2, 1>, scalar_prefetch = 0 : i64, scratch_operands = 0 : i64, tpu.core_type = #tpu.core_type<tc>, window_params = [{transform_indices = @transform_0, window_bounds = array<i64: 1, 16, 48>}, {transform_indices = @transform_1, window_bounds = array<i64: 1, 48, 16>}, {transform_indices = @transform_2, window_bounds = array<i64: 1, 1, 16>}, {transform_indices = @transform_3, window_bounds = array<i64: 1, 16, 16>}]} {
    %c0 = arith.constant 0 : index
    %c0_0 = arith.constant 0 : index
    %c0_1 = arith.constant 0 : index
    %0 = vector.load %arg2[%c0, %c0_0, %c0_1] : memref<1x16x48xf32, #tpu.memory_space<vmem>>, vector<1x16x48xf32>
    %1 = vector.shape_cast %0 : vector<1x16x48xf32> to vector<16x48xf32>
    %c0_2 = arith.constant 0 : index
    %c0_3 = arith.constant 0 : index
    %c0_4 = arith.constant 0 : index
    %2 = vector.load %arg3[%c0_2, %c0_3, %c0_4] : memref<1x48x16xf32, #tpu.memory_space<vmem>>, vector<1x48x16xf32>
    %3 = vector.shape_cast %2 : vector<1x48x16xf32> to vector<48x16xf32>
    %cst = arith.constant dense<0.000000e+00> : vector<16x16xf32>
    %4 = tpu.matmul %1, %3, %cst {dimension_numbers = #tpu.dot_dimension_numbers<[1], [0], [0], [1], [0, 0, 1, 1], [], []>} : vector<16x48xf32>, vector<48x16xf32>, vector<16x16xf32> -> vector<16x16xf32>
    %cst_5 = arith.constant 2.000000e+00 : f32
    %5 = vector.broadcast %cst_5 : f32 to vector<16x16xf32>
    %6 = arith.mulf %5, %4 : vector<16x16xf32>
    %c0_6 = arith.constant 0 : index
    %c0_7 = arith.constant 0 : index
    %c0_8 = arith.constant 0 : index
    %7 = vector.load %arg4[%c0_6, %c0_7, %c0_8] : memref<1x1x16xf32, #tpu.memory_space<vmem>>, vector<1x1x16xf32>
    %8 = vector.shape_cast %7 : vector<1x1x16xf32> to vector<1x16xf32>
    %9 = vector.broadcast %8 : vector<1x16xf32> to vector<16x16xf32>
    %10 = arith.subf %6, %9 : vector<16x16xf32>
    %c0_9 = arith.constant 0 : index
    %c0_10 = arith.constant 0 : index
    %c0_11 = arith.constant 0 : index
    %11 = vector.load %arg5[%c0_9, %c0_10, %c0_11] : memref<1x16x16xf32, #tpu.memory_space<vmem>>, vector<1x16x16xf32>
    %12 = vector.shape_cast %11 : vector<1x16x16xf32> to vector<16x16xf32>
    %13 = vector.shape_cast %10 : vector<16x16xf32> to vector<1x16x16xf32>
    tpu.vector_store %arg5[%c0_9, %c0_10, %c0_11], %13 {strides = array<i32>} : memref<1x16x16xf32, #tpu.memory_space<vmem>>, vector<1x16x16xf32>,
    return
  }
  func.func @transform_0(%arg0: i32, %arg1: i32) -> (i32, i32, i32) {
    %c0_i32 = arith.constant 0 : i32
    %c0_i32_0 = arith.constant 0 : i32
    return %arg0, %arg1, %c0_i32 : i32, i32, i32
  }
  func.func @transform_1(%arg0: i32, %arg1: i32) -> (i32, i32, i32) {
    %c0_i32 = arith.constant 0 : i32
    %c0_i32_0 = arith.constant 0 : i32
    %c0_i32_1 = arith.constant 0 : i32
    return %arg0, %c0_i32, %c0_i32_0 : i32, i32, i32
  }
  func.func @transform_2(%arg0: i32, %arg1: i32) -> (i32, i32, i32) {
    %c0_i32 = arith.constant 0 : i32
    %c0_i32_0 = arith.constant 0 : i32
    %c0_i32_1 = arith.constant 0 : i32
    return %arg0, %c0_i32, %c0_i32_0 : i32, i32, i32
  }
  func.func @transform_3(%arg0: i32, %arg1: i32) -> (i32, i32, i32) {
    %c0_i32 = arith.constant 0 : i32
    %c0_i32_0 = arith.constant 0 : i32
    return %arg0, %arg1, %c0_i32 : i32, i32, i32
  }
}

module attributes {stable_mosaic.version = 11 : i64} {
  func.func @_edge_conv_kernel(%arg0: i32, %arg1: i32, %arg2: i32, %arg3: memref<1x4x3x16x16xbf16, #tpu.memory_space<vmem>>, %arg4: memref<1x3x16x16xbf16, #tpu.memory_space<vmem>>, %arg5: memref<16x256xbf16, #tpu.memory_space<vmem>>, %arg6: memref<16x256xbf16, #tpu.memory_space<vmem>>, %arg7: memref<1x3x16x128xf32, #tpu.memory_space<vmem>>, %arg8: memref<3x16x256xf32, #tpu.memory_space<vmem>>) attributes {dimension_semantics = [#tpu.dimension_semantics<parallel>, #tpu.dimension_semantics<parallel>, #tpu.dimension_semantics<arbitrary>], iteration_bounds = array<i64: 2, 1, 1>, scalar_prefetch = 0 : i64, scratch_operands = 1 : i64, tpu.core_type = #tpu.core_type<tc>, window_params = [{transform_indices = @transform_0, window_bounds = array<i64: 1, 4, 3, 16, 16>}, {transform_indices = @transform_1, window_bounds = array<i64: 1, 3, 16, 16>}, {pipeline_mode = #tpu.pipeline_mode<synchronous>, transform_indices = @transform_2, window_bounds = array<i64: 16, 256>}, {pipeline_mode = #tpu.pipeline_mode<synchronous>, transform_indices = @transform_3, window_bounds = array<i64: 16, 256>}, {transform_indices = @transform_4, window_bounds = array<i64: 1, 3, 16, 128>}]} {
    %c0_i32 = arith.constant 0 : i32
    %0 = arith.cmpi eq, %arg2, %c0_i32 : i32
    %1 = arith.extui %0 : i1 to i32
    %c0_i32_0 = arith.constant 0 : i32
    %2 = arith.cmpi ne, %1, %c0_i32_0 : i32
    scf.if %2 {
      %cst_98 = arith.constant 0.000000e+00 : f32
      %150 = vector.broadcast %cst_98 : f32 to vector<3x16x128xf32>
      %c0_99 = arith.constant 0 : index
      %c0_100 = arith.constant 0 : index
      %c0_101 = arith.constant 0 : index
      %c0_102 = arith.constant 0 : index
      %151 = vector.load %arg7[%c0_99, %c0_100, %c0_101, %c0_102] : memref<1x3x16x128xf32, #tpu.memory_space<vmem>>, vector<1x3x16x128xf32>
      %152 = vector.shape_cast %151 : vector<1x3x16x128xf32> to vector<3x16x128xf32>
      %153 = vector.shape_cast %150 : vector<3x16x128xf32> to vector<1x3x16x128xf32>
      tpu.vector_store %arg7[%c0_99, %c0_100, %c0_101, %c0_102], %153 {strides = array<i32>} : memref<1x3x16x128xf32, #tpu.memory_space<vmem>>, vector<1x3x16x128xf32>,
      %c0_103 = arith.constant 0 : index
      %c0_104 = arith.constant 0 : index
      %c0_105 = arith.constant 0 : index
      %c0_106 = arith.constant 0 : index
      %154 = vector.load %arg4[%c0_103, %c0_104, %c0_105, %c0_106] : memref<1x3x16x16xbf16, #tpu.memory_space<vmem>>, vector<1x3x16x16xbf16>
      %155 = vector.shape_cast %154 : vector<1x3x16x16xbf16> to vector<3x16x16xbf16>
      %c0_107 = arith.constant 0 : index
      %c0_108 = arith.constant 0 : index
      %156 = vector.load %arg6[%c0_107, %c0_108] : memref<16x256xbf16, #tpu.memory_space<vmem>>, vector<16x256xbf16>
      %157 = vector.shape_cast %155 : vector<3x16x16xbf16> to vector<48x16xbf16>
      %cst_109 = arith.constant dense<0.000000e+00> : vector<48x256xf32>
      %158 = tpu.matmul %157, %156, %cst_109 {dimension_numbers = #tpu.dot_dimension_numbers<[1], [0], [0], [1], [0, 0, 1, 1], [], []>} : vector<48x16xbf16>, vector<16x256xbf16>, vector<48x256xf32> -> vector<48x256xf32>
      %159 = vector.shape_cast %158 : vector<48x256xf32> to vector<3x16x256xf32>
      %c0_110 = arith.constant 0 : index
      %c0_111 = arith.constant 0 : index
      %c0_112 = arith.constant 0 : index
      %160 = vector.load %arg8[%c0_110, %c0_111, %c0_112] : memref<3x16x256xf32, #tpu.memory_space<vmem>>, vector<3x16x256xf32>
      tpu.vector_store %arg8[%c0_110, %c0_111, %c0_112], %159 {strides = array<i32>} : memref<3x16x256xf32, #tpu.memory_space<vmem>>, vector<3x16x256xf32>,
    } else {
    }
    %c0_i32_1 = arith.constant 0 : i32
    %c0 = arith.constant 0 : index
    %3 = arith.index_cast %c0_i32_1 : i32 to index
    %c0_2 = arith.constant 0 : index
    %c0_3 = arith.constant 0 : index
    %c0_4 = arith.constant 0 : index
    %4 = vector.load %arg3[%c0, %3, %c0_2, %c0_3, %c0_4] : memref<1x4x3x16x16xbf16, #tpu.memory_space<vmem>>, vector<1x1x3x16x16xbf16>
    %5 = vector.shape_cast %4 : vector<1x1x3x16x16xbf16> to vector<3x16x16xbf16>
    %c0_5 = arith.constant 0 : index
    %c0_6 = arith.constant 0 : index
    %6 = vector.load %arg5[%c0_5, %c0_6] : memref<16x256xbf16, #tpu.memory_space<vmem>>, vector<16x256xbf16>
    %7 = vector.shape_cast %5 : vector<3x16x16xbf16> to vector<48x16xbf16>
    %cst = arith.constant dense<0.000000e+00> : vector<48x256xf32>
    %8 = tpu.matmul %7, %6, %cst {dimension_numbers = #tpu.dot_dimension_numbers<[1], [0], [0], [1], [0, 0, 1, 1], [], []>} : vector<48x16xbf16>, vector<16x256xbf16>, vector<48x256xf32> -> vector<48x256xf32>
    %9 = vector.shape_cast %8 : vector<48x256xf32> to vector<3x16x256xf32>
    %c0_7 = arith.constant 0 : index
    %c0_8 = arith.constant 0 : index
    %c0_9 = arith.constant 0 : index
    %10 = vector.load %arg8[%c0_7, %c0_8, %c0_9] : memref<3x16x256xf32, #tpu.memory_space<vmem>>, vector<3x16x256xf32>
    %11 = arith.addf %9, %10 : vector<3x16x256xf32>
    %12 = vector.extract_strided_slice %11 {offsets = [0, 0, 0], sizes = [3, 16, 128], strides = [1, 1, 1]} : vector<3x16x256xf32> to vector<3x16x128xf32>
    %13 = vector.extract_strided_slice %11 {offsets = [0, 0, 128], sizes = [3, 16, 128], strides = [1, 1, 1]} : vector<3x16x256xf32> to vector<3x16x128xf32>
    %c0_10 = arith.constant 0 : index
    %c0_11 = arith.constant 0 : index
    %c0_12 = arith.constant 0 : index
    %c0_13 = arith.constant 0 : index
    %14 = vector.load %arg7[%c0_10, %c0_11, %c0_12, %c0_13] : memref<1x3x16x128xf32, #tpu.memory_space<vmem>>, vector<1x3x16x128xf32>
    %15 = vector.shape_cast %14 : vector<1x3x16x128xf32> to vector<3x16x128xf32>
    %16 = arith.mulf %12, %13 : vector<3x16x128xf32>
    %cst_14 = arith.constant dense<0.000000e+00> : vector<16x128xf32>
    %17 = vector.multi_reduction <add>, %16, %cst_14 [0] : vector<3x16x128xf32> to vector<16x128xf32>
    %18 = vector.shape_cast %17 : vector<16x128xf32> to vector<1x16x128xf32>
    %19 = arith.mulf %13, %13 : vector<3x16x128xf32>
    %cst_15 = arith.constant dense<0.000000e+00> : vector<16x128xf32>
    %20 = vector.multi_reduction <add>, %19, %cst_15 [0] : vector<3x16x128xf32> to vector<16x128xf32>
    %21 = vector.shape_cast %20 : vector<16x128xf32> to vector<1x16x128xf32>
    %cst_16 = arith.constant 0.000000e+00 : f32
    %22 = vector.broadcast %cst_16 : f32 to vector<1x16x128xf32>
    %23 = arith.cmpf olt, %18, %22 : vector<1x16x128xf32>
    %cst_17 = arith.constant 0.000000e+00 : f32
    %24 = vector.broadcast %cst_17 : f32 to vector<1x16x128xf32>
    %25 = arith.select %23, %18, %24 : vector<1x16x128xi1>, vector<1x16x128xf32>
    %cst_18 = arith.constant 9.99999997E-7 : f32
    %26 = vector.broadcast %cst_18 : f32 to vector<1x16x128xf32>
    %27 = arith.addf %21, %26 : vector<1x16x128xf32>
    %28 = tpu.reciprocal %27 {approx = true} : vector<1x16x128xf32> -> vector<1x16x128xf32>
    %29 = arith.mulf %25, %28 : vector<1x16x128xf32>
    %cst_19 = arith.constant 8.000000e-01 : f32
    %30 = vector.broadcast %cst_19 : f32 to vector<1x16x128xf32>
    %31 = arith.mulf %30, %29 : vector<1x16x128xf32>
    %32 = vector.broadcast %31 : vector<1x16x128xf32> to vector<3x16x128xf32>
    %33 = arith.mulf %32, %13 : vector<3x16x128xf32>
    %34 = arith.subf %12, %33 : vector<3x16x128xf32>
    %35 = arith.addf %15, %34 : vector<3x16x128xf32>
    %c0_20 = arith.constant 0 : index
    %c0_21 = arith.constant 0 : index
    %c0_22 = arith.constant 0 : index
    %c0_23 = arith.constant 0 : index
    %36 = vector.load %arg7[%c0_20, %c0_21, %c0_22, %c0_23] : memref<1x3x16x128xf32, #tpu.memory_space<vmem>>, vector<1x3x16x128xf32>
    %37 = vector.shape_cast %36 : vector<1x3x16x128xf32> to vector<3x16x128xf32>
    %38 = vector.shape_cast %35 : vector<3x16x128xf32> to vector<1x3x16x128xf32>
    tpu.vector_store %arg7[%c0_20, %c0_21, %c0_22, %c0_23], %38 {strides = array<i32>} : memref<1x3x16x128xf32, #tpu.memory_space<vmem>>, vector<1x3x16x128xf32>,
    %c1_i32 = arith.constant 1 : i32
    %c0_24 = arith.constant 0 : index
    %39 = arith.index_cast %c1_i32 : i32 to index
    %c0_25 = arith.constant 0 : index
    %c0_26 = arith.constant 0 : index
    %c0_27 = arith.constant 0 : index
    %40 = vector.load %arg3[%c0_24, %39, %c0_25, %c0_26, %c0_27] : memref<1x4x3x16x16xbf16, #tpu.memory_space<vmem>>, vector<1x1x3x16x16xbf16>
    %41 = vector.shape_cast %40 : vector<1x1x3x16x16xbf16> to vector<3x16x16xbf16>
    %c0_28 = arith.constant 0 : index
    %c0_29 = arith.constant 0 : index
    %42 = vector.load %arg5[%c0_28, %c0_29] : memref<16x256xbf16, #tpu.memory_space<vmem>>, vector<16x256xbf16>
    %43 = vector.shape_cast %41 : vector<3x16x16xbf16> to vector<48x16xbf16>
    %cst_30 = arith.constant dense<0.000000e+00> : vector<48x256xf32>
    %44 = tpu.matmul %43, %42, %cst_30 {dimension_numbers = #tpu.dot_dimension_numbers<[1], [0], [0], [1], [0, 0, 1, 1], [], []>} : vector<48x16xbf16>, vector<16x256xbf16>, vector<48x256xf32> -> vector<48x256xf32>
    %45 = vector.shape_cast %44 : vector<48x256xf32> to vector<3x16x256xf32>
    %c0_31 = arith.constant 0 : index
    %c0_32 = arith.constant 0 : index
    %c0_33 = arith.constant 0 : index
    %46 = vector.load %arg8[%c0_31, %c0_32, %c0_33] : memref<3x16x256xf32, #tpu.memory_space<vmem>>, vector<3x16x256xf32>
    %47 = arith.addf %45, %46 : vector<3x16x256xf32>
    %48 = vector.extract_strided_slice %47 {offsets = [0, 0, 0], sizes = [3, 16, 128], strides = [1, 1, 1]} : vector<3x16x256xf32> to vector<3x16x128xf32>
    %49 = vector.extract_strided_slice %47 {offsets = [0, 0, 128], sizes = [3, 16, 128], strides = [1, 1, 1]} : vector<3x16x256xf32> to vector<3x16x128xf32>
    %c0_34 = arith.constant 0 : index
    %c0_35 = arith.constant 0 : index
    %c0_36 = arith.constant 0 : index
    %c0_37 = arith.constant 0 : index
    %50 = vector.load %arg7[%c0_34, %c0_35, %c0_36, %c0_37] : memref<1x3x16x128xf32, #tpu.memory_space<vmem>>, vector<1x3x16x128xf32>
    %51 = vector.shape_cast %50 : vector<1x3x16x128xf32> to vector<3x16x128xf32>
    %52 = arith.mulf %48, %49 : vector<3x16x128xf32>
    %cst_38 = arith.constant dense<0.000000e+00> : vector<16x128xf32>
    %53 = vector.multi_reduction <add>, %52, %cst_38 [0] : vector<3x16x128xf32> to vector<16x128xf32>
    %54 = vector.shape_cast %53 : vector<16x128xf32> to vector<1x16x128xf32>
    %55 = arith.mulf %49, %49 : vector<3x16x128xf32>
    %cst_39 = arith.constant dense<0.000000e+00> : vector<16x128xf32>
    %56 = vector.multi_reduction <add>, %55, %cst_39 [0] : vector<3x16x128xf32> to vector<16x128xf32>
    %57 = vector.shape_cast %56 : vector<16x128xf32> to vector<1x16x128xf32>
    %cst_40 = arith.constant 0.000000e+00 : f32
    %58 = vector.broadcast %cst_40 : f32 to vector<1x16x128xf32>
    %59 = arith.cmpf olt, %54, %58 : vector<1x16x128xf32>
    %cst_41 = arith.constant 0.000000e+00 : f32
    %60 = vector.broadcast %cst_41 : f32 to vector<1x16x128xf32>
    %61 = arith.select %59, %54, %60 : vector<1x16x128xi1>, vector<1x16x128xf32>
    %cst_42 = arith.constant 9.99999997E-7 : f32
    %62 = vector.broadcast %cst_42 : f32 to vector<1x16x128xf32>
    %63 = arith.addf %57, %62 : vector<1x16x128xf32>
    %64 = tpu.reciprocal %63 {approx = true} : vector<1x16x128xf32> -> vector<1x16x128xf32>
    %65 = arith.mulf %61, %64 : vector<1x16x128xf32>
    %cst_43 = arith.constant 8.000000e-01 : f32
    %66 = vector.broadcast %cst_43 : f32 to vector<1x16x128xf32>
    %67 = arith.mulf %66, %65 : vector<1x16x128xf32>
    %68 = vector.broadcast %67 : vector<1x16x128xf32> to vector<3x16x128xf32>
    %69 = arith.mulf %68, %49 : vector<3x16x128xf32>
    %70 = arith.subf %48, %69 : vector<3x16x128xf32>
    %71 = arith.addf %51, %70 : vector<3x16x128xf32>
    %c0_44 = arith.constant 0 : index
    %c0_45 = arith.constant 0 : index
    %c0_46 = arith.constant 0 : index
    %c0_47 = arith.constant 0 : index
    %72 = vector.load %arg7[%c0_44, %c0_45, %c0_46, %c0_47] : memref<1x3x16x128xf32, #tpu.memory_space<vmem>>, vector<1x3x16x128xf32>
    %73 = vector.shape_cast %72 : vector<1x3x16x128xf32> to vector<3x16x128xf32>
    %74 = vector.shape_cast %71 : vector<3x16x128xf32> to vector<1x3x16x128xf32>
    tpu.vector_store %arg7[%c0_44, %c0_45, %c0_46, %c0_47], %74 {strides = array<i32>} : memref<1x3x16x128xf32, #tpu.memory_space<vmem>>, vector<1x3x16x128xf32>,
    %c2_i32 = arith.constant 2 : i32
    %c0_48 = arith.constant 0 : index
    %75 = arith.index_cast %c2_i32 : i32 to index
    %c0_49 = arith.constant 0 : index
    %c0_50 = arith.constant 0 : index
    %c0_51 = arith.constant 0 : index
    %76 = vector.load %arg3[%c0_48, %75, %c0_49, %c0_50, %c0_51] : memref<1x4x3x16x16xbf16, #tpu.memory_space<vmem>>, vector<1x1x3x16x16xbf16>
    %77 = vector.shape_cast %76 : vector<1x1x3x16x16xbf16> to vector<3x16x16xbf16>
    %c0_52 = arith.constant 0 : index
    %c0_53 = arith.constant 0 : index
    %78 = vector.load %arg5[%c0_52, %c0_53] : memref<16x256xbf16, #tpu.memory_space<vmem>>, vector<16x256xbf16>
    %79 = vector.shape_cast %77 : vector<3x16x16xbf16> to vector<48x16xbf16>
    %cst_54 = arith.constant dense<0.000000e+00> : vector<48x256xf32>
    %80 = tpu.matmul %79, %78, %cst_54 {dimension_numbers = #tpu.dot_dimension_numbers<[1], [0], [0], [1], [0, 0, 1, 1], [], []>} : vector<48x16xbf16>, vector<16x256xbf16>, vector<48x256xf32> -> vector<48x256xf32>
    %81 = vector.shape_cast %80 : vector<48x256xf32> to vector<3x16x256xf32>
    %c0_55 = arith.constant 0 : index
    %c0_56 = arith.constant 0 : index
    %c0_57 = arith.constant 0 : index
    %82 = vector.load %arg8[%c0_55, %c0_56, %c0_57] : memref<3x16x256xf32, #tpu.memory_space<vmem>>, vector<3x16x256xf32>
    %83 = arith.addf %81, %82 : vector<3x16x256xf32>
    %84 = vector.extract_strided_slice %83 {offsets = [0, 0, 0], sizes = [3, 16, 128], strides = [1, 1, 1]} : vector<3x16x256xf32> to vector<3x16x128xf32>
    %85 = vector.extract_strided_slice %83 {offsets = [0, 0, 128], sizes = [3, 16, 128], strides = [1, 1, 1]} : vector<3x16x256xf32> to vector<3x16x128xf32>
    %c0_58 = arith.constant 0 : index
    %c0_59 = arith.constant 0 : index
    %c0_60 = arith.constant 0 : index
    %c0_61 = arith.constant 0 : index
    %86 = vector.load %arg7[%c0_58, %c0_59, %c0_60, %c0_61] : memref<1x3x16x128xf32, #tpu.memory_space<vmem>>, vector<1x3x16x128xf32>
    %87 = vector.shape_cast %86 : vector<1x3x16x128xf32> to vector<3x16x128xf32>
    %88 = arith.mulf %84, %85 : vector<3x16x128xf32>
    %cst_62 = arith.constant dense<0.000000e+00> : vector<16x128xf32>
    %89 = vector.multi_reduction <add>, %88, %cst_62 [0] : vector<3x16x128xf32> to vector<16x128xf32>
    %90 = vector.shape_cast %89 : vector<16x128xf32> to vector<1x16x128xf32>
    %91 = arith.mulf %85, %85 : vector<3x16x128xf32>
    %cst_63 = arith.constant dense<0.000000e+00> : vector<16x128xf32>
    %92 = vector.multi_reduction <add>, %91, %cst_63 [0] : vector<3x16x128xf32> to vector<16x128xf32>
    %93 = vector.shape_cast %92 : vector<16x128xf32> to vector<1x16x128xf32>
    %cst_64 = arith.constant 0.000000e+00 : f32
    %94 = vector.broadcast %cst_64 : f32 to vector<1x16x128xf32>
    %95 = arith.cmpf olt, %90, %94 : vector<1x16x128xf32>
    %cst_65 = arith.constant 0.000000e+00 : f32
    %96 = vector.broadcast %cst_65 : f32 to vector<1x16x128xf32>
    %97 = arith.select %95, %90, %96 : vector<1x16x128xi1>, vector<1x16x128xf32>
    %cst_66 = arith.constant 9.99999997E-7 : f32
    %98 = vector.broadcast %cst_66 : f32 to vector<1x16x128xf32>
    %99 = arith.addf %93, %98 : vector<1x16x128xf32>
    %100 = tpu.reciprocal %99 {approx = true} : vector<1x16x128xf32> -> vector<1x16x128xf32>
    %101 = arith.mulf %97, %100 : vector<1x16x128xf32>
    %cst_67 = arith.constant 8.000000e-01 : f32
    %102 = vector.broadcast %cst_67 : f32 to vector<1x16x128xf32>
    %103 = arith.mulf %102, %101 : vector<1x16x128xf32>
    %104 = vector.broadcast %103 : vector<1x16x128xf32> to vector<3x16x128xf32>
    %105 = arith.mulf %104, %85 : vector<3x16x128xf32>
    %106 = arith.subf %84, %105 : vector<3x16x128xf32>
    %107 = arith.addf %87, %106 : vector<3x16x128xf32>
    %c0_68 = arith.constant 0 : index
    %c0_69 = arith.constant 0 : index
    %c0_70 = arith.constant 0 : index
    %c0_71 = arith.constant 0 : index
    %108 = vector.load %arg7[%c0_68, %c0_69, %c0_70, %c0_71] : memref<1x3x16x128xf32, #tpu.memory_space<vmem>>, vector<1x3x16x128xf32>
    %109 = vector.shape_cast %108 : vector<1x3x16x128xf32> to vector<3x16x128xf32>
    %110 = vector.shape_cast %107 : vector<3x16x128xf32> to vector<1x3x16x128xf32>
    tpu.vector_store %arg7[%c0_68, %c0_69, %c0_70, %c0_71], %110 {strides = array<i32>} : memref<1x3x16x128xf32, #tpu.memory_space<vmem>>, vector<1x3x16x128xf32>,
    %c3_i32 = arith.constant 3 : i32
    %c0_72 = arith.constant 0 : index
    %111 = arith.index_cast %c3_i32 : i32 to index
    %c0_73 = arith.constant 0 : index
    %c0_74 = arith.constant 0 : index
    %c0_75 = arith.constant 0 : index
    %112 = vector.load %arg3[%c0_72, %111, %c0_73, %c0_74, %c0_75] : memref<1x4x3x16x16xbf16, #tpu.memory_space<vmem>>, vector<1x1x3x16x16xbf16>
    %113 = vector.shape_cast %112 : vector<1x1x3x16x16xbf16> to vector<3x16x16xbf16>
    %c0_76 = arith.constant 0 : index
    %c0_77 = arith.constant 0 : index
    %114 = vector.load %arg5[%c0_76, %c0_77] : memref<16x256xbf16, #tpu.memory_space<vmem>>, vector<16x256xbf16>
    %115 = vector.shape_cast %113 : vector<3x16x16xbf16> to vector<48x16xbf16>
    %cst_78 = arith.constant dense<0.000000e+00> : vector<48x256xf32>
    %116 = tpu.matmul %115, %114, %cst_78 {dimension_numbers = #tpu.dot_dimension_numbers<[1], [0], [0], [1], [0, 0, 1, 1], [], []>} : vector<48x16xbf16>, vector<16x256xbf16>, vector<48x256xf32> -> vector<48x256xf32>
    %117 = vector.shape_cast %116 : vector<48x256xf32> to vector<3x16x256xf32>
    %c0_79 = arith.constant 0 : index
    %c0_80 = arith.constant 0 : index
    %c0_81 = arith.constant 0 : index
    %118 = vector.load %arg8[%c0_79, %c0_80, %c0_81] : memref<3x16x256xf32, #tpu.memory_space<vmem>>, vector<3x16x256xf32>
    %119 = arith.addf %117, %118 : vector<3x16x256xf32>
    %120 = vector.extract_strided_slice %119 {offsets = [0, 0, 0], sizes = [3, 16, 128], strides = [1, 1, 1]} : vector<3x16x256xf32> to vector<3x16x128xf32>
    %121 = vector.extract_strided_slice %119 {offsets = [0, 0, 128], sizes = [3, 16, 128], strides = [1, 1, 1]} : vector<3x16x256xf32> to vector<3x16x128xf32>
    %c0_82 = arith.constant 0 : index
    %c0_83 = arith.constant 0 : index
    %c0_84 = arith.constant 0 : index
    %c0_85 = arith.constant 0 : index
    %122 = vector.load %arg7[%c0_82, %c0_83, %c0_84, %c0_85] : memref<1x3x16x128xf32, #tpu.memory_space<vmem>>, vector<1x3x16x128xf32>
    %123 = vector.shape_cast %122 : vector<1x3x16x128xf32> to vector<3x16x128xf32>
    %124 = arith.mulf %120, %121 : vector<3x16x128xf32>
    %cst_86 = arith.constant dense<0.000000e+00> : vector<16x128xf32>
    %125 = vector.multi_reduction <add>, %124, %cst_86 [0] : vector<3x16x128xf32> to vector<16x128xf32>
    %126 = vector.shape_cast %125 : vector<16x128xf32> to vector<1x16x128xf32>
    %127 = arith.mulf %121, %121 : vector<3x16x128xf32>
    %cst_87 = arith.constant dense<0.000000e+00> : vector<16x128xf32>
    %128 = vector.multi_reduction <add>, %127, %cst_87 [0] : vector<3x16x128xf32> to vector<16x128xf32>
    %129 = vector.shape_cast %128 : vector<16x128xf32> to vector<1x16x128xf32>
    %cst_88 = arith.constant 0.000000e+00 : f32
    %130 = vector.broadcast %cst_88 : f32 to vector<1x16x128xf32>
    %131 = arith.cmpf olt, %126, %130 : vector<1x16x128xf32>
    %cst_89 = arith.constant 0.000000e+00 : f32
    %132 = vector.broadcast %cst_89 : f32 to vector<1x16x128xf32>
    %133 = arith.select %131, %126, %132 : vector<1x16x128xi1>, vector<1x16x128xf32>
    %cst_90 = arith.constant 9.99999997E-7 : f32
    %134 = vector.broadcast %cst_90 : f32 to vector<1x16x128xf32>
    %135 = arith.addf %129, %134 : vector<1x16x128xf32>
    %136 = tpu.reciprocal %135 {approx = true} : vector<1x16x128xf32> -> vector<1x16x128xf32>
    %137 = arith.mulf %133, %136 : vector<1x16x128xf32>
    %cst_91 = arith.constant 8.000000e-01 : f32
    %138 = vector.broadcast %cst_91 : f32 to vector<1x16x128xf32>
    %139 = arith.mulf %138, %137 : vector<1x16x128xf32>
    %140 = vector.broadcast %139 : vector<1x16x128xf32> to vector<3x16x128xf32>
    %141 = arith.mulf %140, %121 : vector<3x16x128xf32>
    %142 = arith.subf %120, %141 : vector<3x16x128xf32>
    %143 = arith.addf %123, %142 : vector<3x16x128xf32>
    %c0_92 = arith.constant 0 : index
    %c0_93 = arith.constant 0 : index
    %c0_94 = arith.constant 0 : index
    %c0_95 = arith.constant 0 : index
    %144 = vector.load %arg7[%c0_92, %c0_93, %c0_94, %c0_95] : memref<1x3x16x128xf32, #tpu.memory_space<vmem>>, vector<1x3x16x128xf32>
    %145 = vector.shape_cast %144 : vector<1x3x16x128xf32> to vector<3x16x128xf32>
    %146 = vector.shape_cast %143 : vector<3x16x128xf32> to vector<1x3x16x128xf32>
    tpu.vector_store %arg7[%c0_92, %c0_93, %c0_94, %c0_95], %146 {strides = array<i32>} : memref<1x3x16x128xf32, #tpu.memory_space<vmem>>, vector<1x3x16x128xf32>,
    %c4_i32 = arith.constant 4 : i32
    %c0_i32_96 = arith.constant 0 : i32
    %147 = arith.cmpi eq, %arg2, %c0_i32_96 : i32
    %148 = arith.extui %147 : i1 to i32
    %c0_i32_97 = arith.constant 0 : i32
    %149 = arith.cmpi ne, %148, %c0_i32_97 : i32
    scf.if %149 {
      %c0_98 = arith.constant 0 : index
      %c0_99 = arith.constant 0 : index
      %c0_100 = arith.constant 0 : index
      %c0_101 = arith.constant 0 : index
      %150 = vector.load %arg7[%c0_98, %c0_99, %c0_100, %c0_101] : memref<1x3x16x128xf32, #tpu.memory_space<vmem>>, vector<1x3x16x128xf32>
      %151 = vector.shape_cast %150 : vector<1x3x16x128xf32> to vector<3x16x128xf32>
      %cst_102 = arith.constant 2.500000e-01 : f32
      %152 = vector.broadcast %cst_102 : f32 to vector<3x16x128xf32>
      %153 = arith.mulf %151, %152 : vector<3x16x128xf32>
      %c0_103 = arith.constant 0 : index
      %c0_104 = arith.constant 0 : index
      %c0_105 = arith.constant 0 : index
      %c0_106 = arith.constant 0 : index
      %154 = vector.load %arg7[%c0_103, %c0_104, %c0_105, %c0_106] : memref<1x3x16x128xf32, #tpu.memory_space<vmem>>, vector<1x3x16x128xf32>
      %155 = vector.shape_cast %154 : vector<1x3x16x128xf32> to vector<3x16x128xf32>
      %156 = vector.shape_cast %153 : vector<3x16x128xf32> to vector<1x3x16x128xf32>
      tpu.vector_store %arg7[%c0_103, %c0_104, %c0_105, %c0_106], %156 {strides = array<i32>} : memref<1x3x16x128xf32, #tpu.memory_space<vmem>>, vector<1x3x16x128xf32>,
    } else {
    }
    return
  }
  func.func @transform_0(%arg0: i32, %arg1: i32, %arg2: i32) -> (i32, i32, i32, i32, i32) {
    %c0_i32 = arith.constant 0 : i32
    %c0_i32_0 = arith.constant 0 : i32
    %c0_i32_1 = arith.constant 0 : i32
    return %arg0, %arg2, %c0_i32, %arg1, %c0_i32_0 : i32, i32, i32, i32, i32
  }
  func.func @transform_1(%arg0: i32, %arg1: i32, %arg2: i32) -> (i32, i32, i32, i32) {
    %c0_i32 = arith.constant 0 : i32
    %c0_i32_0 = arith.constant 0 : i32
    %c0_i32_1 = arith.constant 0 : i32
    return %arg0, %c0_i32, %arg1, %c0_i32_0 : i32, i32, i32, i32
  }
  func.func @transform_2(%arg0: i32, %arg1: i32, %arg2: i32) -> (i32, i32) {
    %c0_i32 = arith.constant 0 : i32
    %c0_i32_0 = arith.constant 0 : i32
    %c0_i32_1 = arith.constant 0 : i32
    return %c0_i32, %c0_i32_0 : i32, i32
  }
  func.func @transform_3(%arg0: i32, %arg1: i32, %arg2: i32) -> (i32, i32) {
    %c0_i32 = arith.constant 0 : i32
    %c0_i32_0 = arith.constant 0 : i32
    %c0_i32_1 = arith.constant 0 : i32
    return %c0_i32, %c0_i32_0 : i32, i32
  }
  func.func @transform_4(%arg0: i32, %arg1: i32, %arg2: i32) -> (i32, i32, i32, i32) {
    %c0_i32 = arith.constant 0 : i32
    %c0_i32_0 = arith.constant 0 : i32
    %c0_i32_1 = arith.constant 0 : i32
    return %arg0, %c0_i32, %arg1, %c0_i32_0 : i32, i32, i32, i32
  }
}

module attributes {stable_mosaic.version = 11 : i64} {
  func.func @_point_conv_kernel(%arg0: i32, %arg1: i32, %arg2: memref<1x3x16x64xbf16, #tpu.memory_space<vmem>>, %arg3: memref<64x256xbf16, #tpu.memory_space<vmem>>, %arg4: memref<1x3x128xf32, #tpu.memory_space<vmem>>) attributes {dimension_semantics = [#tpu.dimension_semantics<parallel>, #tpu.dimension_semantics<arbitrary>], iteration_bounds = array<i64: 2, 1>, scalar_prefetch = 0 : i64, scratch_operands = 0 : i64, tpu.core_type = #tpu.core_type<tc>, window_params = [{transform_indices = @transform_0, window_bounds = array<i64: 1, 3, 16, 64>}, {pipeline_mode = #tpu.pipeline_mode<synchronous>, transform_indices = @transform_1, window_bounds = array<i64: 64, 256>}, {transform_indices = @transform_2, window_bounds = array<i64: 1, 3, 128>}]} {
    %c0_i32 = arith.constant 0 : i32
    %0 = arith.cmpi eq, %arg1, %c0_i32 : i32
    %1 = arith.extui %0 : i1 to i32
    %c0_i32_0 = arith.constant 0 : i32
    %2 = arith.cmpi ne, %1, %c0_i32_0 : i32
    scf.if %2 {
      %cst_21 = arith.constant 0.000000e+00 : f32
      %43 = vector.broadcast %cst_21 : f32 to vector<3x128xf32>
      %c0_22 = arith.constant 0 : index
      %c0_23 = arith.constant 0 : index
      %c0_24 = arith.constant 0 : index
      %44 = vector.load %arg4[%c0_22, %c0_23, %c0_24] : memref<1x3x128xf32, #tpu.memory_space<vmem>>, vector<1x3x128xf32>
      %45 = vector.shape_cast %44 : vector<1x3x128xf32> to vector<3x128xf32>
      %46 = vector.shape_cast %43 : vector<3x128xf32> to vector<1x3x128xf32>
      tpu.vector_store %arg4[%c0_22, %c0_23, %c0_24], %46 {strides = array<i32>} : memref<1x3x128xf32, #tpu.memory_space<vmem>>, vector<1x3x128xf32>,
    } else {
    }
    %c0 = arith.constant 0 : index
    %c0_1 = arith.constant 0 : index
    %c0_2 = arith.constant 0 : index
    %c0_3 = arith.constant 0 : index
    %3 = vector.load %arg2[%c0, %c0_1, %c0_2, %c0_3] : memref<1x3x16x64xbf16, #tpu.memory_space<vmem>>, vector<1x3x16x64xbf16>
    %4 = vector.shape_cast %3 : vector<1x3x16x64xbf16> to vector<3x16x64xbf16>
    %5 = vector.shape_cast %4 : vector<3x16x64xbf16> to vector<48x64xbf16>
    %c0_4 = arith.constant 0 : index
    %c0_5 = arith.constant 0 : index
    %6 = vector.load %arg3[%c0_4, %c0_5] : memref<64x256xbf16, #tpu.memory_space<vmem>>, vector<64x256xbf16>
    %cst = arith.constant dense<0.000000e+00> : vector<48x256xf32>
    %7 = tpu.matmul %5, %6, %cst {dimension_numbers = #tpu.dot_dimension_numbers<[1], [0], [0], [1], [0, 0, 1, 1], [], []>} : vector<48x64xbf16>, vector<64x256xbf16>, vector<48x256xf32> -> vector<48x256xf32>
    %8 = vector.shape_cast %7 : vector<48x256xf32> to vector<3x16x256xf32>
    %9 = vector.extract_strided_slice %8 {offsets = [0, 0, 0], sizes = [3, 16, 128], strides = [1, 1, 1]} : vector<3x16x256xf32> to vector<3x16x128xf32>
    %10 = vector.extract_strided_slice %8 {offsets = [0, 0, 128], sizes = [3, 16, 1], strides = [1, 1, 1]} : vector<3x16x256xf32> to vector<3x16x1xf32>
    %11 = vector.broadcast %10 : vector<3x16x1xf32> to vector<3x16x128xf32>
    %12 = arith.mulf %9, %11 : vector<3x16x128xf32>
    %cst_6 = arith.constant dense<0.000000e+00> : vector<16x128xf32>
    %13 = vector.multi_reduction <add>, %12, %cst_6 [0] : vector<3x16x128xf32> to vector<16x128xf32>
    %14 = vector.shape_cast %13 : vector<16x128xf32> to vector<1x16x128xf32>
    %15 = arith.mulf %10, %10 : vector<3x16x1xf32>
    %cst_7 = arith.constant dense<0.000000e+00> : vector<16x1xf32>
    %16 = vector.multi_reduction <add>, %15, %cst_7 [0] : vector<3x16x1xf32> to vector<16x1xf32>
    %17 = vector.shape_cast %16 : vector<16x1xf32> to vector<1x16x1xf32>
    %cst_8 = arith.constant 0.000000e+00 : f32
    %18 = vector.broadcast %cst_8 : f32 to vector<1x16x128xf32>
    %19 = arith.cmpf olt, %14, %18 : vector<1x16x128xf32>
    %cst_9 = arith.constant 0.000000e+00 : f32
    %20 = vector.broadcast %cst_9 : f32 to vector<1x16x128xf32>
    %21 = arith.select %19, %14, %20 : vector<1x16x128xi1>, vector<1x16x128xf32>
    %cst_10 = arith.constant 9.99999997E-7 : f32
    %22 = vector.broadcast %cst_10 : f32 to vector<1x16x1xf32>
    %23 = arith.addf %17, %22 : vector<1x16x1xf32>
    %24 = tpu.reciprocal %23 {approx = true} : vector<1x16x1xf32> -> vector<1x16x1xf32>
    %25 = vector.broadcast %24 : vector<1x16x1xf32> to vector<1x16x128xf32>
    %26 = arith.mulf %21, %25 : vector<1x16x128xf32>
    %cst_11 = arith.constant 8.000000e-01 : f32
    %27 = vector.broadcast %cst_11 : f32 to vector<1x16x128xf32>
    %28 = arith.mulf %27, %26 : vector<1x16x128xf32>
    %29 = vector.broadcast %28 : vector<1x16x128xf32> to vector<3x16x128xf32>
    %30 = vector.broadcast %10 : vector<3x16x1xf32> to vector<3x16x128xf32>
    %31 = arith.mulf %29, %30 : vector<3x16x128xf32>
    %32 = arith.subf %9, %31 : vector<3x16x128xf32>
    %c0_12 = arith.constant 0 : index
    %c0_13 = arith.constant 0 : index
    %c0_14 = arith.constant 0 : index
    %33 = vector.load %arg4[%c0_12, %c0_13, %c0_14] : memref<1x3x128xf32, #tpu.memory_space<vmem>>, vector<1x3x128xf32>
    %34 = vector.shape_cast %33 : vector<1x3x128xf32> to vector<3x128xf32>
    %cst_15 = arith.constant dense<0.000000e+00> : vector<3x128xf32>
    %35 = vector.multi_reduction <add>, %32, %cst_15 [1] : vector<3x16x128xf32> to vector<3x128xf32>
    %36 = arith.addf %34, %35 : vector<3x128xf32>
    %c0_16 = arith.constant 0 : index
    %c0_17 = arith.constant 0 : index
    %c0_18 = arith.constant 0 : index
    %37 = vector.load %arg4[%c0_16, %c0_17, %c0_18] : memref<1x3x128xf32, #tpu.memory_space<vmem>>, vector<1x3x128xf32>
    %38 = vector.shape_cast %37 : vector<1x3x128xf32> to vector<3x128xf32>
    %39 = vector.shape_cast %36 : vector<3x128xf32> to vector<1x3x128xf32>
    tpu.vector_store %arg4[%c0_16, %c0_17, %c0_18], %39 {strides = array<i32>} : memref<1x3x128xf32, #tpu.memory_space<vmem>>, vector<1x3x128xf32>,
    %c0_i32_19 = arith.constant 0 : i32
    %40 = arith.cmpi eq, %arg1, %c0_i32_19 : i32
    %41 = arith.extui %40 : i1 to i32
    %c0_i32_20 = arith.constant 0 : i32
    %42 = arith.cmpi ne, %41, %c0_i32_20 : i32
    scf.if %42 {
      %c0_21 = arith.constant 0 : index
      %c0_22 = arith.constant 0 : index
      %c0_23 = arith.constant 0 : index
      %43 = vector.load %arg4[%c0_21, %c0_22, %c0_23] : memref<1x3x128xf32, #tpu.memory_space<vmem>>, vector<1x3x128xf32>
      %44 = vector.shape_cast %43 : vector<1x3x128xf32> to vector<3x128xf32>
      %cst_24 = arith.constant 6.250000e-02 : f32
      %45 = vector.broadcast %cst_24 : f32 to vector<3x128xf32>
      %46 = arith.mulf %44, %45 : vector<3x128xf32>
      %c0_25 = arith.constant 0 : index
      %c0_26 = arith.constant 0 : index
      %c0_27 = arith.constant 0 : index
      %47 = vector.load %arg4[%c0_25, %c0_26, %c0_27] : memref<1x3x128xf32, #tpu.memory_space<vmem>>, vector<1x3x128xf32>
      %48 = vector.shape_cast %47 : vector<1x3x128xf32> to vector<3x128xf32>
      %49 = vector.shape_cast %46 : vector<3x128xf32> to vector<1x3x128xf32>
      tpu.vector_store %arg4[%c0_25, %c0_26, %c0_27], %49 {strides = array<i32>} : memref<1x3x128xf32, #tpu.memory_space<vmem>>, vector<1x3x128xf32>,
    } else {
    }
    return
  }
  func.func @transform_0(%arg0: i32, %arg1: i32) -> (i32, i32, i32, i32) {
    %c0_i32 = arith.constant 0 : i32
    %c0_i32_0 = arith.constant 0 : i32
    %c0_i32_1 = arith.constant 0 : i32
    return %arg0, %c0_i32, %arg1, %c0_i32_0 : i32, i32, i32, i32
  }
  func.func @transform_1(%arg0: i32, %arg1: i32) -> (i32, i32) {
    %c0_i32 = arith.constant 0 : i32
    %c0_i32_0 = arith.constant 0 : i32
    %c0_i32_1 = arith.constant 0 : i32
    return %c0_i32, %c0_i32_0 : i32, i32
  }
  func.func @transform_2(%arg0: i32, %arg1: i32) -> (i32, i32, i32) {
    %c0_i32 = arith.constant 0 : i32
    %c0_i32_0 = arith.constant 0 : i32
    %c0_i32_1 = arith.constant 0 : i32
    return %arg0, %c0_i32, %c0_i32_0 : i32, i32, i32
  }
}

</mosaic_0001>

<llo_original>
// kernel: vn_dgcnn_encoder.9
$region0: #{vn_dgcnn_encoder.9}
  #allocation0 [shape = 'u32[]', space=smem, size = 0x4, offset = 0x4, fixed_abs, tag = 'smem constant byte address 0x4 - core index']
  #allocation1 [shape = 'u32[144,128]{1,0:T(1,128)}', space=vmem, size = 0x12000, scoped, tag = 'internal scratch']
  %s0 = inlined_call_operand.vmem [shape: f32[2,16,8], index: 0, kind: input, shape index: {}]
  %s1 = inlined_call_operand.vmem [shape: f32[2,8,16], index: 1, kind: input, shape index: {}]
  %s2 = inlined_call_operand.vmem [shape: f32[2,1,16], index: 2, kind: input, shape index: {}]
  %s3 = inlined_call_operand.vmem [shape: f32[2,16,16], index: 3, kind: output, shape index: {}]
  %s4 = sld [smem:[#allocation0]]
  $region45: #{vn_dgcnn_encoder.9} parent=0
    _
  %s6 = ssub.s32 1, %s4
  %s7 = scalar_select 0, %s6, %s4
  loop: start=0, step=1, limit=4
  $region2: #{vn_dgcnn_encoder.9} parent=0 // loop_pre_header
    _
  $region3: #{vn_dgcnn_encoder.9} parent=0 // loop_header
    %s9 = sphi 0, %s13
    %p10 = scmp.ge.s32.totalorder %s9, 4
    %s16 = sphi 0, %s28
    %s17 = sphi 0, %s24
    %s18 = sphi 0, %s16
    %s19 = sphi 0, %s17
    %s20 = sphi 0, %s18
    %s21 = sphi 0, %s19
    %s33 = sphi 0, %s35
    %s36 = sphi 0, %s33
    %s37 = sphi 0, %s36
    %s53 = sphi 0, %s37
    %s59 = sphi 0, %s61
    %s62 = sphi 0, %s59
    %s63 = sphi 0, %s62
    %s79 = sphi 0, %s63
    %s85 = sphi 0, %s87
    %s88 = sphi 0, %s85
    %s89 = sphi 0, %s88
    %s105 = sphi 0, %s89
    %s113 = sphi 0, %s115
    %s116 = sphi 0, %s113
    %s117 = sphi 0, %s116
    %s133 = sphi 0, %s117
  $region4: #{vn_dgcnn_encoder.9} parent=0 // loop_header_branch
    %12 = sbr.rel (%p10) target = $region8
  $region5: #{vn_dgcnn_encoder.9} parent=0 // loop_body
    %s14 = ssub.s32 %s9, 1
    %s15 = ssub.s32 %s9, 2
    %s22 = sadd.s32 1, %s17
    %p23 = scmp.ge.s32.totalorder %s22, 1
    %s24 = scalar_select %p23, 0, %s22
    %s25 = sadd.s32 1, %s16
    %s26 = scalar_select %p23, %s25, %s16
    %p27 = scmp.ge.s32.totalorder %s26, 2
    %s28 = scalar_select %p27, 0, %s26
    %s29 = ssub.s32 %s16, %s28
    %s30 = ssub.s32 %s17, %s24
    %s31 = sor.u32 %s29, %s30
    %p32 = scmp.eq.s32.totalorder %s31, 0
    %s34 = sadd.s32 %s33, 1
    %s35 = scalar_select %p32, %s33, %s34
    %p38 = pneg %p32
    %p39 = scmp.eq.s32.totalorder %s9, 1
    %p40 = por %p38, %p39
    %p41 = scmp.ne.s32.totalorder %s33, %s36
    %p42 = scmp.eq.s32.totalorder %s9, 0
    %p43 = por %p41, %p42
    %p44 = scmp.ne.s32.totalorder %s33, %s36
    %p45 = scmp.eq.s32.totalorder %s14, 1
    %p46 = por %p44, %p45
    %p47 = scmp.ne.s32.totalorder %s36, %s37
    %p48 = scmp.eq.s32.totalorder %s14, 0
    %p49 = por %p47, %p48
    %p50 = scmp.ne.s32.totalorder %s36, %s37
    %p51 = scmp.eq.s32.totalorder %s15, 1
    %p52 = por %p50, %p51
    %p54 = scmp.ne.s32.totalorder %s37, %s53
    %p55 = scmp.eq.s32.totalorder %s15, 0
    %p56 = por %p54, %p55
    %s57 = ssub.s32 %s16, %s28
    %p58 = scmp.eq.s32.totalorder %s57, 0
    %s60 = sadd.s32 %s59, 1
    %s61 = scalar_select %p58, %s59, %s60
    %p64 = pneg %p58
    %p65 = scmp.eq.s32.totalorder %s9, 1
    %p66 = por %p64, %p65
    %p67 = scmp.ne.s32.totalorder %s59, %s62
    %p68 = scmp.eq.s32.totalorder %s9, 0
    %p69 = por %p67, %p68
    %p70 = scmp.ne.s32.totalorder %s59, %s62
    %p71 = scmp.eq.s32.totalorder %s14, 1
    %p72 = por %p70, %p71
    %p73 = scmp.ne.s32.totalorder %s62, %s63
    %p74 = scmp.eq.s32.totalorder %s14, 0
    %p75 = por %p73, %p74
    %p76 = scmp.ne.s32.totalorder %s62, %s63
    %p77 = scmp.eq.s32.totalorder %s15, 1
    %p78 = por %p76, %p77
    %p80 = scmp.ne.s32.totalorder %s63, %s79
    %p81 = scmp.eq.s32.totalorder %s15, 0
    %p82 = por %p80, %p81
    %s83 = ssub.s32 %s16, %s28
    %p84 = scmp.eq.s32.totalorder %s83, 0
    %s86 = sadd.s32 %s85, 1
    %s87 = scalar_select %p84, %s85, %s86
    %p90 = pneg %p84
    %p91 = scmp.eq.s32.totalorder %s9, 1
    %p92 = por %p90, %p91
    %p93 = scmp.ne.s32.totalorder %s85, %s88
    %p94 = scmp.eq.s32.totalorder %s9, 0
    %p95 = por %p93, %p94
    %p96 = scmp.ne.s32.totalorder %s85, %s88
    %p97 = scmp.eq.s32.totalorder %s14, 1
    %p98 = por %p96, %p97
    %p99 = scmp.ne.s32.totalorder %s88, %s89
    %p100 = scmp.eq.s32.totalorder %s14, 0
    %p101 = por %p99, %p100
    %p102 = scmp.ne.s32.totalorder %s88, %s89
    %p103 = scmp.eq.s32.totalorder %s15, 1
    %p104 = por %p102, %p103
    %p106 = scmp.ne.s32.totalorder %s89, %s105
    %p107 = scmp.eq.s32.totalorder %s15, 0
    %p108 = por %p106, %p107
    %s109 = ssub.s32 %s16, %s28
    %s110 = ssub.s32 %s17, %s24
    %s111 = sor.u32 %s109, %s110
    %p112 = scmp.eq.s32.totalorder %s111, 0
    %s114 = sadd.s32 %s113, 1
    %s115 = scalar_select %p112, %s113, %s114
    %p118 = pneg %p112
    %p119 = scmp.eq.s32.totalorder %s9, 1
    %p120 = por %p118, %p119
    %p121 = scmp.ne.s32.totalorder %s113, %s116
    %p122 = scmp.eq.s32.totalorder %s9, 0
    %p123 = por %p121, %p122
    %p124 = scmp.ne.s32.totalorder %s113, %s116
    %p125 = scmp.eq.s32.totalorder %s14, 1
    %p126 = por %p124, %p125
    %p127 = scmp.ne.s32.totalorder %s116, %s117
    %p128 = scmp.eq.s32.totalorder %s14, 0
    %p129 = por %p127, %p128
    %p130 = scmp.ne.s32.totalorder %s116, %s117
    %p131 = scmp.eq.s32.totalorder %s15, 1
    %p132 = por %p130, %p131
    %p134 = scmp.ne.s32.totalorder %s117, %s133
    %p135 = scmp.eq.s32.totalorder %s15, 0
    %p136 = por %p134, %p135
    %p137 = scmp.le.s32.totalorder 1, %s9
    %p138 = scmp.lt.s32.totalorder %s9, 3
    %p139 = pnand %p137, %p138
    %p140 = pneg %p139
    // Predicated region
    $region9: #{vn_dgcnn_encoder.9} parent=5 // pred_check
      _
    $region10: #{vn_dgcnn_encoder.9} parent=5 // pred_check_branch
      %142 = sbr.rel (%p139) target = $region12
    $region11: #{vn_dgcnn_encoder.9} parent=5 // pred_region
      %s143 = ssub.s32 %s9, 1
    $region12: #{vn_dgcnn_encoder.9} parent=5 // pred_fallthru
      _
    %p144 = scmp.lt.s32.totalorder %s9, 2
    // Predicated region
    $region13: #{vn_dgcnn_encoder.9} parent=5 // pred_check
      %p145 = pneg %p144
    $region14: #{vn_dgcnn_encoder.9} parent=5 // pred_check_branch
      %147 = sbr.rel (%p145) target = $region16
    $region15: #{vn_dgcnn_encoder.9} parent=5 // pred_region
      // Predicated region
      $region17: #{vn_dgcnn_encoder.9} parent=15 // pred_check
        %p148 = pneg %p43
      $region18: #{vn_dgcnn_encoder.9} parent=15 // pred_check_branch
        %150 = sbr.rel (%p148) target = $region20
      $region19: #{vn_dgcnn_encoder.9} parent=15 // pred_region
        %s151 = smul.u32 2, %s17
        %p152 = scmp.lt.s32.totalorder %s16, 1
        %s153 = scalar_select %p152, %s16, 1
        %p154 = scmp.lt.s32.totalorder %s151, 1
        %s155 = scalar_select %p154, %s151, 1
        %s156 = smul.addr %s153, 2
        %s157 = sadd.s32 %s155, %s156
        %s158 = smul.addr %s157, 8
        %s159 = scalar_lea.vmem %s0, %s158
        %s160 = smul.u32 2, %s17
      $region20: #{vn_dgcnn_encoder.9} parent=15 // pred_fallthru
        _
      // Predicated region
      $region21: #{vn_dgcnn_encoder.9} parent=15 // pred_check
        %p161 = pneg %p69
      $region22: #{vn_dgcnn_encoder.9} parent=15 // pred_check_branch
        %163 = sbr.rel (%p161) target = $region24
      $region23: #{vn_dgcnn_encoder.9} parent=15 // pred_region
        %p164 = scmp.lt.s32.totalorder %s16, 1
        %s165 = scalar_select %p164, %s16, 1
        %s166 = smul.addr %s165, 8
        %s167 = scalar_lea.vmem %s1, %s166
      $region24: #{vn_dgcnn_encoder.9} parent=15 // pred_fallthru
        _
      // Predicated region
      $region25: #{vn_dgcnn_encoder.9} parent=15 // pred_check
        %p168 = pneg %p95
      $region26: #{vn_dgcnn_encoder.9} parent=15 // pred_check_branch
        %170 = sbr.rel (%p168) target = $region28
      $region27: #{vn_dgcnn_encoder.9} parent=15 // pred_region
        %p171 = scmp.lt.s32.totalorder %s16, 1
        %s172 = scalar_select %p171, %s16, 1
        %s173 = scalar_lea.vmem %s2, %s172
      $region28: #{vn_dgcnn_encoder.9} parent=15 // pred_fallthru
        _
    $region16: #{vn_dgcnn_encoder.9} parent=5 // pred_fallthru
      _
    %p174 = scmp.le.s32.totalorder 1, %s9
    %p175 = scmp.lt.s32.totalorder %s9, 3
    %p176 = pnand %p174, %p175
    %p177 = pneg %p176
    // Predicated region
    $region29: #{vn_dgcnn_encoder.9} parent=5 // pred_check
      _
    $region30: #{vn_dgcnn_encoder.9} parent=5 // pred_check_branch
      %179 = sbr.rel (%p176) target = $region32
    $region31: #{vn_dgcnn_encoder.9} parent=5 // pred_region
      %s180 = ssub.s32 %s9, 1
      %s181 = smul.u32 2, %s19
      %p182 = scmp.lt.s32.totalorder %s18, 1
      %s183 = scalar_select %p182, %s18, 1
      %p184 = scmp.lt.s32.totalorder %s181, 1
      %s185 = scalar_select %p184, %s181, 1
      %s186 = smul.addr %s183, 2
      %s187 = sadd.s32 %s185, %s186
      %s188 = smul.addr %s187, 8
      %s189 = scalar_lea.vmem %s0, %s188
      %p190 = pneg %p49
      %p191 = pneg %p46
      %p192 = scmp.lt.s32.totalorder %s18, 1
      %s193 = scalar_select %p192, %s18, 1
      %s194 = smul.addr %s193, 8
      %s195 = scalar_lea.vmem %s1, %s194
      %p196 = pneg %p75
      %p197 = pneg %p72
      %p198 = scmp.lt.s32.totalorder %s18, 1
      %s199 = scalar_select %p198, %s18, 1
      %s200 = scalar_lea.vmem %s2, %s199
      %p201 = pneg %p101
      %p202 = pneg %p98
      %p203 = pneg %p129
      %p204 = pneg %p126
      %s205 = smul.u32 2, %s19
      %p206 = scmp.lt.s32.totalorder %s18, 1
      %s207 = scalar_select %p206, %s18, 1
      %p208 = scmp.lt.s32.totalorder %s205, 1
      %s209 = scalar_select %p208, %s205, 1
      %s210 = smul.addr %s207, 2
      %s211 = sadd.s32 %s209, %s210
      %s212 = smul.addr %s211, 8
      %s213 = scalar_lea.vmem %s3, %s212
      %s214 = smul.u32 2, %s19
      %p215 = scmp.lt.s32.totalorder %s18, 1
      %s216 = scalar_select %p215, %s18, 1
      %p217 = scmp.lt.s32.totalorder %s214, 1
      %s218 = scalar_select %p217, %s214, 1
      %s219 = smul.addr %s216, 2
      %s220 = sadd.s32 %s218, %s219
      %s221 = smul.addr %s220, 8
      %s222 = scalar_lea.vmem %s0, %s221
      %s223 = smul.u32 2, %s19
      %p224 = scmp.lt.s32.totalorder %s18, 1
      %s225 = scalar_select %p224, %s18, 1
      %s226 = smul.addr %s225, 8
      %s227 = scalar_lea.vmem %s1, %s226
      %p228 = scmp.lt.s32.totalorder %s18, 1
      %s229 = scalar_select %p228, %s18, 1
      %s230 = scalar_lea.vmem %s2, %s229
      %s231 = smul.u32 2, %s19
      %p232 = scmp.lt.s32.totalorder %s18, 1
      %s233 = scalar_select %p232, %s18, 1
      %p234 = scmp.lt.s32.totalorder %s231, 1
      %s235 = scalar_select %p234, %s231, 1
      %s236 = smul.addr %s233, 2
      %s237 = sadd.s32 %s235, %s236
      %s238 = smul.addr %s237, 8
      %s239 = scalar_lea.vmem %s3, %s238
      %s240 = smul.u32 2, %s19
      %v241 = vld [vmem:[%s222] sm:$0xff]
      %v242 = vld [vmem:[%s222 + $0x8] sm:$0xff]
      %v243 = vld [vmem:[%s227] sm:$0xff]
      %vm244 = vcmask 64512
      %v246 = vsel %vm244, %v241, 0
      %v249 = vsel %vm244, %v242, 0
      %251 = vmatprep.subr.mxu0 0.0
      %252 = vmatpush1.msra.mxu0 %v243
      %253 = vmatprep.subr.mxu0 0.0
      %254 = vmatpush1.msra.mxu0 0.0
      %255 = vmatprep.subr.mxu0 0.0
      %256 = vmatpush1.msra.mxu0 0.0
      %257 = vmatprep.subr.mxu0 0.0
      %258 = vmatpush1.msra.mxu0 0.0
      %259 = vmatprep.subr.mxu0 0.0
      %260 = vmatpush1.msra.mxu0 0.0
      %261 = vmatprep.subr.mxu0 0.0
      %262 = vmatpush1.msra.mxu0 0.0
      %263 = vmatprep.subr.mxu0 0.0
      %264 = vmatpush1.msra.mxu0 0.0
      %265 = vmatprep.subr.mxu0 0.0
      %266 = vmatpush1.msra.mxu0 0.0
      %267 = vmatprep.subr.mxu0 0.0
      %268 = vmatpush1.msra.mxu0 0.0
      %269 = vmatprep.subr.mxu0 0.0
      %270 = vmatpush1.msra.mxu0 0.0
      %271 = vmatprep.subr.mxu0 0.0
      %272 = vmatpush1.msra.mxu0 0.0
      %273 = vmatprep.subr.mxu0 0.0
      %274 = vmatpush1.msra.mxu0 0.0
      %275 = vmatprep.subr.mxu0 0.0
      %276 = vmatpush1.msra.mxu0 0.0
      %277 = vmatprep.subr.mxu0 0.0
      %278 = vmatpush1.msra.mxu0 0.0
      %279 = vmatprep.subr.mxu0 0.0
      %280 = vmatpush1.msra.mxu0 0.0
      %281 = vmatprep.subr.mxu0 0.0
      %282 = vmatpush1.msra.mxu0 0.0
      %283 = vmatprep.subr.mxu0 0.0
      %284 = vmatpush1.msra.mxu0 0.0
      %285 = vmatprep.subr.mxu0 0.0
      %286 = vmatpush1.msra.mxu0 0.0
      %287 = vmatprep.subr.mxu0 0.0
      %288 = vmatpush1.msra.mxu0 0.0
      %289 = vmatprep.subr.mxu0 0.0
      %290 = vmatpush1.msra.mxu0 0.0
      %291 = vmatprep.subr.mxu0 0.0
      %292 = vmatpush1.msra.mxu0 0.0
      %293 = vmatprep.subr.mxu0 0.0
      %294 = vmatpush1.msra.mxu0 0.0
      %295 = vmatprep.subr.mxu0 0.0
      %296 = vmatpush1.msra.mxu0 0.0
      %297 = vmatprep.subr.mxu0 0.0
      %298 = vmatpush1.msra.mxu0 0.0
      %299 = vmatprep.subr.mxu0 0.0
      %300 = vmatpush1.msra.mxu0 0.0
      %301 = vmatprep.subr.mxu0 0.0
      %302 = vmatpush1.msra.mxu0 0.0
      %303 = vmatprep.subr.mxu0 0.0
      %304 = vmatpush1.msra.mxu0 0.0
      %305 = vmatprep.subr.mxu0 0.0
      %306 = vmatpush1.msra.mxu0 0.0
      %307 = vmatprep.subr.mxu0 0.0
      %308 = vmatpush1.msra.mxu0 0.0
      %309 = vmatprep.subr.mxu0 0.0
      %310 = vmatpush1.msra.mxu0 0.0
      %311 = vmatprep.subr.mxu0 0.0
      %312 = vmatpush1.msra.mxu0 0.0
      %313 = vmatprep.subr.mxu0 0.0
      %314 = vmatpush1.msra.mxu0 0.0
      %315 = vmatprep.mubr.f32.mxu0 0.0
      %316 = vmatmul.mubr.f32.gmra.mrb[0].mxu0 %v246
      %v317 = vpop.f32.mrb[0].mxu0
      %v318 = vadd.f32 0.0, %v317
      %v319 = vpop.f32.mrb[0].mxu0
      %320 = vmatprep.mubr.f32.mxu0 0.0
      %321 = vmatmul.mubr.f32.gmra.mrb[0].mxu0 %v249
      %v322 = vpop.f32.mrb[0].mxu0
      %v323 = vadd.f32 0.0, %v322
      %v324 = vpop.f32.mrb[0].mxu0
      %325 = vdwg.mxu0
      %v326 = vmul.f32 %v318, 2.0
      %v327 = vmul.f32 %v323, 2.0
      %v328 = vld [vmem:[%s230] sm:$0x1]
      %v330 = vlaneseq
      %v331 = vshrl.u32 %v330, 7
      %v332 = vsub.s32 0, %v331
      %v333 = vrot.slane %v328, %v332
      %v335 = vsub.f32 %v326, %v333
      %v336 = vsub.f32 %v327, %v333
      %vm337 = vcmask 130048
      %338 = vst.msk [vmem:[%s239] sm:$0xff] %vm337, %v335
      %339 = vst.msk [vmem:[%s239 + $0x8] sm:$0xff] %vm337, %v336
      %s340 = smul.u32 2, %s19
      %p341 = scmp.lt.s32.totalorder %s18, 1
      %s342 = scalar_select %p341, %s18, 1
      %p343 = scmp.lt.s32.totalorder %s340, 1
      %s344 = scalar_select %p343, %s340, 1
      %s345 = smul.addr %s342, 2
      %s346 = sadd.s32 %s344, %s345
      %s347 = smul.addr %s346, 8
      %s348 = scalar_lea.vmem %s3, %s347
      // Predicated region
      $region33: #{vn_dgcnn_encoder.9} parent=31 // pred_check
        %p349 = pneg %p126
      $region34: #{vn_dgcnn_encoder.9} parent=31 // pred_check_branch
        %351 = sbr.rel (%p349) target = $region36
      $region35: #{vn_dgcnn_encoder.9} parent=31 // pred_region
        %s352 = smul.u32 2, %s19
      $region36: #{vn_dgcnn_encoder.9} parent=31 // pred_fallthru
        _
    $region32: #{vn_dgcnn_encoder.9} parent=5 // pred_fallthru
      _
    %p353 = scmp.le.s32.totalorder 2, %s9
    // Predicated region
    $region37: #{vn_dgcnn_encoder.9} parent=5 // pred_check
      %p354 = pneg %p353
    $region38: #{vn_dgcnn_encoder.9} parent=5 // pred_check_branch
      %356 = sbr.rel (%p354) target = $region40
    $region39: #{vn_dgcnn_encoder.9} parent=5 // pred_region
      %s357 = ssub.s32 %s9, 2
      // Predicated region
      $region41: #{vn_dgcnn_encoder.9} parent=39 // pred_check
        %p358 = pneg %p132
      $region42: #{vn_dgcnn_encoder.9} parent=39 // pred_check_branch
        %360 = sbr.rel (%p358) target = $region44
      $region43: #{vn_dgcnn_encoder.9} parent=39 // pred_region
        %s361 = smul.u32 2, %s21
        %p362 = scmp.lt.s32.totalorder %s20, 1
        %s363 = scalar_select %p362, %s20, 1
        %p364 = scmp.lt.s32.totalorder %s361, 1
        %s365 = scalar_select %p364, %s361, 1
        %s366 = smul.addr %s363, 2
        %s367 = sadd.s32 %s365, %s366
        %s368 = smul.addr %s367, 8
        %s369 = scalar_lea.vmem %s3, %s368
      $region44: #{vn_dgcnn_encoder.9} parent=39 // pred_fallthru
        _
    $region40: #{vn_dgcnn_encoder.9} parent=5 // pred_fallthru
      _
  $region6: #{vn_dgcnn_encoder.9} parent=0 // loop_footer
    %s13 = sadd.s32 1, %s9
  $region7: #{vn_dgcnn_encoder.9} parent=0 // loop_footer_branch
    %8 = sbr.rel target = $region3
  $region8: #{vn_dgcnn_encoder.9} parent=0 // loop_exit
    _

// kernel: vn_dgcnn_encoder.11
$region0: #{vn_dgcnn_encoder.11}
  #allocation0 [shape = 'u32[]', space=smem, size = 0x4, offset = 0x4, fixed_abs, tag = 'smem constant byte address 0x4 - core index']
  #allocation1 [shape = 'u32[144,128]{1,0:T(1,128)}', space=vmem, size = 0x12000, scoped, tag = 'internal scratch']
  %s0 = inlined_call_operand.vmem [shape: f32[2,16,24], index: 0, kind: input, shape index: {}]
  %s1 = inlined_call_operand.vmem [shape: f32[2,24,16], index: 1, kind: input, shape index: {}]
  %s2 = inlined_call_operand.vmem [shape: f32[2,1,16], index: 2, kind: input, shape index: {}]
  %s3 = inlined_call_operand.vmem [shape: f32[2,16,16], index: 3, kind: output, shape index: {}]
  %s4 = sld [smem:[#allocation0]]
  $region45: #{vn_dgcnn_encoder.11} parent=0
    _
  %s6 = ssub.s32 1, %s4
  %s7 = scalar_select 0, %s6, %s4
  loop: start=0, step=1, limit=4
  $region2: #{vn_dgcnn_encoder.11} parent=0 // loop_pre_header
    _
  $region3: #{vn_dgcnn_encoder.11} parent=0 // loop_header
    %s9 = sphi 0, %s13
    %p10 = scmp.ge.s32.totalorder %s9, 4
    %s16 = sphi 0, %s28
    %s17 = sphi 0, %s24
    %s18 = sphi 0, %s16
    %s19 = sphi 0, %s17
    %s20 = sphi 0, %s18
    %s21 = sphi 0, %s19
    %s33 = sphi 0, %s35
    %s36 = sphi 0, %s33
    %s37 = sphi 0, %s36
    %s53 = sphi 0, %s37
    %s59 = sphi 0, %s61
    %s62 = sphi 0, %s59
    %s63 = sphi 0, %s62
    %s79 = sphi 0, %s63
    %s85 = sphi 0, %s87
    %s88 = sphi 0, %s85
    %s89 = sphi 0, %s88
    %s105 = sphi 0, %s89
    %s113 = sphi 0, %s115
    %s116 = sphi 0, %s113
    %s117 = sphi 0, %s116
    %s133 = sphi 0, %s117
  $region4: #{vn_dgcnn_encoder.11} parent=0 // loop_header_branch
    %12 = sbr.rel (%p10) target = $region8
  $region5: #{vn_dgcnn_encoder.11} parent=0 // loop_body
    %s14 = ssub.s32 %s9, 1
    %s15 = ssub.s32 %s9, 2
    %s22 = sadd.s32 1, %s17
    %p23 = scmp.ge.s32.totalorder %s22, 1
    %s24 = scalar_select %p23, 0, %s22
    %s25 = sadd.s32 1, %s16
    %s26 = scalar_select %p23, %s25, %s16
    %p27 = scmp.ge.s32.totalorder %s26, 2
    %s28 = scalar_select %p27, 0, %s26
    %s29 = ssub.s32 %s16, %s28
    %s30 = ssub.s32 %s17, %s24
    %s31 = sor.u32 %s29, %s30
    %p32 = scmp.eq.s32.totalorder %s31, 0
    %s34 = sadd.s32 %s33, 1
    %s35 = scalar_select %p32, %s33, %s34
    %p38 = pneg %p32
    %p39 = scmp.eq.s32.totalorder %s9, 1
    %p40 = por %p38, %p39
    %p41 = scmp.ne.s32.totalorder %s33, %s36
    %p42 = scmp.eq.s32.totalorder %s9, 0
    %p43 = por %p41, %p42
    %p44 = scmp.ne.s32.totalorder %s33, %s36
    %p45 = scmp.eq.s32.totalorder %s14, 1
    %p46 = por %p44, %p45
    %p47 = scmp.ne.s32.totalorder %s36, %s37
    %p48 = scmp.eq.s32.totalorder %s14, 0
    %p49 = por %p47, %p48
    %p50 = scmp.ne.s32.totalorder %s36, %s37
    %p51 = scmp.eq.s32.totalorder %s15, 1
    %p52 = por %p50, %p51
    %p54 = scmp.ne.s32.totalorder %s37, %s53
    %p55 = scmp.eq.s32.totalorder %s15, 0
    %p56 = por %p54, %p55
    %s57 = ssub.s32 %s16, %s28
    %p58 = scmp.eq.s32.totalorder %s57, 0
    %s60 = sadd.s32 %s59, 1
    %s61 = scalar_select %p58, %s59, %s60
    %p64 = pneg %p58
    %p65 = scmp.eq.s32.totalorder %s9, 1
    %p66 = por %p64, %p65
    %p67 = scmp.ne.s32.totalorder %s59, %s62
    %p68 = scmp.eq.s32.totalorder %s9, 0
    %p69 = por %p67, %p68
    %p70 = scmp.ne.s32.totalorder %s59, %s62
    %p71 = scmp.eq.s32.totalorder %s14, 1
    %p72 = por %p70, %p71
    %p73 = scmp.ne.s32.totalorder %s62, %s63
    %p74 = scmp.eq.s32.totalorder %s14, 0
    %p75 = por %p73, %p74
    %p76 = scmp.ne.s32.totalorder %s62, %s63
    %p77 = scmp.eq.s32.totalorder %s15, 1
    %p78 = por %p76, %p77
    %p80 = scmp.ne.s32.totalorder %s63, %s79
    %p81 = scmp.eq.s32.totalorder %s15, 0
    %p82 = por %p80, %p81
    %s83 = ssub.s32 %s16, %s28
    %p84 = scmp.eq.s32.totalorder %s83, 0
    %s86 = sadd.s32 %s85, 1
    %s87 = scalar_select %p84, %s85, %s86
    %p90 = pneg %p84
    %p91 = scmp.eq.s32.totalorder %s9, 1
    %p92 = por %p90, %p91
    %p93 = scmp.ne.s32.totalorder %s85, %s88
    %p94 = scmp.eq.s32.totalorder %s9, 0
    %p95 = por %p93, %p94
    %p96 = scmp.ne.s32.totalorder %s85, %s88
    %p97 = scmp.eq.s32.totalorder %s14, 1
    %p98 = por %p96, %p97
    %p99 = scmp.ne.s32.totalorder %s88, %s89
    %p100 = scmp.eq.s32.totalorder %s14, 0
    %p101 = por %p99, %p100
    %p102 = scmp.ne.s32.totalorder %s88, %s89
    %p103 = scmp.eq.s32.totalorder %s15, 1
    %p104 = por %p102, %p103
    %p106 = scmp.ne.s32.totalorder %s89, %s105
    %p107 = scmp.eq.s32.totalorder %s15, 0
    %p108 = por %p106, %p107
    %s109 = ssub.s32 %s16, %s28
    %s110 = ssub.s32 %s17, %s24
    %s111 = sor.u32 %s109, %s110
    %p112 = scmp.eq.s32.totalorder %s111, 0
    %s114 = sadd.s32 %s113, 1
    %s115 = scalar_select %p112, %s113, %s114
    %p118 = pneg %p112
    %p119 = scmp.eq.s32.totalorder %s9, 1
    %p120 = por %p118, %p119
    %p121 = scmp.ne.s32.totalorder %s113, %s116
    %p122 = scmp.eq.s32.totalorder %s9, 0
    %p123 = por %p121, %p122
    %p124 = scmp.ne.s32.totalorder %s113, %s116
    %p125 = scmp.eq.s32.totalorder %s14, 1
    %p126 = por %p124, %p125
    %p127 = scmp.ne.s32.totalorder %s116, %s117
    %p128 = scmp.eq.s32.totalorder %s14, 0
    %p129 = por %p127, %p128
    %p130 = scmp.ne.s32.totalorder %s116, %s117
    %p131 = scmp.eq.s32.totalorder %s15, 1
    %p132 = por %p130, %p131
    %p134 = scmp.ne.s32.totalorder %s117, %s133
    %p135 = scmp.eq.s32.totalorder %s15, 0
    %p136 = por %p134, %p135
    %p137 = scmp.le.s32.totalorder 1, %s9
    %p138 = scmp.lt.s32.totalorder %s9, 3
    %p139 = pnand %p137, %p138
    %p140 = pneg %p139
    // Predicated region
    $region9: #{vn_dgcnn_encoder.11} parent=5 // pred_check
      _
    $region10: #{vn_dgcnn_encoder.11} parent=5 // pred_check_branch
      %142 = sbr.rel (%p139) target = $region12
    $region11: #{vn_dgcnn_encoder.11} parent=5 // pred_region
      %s143 = ssub.s32 %s9, 1
    $region12: #{vn_dgcnn_encoder.11} parent=5 // pred_fallthru
      _
    %p144 = scmp.lt.s32.totalorder %s9, 2
    // Predicated region
    $region13: #{vn_dgcnn_encoder.11} parent=5 // pred_check
      %p145 = pneg %p144
    $region14: #{vn_dgcnn_encoder.11} parent=5 // pred_check_branch
      %147 = sbr.rel (%p145) target = $region16
    $region15: #{vn_dgcnn_encoder.11} parent=5 // pred_region
      // Predicated region
      $region17: #{vn_dgcnn_encoder.11} parent=15 // pred_check
        %p148 = pneg %p43
      $region18: #{vn_dgcnn_encoder.11} parent=15 // pred_check_branch
        %150 = sbr.rel (%p148) target = $region20
      $region19: #{vn_dgcnn_encoder.11} parent=15 // pred_region
        %s151 = smul.u32 2, %s17
        %p152 = scmp.lt.s32.totalorder %s16, 1
        %s153 = scalar_select %p152, %s16, 1
        %p154 = scmp.lt.s32.totalorder %s151, 1
        %s155 = scalar_select %p154, %s151, 1
        %s156 = smul.addr %s153, 2
        %s157 = sadd.s32 %s155, %s156
        %s158 = smul.addr %s157, 8
        %s159 = scalar_lea.vmem %s0, %s158
        %s160 = smul.u32 2, %s17
      $region20: #{vn_dgcnn_encoder.11} parent=15 // pred_fallthru
        _
      // Predicated region
      $region21: #{vn_dgcnn_encoder.11} parent=15 // pred_check
        %p161 = pneg %p69
      $region22: #{vn_dgcnn_encoder.11} parent=15 // pred_check_branch
        %163 = sbr.rel (%p161) target = $region24
      $region23: #{vn_dgcnn_encoder.11} parent=15 // pred_region
        %p164 = scmp.lt.s32.totalorder %s16, 1
        %s165 = scalar_select %p164, %s16, 1
        %s166 = smul.addr %s165, 3
        %s167 = smul.addr %s166, 8
        %s168 = scalar_lea.vmem %s1, %s167
      $region24: #{vn_dgcnn_encoder.11} parent=15 // pred_fallthru
        _
      // Predicated region
      $region25: #{vn_dgcnn_encoder.11} parent=15 // pred_check
        %p169 = pneg %p95
      $region26: #{vn_dgcnn_encoder.11} parent=15 // pred_check_branch
        %171 = sbr.rel (%p169) target = $region28
      $region27: #{vn_dgcnn_encoder.11} parent=15 // pred_region
        %p172 = scmp.lt.s32.totalorder %s16, 1
        %s173 = scalar_select %p172, %s16, 1
        %s174 = scalar_lea.vmem %s2, %s173
      $region28: #{vn_dgcnn_encoder.11} parent=15 // pred_fallthru
        _
    $region16: #{vn_dgcnn_encoder.11} parent=5 // pred_fallthru
      _
    %p175 = scmp.le.s32.totalorder 1, %s9
    %p176 = scmp.lt.s32.totalorder %s9, 3
    %p177 = pnand %p175, %p176
    %p178 = pneg %p177
    // Predicated region
    $region29: #{vn_dgcnn_encoder.11} parent=5 // pred_check
      _
    $region30: #{vn_dgcnn_encoder.11} parent=5 // pred_check_branch
      %180 = sbr.rel (%p177) target = $region32
    $region31: #{vn_dgcnn_encoder.11} parent=5 // pred_region
      %s181 = ssub.s32 %s9, 1
      %s182 = smul.u32 2, %s19
      %p183 = scmp.lt.s32.totalorder %s18, 1
      %s184 = scalar_select %p183, %s18, 1
      %p185 = scmp.lt.s32.totalorder %s182, 1
      %s186 = scalar_select %p185, %s182, 1
      %s187 = smul.addr %s184, 2
      %s188 = sadd.s32 %s186, %s187
      %s189 = smul.addr %s188, 8
      %s190 = scalar_lea.vmem %s0, %s189
      %p191 = pneg %p49
      %p192 = pneg %p46
      %p193 = scmp.lt.s32.totalorder %s18, 1
      %s194 = scalar_select %p193, %s18, 1
      %s195 = smul.addr %s194, 3
      %s196 = smul.addr %s195, 8
      %s197 = scalar_lea.vmem %s1, %s196
      %p198 = pneg %p75
      %p199 = pneg %p72
      %p200 = scmp.lt.s32.totalorder %s18, 1
      %s201 = scalar_select %p200, %s18, 1
      %s202 = scalar_lea.vmem %s2, %s201
      %p203 = pneg %p101
      %p204 = pneg %p98
      %p205 = pneg %p129
      %p206 = pneg %p126
      %s207 = smul.u32 2, %s19
      %p208 = scmp.lt.s32.totalorder %s18, 1
      %s209 = scalar_select %p208, %s18, 1
      %p210 = scmp.lt.s32.totalorder %s207, 1
      %s211 = scalar_select %p210, %s207, 1
      %s212 = smul.addr %s209, 2
      %s213 = sadd.s32 %s211, %s212
      %s214 = smul.addr %s213, 8
      %s215 = scalar_lea.vmem %s3, %s214
      %s216 = smul.u32 2, %s19
      %p217 = scmp.lt.s32.totalorder %s18, 1
      %s218 = scalar_select %p217, %s18, 1
      %p219 = scmp.lt.s32.totalorder %s216, 1
      %s220 = scalar_select %p219, %s216, 1
      %s221 = smul.addr %s218, 2
      %s222 = sadd.s32 %s220, %s221
      %s223 = smul.addr %s222, 8
      %s224 = scalar_lea.vmem %s0, %s223
      %s225 = smul.u32 2, %s19
      %p226 = scmp.lt.s32.totalorder %s18, 1
      %s227 = scalar_select %p226, %s18, 1
      %s228 = smul.addr %s227, 3
      %s229 = smul.addr %s228, 8
      %s230 = scalar_lea.vmem %s1, %s229
      %p231 = scmp.lt.s32.totalorder %s18, 1
      %s232 = scalar_select %p231, %s18, 1
      %s233 = scalar_lea.vmem %s2, %s232
      %s234 = smul.u32 2, %s19
      %p235 = scmp.lt.s32.totalorder %s18, 1
      %s236 = scalar_select %p235, %s18, 1
      %p237 = scmp.lt.s32.totalorder %s234, 1
      %s238 = scalar_select %p237, %s234, 1
      %s239 = smul.addr %s236, 2
      %s240 = sadd.s32 %s238, %s239
      %s241 = smul.addr %s240, 8
      %s242 = scalar_lea.vmem %s3, %s241
      %s243 = smul.u32 2, %s19
      %v244 = vld [vmem:[%s224] sm:$0xff]
      %v245 = vld [vmem:[%s224 + $0x8] sm:$0xff]
      %v246 = vld [vmem:[%s230] sm:$0xff]
      %v247 = vld [vmem:[%s230 + $0x8] sm:$0xff]
      %v248 = vld [vmem:[%s230 + $0x10] sm:$0xff]
      %vm249 = vcmask 195584
      %v251 = vsel %vm249, %v244, 0
      %v254 = vsel %vm249, %v245, 0
      %256 = vmatprep.subr.mxu0 0.0
      %257 = vmatpush1.msra.mxu0 %v246
      %258 = vmatprep.subr.mxu0 0.0
      %259 = vmatpush1.msra.mxu0 %v247
      %260 = vmatprep.subr.mxu0 0.0
      %261 = vmatpush1.msra.mxu0 %v248
      %262 = vmatprep.subr.mxu0 0.0
      %263 = vmatpush1.msra.mxu0 0.0
      %264 = vmatprep.subr.mxu0 0.0
      %265 = vmatpush1.msra.mxu0 0.0
      %266 = vmatprep.subr.mxu0 0.0
      %267 = vmatpush1.msra.mxu0 0.0
      %268 = vmatprep.subr.mxu0 0.0
      %269 = vmatpush1.msra.mxu0 0.0
      %270 = vmatprep.subr.mxu0 0.0
      %271 = vmatpush1.msra.mxu0 0.0
      %272 = vmatprep.subr.mxu0 0.0
      %273 = vmatpush1.msra.mxu0 0.0
      %274 = vmatprep.subr.mxu0 0.0
      %275 = vmatpush1.msra.mxu0 0.0
      %276 = vmatprep.subr.mxu0 0.0
      %277 = vmatpush1.msra.mxu0 0.0
      %278 = vmatprep.subr.mxu0 0.0
      %279 = vmatpush1.msra.mxu0 0.0
      %280 = vmatprep.subr.mxu0 0.0
      %281 = vmatpush1.msra.mxu0 0.0
      %282 = vmatprep.subr.mxu0 0.0
      %283 = vmatpush1.msra.mxu0 0.0
      %284 = vmatprep.subr.mxu0 0.0
      %285 = vmatpush1.msra.mxu0 0.0
      %286 = vmatprep.subr.mxu0 0.0
      %287 = vmatpush1.msra.mxu0 0.0
      %288 = vmatprep.subr.mxu0 0.0
      %289 = vmatpush1.msra.mxu0 0.0
      %290 = vmatprep.subr.mxu0 0.0
      %291 = vmatpush1.msra.mxu0 0.0
      %292 = vmatprep.subr.mxu0 0.0
      %293 = vmatpush1.msra.mxu0 0.0
      %294 = vmatprep.subr.mxu0 0.0
      %295 = vmatpush1.msra.mxu0 0.0
      %296 = vmatprep.subr.mxu0 0.0
      %297 = vmatpush1.msra.mxu0 0.0
      %298 = vmatprep.subr.mxu0 0.0
      %299 = vmatpush1.msra.mxu0 0.0
      %300 = vmatprep.subr.mxu0 0.0
      %301 = vmatpush1.msra.mxu0 0.0
      %302 = vmatprep.subr.mxu0 0.0
      %303 = vmatpush1.msra.mxu0 0.0
      %304 = vmatprep.subr.mxu0 0.0
      %305 = vmatpush1.msra.mxu0 0.0
      %306 = vmatprep.subr.mxu0 0.0
      %307 = vmatpush1.msra.mxu0 0.0
      %308 = vmatprep.subr.mxu0 0.0
      %309 = vmatpush1.msra.mxu0 0.0
      %310 = vmatprep.subr.mxu0 0.0
      %311 = vmatpush1.msra.mxu0 0.0
      %312 = vmatprep.subr.mxu0 0.0
      %313 = vmatpush1.msra.mxu0 0.0
      %314 = vmatprep.subr.mxu0 0.0
      %315 = vmatpush1.msra.mxu0 0.0
      %316 = vmatprep.subr.mxu0 0.0
      %317 = vmatpush1.msra.mxu0 0.0
      %318 = vmatprep.subr.mxu0 0.0
      %319 = vmatpush1.msra.mxu0 0.0
      %320 = vmatprep.mubr.f32.mxu0 0.0
      %321 = vmatmul.mubr.f32.gmra.mrb[0].mxu0 %v251
      %v322 = vpop.f32.mrb[0].mxu0
      %v323 = vadd.f32 0.0, %v322
      %v324 = vpop.f32.mrb[0].mxu0
      %325 = vmatprep.mubr.f32.mxu0 0.0
      %326 = vmatmul.mubr.f32.gmra.mrb[0].mxu0 %v254
      %v327 = vpop.f32.mrb[0].mxu0
      %v328 = vadd.f32 0.0, %v327
      %v329 = vpop.f32.mrb[0].mxu0
      %330 = vdwg.mxu0
      %v331 = vmul.f32 %v323, 2.0
      %v332 = vmul.f32 %v328, 2.0
      %v333 = vld [vmem:[%s233] sm:$0x1]
      %v335 = vlaneseq
      %v336 = vshrl.u32 %v335, 7
      %v337 = vsub.s32 0, %v336
      %v338 = vrot.slane %v333, %v337
      %v340 = vsub.f32 %v331, %v338
      %v341 = vsub.f32 %v332, %v338
      %vm342 = vcmask 130048
      %343 = vst.msk [vmem:[%s242] sm:$0xff] %vm342, %v340
      %344 = vst.msk [vmem:[%s242 + $0x8] sm:$0xff] %vm342, %v341
      %s345 = smul.u32 2, %s19
      %p346 = scmp.lt.s32.totalorder %s18, 1
      %s347 = scalar_select %p346, %s18, 1
      %p348 = scmp.lt.s32.totalorder %s345, 1
      %s349 = scalar_select %p348, %s345, 1
      %s350 = smul.addr %s347, 2
      %s351 = sadd.s32 %s349, %s350
      %s352 = smul.addr %s351, 8
      %s353 = scalar_lea.vmem %s3, %s352
      // Predicated region
      $region33: #{vn_dgcnn_encoder.11} parent=31 // pred_check
        %p354 = pneg %p126
      $region34: #{vn_dgcnn_encoder.11} parent=31 // pred_check_branch
        %356 = sbr.rel (%p354) target = $region36
      $region35: #{vn_dgcnn_encoder.11} parent=31 // pred_region
        %s357 = smul.u32 2, %s19
      $region36: #{vn_dgcnn_encoder.11} parent=31 // pred_fallthru
        _
    $region32: #{vn_dgcnn_encoder.11} parent=5 // pred_fallthru
      _
    %p358 = scmp.le.s32.totalorder 2, %s9
    // Predicated region
    $region37: #{vn_dgcnn_encoder.11} parent=5 // pred_check
      %p359 = pneg %p358
    $region38: #{vn_dgcnn_encoder.11} parent=5 // pred_check_branch
      %361 = sbr.rel (%p359) target = $region40
    $region39: #{vn_dgcnn_encoder.11} parent=5 // pred_region
      %s362 = ssub.s32 %s9, 2
      // Predicated region
      $region41: #{vn_dgcnn_encoder.11} parent=39 // pred_check
        %p363 = pneg %p132
      $region42: #{vn_dgcnn_encoder.11} parent=39 // pred_check_branch
        %365 = sbr.rel (%p363) target = $region44
      $region43: #{vn_dgcnn_encoder.11} parent=39 // pred_region
        %s366 = smul.u32 2, %s21
        %p367 = scmp.lt.s32.totalorder %s20, 1
        %s368 = scalar_select %p367, %s20, 1
        %p369 = scmp.lt.s32.totalorder %s366, 1
        %s370 = scalar_select %p369, %s366, 1
        %s371 = smul.addr %s368, 2
        %s372 = sadd.s32 %s370, %s371
        %s373 = smul.addr %s372, 8
        %s374 = scalar_lea.vmem %s3, %s373
      $region44: #{vn_dgcnn_encoder.11} parent=39 // pred_fallthru
        _
    $region40: #{vn_dgcnn_encoder.11} parent=5 // pred_fallthru
      _
  $region6: #{vn_dgcnn_encoder.11} parent=0 // loop_footer
    %s13 = sadd.s32 1, %s9
  $region7: #{vn_dgcnn_encoder.11} parent=0 // loop_footer_branch
    %8 = sbr.rel target = $region3
  $region8: #{vn_dgcnn_encoder.11} parent=0 // loop_exit
    _

// kernel: vn_dgcnn_encoder.10
$region0: #{vn_dgcnn_encoder.10}
  #allocation0 [shape = 'u32[]', space=smem, size = 0x4, offset = 0x4, fixed_abs, tag = 'smem constant byte address 0x4 - core index']
  #allocation1 [shape = 'u32[144,128]{1,0:T(1,128)}', space=vmem, size = 0x12000, scoped, tag = 'internal scratch']
  #allocation2 [shape = 'f32[3,16,256]{2,1,0:T(8,128)}', space=vmem, size = 0xc000, scoped, tag = 'scratch operand']
  %s0 = inlined_call_operand.vmem [shape: bf16[2,4,3,16,1], index: 0, kind: input, shape index: {}]
  %s1 = inlined_call_operand.vmem [shape: bf16[2,3,16,1], index: 1, kind: input, shape index: {}]
  %s2 = inlined_call_operand.vmem [shape: bf16[1,256], index: 2, kind: input, shape index: {}]
  %s3 = inlined_call_operand.vmem [shape: bf16[1,256], index: 3, kind: input, shape index: {}]
  %s4 = inlined_call_operand.vmem [shape: f32[2,3,16,128], index: 4, kind: output, shape index: {}]
  %s5 = sld [smem:[#allocation0]]
  $region57: #{vn_dgcnn_encoder.10} parent=0
    _
  %s7 = ssub.s32 1, %s5
  %s8 = scalar_select 0, %s7, %s5
  loop: start=0, step=1, limit=4
  $region2: #{vn_dgcnn_encoder.10} parent=0 // loop_pre_header
    _
  $region3: #{vn_dgcnn_encoder.10} parent=0 // loop_header
    %s10 = sphi 0, %s14
    %p11 = scmp.ge.s32.totalorder %s10, 4
    %s17 = sphi 0, %s36
    %s18 = sphi 0, %s32
    %s19 = sphi 0, %s28
    %s20 = sphi 0, %s17
    %s21 = sphi 0, %s18
    %s22 = sphi 0, %s19
    %s23 = sphi 0, %s20
    %s24 = sphi 0, %s21
    %s25 = sphi 0, %s22
    %s43 = sphi 0, %s45
    %s46 = sphi 0, %s43
    %s47 = sphi 0, %s46
    %s63 = sphi 0, %s47
    %s71 = sphi 0, %s73
    %s74 = sphi 0, %s71
    %s75 = sphi 0, %s74
    %s91 = sphi 0, %s75
    %s95 = sphi 0, %s95
    %s97 = sphi 0, %s95
    %s98 = sphi 0, %s97
    %s112 = sphi 0, %s98
    %s116 = sphi 0, %s116
    %s118 = sphi 0, %s116
    %s119 = sphi 0, %s118
    %s133 = sphi 0, %s119
    %s141 = sphi 0, %s143
    %s144 = sphi 0, %s141
    %s145 = sphi 0, %s144
    %s161 = sphi 0, %s145
  $region4: #{vn_dgcnn_encoder.10} parent=0 // loop_header_branch
    %13 = sbr.rel (%p11) target = $region8
  $region5: #{vn_dgcnn_encoder.10} parent=0 // loop_body
    %s15 = ssub.s32 %s10, 1
    %s16 = ssub.s32 %s10, 2
    %s26 = sadd.s32 1, %s19
    %p27 = scmp.ge.s32.totalorder %s26, 1
    %s28 = scalar_select %p27, 0, %s26
    %s29 = sadd.s32 1, %s18
    %s30 = scalar_select %p27, %s29, %s18
    %p31 = scmp.ge.s32.totalorder %s30, 1
    %s32 = scalar_select %p31, 0, %s30
    %s33 = sadd.s32 1, %s17
    %s34 = scalar_select %p31, %s33, %s17
    %p35 = scmp.ge.s32.totalorder %s34, 2
    %s36 = scalar_select %p35, 0, %s34
    %s37 = ssub.s32 %s17, %s36
    %s38 = ssub.s32 %s19, %s28
    %s39 = sor.u32 %s37, %s38
    %s40 = ssub.s32 %s18, %s32
    %s41 = sor.u32 %s39, %s40
    %p42 = scmp.eq.s32.totalorder %s41, 0
    %s44 = sadd.s32 %s43, 1
    %s45 = scalar_select %p42, %s43, %s44
    %p48 = pneg %p42
    %p49 = scmp.eq.s32.totalorder %s10, 1
    %p50 = por %p48, %p49
    %p51 = scmp.ne.s32.totalorder %s43, %s46
    %p52 = scmp.eq.s32.totalorder %s10, 0
    %p53 = por %p51, %p52
    %p54 = scmp.ne.s32.totalorder %s43, %s46
    %p55 = scmp.eq.s32.totalorder %s15, 1
    %p56 = por %p54, %p55
    %p57 = scmp.ne.s32.totalorder %s46, %s47
    %p58 = scmp.eq.s32.totalorder %s15, 0
    %p59 = por %p57, %p58
    %p60 = scmp.ne.s32.totalorder %s46, %s47
    %p61 = scmp.eq.s32.totalorder %s16, 1
    %p62 = por %p60, %p61
    %p64 = scmp.ne.s32.totalorder %s47, %s63
    %p65 = scmp.eq.s32.totalorder %s16, 0
    %p66 = por %p64, %p65
    %s67 = ssub.s32 %s17, %s36
    %s68 = ssub.s32 %s18, %s32
    %s69 = sor.u32 %s67, %s68
    %p70 = scmp.eq.s32.totalorder %s69, 0
    %s72 = sadd.s32 %s71, 1
    %s73 = scalar_select %p70, %s71, %s72
    %p76 = pneg %p70
    %p77 = scmp.eq.s32.totalorder %s10, 1
    %p78 = por %p76, %p77
    %p79 = scmp.ne.s32.totalorder %s71, %s74
    %p80 = scmp.eq.s32.totalorder %s10, 0
    %p81 = por %p79, %p80
    %p82 = scmp.ne.s32.totalorder %s71, %s74
    %p83 = scmp.eq.s32.totalorder %s15, 1
    %p84 = por %p82, %p83
    %p85 = scmp.ne.s32.totalorder %s74, %s75
    %p86 = scmp.eq.s32.totalorder %s15, 0
    %p87 = por %p85, %p86
    %p88 = scmp.ne.s32.totalorder %s74, %s75
    %p89 = scmp.eq.s32.totalorder %s16, 1
    %p90 = por %p88, %p89
    %p92 = scmp.ne.s32.totalorder %s75, %s91
    %p93 = scmp.eq.s32.totalorder %s16, 0
    %p94 = por %p92, %p93
    %s96 = sadd.s32 %s95, 1
    %p99 = scmp.eq.s32.totalorder %s10, 1
    %p100 = scmp.ne.s32.totalorder %s95, %s97
    %p101 = scmp.eq.s32.totalorder %s10, 0
    %p102 = por %p100, %p101
    %p103 = scmp.ne.s32.totalorder %s95, %s97
    %p104 = scmp.eq.s32.totalorder %s15, 1
    %p105 = por %p103, %p104
    %p106 = scmp.ne.s32.totalorder %s97, %s98
    %p107 = scmp.eq.s32.totalorder %s15, 0
    %p108 = por %p106, %p107
    %p109 = scmp.ne.s32.totalorder %s97, %s98
    %p110 = scmp.eq.s32.totalorder %s16, 1
    %p111 = por %p109, %p110
    %p113 = scmp.ne.s32.totalorder %s98, %s112
    %p114 = scmp.eq.s32.totalorder %s16, 0
    %p115 = por %p113, %p114
    %s117 = sadd.s32 %s116, 1
    %p120 = scmp.eq.s32.totalorder %s10, 1
    %p121 = scmp.ne.s32.totalorder %s116, %s118
    %p122 = scmp.eq.s32.totalorder %s10, 0
    %p123 = por %p121, %p122
    %p124 = scmp.ne.s32.totalorder %s116, %s118
    %p125 = scmp.eq.s32.totalorder %s15, 1
    %p126 = por %p124, %p125
    %p127 = scmp.ne.s32.totalorder %s118, %s119
    %p128 = scmp.eq.s32.totalorder %s15, 0
    %p129 = por %p127, %p128
    %p130 = scmp.ne.s32.totalorder %s118, %s119
    %p131 = scmp.eq.s32.totalorder %s16, 1
    %p132 = por %p130, %p131
    %p134 = scmp.ne.s32.totalorder %s119, %s133
    %p135 = scmp.eq.s32.totalorder %s16, 0
    %p136 = por %p134, %p135
    %s137 = ssub.s32 %s17, %s36
    %s138 = ssub.s32 %s18, %s32
    %s139 = sor.u32 %s137, %s138
    %p140 = scmp.eq.s32.totalorder %s139, 0
    %s142 = sadd.s32 %s141, 1
    %s143 = scalar_select %p140, %s141, %s142
    %p146 = pneg %p140
    %p147 = scmp.eq.s32.totalorder %s10, 1
    %p148 = por %p146, %p147
    %p149 = scmp.ne.s32.totalorder %s141, %s144
    %p150 = scmp.eq.s32.totalorder %s10, 0
    %p151 = por %p149, %p150
    %p152 = scmp.ne.s32.totalorder %s141, %s144
    %p153 = scmp.eq.s32.totalorder %s15, 1
    %p154 = por %p152, %p153
    %p155 = scmp.ne.s32.totalorder %s144, %s145
    %p156 = scmp.eq.s32.totalorder %s15, 0
    %p157 = por %p155, %p156
    %p158 = scmp.ne.s32.totalorder %s144, %s145
    %p159 = scmp.eq.s32.totalorder %s16, 1
    %p160 = por %p158, %p159
    %p162 = scmp.ne.s32.totalorder %s145, %s161
    %p163 = scmp.eq.s32.totalorder %s16, 0
    %p164 = por %p162, %p163
    %p165 = scmp.le.s32.totalorder 1, %s10
    %p166 = scmp.lt.s32.totalorder %s10, 3
    %p167 = pnand %p165, %p166
    %p168 = pneg %p167
    // Predicated region
    $region9: #{vn_dgcnn_encoder.10} parent=5 // pred_check
      _
    $region10: #{vn_dgcnn_encoder.10} parent=5 // pred_check_branch
      %170 = sbr.rel (%p167) target = $region12
    $region11: #{vn_dgcnn_encoder.10} parent=5 // pred_region
      %s171 = ssub.s32 %s10, 1
      // Predicated region
      $region13: #{vn_dgcnn_encoder.10} parent=11 // pred_check
        %p172 = pneg %p108
      $region14: #{vn_dgcnn_encoder.10} parent=11 // pred_check_branch
        %174 = sbr.rel (%p172) target = $region16
      $region15: #{vn_dgcnn_encoder.10} parent=11 // pred_region
        _
      $region16: #{vn_dgcnn_encoder.10} parent=11 // pred_fallthru
        _
      // Predicated region
      $region17: #{vn_dgcnn_encoder.10} parent=11 // pred_check
        %p175 = pneg %p129
      $region18: #{vn_dgcnn_encoder.10} parent=11 // pred_check_branch
        %177 = sbr.rel (%p175) target = $region20
      $region19: #{vn_dgcnn_encoder.10} parent=11 // pred_region
        _
      $region20: #{vn_dgcnn_encoder.10} parent=11 // pred_fallthru
        _
    $region12: #{vn_dgcnn_encoder.10} parent=5 // pred_fallthru
      _
    %p178 = scmp.lt.s32.totalorder %s10, 2
    // Predicated region
    $region21: #{vn_dgcnn_encoder.10} parent=5 // pred_check
      %p179 = pneg %p178
    $region22: #{vn_dgcnn_encoder.10} parent=5 // pred_check_branch
      %181 = sbr.rel (%p179) target = $region24
    $region23: #{vn_dgcnn_encoder.10} parent=5 // pred_region
      // Predicated region
      $region25: #{vn_dgcnn_encoder.10} parent=23 // pred_check
        %p182 = pneg %p53
      $region26: #{vn_dgcnn_encoder.10} parent=23 // pred_check_branch
        %184 = sbr.rel (%p182) target = $region28
      $region27: #{vn_dgcnn_encoder.10} parent=23 // pred_region
        %s185 = smul.u32 4, %s19
        %s186 = smul.u32 2, %s18
        %p187 = scmp.lt.s32.totalorder %s17, 1
        %s188 = scalar_select %p187, %s17, 1
        %p189 = scmp.lt.s32.totalorder %s185, 3
        %s190 = scalar_select %p189, %s185, 3
        %p191 = scmp.lt.s32.totalorder %s186, 1
        %s192 = scalar_select %p191, %s186, 1
        %s193 = smul.addr %s190, 6
        %s194 = sadd.s32 %s192, %s193
        %s195 = smul.addr %s188, 24
        %s196 = sadd.s32 %s194, %s195
        %s197 = smul.addr %s196, 4
        %s198 = scalar_lea.vmem %s0, %s197
        %s199 = smul.u32 4, %s19
        %s200 = smul.u32 2, %s18
      $region28: #{vn_dgcnn_encoder.10} parent=23 // pred_fallthru
        _
      // Predicated region
      $region29: #{vn_dgcnn_encoder.10} parent=23 // pred_check
        %p201 = pneg %p81
      $region30: #{vn_dgcnn_encoder.10} parent=23 // pred_check_branch
        %203 = sbr.rel (%p201) target = $region32
      $region31: #{vn_dgcnn_encoder.10} parent=23 // pred_region
        %s204 = smul.u32 2, %s18
        %p205 = scmp.lt.s32.totalorder %s17, 1
        %s206 = scalar_select %p205, %s17, 1
        %p207 = scmp.lt.s32.totalorder %s204, 1
        %s208 = scalar_select %p207, %s204, 1
        %s209 = smul.addr %s206, 6
        %s210 = sadd.s32 %s208, %s209
        %s211 = smul.addr %s210, 4
        %s212 = scalar_lea.vmem %s1, %s211
        %s213 = smul.u32 2, %s18
      $region32: #{vn_dgcnn_encoder.10} parent=23 // pred_fallthru
        _
    $region24: #{vn_dgcnn_encoder.10} parent=5 // pred_fallthru
      _
    %p214 = scmp.le.s32.totalorder 1, %s10
    %p215 = scmp.lt.s32.totalorder %s10, 3
    %p216 = pnand %p214, %p215
    %p217 = pneg %p216
    // Predicated region
    $region33: #{vn_dgcnn_encoder.10} parent=5 // pred_check
      _
    $region34: #{vn_dgcnn_encoder.10} parent=5 // pred_check_branch
      %219 = sbr.rel (%p216) target = $region36
    $region35: #{vn_dgcnn_encoder.10} parent=5 // pred_region
      %s220 = ssub.s32 %s10, 1
      %s221 = smul.u32 4, %s22
      %s222 = smul.u32 2, %s21
      %p223 = scmp.lt.s32.totalorder %s20, 1
      %s224 = scalar_select %p223, %s20, 1
      %p225 = scmp.lt.s32.totalorder %s221, 3
      %s226 = scalar_select %p225, %s221, 3
      %p227 = scmp.lt.s32.totalorder %s222, 1
      %s228 = scalar_select %p227, %s222, 1
      %s229 = smul.addr %s226, 6
      %s230 = sadd.s32 %s228, %s229
      %s231 = smul.addr %s224, 24
      %s232 = sadd.s32 %s230, %s231
      %s233 = smul.addr %s232, 4
      %s234 = scalar_lea.vmem %s0, %s233
      %p235 = pneg %p59
      %p236 = pneg %p56
      %s237 = smul.u32 2, %s21
      %p238 = scmp.lt.s32.totalorder %s20, 1
      %s239 = scalar_select %p238, %s20, 1
      %p240 = scmp.lt.s32.totalorder %s237, 1
      %s241 = scalar_select %p240, %s237, 1
      %s242 = smul.addr %s239, 6
      %s243 = sadd.s32 %s241, %s242
      %s244 = smul.addr %s243, 4
      %s245 = scalar_lea.vmem %s1, %s244
      %p246 = pneg %p87
      %p247 = pneg %p84
      %p248 = pneg %p108
      %p249 = pneg %p105
      %p250 = pneg %p129
      %p251 = pneg %p126
      %p252 = pneg %p157
      %p253 = pneg %p154
      %s254 = smul.u32 2, %s21
      %p255 = scmp.lt.s32.totalorder %s20, 1
      %s256 = scalar_select %p255, %s20, 1
      %p257 = scmp.lt.s32.totalorder %s254, 1
      %s258 = scalar_select %p257, %s254, 1
      %s259 = smul.addr %s256, 6
      %s260 = sadd.s32 %s258, %s259
      %s261 = smul.addr %s260, 8
      %s262 = scalar_lea.vmem %s4, %s261
      %s263 = smul.u32 4, %s22
      %s264 = smul.u32 2, %s21
      %p265 = scmp.lt.s32.totalorder %s20, 1
      %s266 = scalar_select %p265, %s20, 1
      %p267 = scmp.lt.s32.totalorder %s263, 3
      %s268 = scalar_select %p267, %s263, 3
      %p269 = scmp.lt.s32.totalorder %s264, 1
      %s270 = scalar_select %p269, %s264, 1
      %s271 = smul.addr %s268, 6
      %s272 = sadd.s32 %s270, %s271
      %s273 = smul.addr %s266, 24
      %s274 = sadd.s32 %s272, %s273
      %s275 = smul.addr %s274, 4
      %s276 = scalar_lea.vmem %s0, %s275
      %s277 = smul.u32 4, %s22
      %s278 = smul.u32 2, %s21
      %s279 = smul.u32 2, %s21
      %p280 = scmp.lt.s32.totalorder %s20, 1
      %s281 = scalar_select %p280, %s20, 1
      %p282 = scmp.lt.s32.totalorder %s279, 1
      %s283 = scalar_select %p282, %s279, 1
      %s284 = smul.addr %s281, 6
      %s285 = sadd.s32 %s283, %s284
      %s286 = smul.addr %s285, 4
      %s287 = scalar_lea.vmem %s1, %s286
      %s288 = smul.u32 2, %s21
      %s289 = smul.u32 2, %s21
      %p290 = scmp.lt.s32.totalorder %s20, 1
      %s291 = scalar_select %p290, %s20, 1
      %p292 = scmp.lt.s32.totalorder %s289, 1
      %s293 = scalar_select %p292, %s289, 1
      %s294 = smul.addr %s291, 6
      %s295 = sadd.s32 %s293, %s294
      %s296 = smul.addr %s295, 8
      %s297 = scalar_lea.vmem %s4, %s296
      %s298 = smul.u32 2, %s21
      %p299 = scmp.eq.s32.totalorder %s22, 0
      // Predicated region
      $region37: #{vn_dgcnn_encoder.10} parent=35 // pred_check
        %p300 = pneg %p299
      $region38: #{vn_dgcnn_encoder.10} parent=35 // pred_check_branch
        %302 = sbr.rel (%p300) target = $region40
      $region39: #{vn_dgcnn_encoder.10} parent=35 // pred_region
        %303 = vst [vmem:[%s297] sm:$0xff] 0.0
        %304 = vst [vmem:[%s297 + $0x8] sm:$0xff] 0.0
        %305 = vst [vmem:[%s297 + $0x10] sm:$0xff] 0.0
        %306 = vst [vmem:[%s297 + $0x18] sm:$0xff] 0.0
        %307 = vst [vmem:[%s297 + $0x20] sm:$0xff] 0.0
        %308 = vst [vmem:[%s297 + $0x28] sm:$0xff] 0.0
        %v309 = vld [vmem:[%s287] sm:$0xf]
        %v310 = vld [vmem:[%s287 + $0x4] sm:$0xf]
        %v311 = vld [vmem:[%s287 + $0x8] sm:$0xf]
        %v312 = vld [vmem:[%s287 + $0xc] sm:$0xf]
        %v313 = vld [vmem:[%s287 + $0x10] sm:$0xf]
        %v314 = vld [vmem:[%s287 + $0x14] sm:$0xf]
        %v315 = vld [vmem:[%s3] sm:$0x3]
        %v316 = vunpack.c.l.bf16 %v309
        %v317 = vunpack.c.l.bf16 %v310
        %v318 = vunpack.c.l.bf16 %v311
        %v319 = vunpack.c.l.bf16 %v312
        %v320 = vunpack.c.l.bf16 %v313
        %v321 = vunpack.c.l.bf16 %v314
        %v322 = vunpack.c.l.bf16 %v315
        %324 = vset.pattern.permute.xlu0 0
        %325 = vperm.xlu0 %324, %v316
        %v326 = vpop.permute.xlu0 %325
        %329 = vset.pattern.permute.xlu0 0
        %330 = vperm.xlu0 %329, %v317
        %v331 = vpop.permute.xlu0 %330
        %334 = vset.pattern.permute.xlu0 0
        %335 = vperm.xlu0 %334, %v318
        %v336 = vpop.permute.xlu0 %335
        %339 = vset.pattern.permute.xlu0 0
        %340 = vperm.xlu0 %339, %v319
        %v341 = vpop.permute.xlu0 %340
        %344 = vset.pattern.permute.xlu0 0
        %345 = vperm.xlu0 %344, %v320
        %v346 = vpop.permute.xlu0 %345
        %349 = vset.pattern.permute.xlu0 0
        %350 = vperm.xlu0 %349, %v321
        %v351 = vpop.permute.xlu0 %350
        %v354 = vlaneseq
        %v355 = vshrl.u32 %v354, 7
        %v356 = vsub.s32 0, %v355
        %v357 = vrot.slane %v322, %v356
        %v358 = vlaneseq
        %v359 = vshrl.u32 %v358, 7
        %v360 = vsub.s32 2, %v359
        %v361 = vrot.slane %v322, %v360
        %v364 = vlaneseq
        %v365 = vshrl.u32 %v364, 7
        %v366 = vsub.s32 0, %v365
        %v367 = vrot.slane %v357, %v366
        %v368 = vlaneseq
        %v369 = vshrl.u32 %v368, 7
        %v370 = vsub.s32 0, %v369
        %v371 = vrot.slane %v361, %v370
        %v372 = vmul.f32 %v326, %v367
        %v373 = vmul.f32 %v326, %v371
        %v374 = vmul.f32 %v331, %v367
        %v375 = vmul.f32 %v331, %v371
        %v376 = vmul.f32 %v336, %v367
        %v377 = vmul.f32 %v336, %v371
        %v378 = vmul.f32 %v341, %v367
        %v379 = vmul.f32 %v341, %v371
        %v380 = vmul.f32 %v346, %v367
        %v381 = vmul.f32 %v346, %v371
        %v382 = vmul.f32 %v351, %v367
        %v383 = vmul.f32 %v351, %v371
        %384 = vst [vmem:[#allocation2] sm:$0xff] %v372
        %385 = vst [vmem:[#allocation2 + $0x8] sm:$0xff] %v373
        %386 = vst [vmem:[#allocation2 + $0x10] sm:$0xff] %v374
        %387 = vst [vmem:[#allocation2 + $0x18] sm:$0xff] %v375
        %388 = vst [vmem:[#allocation2 + $0x20] sm:$0xff] %v376
        %389 = vst [vmem:[#allocation2 + $0x28] sm:$0xff] %v377
        %390 = vst [vmem:[#allocation2 + $0x30] sm:$0xff] %v378
        %391 = vst [vmem:[#allocation2 + $0x38] sm:$0xff] %v379
        %392 = vst [vmem:[#allocation2 + $0x40] sm:$0xff] %v380
        %393 = vst [vmem:[#allocation2 + $0x48] sm:$0xff] %v381
        %394 = vst [vmem:[#allocation2 + $0x50] sm:$0xff] %v382
        %395 = vst [vmem:[#allocation2 + $0x58] sm:$0xff] %v383
      $region40: #{vn_dgcnn_encoder.10} parent=35 // pred_fallthru
        _
      %v396 = vld [vmem:[%s276] sm:$0xf]
      %v397 = vld [vmem:[%s276 + $0x4] sm:$0xf]
      %v398 = vld [vmem:[%s276 + $0x8] sm:$0xf]
      %v399 = vld [vmem:[%s276 + $0xc] sm:$0xf]
      %v400 = vld [vmem:[%s276 + $0x10] sm:$0xf]
      %v401 = vld [vmem:[%s276 + $0x14] sm:$0xf]
      %v402 = vld [vmem:[%s2] sm:$0x3]
      %v403 = vunpack.c.l.bf16 %v396
      %v404 = vunpack.c.l.bf16 %v397
      %v405 = vunpack.c.l.bf16 %v398
      %v406 = vunpack.c.l.bf16 %v399
      %v407 = vunpack.c.l.bf16 %v400
      %v408 = vunpack.c.l.bf16 %v401
      %v409 = vunpack.c.l.bf16 %v402
      %411 = vset.pattern.permute.xlu0 0
      %412 = vperm.xlu0 %411, %v403
      %v413 = vpop.permute.xlu0 %412
      %416 = vset.pattern.permute.xlu0 0
      %417 = vperm.xlu0 %416, %v404
      %v418 = vpop.permute.xlu0 %417
      %421 = vset.pattern.permute.xlu0 0
      %422 = vperm.xlu0 %421, %v405
      %v423 = vpop.permute.xlu0 %422
      %426 = vset.pattern.permute.xlu0 0
      %427 = vperm.xlu0 %426, %v406
      %v428 = vpop.permute.xlu0 %427
      %431 = vset.pattern.permute.xlu0 0
      %432 = vperm.xlu0 %431, %v407
      %v433 = vpop.permute.xlu0 %432
      %436 = vset.pattern.permute.xlu0 0
      %437 = vperm.xlu0 %436, %v408
      %v438 = vpop.permute.xlu0 %437
      %v441 = vlaneseq
      %v442 = vshrl.u32 %v441, 7
      %v443 = vsub.s32 0, %v442
      %v444 = vrot.slane %v409, %v443
      %v445 = vlaneseq
      %v446 = vshrl.u32 %v445, 7
      %v447 = vsub.s32 2, %v446
      %v448 = vrot.slane %v409, %v447
      %v451 = vlaneseq
      %v452 = vshrl.u32 %v451, 7
      %v453 = vsub.s32 0, %v452
      %v454 = vrot.slane %v444, %v453
      %v455 = vlaneseq
      %v456 = vshrl.u32 %v455, 7
      %v457 = vsub.s32 0, %v456
      %v458 = vrot.slane %v448, %v457
      %v459 = vmul.f32 %v413, %v454
      %v460 = vmul.f32 %v413, %v458
      %v461 = vmul.f32 %v418, %v454
      %v462 = vmul.f32 %v418, %v458
      %v463 = vmul.f32 %v423, %v454
      %v464 = vmul.f32 %v423, %v458
      %v465 = vmul.f32 %v428, %v454
      %v466 = vmul.f32 %v428, %v458
      %v467 = vmul.f32 %v433, %v454
      %v468 = vmul.f32 %v433, %v458
      %v469 = vmul.f32 %v438, %v454
      %v470 = vmul.f32 %v438, %v458
      %v471 = vld [vmem:[#allocation2] sm:$0xff]
      %v472 = vld [vmem:[#allocation2 + $0x8] sm:$0xff]
      %v473 = vld [vmem:[#allocation2 + $0x10] sm:$0xff]
      %v474 = vld [vmem:[#allocation2 + $0x18] sm:$0xff]
      %v475 = vld [vmem:[#allocation2 + $0x20] sm:$0xff]
      %v476 = vld [vmem:[#allocation2 + $0x28] sm:$0xff]
      %v477 = vld [vmem:[#allocation2 + $0x30] sm:$0xff]
      %v478 = vld [vmem:[#allocation2 + $0x38] sm:$0xff]
      %v479 = vld [vmem:[#allocation2 + $0x40] sm:$0xff]
      %v480 = vld [vmem:[#allocation2 + $0x48] sm:$0xff]
      %v481 = vld [vmem:[#allocation2 + $0x50] sm:$0xff]
      %v482 = vld [vmem:[#allocation2 + $0x58] sm:$0xff]
      %v483 = vadd.f32 %v459, %v471
      %v484 = vadd.f32 %v460, %v472
      %v485 = vadd.f32 %v461, %v473
      %v486 = vadd.f32 %v462, %v474
      %v487 = vadd.f32 %v463, %v475
      %v488 = vadd.f32 %v464, %v476
      %v489 = vadd.f32 %v465, %v477
      %v490 = vadd.f32 %v466, %v478
      %v491 = vadd.f32 %v467, %v479
      %v492 = vadd.f32 %v468, %v480
      %v493 = vadd.f32 %v469, %v481
      %v494 = vadd.f32 %v470, %v482
      %v495 = vld [vmem:[%s297] sm:$0xff]
      %v496 = vld [vmem:[%s297 + $0x8] sm:$0xff]
      %v497 = vld [vmem:[%s297 + $0x10] sm:$0xff]
      %v498 = vld [vmem:[%s297 + $0x18] sm:$0xff]
      %v499 = vld [vmem:[%s297 + $0x20] sm:$0xff]
      %v500 = vld [vmem:[%s297 + $0x28] sm:$0xff]
      %v501 = vmul.f32 %v483, %v484
      %v502 = vmul.f32 %v485, %v486
      %v503 = vmul.f32 %v487, %v488
      %v504 = vmul.f32 %v489, %v490
      %v505 = vmul.f32 %v491, %v492
      %v506 = vmul.f32 %v493, %v494
      %v507 = vadd.f32 %v501, %v503
      %v508 = vadd.f32 %v507, %v505
      %v509 = vadd.f32 %v502, %v504
      %v510 = vadd.f32 %v509, %v506
      %v511 = vmul.f32 %v484, %v484
      %v512 = vmul.f32 %v486, %v486
      %v513 = vmul.f32 %v488, %v488
      %v514 = vmul.f32 %v490, %v490
      %v515 = vmul.f32 %v492, %v492
      %v516 = vmul.f32 %v494, %v494
      %v517 = vadd.f32 %v511, %v513
      %v518 = vadd.f32 %v517, %v515
      %v519 = vadd.f32 %v512, %v514
      %v520 = vadd.f32 %v519, %v516
      %vm521 = vcmp.lt.f32.partialorder %v508, 0.0
      %vm522 = vcmp.lt.f32.partialorder %v510, 0.0
      %v523 = vsel %vm521, %v508, 0.0
      %v524 = vsel %vm522, %v510, 0.0
      %v525 = vadd.f32 %v518, 1e-06
      %v526 = vadd.f32 %v520, 1e-06
      %v527 = vrcp.pop %v525
      %v528 = vrcp.pop %v526
      %v529 = vmul.f32 %v523, %v527
      %v530 = vmul.f32 %v524, %v528
      %v531 = vmul.f32 %v529, 0.8
      %v532 = vmul.f32 %v530, 0.8
      %v533 = vmul.f32 %v531, %v484
      %v534 = vmul.f32 %v532, %v486
      %v535 = vmul.f32 %v531, %v488
      %v536 = vmul.f32 %v532, %v490
      %v537 = vmul.f32 %v531, %v492
      %v538 = vmul.f32 %v532, %v494
      %v539 = vsub.f32 %v483, %v533
      %v540 = vsub.f32 %v485, %v534
      %v541 = vsub.f32 %v487, %v535
      %v542 = vsub.f32 %v489, %v536
      %v543 = vsub.f32 %v491, %v537
      %v544 = vsub.f32 %v493, %v538
      %v545 = vadd.f32 %v495, %v539
      %v546 = vadd.f32 %v496, %v540
      %v547 = vadd.f32 %v497, %v541
      %v548 = vadd.f32 %v498, %v542
      %v549 = vadd.f32 %v499, %v543
      %v550 = vadd.f32 %v500, %v544
      %551 = vst [vmem:[%s297] sm:$0xff] %v545
      %552 = vst [vmem:[%s297 + $0x8] sm:$0xff] %v546
      %553 = vst [vmem:[%s297 + $0x10] sm:$0xff] %v547
      %554 = vst [vmem:[%s297 + $0x18] sm:$0xff] %v548
      %555 = vst [vmem:[%s297 + $0x20] sm:$0xff] %v549
      %556 = vst [vmem:[%s297 + $0x28] sm:$0xff] %v550
      %s557 = scalar_lea.vmem %s276, 24
      %v558 = vld [vmem:[%s557] sm:$0xf]
      %v559 = vld [vmem:[%s557 + $0x4] sm:$0xf]
      %v560 = vld [vmem:[%s557 + $0x8] sm:$0xf]
      %v561 = vld [vmem:[%s557 + $0xc] sm:$0xf]
      %v562 = vld [vmem:[%s557 + $0x10] sm:$0xf]
      %v563 = vld [vmem:[%s557 + $0x14] sm:$0xf]
      %v564 = vld [vmem:[%s2] sm:$0x3]
      %v565 = vunpack.c.l.bf16 %v558
      %v566 = vunpack.c.l.bf16 %v559
      %v567 = vunpack.c.l.bf16 %v560
      %v568 = vunpack.c.l.bf16 %v561
      %v569 = vunpack.c.l.bf16 %v562
      %v570 = vunpack.c.l.bf16 %v563
      %v571 = vunpack.c.l.bf16 %v564
      %573 = vset.pattern.permute.xlu0 0
      %574 = vperm.xlu0 %573, %v565
      %v575 = vpop.permute.xlu0 %574
      %578 = vset.pattern.permute.xlu0 0
      %579 = vperm.xlu0 %578, %v566
      %v580 = vpop.permute.xlu0 %579
      %583 = vset.pattern.permute.xlu0 0
      %584 = vperm.xlu0 %583, %v567
      %v585 = vpop.permute.xlu0 %584
      %588 = vset.pattern.permute.xlu0 0
      %589 = vperm.xlu0 %588, %v568
      %v590 = vpop.permute.xlu0 %589
      %593 = vset.pattern.permute.xlu0 0
      %594 = vperm.xlu0 %593, %v569
      %v595 = vpop.permute.xlu0 %594
      %598 = vset.pattern.permute.xlu0 0
      %599 = vperm.xlu0 %598, %v570
      %v600 = vpop.permute.xlu0 %599
      %v603 = vlaneseq
      %v604 = vshrl.u32 %v603, 7
      %v605 = vsub.s32 0, %v604
      %v606 = vrot.slane %v571, %v605
      %v607 = vlaneseq
      %v608 = vshrl.u32 %v607, 7
      %v609 = vsub.s32 2, %v608
      %v610 = vrot.slane %v571, %v609
      %v613 = vlaneseq
      %v614 = vshrl.u32 %v613, 7
      %v615 = vsub.s32 0, %v614
      %v616 = vrot.slane %v606, %v615
      %v617 = vlaneseq
      %v618 = vshrl.u32 %v617, 7
      %v619 = vsub.s32 0, %v618
      %v620 = vrot.slane %v610, %v619
      %v621 = vmul.f32 %v575, %v616
      %v622 = vmul.f32 %v575, %v620
      %v623 = vmul.f32 %v580, %v616
      %v624 = vmul.f32 %v580, %v620
      %v625 = vmul.f32 %v585, %v616
      %v626 = vmul.f32 %v585, %v620
      %v627 = vmul.f32 %v590, %v616
      %v628 = vmul.f32 %v590, %v620
      %v629 = vmul.f32 %v595, %v616
      %v630 = vmul.f32 %v595, %v620
      %v631 = vmul.f32 %v600, %v616
      %v632 = vmul.f32 %v600, %v620
      %v633 = vld [vmem:[#allocation2] sm:$0xff]
      %v634 = vld [vmem:[#allocation2 + $0x8] sm:$0xff]
      %v635 = vld [vmem:[#allocation2 + $0x10] sm:$0xff]
      %v636 = vld [vmem:[#allocation2 + $0x18] sm:$0xff]
      %v637 = vld [vmem:[#allocation2 + $0x20] sm:$0xff]
      %v638 = vld [vmem:[#allocation2 + $0x28] sm:$0xff]
      %v639 = vld [vmem:[#allocation2 + $0x30] sm:$0xff]
      %v640 = vld [vmem:[#allocation2 + $0x38] sm:$0xff]
      %v641 = vld [vmem:[#allocation2 + $0x40] sm:$0xff]
      %v642 = vld [vmem:[#allocation2 + $0x48] sm:$0xff]
      %v643 = vld [vmem:[#allocation2 + $0x50] sm:$0xff]
      %v644 = vld [vmem:[#allocation2 + $0x58] sm:$0xff]
      %v645 = vadd.f32 %v621, %v633
      %v646 = vadd.f32 %v622, %v634
      %v647 = vadd.f32 %v623, %v635
      %v648 = vadd.f32 %v624, %v636
      %v649 = vadd.f32 %v625, %v637
      %v650 = vadd.f32 %v626, %v638
      %v651 = vadd.f32 %v627, %v639
      %v652 = vadd.f32 %v628, %v640
      %v653 = vadd.f32 %v629, %v641
      %v654 = vadd.f32 %v630, %v642
      %v655 = vadd.f32 %v631, %v643
      %v656 = vadd.f32 %v632, %v644
      %v657 = vld [vmem:[%s297] sm:$0xff]
      %v658 = vld [vmem:[%s297 + $0x8] sm:$0xff]
      %v659 = vld [vmem:[%s297 + $0x10] sm:$0xff]
      %v660 = vld [vmem:[%s297 + $0x18] sm:$0xff]
      %v661 = vld [vmem:[%s297 + $0x20] sm:$0xff]
      %v662 = vld [vmem:[%s297 + $0x28] sm:$0xff]
      %v663 = vmul.f32 %v645, %v646
      %v664 = vmul.f32 %v647, %v648
      %v665 = vmul.f32 %v649, %v650
      %v666 = vmul.f32 %v651, %v652
      %v667 = vmul.f32 %v653, %v654
      %v668 = vmul.f32 %v655, %v656
      %v669 = vadd.f32 %v663, %v665
      %v670 = vadd.f32 %v669, %v667
      %v671 = vadd.f32 %v664, %v666
      %v672 = vadd.f32 %v671, %v668
      %v673 = vmul.f32 %v646, %v646
      %v674 = vmul.f32 %v648, %v648
      %v675 = vmul.f32 %v650, %v650
      %v676 = vmul.f32 %v652, %v652
      %v677 = vmul.f32 %v654, %v654
      %v678 = vmul.f32 %v656, %v656
      %v679 = vadd.f32 %v673, %v675
      %v680 = vadd.f32 %v679, %v677
      %v681 = vadd.f32 %v674, %v676
      %v682 = vadd.f32 %v681, %v678
      %vm683 = vcmp.lt.f32.partialorder %v670, 0.0
      %vm684 = vcmp.lt.f32.partialorder %v672, 0.0
      %v685 = vsel %vm683, %v670, 0.0
      %v686 = vsel %vm684, %v672, 0.0
      %v687 = vadd.f32 %v680, 1e-06
      %v688 = vadd.f32 %v682, 1e-06
      %v689 = vrcp.pop %v687
      %v690 = vrcp.pop %v688
      %v691 = vmul.f32 %v685, %v689
      %v692 = vmul.f32 %v686, %v690
      %v693 = vmul.f32 %v691, 0.8
      %v694 = vmul.f32 %v692, 0.8
      %v695 = vmul.f32 %v693, %v646
      %v696 = vmul.f32 %v694, %v648
      %v697 = vmul.f32 %v693, %v650
      %v698 = vmul.f32 %v694, %v652
      %v699 = vmul.f32 %v693, %v654
      %v700 = vmul.f32 %v694, %v656
      %v701 = vsub.f32 %v645, %v695
      %v702 = vsub.f32 %v647, %v696
      %v703 = vsub.f32 %v649, %v697
      %v704 = vsub.f32 %v651, %v698
      %v705 = vsub.f32 %v653, %v699
      %v706 = vsub.f32 %v655, %v700
      %v707 = vadd.f32 %v657, %v701
      %v708 = vadd.f32 %v658, %v702
      %v709 = vadd.f32 %v659, %v703
      %v710 = vadd.f32 %v660, %v704
      %v711 = vadd.f32 %v661, %v705
      %v712 = vadd.f32 %v662, %v706
      %713 = vst [vmem:[%s297] sm:$0xff] %v707
      %714 = vst [vmem:[%s297 + $0x8] sm:$0xff] %v708
      %715 = vst [vmem:[%s297 + $0x10] sm:$0xff] %v709
      %716 = vst [vmem:[%s297 + $0x18] sm:$0xff] %v710
      %717 = vst [vmem:[%s297 + $0x20] sm:$0xff] %v711
      %718 = vst [vmem:[%s297 + $0x28] sm:$0xff] %v712
      %s719 = scalar_lea.vmem %s276, 48
      %v720 = vld [vmem:[%s719] sm:$0xf]
      %v721 = vld [vmem:[%s719 + $0x4] sm:$0xf]
      %v722 = vld [vmem:[%s719 + $0x8] sm:$0xf]
      %v723 = vld [vmem:[%s719 + $0xc] sm:$0xf]
      %v724 = vld [vmem:[%s719 + $0x10] sm:$0xf]
      %v725 = vld [vmem:[%s719 + $0x14] sm:$0xf]
      %v726 = vld [vmem:[%s2] sm:$0x3]
      %v727 = vunpack.c.l.bf16 %v720
      %v728 = vunpack.c.l.bf16 %v721
      %v729 = vunpack.c.l.bf16 %v722
      %v730 = vunpack.c.l.bf16 %v723
      %v731 = vunpack.c.l.bf16 %v724
      %v732 = vunpack.c.l.bf16 %v725
      %v733 = vunpack.c.l.bf16 %v726
      %735 = vset.pattern.permute.xlu0 0
      %736 = vperm.xlu0 %735, %v727
      %v737 = vpop.permute.xlu0 %736
      %740 = vset.pattern.permute.xlu0 0
      %741 = vperm.xlu0 %740, %v728
      %v742 = vpop.permute.xlu0 %741
      %745 = vset.pattern.permute.xlu0 0
      %746 = vperm.xlu0 %745, %v729
      %v747 = vpop.permute.xlu0 %746
      %750 = vset.pattern.permute.xlu0 0
      %751 = vperm.xlu0 %750, %v730
      %v752 = vpop.permute.xlu0 %751
      %755 = vset.pattern.permute.xlu0 0
      %756 = vperm.xlu0 %755, %v731
      %v757 = vpop.permute.xlu0 %756
      %760 = vset.pattern.permute.xlu0 0
      %761 = vperm.xlu0 %760, %v732
      %v762 = vpop.permute.xlu0 %761
      %v765 = vlaneseq
      %v766 = vshrl.u32 %v765, 7
      %v767 = vsub.s32 0, %v766
      %v768 = vrot.slane %v733, %v767
      %v769 = vlaneseq
      %v770 = vshrl.u32 %v769, 7
      %v771 = vsub.s32 2, %v770
      %v772 = vrot.slane %v733, %v771
      %v775 = vlaneseq
      %v776 = vshrl.u32 %v775, 7
      %v777 = vsub.s32 0, %v776
      %v778 = vrot.slane %v768, %v777
      %v779 = vlaneseq
      %v780 = vshrl.u32 %v779, 7
      %v781 = vsub.s32 0, %v780
      %v782 = vrot.slane %v772, %v781
      %v783 = vmul.f32 %v737, %v778
      %v784 = vmul.f32 %v737, %v782
      %v785 = vmul.f32 %v742, %v778
      %v786 = vmul.f32 %v742, %v782
      %v787 = vmul.f32 %v747, %v778
      %v788 = vmul.f32 %v747, %v782
      %v789 = vmul.f32 %v752, %v778
      %v790 = vmul.f32 %v752, %v782
      %v791 = vmul.f32 %v757, %v778
      %v792 = vmul.f32 %v757, %v782
      %v793 = vmul.f32 %v762, %v778
      %v794 = vmul.f32 %v762, %v782
      %v795 = vld [vmem:[#allocation2] sm:$0xff]
      %v796 = vld [vmem:[#allocation2 + $0x8] sm:$0xff]
      %v797 = vld [vmem:[#allocation2 + $0x10] sm:$0xff]
      %v798 = vld [vmem:[#allocation2 + $0x18] sm:$0xff]
      %v799 = vld [vmem:[#allocation2 + $0x20] sm:$0xff]
      %v800 = vld [vmem:[#allocation2 + $0x28] sm:$0xff]
      %v801 = vld [vmem:[#allocation2 + $0x30] sm:$0xff]
      %v802 = vld [vmem:[#allocation2 + $0x38] sm:$0xff]
      %v803 = vld [vmem:[#allocation2 + $0x40] sm:$0xff]
      %v804 = vld [vmem:[#allocation2 + $0x48] sm:$0xff]
      %v805 = vld [vmem:[#allocation2 + $0x50] sm:$0xff]
      %v806 = vld [vmem:[#allocation2 + $0x58] sm:$0xff]
      %v807 = vadd.f32 %v783, %v795
      %v808 = vadd.f32 %v784, %v796
      %v809 = vadd.f32 %v785, %v797
      %v810 = vadd.f32 %v786, %v798
      %v811 = vadd.f32 %v787, %v799
      %v812 = vadd.f32 %v788, %v800
      %v813 = vadd.f32 %v789, %v801
      %v814 = vadd.f32 %v790, %v802
      %v815 = vadd.f32 %v791, %v803
      %v816 = vadd.f32 %v792, %v804
      %v817 = vadd.f32 %v793, %v805
      %v818 = vadd.f32 %v794, %v806
      %v819 = vld [vmem:[%s297] sm:$0xff]
      %v820 = vld [vmem:[%s297 + $0x8] sm:$0xff]
      %v821 = vld [vmem:[%s297 + $0x10] sm:$0xff]
      %v822 = vld [vmem:[%s297 + $0x18] sm:$0xff]
      %v823 = vld [vmem:[%s297 + $0x20] sm:$0xff]
      %v824 = vld [vmem:[%s297 + $0x28] sm:$0xff]
      %v825 = vmul.f32 %v807, %v808
      %v826 = vmul.f32 %v809, %v810
      %v827 = vmul.f32 %v811, %v812
      %v828 = vmul.f32 %v813, %v814
      %v829 = vmul.f32 %v815, %v816
      %v830 = vmul.f32 %v817, %v818
      %v831 = vadd.f32 %v825, %v827
      %v832 = vadd.f32 %v831, %v829
      %v833 = vadd.f32 %v826, %v828
      %v834 = vadd.f32 %v833, %v830
      %v835 = vmul.f32 %v808, %v808
      %v836 = vmul.f32 %v810, %v810
      %v837 = vmul.f32 %v812, %v812
      %v838 = vmul.f32 %v814, %v814
      %v839 = vmul.f32 %v816, %v816
      %v840 = vmul.f32 %v818, %v818
      %v841 = vadd.f32 %v835, %v837
      %v842 = vadd.f32 %v841, %v839
      %v843 = vadd.f32 %v836, %v838
      %v844 = vadd.f32 %v843, %v840
      %vm845 = vcmp.lt.f32.partialorder %v832, 0.0
      %vm846 = vcmp.lt.f32.partialorder %v834, 0.0
      %v847 = vsel %vm845, %v832, 0.0
      %v848 = vsel %vm846, %v834, 0.0
      %v849 = vadd.f32 %v842, 1e-06
      %v850 = vadd.f32 %v844, 1e-06
      %v851 = vrcp.pop %v849
      %v852 = vrcp.pop %v850
      %v853 = vmul.f32 %v847, %v851
      %v854 = vmul.f32 %v848, %v852
      %v855 = vmul.f32 %v853, 0.8
      %v856 = vmul.f32 %v854, 0.8
      %v857 = vmul.f32 %v855, %v808
      %v858 = vmul.f32 %v856, %v810
      %v859 = vmul.f32 %v855, %v812
      %v860 = vmul.f32 %v856, %v814
      %v861 = vmul.f32 %v855, %v816
      %v862 = vmul.f32 %v856, %v818
      %v863 = vsub.f32 %v807, %v857
      %v864 = vsub.f32 %v809, %v858
      %v865 = vsub.f32 %v811, %v859
      %v866 = vsub.f32 %v813, %v860
      %v867 = vsub.f32 %v815, %v861
      %v868 = vsub.f32 %v817, %v862
      %v869 = vadd.f32 %v819, %v863
      %v870 = vadd.f32 %v820, %v864
      %v871 = vadd.f32 %v821, %v865
      %v872 = vadd.f32 %v822, %v866
      %v873 = vadd.f32 %v823, %v867
      %v874 = vadd.f32 %v824, %v868
      %875 = vst [vmem:[%s297] sm:$0xff] %v869
      %876 = vst [vmem:[%s297 + $0x8] sm:$0xff] %v870
      %877 = vst [vmem:[%s297 + $0x10] sm:$0xff] %v871
      %878 = vst [vmem:[%s297 + $0x18] sm:$0xff] %v872
      %879 = vst [vmem:[%s297 + $0x20] sm:$0xff] %v873
      %880 = vst [vmem:[%s297 + $0x28] sm:$0xff] %v874
      %s881 = scalar_lea.vmem %s276, 72
      %v882 = vld [vmem:[%s881] sm:$0xf]
      %v883 = vld [vmem:[%s881 + $0x4] sm:$0xf]
      %v884 = vld [vmem:[%s881 + $0x8] sm:$0xf]
      %v885 = vld [vmem:[%s881 + $0xc] sm:$0xf]
      %v886 = vld [vmem:[%s881 + $0x10] sm:$0xf]
      %v887 = vld [vmem:[%s881 + $0x14] sm:$0xf]
      %v888 = vld [vmem:[%s2] sm:$0x3]
      %v889 = vunpack.c.l.bf16 %v882
      %v890 = vunpack.c.l.bf16 %v883
      %v891 = vunpack.c.l.bf16 %v884
      %v892 = vunpack.c.l.bf16 %v885
      %v893 = vunpack.c.l.bf16 %v886
      %v894 = vunpack.c.l.bf16 %v887
      %v895 = vunpack.c.l.bf16 %v888
      %897 = vset.pattern.permute.xlu0 0
      %898 = vperm.xlu0 %897, %v889
      %v899 = vpop.permute.xlu0 %898
      %902 = vset.pattern.permute.xlu0 0
      %903 = vperm.xlu0 %902, %v890
      %v904 = vpop.permute.xlu0 %903
      %907 = vset.pattern.permute.xlu0 0
      %908 = vperm.xlu0 %907, %v891
      %v909 = vpop.permute.xlu0 %908
      %912 = vset.pattern.permute.xlu0 0
      %913 = vperm.xlu0 %912, %v892
      %v914 = vpop.permute.xlu0 %913
      %917 = vset.pattern.permute.xlu0 0
      %918 = vperm.xlu0 %917, %v893
      %v919 = vpop.permute.xlu0 %918
      %922 = vset.pattern.permute.xlu0 0
      %923 = vperm.xlu0 %922, %v894
      %v924 = vpop.permute.xlu0 %923
      %v927 = vlaneseq
      %v928 = vshrl.u32 %v927, 7
      %v929 = vsub.s32 0, %v928
      %v930 = vrot.slane %v895, %v929
      %v931 = vlaneseq
      %v932 = vshrl.u32 %v931, 7
      %v933 = vsub.s32 2, %v932
      %v934 = vrot.slane %v895, %v933
      %v937 = vlaneseq
      %v938 = vshrl.u32 %v937, 7
      %v939 = vsub.s32 0, %v938
      %v940 = vrot.slane %v930, %v939
      %v941 = vlaneseq
      %v942 = vshrl.u32 %v941, 7
      %v943 = vsub.s32 0, %v942
      %v944 = vrot.slane %v934, %v943
      %v945 = vmul.f32 %v899, %v940
      %v946 = vmul.f32 %v899, %v944
      %v947 = vmul.f32 %v904, %v940
      %v948 = vmul.f32 %v904, %v944
      %v949 = vmul.f32 %v909, %v940
      %v950 = vmul.f32 %v909, %v944
      %v951 = vmul.f32 %v914, %v940
      %v952 = vmul.f32 %v914, %v944
      %v953 = vmul.f32 %v919, %v940
      %v954 = vmul.f32 %v919, %v944
      %v955 = vmul.f32 %v924, %v940
      %v956 = vmul.f32 %v924, %v944
      %v957 = vld [vmem:[#allocation2] sm:$0xff]
      %v958 = vld [vmem:[#allocation2 + $0x8] sm:$0xff]
      %v959 = vld [vmem:[#allocation2 + $0x10] sm:$0xff]
      %v960 = vld [vmem:[#allocation2 + $0x18] sm:$0xff]
      %v961 = vld [vmem:[#allocation2 + $0x20] sm:$0xff]
      %v962 = vld [vmem:[#allocation2 + $0x28] sm:$0xff]
      %v963 = vld [vmem:[#allocation2 + $0x30] sm:$0xff]
      %v964 = vld [vmem:[#allocation2 + $0x38] sm:$0xff]
      %v965 = vld [vmem:[#allocation2 + $0x40] sm:$0xff]
      %v966 = vld [vmem:[#allocation2 + $0x48] sm:$0xff]
      %v967 = vld [vmem:[#allocation2 + $0x50] sm:$0xff]
      %v968 = vld [vmem:[#allocation2 + $0x58] sm:$0xff]
      %v969 = vadd.f32 %v945, %v957
      %v970 = vadd.f32 %v946, %v958
      %v971 = vadd.f32 %v947, %v959
      %v972 = vadd.f32 %v948, %v960
      %v973 = vadd.f32 %v949, %v961
      %v974 = vadd.f32 %v950, %v962
      %v975 = vadd.f32 %v951, %v963
      %v976 = vadd.f32 %v952, %v964
      %v977 = vadd.f32 %v953, %v965
      %v978 = vadd.f32 %v954, %v966
      %v979 = vadd.f32 %v955, %v967
      %v980 = vadd.f32 %v956, %v968
      %v981 = vld [vmem:[%s297] sm:$0xff]
      %v982 = vld [vmem:[%s297 + $0x8] sm:$0xff]
      %v983 = vld [vmem:[%s297 + $0x10] sm:$0xff]
      %v984 = vld [vmem:[%s297 + $0x18] sm:$0xff]
      %v985 = vld [vmem:[%s297 + $0x20] sm:$0xff]
      %v986 = vld [vmem:[%s297 + $0x28] sm:$0xff]
      %v987 = vmul.f32 %v969, %v970
      %v988 = vmul.f32 %v971, %v972
      %v989 = vmul.f32 %v973, %v974
      %v990 = vmul.f32 %v975, %v976
      %v991 = vmul.f32 %v977, %v978
      %v992 = vmul.f32 %v979, %v980
      %v993 = vadd.f32 %v987, %v989
      %v994 = vadd.f32 %v993, %v991
      %v995 = vadd.f32 %v988, %v990
      %v996 = vadd.f32 %v995, %v992
      %v997 = vmul.f32 %v970, %v970
      %v998 = vmul.f32 %v972, %v972
      %v999 = vmul.f32 %v974, %v974
      %v1000 = vmul.f32 %v976, %v976
      %v1001 = vmul.f32 %v978, %v978
      %v1002 = vmul.f32 %v980, %v980
      %v1003 = vadd.f32 %v997, %v999
      %v1004 = vadd.f32 %v1003, %v1001
      %v1005 = vadd.f32 %v998, %v1000
      %v1006 = vadd.f32 %v1005, %v1002
      %vm1007 = vcmp.lt.f32.partialorder %v994, 0.0
      %vm1008 = vcmp.lt.f32.partialorder %v996, 0.0
      %v1009 = vsel %vm1007, %v994, 0.0
      %v1010 = vsel %vm1008, %v996, 0.0
      %v1011 = vadd.f32 %v1004, 1e-06
      %v1012 = vadd.f32 %v1006, 1e-06
      %v1013 = vrcp.pop %v1011
      %v1014 = vrcp.pop %v1012
      %v1015 = vmul.f32 %v1009, %v1013
      %v1016 = vmul.f32 %v1010, %v1014
      %v1017 = vmul.f32 %v1015, 0.8
      %v1018 = vmul.f32 %v1016, 0.8
      %v1019 = vmul.f32 %v1017, %v970
      %v1020 = vmul.f32 %v1018, %v972
      %v1021 = vmul.f32 %v1017, %v974
      %v1022 = vmul.f32 %v1018, %v976
      %v1023 = vmul.f32 %v1017, %v978
      %v1024 = vmul.f32 %v1018, %v980
      %v1025 = vsub.f32 %v969, %v1019
      %v1026 = vsub.f32 %v971, %v1020
      %v1027 = vsub.f32 %v973, %v1021
      %v1028 = vsub.f32 %v975, %v1022
      %v1029 = vsub.f32 %v977, %v1023
      %v1030 = vsub.f32 %v979, %v1024
      %v1031 = vadd.f32 %v981, %v1025
      %v1032 = vadd.f32 %v982, %v1026
      %v1033 = vadd.f32 %v983, %v1027
      %v1034 = vadd.f32 %v984, %v1028
      %v1035 = vadd.f32 %v985, %v1029
      %v1036 = vadd.f32 %v986, %v1030
      %1037 = vst [vmem:[%s297] sm:$0xff] %v1031
      %1038 = vst [vmem:[%s297 + $0x8] sm:$0xff] %v1032
      %1039 = vst [vmem:[%s297 + $0x10] sm:$0xff] %v1033
      %1040 = vst [vmem:[%s297 + $0x18] sm:$0xff] %v1034
      %1041 = vst [vmem:[%s297 + $0x20] sm:$0xff] %v1035
      %1042 = vst [vmem:[%s297 + $0x28] sm:$0xff] %v1036
      // Predicated region
      $region41: #{vn_dgcnn_encoder.10} parent=35 // pred_check
        %p1043 = pneg %p299
      $region42: #{vn_dgcnn_encoder.10} parent=35 // pred_check_branch
        %1045 = sbr.rel (%p1043) target = $region44
      $region43: #{vn_dgcnn_encoder.10} parent=35 // pred_region
        %v1046 = vld [vmem:[%s297] sm:$0xff]
        %v1047 = vld [vmem:[%s297 + $0x8] sm:$0xff]
        %v1048 = vld [vmem:[%s297 + $0x10] sm:$0xff]
        %v1049 = vld [vmem:[%s297 + $0x18] sm:$0xff]
        %v1050 = vld [vmem:[%s297 + $0x20] sm:$0xff]
        %v1051 = vld [vmem:[%s297 + $0x28] sm:$0xff]
        %v1052 = vmul.f32 %v1046, 0.25
        %v1053 = vmul.f32 %v1047, 0.25
        %v1054 = vmul.f32 %v1048, 0.25
        %v1055 = vmul.f32 %v1049, 0.25
        %v1056 = vmul.f32 %v1050, 0.25
        %v1057 = vmul.f32 %v1051, 0.25
        %1058 = vst [vmem:[%s297] sm:$0xff] %v1052
        %1059 = vst [vmem:[%s297 + $0x8] sm:$0xff] %v1053
        %1060 = vst [vmem:[%s297 + $0x10] sm:$0xff] %v1054
        %1061 = vst [vmem:[%s297 + $0x18] sm:$0xff] %v1055
        %1062 = vst [vmem:[%s297 + $0x20] sm:$0xff] %v1056
        %1063 = vst [vmem:[%s297 + $0x28] sm:$0xff] %v1057
      $region44: #{vn_dgcnn_encoder.10} parent=35 // pred_fallthru
        _
      %s1064 = smul.u32 2, %s21
      %p1065 = scmp.lt.s32.totalorder %s20, 1
      %s1066 = scalar_select %p1065, %s20, 1
      %p1067 = scmp.lt.s32.totalorder %s1064, 1
      %s1068 = scalar_select %p1067, %s1064, 1
      %s1069 = smul.addr %s1066, 6
      %s1070 = sadd.s32 %s1068, %s1069
      %s1071 = smul.addr %s1070, 8
      %s1072 = scalar_lea.vmem %s4, %s1071
      // Predicated region
      $region45: #{vn_dgcnn_encoder.10} parent=35 // pred_check
        %p1073 = pneg %p154
      $region46: #{vn_dgcnn_encoder.10} parent=35 // pred_check_branch
        %1075 = sbr.rel (%p1073) target = $region48
      $region47: #{vn_dgcnn_encoder.10} parent=35 // pred_region
        %s1076 = smul.u32 2, %s21
      $region48: #{vn_dgcnn_encoder.10} parent=35 // pred_fallthru
        _
    $region36: #{vn_dgcnn_encoder.10} parent=5 // pred_fallthru
      _
    %p1077 = scmp.le.s32.totalorder 2, %s10
    // Predicated region
    $region49: #{vn_dgcnn_encoder.10} parent=5 // pred_check
      %p1078 = pneg %p1077
    $region50: #{vn_dgcnn_encoder.10} parent=5 // pred_check_branch
      %1080 = sbr.rel (%p1078) target = $region52
    $region51: #{vn_dgcnn_encoder.10} parent=5 // pred_region
      %s1081 = ssub.s32 %s10, 2
      // Predicated region
      $region53: #{vn_dgcnn_encoder.10} parent=51 // pred_check
        %p1082 = pneg %p160
      $region54: #{vn_dgcnn_encoder.10} parent=51 // pred_check_branch
        %1084 = sbr.rel (%p1082) target = $region56
      $region55: #{vn_dgcnn_encoder.10} parent=51 // pred_region
        %s1085 = smul.u32 2, %s24
        %p1086 = scmp.lt.s32.totalorder %s23, 1
        %s1087 = scalar_select %p1086, %s23, 1
        %p1088 = scmp.lt.s32.totalorder %s1085, 1
        %s1089 = scalar_select %p1088, %s1085, 1
        %s1090 = smul.addr %s1087, 6
        %s1091 = sadd.s32 %s1089, %s1090
        %s1092 = smul.addr %s1091, 8
        %s1093 = scalar_lea.vmem %s4, %s1092
      $region56: #{vn_dgcnn_encoder.10} parent=51 // pred_fallthru
        _
    $region52: #{vn_dgcnn_encoder.10} parent=5 // pred_fallthru
      _
  $region6: #{vn_dgcnn_encoder.10} parent=0 // loop_footer
    %s14 = sadd.s32 1, %s10
  $region7: #{vn_dgcnn_encoder.10} parent=0 // loop_footer_branch
    %9 = sbr.rel target = $region3
  $region8: #{vn_dgcnn_encoder.10} parent=0 // loop_exit
    _

// kernel: vn_dgcnn_encoder.15
$region0: #{vn_dgcnn_encoder.15}
  #allocation0 [shape = 'u32[]', space=smem, size = 0x4, offset = 0x4, fixed_abs, tag = 'smem constant byte address 0x4 - core index']
  #allocation1 [shape = 'u32[144,128]{1,0:T(1,128)}', space=vmem, size = 0x12000, scoped, tag = 'internal scratch']
  %s0 = inlined_call_operand.vmem [shape: f32[2,16,48], index: 0, kind: input, shape index: {}]
  %s1 = inlined_call_operand.vmem [shape: f32[2,48,16], index: 1, kind: input, shape index: {}]
  %s2 = inlined_call_operand.vmem [shape: f32[2,1,16], index: 2, kind: input, shape index: {}]
  %s3 = inlined_call_operand.vmem [shape: f32[2,16,16], index: 3, kind: output, shape index: {}]
  %s4 = sld [smem:[#allocation0]]
  $region45: #{vn_dgcnn_encoder.15} parent=0
    _
  %s6 = ssub.s32 1, %s4
  %s7 = scalar_select 0, %s6, %s4
  loop: start=0, step=1, limit=4
  $region2: #{vn_dgcnn_encoder.15} parent=0 // loop_pre_header
    _
  $region3: #{vn_dgcnn_encoder.15} parent=0 // loop_header
    %s9 = sphi 0, %s13
    %p10 = scmp.ge.s32.totalorder %s9, 4
    %s16 = sphi 0, %s28
    %s17 = sphi 0, %s24
    %s18 = sphi 0, %s16
    %s19 = sphi 0, %s17
    %s20 = sphi 0, %s18
    %s21 = sphi 0, %s19
    %s33 = sphi 0, %s35
    %s36 = sphi 0, %s33
    %s37 = sphi 0, %s36
    %s53 = sphi 0, %s37
    %s59 = sphi 0, %s61
    %s62 = sphi 0, %s59
    %s63 = sphi 0, %s62
    %s79 = sphi 0, %s63
    %s85 = sphi 0, %s87
    %s88 = sphi 0, %s85
    %s89 = sphi 0, %s88
    %s105 = sphi 0, %s89
    %s113 = sphi 0, %s115
    %s116 = sphi 0, %s113
    %s117 = sphi 0, %s116
    %s133 = sphi 0, %s117
  $region4: #{vn_dgcnn_encoder.15} parent=0 // loop_header_branch
    %12 = sbr.rel (%p10) target = $region8
  $region5: #{vn_dgcnn_encoder.15} parent=0 // loop_body
    %s14 = ssub.s32 %s9, 1
    %s15 = ssub.s32 %s9, 2
    %s22 = sadd.s32 1, %s17
    %p23 = scmp.ge.s32.totalorder %s22, 1
    %s24 = scalar_select %p23, 0, %s22
    %s25 = sadd.s32 1, %s16
    %s26 = scalar_select %p23, %s25, %s16
    %p27 = scmp.ge.s32.totalorder %s26, 2
    %s28 = scalar_select %p27, 0, %s26
    %s29 = ssub.s32 %s16, %s28
    %s30 = ssub.s32 %s17, %s24
    %s31 = sor.u32 %s29, %s30
    %p32 = scmp.eq.s32.totalorder %s31, 0
    %s34 = sadd.s32 %s33, 1
    %s35 = scalar_select %p32, %s33, %s34
    %p38 = pneg %p32
    %p39 = scmp.eq.s32.totalorder %s9, 1
    %p40 = por %p38, %p39
    %p41 = scmp.ne.s32.totalorder %s33, %s36
    %p42 = scmp.eq.s32.totalorder %s9, 0
    %p43 = por %p41, %p42
    %p44 = scmp.ne.s32.totalorder %s33, %s36
    %p45 = scmp.eq.s32.totalorder %s14, 1
    %p46 = por %p44, %p45
    %p47 = scmp.ne.s32.totalorder %s36, %s37
    %p48 = scmp.eq.s32.totalorder %s14, 0
    %p49 = por %p47, %p48
    %p50 = scmp.ne.s32.totalorder %s36, %s37
    %p51 = scmp.eq.s32.totalorder %s15, 1
    %p52 = por %p50, %p51
    %p54 = scmp.ne.s32.totalorder %s37, %s53
    %p55 = scmp.eq.s32.totalorder %s15, 0
    %p56 = por %p54, %p55
    %s57 = ssub.s32 %s16, %s28
    %p58 = scmp.eq.s32.totalorder %s57, 0
    %s60 = sadd.s32 %s59, 1
    %s61 = scalar_select %p58, %s59, %s60
    %p64 = pneg %p58
    %p65 = scmp.eq.s32.totalorder %s9, 1
    %p66 = por %p64, %p65
    %p67 = scmp.ne.s32.totalorder %s59, %s62
    %p68 = scmp.eq.s32.totalorder %s9, 0
    %p69 = por %p67, %p68
    %p70 = scmp.ne.s32.totalorder %s59, %s62
    %p71 = scmp.eq.s32.totalorder %s14, 1
    %p72 = por %p70, %p71
    %p73 = scmp.ne.s32.totalorder %s62, %s63
    %p74 = scmp.eq.s32.totalorder %s14, 0
    %p75 = por %p73, %p74
    %p76 = scmp.ne.s32.totalorder %s62, %s63
    %p77 = scmp.eq.s32.totalorder %s15, 1
    %p78 = por %p76, %p77
    %p80 = scmp.ne.s32.totalorder %s63, %s79
    %p81 = scmp.eq.s32.totalorder %s15, 0
    %p82 = por %p80, %p81
    %s83 = ssub.s32 %s16, %s28
    %p84 = scmp.eq.s32.totalorder %s83, 0
    %s86 = sadd.s32 %s85, 1
    %s87 = scalar_select %p84, %s85, %s86
    %p90 = pneg %p84
    %p91 = scmp.eq.s32.totalorder %s9, 1
    %p92 = por %p90, %p91
    %p93 = scmp.ne.s32.totalorder %s85, %s88
    %p94 = scmp.eq.s32.totalorder %s9, 0
    %p95 = por %p93, %p94
    %p96 = scmp.ne.s32.totalorder %s85, %s88
    %p97 = scmp.eq.s32.totalorder %s14, 1
    %p98 = por %p96, %p97
    %p99 = scmp.ne.s32.totalorder %s88, %s89
    %p100 = scmp.eq.s32.totalorder %s14, 0
    %p101 = por %p99, %p100
    %p102 = scmp.ne.s32.totalorder %s88, %s89
    %p103 = scmp.eq.s32.totalorder %s15, 1
    %p104 = por %p102, %p103
    %p106 = scmp.ne.s32.totalorder %s89, %s105
    %p107 = scmp.eq.s32.totalorder %s15, 0
    %p108 = por %p106, %p107
    %s109 = ssub.s32 %s16, %s28
    %s110 = ssub.s32 %s17, %s24
    %s111 = sor.u32 %s109, %s110
    %p112 = scmp.eq.s32.totalorder %s111, 0
    %s114 = sadd.s32 %s113, 1
    %s115 = scalar_select %p112, %s113, %s114
    %p118 = pneg %p112
    %p119 = scmp.eq.s32.totalorder %s9, 1
    %p120 = por %p118, %p119
    %p121 = scmp.ne.s32.totalorder %s113, %s116
    %p122 = scmp.eq.s32.totalorder %s9, 0
    %p123 = por %p121, %p122
    %p124 = scmp.ne.s32.totalorder %s113, %s116
    %p125 = scmp.eq.s32.totalorder %s14, 1
    %p126 = por %p124, %p125
    %p127 = scmp.ne.s32.totalorder %s116, %s117
    %p128 = scmp.eq.s32.totalorder %s14, 0
    %p129 = por %p127, %p128
    %p130 = scmp.ne.s32.totalorder %s116, %s117
    %p131 = scmp.eq.s32.totalorder %s15, 1
    %p132 = por %p130, %p131
    %p134 = scmp.ne.s32.totalorder %s117, %s133
    %p135 = scmp.eq.s32.totalorder %s15, 0
    %p136 = por %p134, %p135
    %p137 = scmp.le.s32.totalorder 1, %s9
    %p138 = scmp.lt.s32.totalorder %s9, 3
    %p139 = pnand %p137, %p138
    %p140 = pneg %p139
    // Predicated region
    $region9: #{vn_dgcnn_encoder.15} parent=5 // pred_check
      _
    $region10: #{vn_dgcnn_encoder.15} parent=5 // pred_check_branch
      %142 = sbr.rel (%p139) target = $region12
    $region11: #{vn_dgcnn_encoder.15} parent=5 // pred_region
      %s143 = ssub.s32 %s9, 1
    $region12: #{vn_dgcnn_encoder.15} parent=5 // pred_fallthru
      _
    %p144 = scmp.lt.s32.totalorder %s9, 2
    // Predicated region
    $region13: #{vn_dgcnn_encoder.15} parent=5 // pred_check
      %p145 = pneg %p144
    $region14: #{vn_dgcnn_encoder.15} parent=5 // pred_check_branch
      %147 = sbr.rel (%p145) target = $region16
    $region15: #{vn_dgcnn_encoder.15} parent=5 // pred_region
      // Predicated region
      $region17: #{vn_dgcnn_encoder.15} parent=15 // pred_check
        %p148 = pneg %p43
      $region18: #{vn_dgcnn_encoder.15} parent=15 // pred_check_branch
        %150 = sbr.rel (%p148) target = $region20
      $region19: #{vn_dgcnn_encoder.15} parent=15 // pred_region
        %s151 = smul.u32 2, %s17
        %p152 = scmp.lt.s32.totalorder %s16, 1
        %s153 = scalar_select %p152, %s16, 1
        %p154 = scmp.lt.s32.totalorder %s151, 1
        %s155 = scalar_select %p154, %s151, 1
        %s156 = smul.addr %s153, 2
        %s157 = sadd.s32 %s155, %s156
        %s158 = smul.addr %s157, 8
        %s159 = scalar_lea.vmem %s0, %s158
        %s160 = smul.u32 2, %s17
      $region20: #{vn_dgcnn_encoder.15} parent=15 // pred_fallthru
        _
      // Predicated region
      $region21: #{vn_dgcnn_encoder.15} parent=15 // pred_check
        %p161 = pneg %p69
      $region22: #{vn_dgcnn_encoder.15} parent=15 // pred_check_branch
        %163 = sbr.rel (%p161) target = $region24
      $region23: #{vn_dgcnn_encoder.15} parent=15 // pred_region
        %p164 = scmp.lt.s32.totalorder %s16, 1
        %s165 = scalar_select %p164, %s16, 1
        %s166 = smul.addr %s165, 6
        %s167 = smul.addr %s166, 8
        %s168 = scalar_lea.vmem %s1, %s167
      $region24: #{vn_dgcnn_encoder.15} parent=15 // pred_fallthru
        _
      // Predicated region
      $region25: #{vn_dgcnn_encoder.15} parent=15 // pred_check
        %p169 = pneg %p95
      $region26: #{vn_dgcnn_encoder.15} parent=15 // pred_check_branch
        %171 = sbr.rel (%p169) target = $region28
      $region27: #{vn_dgcnn_encoder.15} parent=15 // pred_region
        %p172 = scmp.lt.s32.totalorder %s16, 1
        %s173 = scalar_select %p172, %s16, 1
        %s174 = scalar_lea.vmem %s2, %s173
      $region28: #{vn_dgcnn_encoder.15} parent=15 // pred_fallthru
        _
    $region16: #{vn_dgcnn_encoder.15} parent=5 // pred_fallthru
      _
    %p175 = scmp.le.s32.totalorder 1, %s9
    %p176 = scmp.lt.s32.totalorder %s9, 3
    %p177 = pnand %p175, %p176
    %p178 = pneg %p177
    // Predicated region
    $region29: #{vn_dgcnn_encoder.15} parent=5 // pred_check
      _
    $region30: #{vn_dgcnn_encoder.15} parent=5 // pred_check_branch
      %180 = sbr.rel (%p177) target = $region32
    $region31: #{vn_dgcnn_encoder.15} parent=5 // pred_region
      %s181 = ssub.s32 %s9, 1
      %s182 = smul.u32 2, %s19
      %p183 = scmp.lt.s32.totalorder %s18, 1
      %s184 = scalar_select %p183, %s18, 1
      %p185 = scmp.lt.s32.totalorder %s182, 1
      %s186 = scalar_select %p185, %s182, 1
      %s187 = smul.addr %s184, 2
      %s188 = sadd.s32 %s186, %s187
      %s189 = smul.addr %s188, 8
      %s190 = scalar_lea.vmem %s0, %s189
      %p191 = pneg %p49
      %p192 = pneg %p46
      %p193 = scmp.lt.s32.totalorder %s18, 1
      %s194 = scalar_select %p193, %s18, 1
      %s195 = smul.addr %s194, 6
      %s196 = smul.addr %s195, 8
      %s197 = scalar_lea.vmem %s1, %s196
      %p198 = pneg %p75
      %p199 = pneg %p72
      %p200 = scmp.lt.s32.totalorder %s18, 1
      %s201 = scalar_select %p200, %s18, 1
      %s202 = scalar_lea.vmem %s2, %s201
      %p203 = pneg %p101
      %p204 = pneg %p98
      %p205 = pneg %p129
      %p206 = pneg %p126
      %s207 = smul.u32 2, %s19
      %p208 = scmp.lt.s32.totalorder %s18, 1
      %s209 = scalar_select %p208, %s18, 1
      %p210 = scmp.lt.s32.totalorder %s207, 1
      %s211 = scalar_select %p210, %s207, 1
      %s212 = smul.addr %s209, 2
      %s213 = sadd.s32 %s211, %s212
      %s214 = smul.addr %s213, 8
      %s215 = scalar_lea.vmem %s3, %s214
      %s216 = smul.u32 2, %s19
      %p217 = scmp.lt.s32.totalorder %s18, 1
      %s218 = scalar_select %p217, %s18, 1
      %p219 = scmp.lt.s32.totalorder %s216, 1
      %s220 = scalar_select %p219, %s216, 1
      %s221 = smul.addr %s218, 2
      %s222 = sadd.s32 %s220, %s221
      %s223 = smul.addr %s222, 8
      %s224 = scalar_lea.vmem %s0, %s223
      %s225 = smul.u32 2, %s19
      %p226 = scmp.lt.s32.totalorder %s18, 1
      %s227 = scalar_select %p226, %s18, 1
      %s228 = smul.addr %s227, 6
      %s229 = smul.addr %s228, 8
      %s230 = scalar_lea.vmem %s1, %s229
      %p231 = scmp.lt.s32.totalorder %s18, 1
      %s232 = scalar_select %p231, %s18, 1
      %s233 = scalar_lea.vmem %s2, %s232
      %s234 = smul.u32 2, %s19
      %p235 = scmp.lt.s32.totalorder %s18, 1
      %s236 = scalar_select %p235, %s18, 1
      %p237 = scmp.lt.s32.totalorder %s234, 1
      %s238 = scalar_select %p237, %s234, 1
      %s239 = smul.addr %s236, 2
      %s240 = sadd.s32 %s238, %s239
      %s241 = smul.addr %s240, 8
      %s242 = scalar_lea.vmem %s3, %s241
      %s243 = smul.u32 2, %s19
      %v244 = vld [vmem:[%s224] sm:$0xff]
      %v245 = vld [vmem:[%s224 + $0x8] sm:$0xff]
      %v246 = vld [vmem:[%s230] sm:$0xff]
      %v247 = vld [vmem:[%s230 + $0x8] sm:$0xff]
      %v248 = vld [vmem:[%s230 + $0x10] sm:$0xff]
      %v249 = vld [vmem:[%s230 + $0x18] sm:$0xff]
      %v250 = vld [vmem:[%s230 + $0x20] sm:$0xff]
      %v251 = vld [vmem:[%s230 + $0x28] sm:$0xff]
      %vm252 = vcmask 392192
      %v254 = vsel %vm252, %v244, 0
      %v257 = vsel %vm252, %v245, 0
      %259 = vmatprep.subr.mxu0 0.0
      %260 = vmatpush1.msra.mxu0 %v246
      %261 = vmatprep.subr.mxu0 0.0
      %262 = vmatpush1.msra.mxu0 %v247
      %263 = vmatprep.subr.mxu0 0.0
      %264 = vmatpush1.msra.mxu0 %v248
      %265 = vmatprep.subr.mxu0 0.0
      %266 = vmatpush1.msra.mxu0 %v249
      %267 = vmatprep.subr.mxu0 0.0
      %268 = vmatpush1.msra.mxu0 %v250
      %269 = vmatprep.subr.mxu0 0.0
      %270 = vmatpush1.msra.mxu0 %v251
      %271 = vmatprep.subr.mxu0 0.0
      %272 = vmatpush1.msra.mxu0 0.0
      %273 = vmatprep.subr.mxu0 0.0
      %274 = vmatpush1.msra.mxu0 0.0
      %275 = vmatprep.subr.mxu0 0.0
      %276 = vmatpush1.msra.mxu0 0.0
      %277 = vmatprep.subr.mxu0 0.0
      %278 = vmatpush1.msra.mxu0 0.0
      %279 = vmatprep.subr.mxu0 0.0
      %280 = vmatpush1.msra.mxu0 0.0
      %281 = vmatprep.subr.mxu0 0.0
      %282 = vmatpush1.msra.mxu0 0.0
      %283 = vmatprep.subr.mxu0 0.0
      %284 = vmatpush1.msra.mxu0 0.0
      %285 = vmatprep.subr.mxu0 0.0
      %286 = vmatpush1.msra.mxu0 0.0
      %287 = vmatprep.subr.mxu0 0.0
      %288 = vmatpush1.msra.mxu0 0.0
      %289 = vmatprep.subr.mxu0 0.0
      %290 = vmatpush1.msra.mxu0 0.0
      %291 = vmatprep.subr.mxu0 0.0
      %292 = vmatpush1.msra.mxu0 0.0
      %293 = vmatprep.subr.mxu0 0.0
      %294 = vmatpush1.msra.mxu0 0.0
      %295 = vmatprep.subr.mxu0 0.0
      %296 = vmatpush1.msra.mxu0 0.0
      %297 = vmatprep.subr.mxu0 0.0
      %298 = vmatpush1.msra.mxu0 0.0
      %299 = vmatprep.subr.mxu0 0.0
      %300 = vmatpush1.msra.mxu0 0.0
      %301 = vmatprep.subr.mxu0 0.0
      %302 = vmatpush1.msra.mxu0 0.0
      %303 = vmatprep.subr.mxu0 0.0
      %304 = vmatpush1.msra.mxu0 0.0
      %305 = vmatprep.subr.mxu0 0.0
      %306 = vmatpush1.msra.mxu0 0.0
      %307 = vmatprep.subr.mxu0 0.0
      %308 = vmatpush1.msra.mxu0 0.0
      %309 = vmatprep.subr.mxu0 0.0
      %310 = vmatpush1.msra.mxu0 0.0
      %311 = vmatprep.subr.mxu0 0.0
      %312 = vmatpush1.msra.mxu0 0.0
      %313 = vmatprep.subr.mxu0 0.0
      %314 = vmatpush1.msra.mxu0 0.0
      %315 = vmatprep.subr.mxu0 0.0
      %316 = vmatpush1.msra.mxu0 0.0
      %317 = vmatprep.subr.mxu0 0.0
      %318 = vmatpush1.msra.mxu0 0.0
      %319 = vmatprep.subr.mxu0 0.0
      %320 = vmatpush1.msra.mxu0 0.0
      %321 = vmatprep.subr.mxu0 0.0
      %322 = vmatpush1.msra.mxu0 0.0
      %323 = vmatprep.mubr.f32.mxu0 0.0
      %324 = vmatmul.mubr.f32.gmra.mrb[0].mxu0 %v254
      %v325 = vpop.f32.mrb[0].mxu0
      %v326 = vadd.f32 0.0, %v325
      %v327 = vpop.f32.mrb[0].mxu0
      %328 = vmatprep.mubr.f32.mxu0 0.0
      %329 = vmatmul.mubr.f32.gmra.mrb[0].mxu0 %v257
      %v330 = vpop.f32.mrb[0].mxu0
      %v331 = vadd.f32 0.0, %v330
      %v332 = vpop.f32.mrb[0].mxu0
      %333 = vdwg.mxu0
      %v334 = vmul.f32 %v326, 2.0
      %v335 = vmul.f32 %v331, 2.0
      %v336 = vld [vmem:[%s233] sm:$0x1]
      %v338 = vlaneseq
      %v339 = vshrl.u32 %v338, 7
      %v340 = vsub.s32 0, %v339
      %v341 = vrot.slane %v336, %v340
      %v343 = vsub.f32 %v334, %v341
      %v344 = vsub.f32 %v335, %v341
      %vm345 = vcmask 130048
      %346 = vst.msk [vmem:[%s242] sm:$0xff] %vm345, %v343
      %347 = vst.msk [vmem:[%s242 + $0x8] sm:$0xff] %vm345, %v344
      %s348 = smul.u32 2, %s19
      %p349 = scmp.lt.s32.totalorder %s18, 1
      %s350 = scalar_select %p349, %s18, 1
      %p351 = scmp.lt.s32.totalorder %s348, 1
      %s352 = scalar_select %p351, %s348, 1
      %s353 = smul.addr %s350, 2
      %s354 = sadd.s32 %s352, %s353
      %s355 = smul.addr %s354, 8
      %s356 = scalar_lea.vmem %s3, %s355
      // Predicated region
      $region33: #{vn_dgcnn_encoder.15} parent=31 // pred_check
        %p357 = pneg %p126
      $region34: #{vn_dgcnn_encoder.15} parent=31 // pred_check_branch
        %359 = sbr.rel (%p357) target = $region36
      $region35: #{vn_dgcnn_encoder.15} parent=31 // pred_region
        %s360 = smul.u32 2, %s19
      $region36: #{vn_dgcnn_encoder.15} parent=31 // pred_fallthru
        _
    $region32: #{vn_dgcnn_encoder.15} parent=5 // pred_fallthru
      _
    %p361 = scmp.le.s32.totalorder 2, %s9
    // Predicated region
    $region37: #{vn_dgcnn_encoder.15} parent=5 // pred_check
      %p362 = pneg %p361
    $region38: #{vn_dgcnn_encoder.15} parent=5 // pred_check_branch
      %364 = sbr.rel (%p362) target = $region40
    $region39: #{vn_dgcnn_encoder.15} parent=5 // pred_region
      %s365 = ssub.s32 %s9, 2
      // Predicated region
      $region41: #{vn_dgcnn_encoder.15} parent=39 // pred_check
        %p366 = pneg %p132
      $region42: #{vn_dgcnn_encoder.15} parent=39 // pred_check_branch
        %368 = sbr.rel (%p366) target = $region44
      $region43: #{vn_dgcnn_encoder.15} parent=39 // pred_region
        %s369 = smul.u32 2, %s21
        %p370 = scmp.lt.s32.totalorder %s20, 1
        %s371 = scalar_select %p370, %s20, 1
        %p372 = scmp.lt.s32.totalorder %s369, 1
        %s373 = scalar_select %p372, %s369, 1
        %s374 = smul.addr %s371, 2
        %s375 = sadd.s32 %s373, %s374
        %s376 = smul.addr %s375, 8
        %s377 = scalar_lea.vmem %s3, %s376
      $region44: #{vn_dgcnn_encoder.15} parent=39 // pred_fallthru
        _
    $region40: #{vn_dgcnn_encoder.15} parent=5 // pred_fallthru
      _
  $region6: #{vn_dgcnn_encoder.15} parent=0 // loop_footer
    %s13 = sadd.s32 1, %s9
  $region7: #{vn_dgcnn_encoder.15} parent=0 // loop_footer_branch
    %8 = sbr.rel target = $region3
  $region8: #{vn_dgcnn_encoder.15} parent=0 // loop_exit
    _

// kernel: vn_dgcnn_encoder.12
$region0: #{vn_dgcnn_encoder.12}
  #allocation0 [shape = 'u32[]', space=smem, size = 0x4, offset = 0x4, fixed_abs, tag = 'smem constant byte address 0x4 - core index']
  #allocation1 [shape = 'u32[144,128]{1,0:T(1,128)}', space=vmem, size = 0x12000, scoped, tag = 'internal scratch']
  #allocation2 [shape = 'f32[3,16,256]{2,1,0:T(8,128)}', space=vmem, size = 0xc000, scoped, tag = 'scratch operand']
  %s0 = inlined_call_operand.vmem [shape: bf16[2,4,3,16,8], index: 0, kind: input, shape index: {}]
  %s1 = inlined_call_operand.vmem [shape: bf16[2,3,16,8], index: 1, kind: input, shape index: {}]
  %s2 = inlined_call_operand.vmem [shape: bf16[8,256], index: 2, kind: input, shape index: {}]
  %s3 = inlined_call_operand.vmem [shape: bf16[8,256], index: 3, kind: input, shape index: {}]
  %s4 = inlined_call_operand.vmem [shape: f32[2,3,16,128], index: 4, kind: output, shape index: {}]
  %s5 = sld [smem:[#allocation0]]
  $region57: #{vn_dgcnn_encoder.12} parent=0
    _
  %s7 = ssub.s32 1, %s5
  %s8 = scalar_select 0, %s7, %s5
  loop: start=0, step=1, limit=4
  $region2: #{vn_dgcnn_encoder.12} parent=0 // loop_pre_header
    _
  $region3: #{vn_dgcnn_encoder.12} parent=0 // loop_header
    %s10 = sphi 0, %s14
    %p11 = scmp.ge.s32.totalorder %s10, 4
    %s17 = sphi 0, %s36
    %s18 = sphi 0, %s32
    %s19 = sphi 0, %s28
    %s20 = sphi 0, %s17
    %s21 = sphi 0, %s18
    %s22 = sphi 0, %s19
    %s23 = sphi 0, %s20
    %s24 = sphi 0, %s21
    %s25 = sphi 0, %s22
    %s43 = sphi 0, %s45
    %s46 = sphi 0, %s43
    %s47 = sphi 0, %s46
    %s63 = sphi 0, %s47
    %s71 = sphi 0, %s73
    %s74 = sphi 0, %s71
    %s75 = sphi 0, %s74
    %s91 = sphi 0, %s75
    %s95 = sphi 0, %s95
    %s97 = sphi 0, %s95
    %s98 = sphi 0, %s97
    %s112 = sphi 0, %s98
    %s116 = sphi 0, %s116
    %s118 = sphi 0, %s116
    %s119 = sphi 0, %s118
    %s133 = sphi 0, %s119
    %s141 = sphi 0, %s143
    %s144 = sphi 0, %s141
    %s145 = sphi 0, %s144
    %s161 = sphi 0, %s145
  $region4: #{vn_dgcnn_encoder.12} parent=0 // loop_header_branch
    %13 = sbr.rel (%p11) target = $region8
  $region5: #{vn_dgcnn_encoder.12} parent=0 // loop_body
    %s15 = ssub.s32 %s10, 1
    %s16 = ssub.s32 %s10, 2
    %s26 = sadd.s32 1, %s19
    %p27 = scmp.ge.s32.totalorder %s26, 1
    %s28 = scalar_select %p27, 0, %s26
    %s29 = sadd.s32 1, %s18
    %s30 = scalar_select %p27, %s29, %s18
    %p31 = scmp.ge.s32.totalorder %s30, 1
    %s32 = scalar_select %p31, 0, %s30
    %s33 = sadd.s32 1, %s17
    %s34 = scalar_select %p31, %s33, %s17
    %p35 = scmp.ge.s32.totalorder %s34, 2
    %s36 = scalar_select %p35, 0, %s34
    %s37 = ssub.s32 %s17, %s36
    %s38 = ssub.s32 %s19, %s28
    %s39 = sor.u32 %s37, %s38
    %s40 = ssub.s32 %s18, %s32
    %s41 = sor.u32 %s39, %s40
    %p42 = scmp.eq.s32.totalorder %s41, 0
    %s44 = sadd.s32 %s43, 1
    %s45 = scalar_select %p42, %s43, %s44
    %p48 = pneg %p42
    %p49 = scmp.eq.s32.totalorder %s10, 1
    %p50 = por %p48, %p49
    %p51 = scmp.ne.s32.totalorder %s43, %s46
    %p52 = scmp.eq.s32.totalorder %s10, 0
    %p53 = por %p51, %p52
    %p54 = scmp.ne.s32.totalorder %s43, %s46
    %p55 = scmp.eq.s32.totalorder %s15, 1
    %p56 = por %p54, %p55
    %p57 = scmp.ne.s32.totalorder %s46, %s47
    %p58 = scmp.eq.s32.totalorder %s15, 0
    %p59 = por %p57, %p58
    %p60 = scmp.ne.s32.totalorder %s46, %s47
    %p61 = scmp.eq.s32.totalorder %s16, 1
    %p62 = por %p60, %p61
    %p64 = scmp.ne.s32.totalorder %s47, %s63
    %p65 = scmp.eq.s32.totalorder %s16, 0
    %p66 = por %p64, %p65
    %s67 = ssub.s32 %s17, %s36
    %s68 = ssub.s32 %s18, %s32
    %s69 = sor.u32 %s67, %s68
    %p70 = scmp.eq.s32.totalorder %s69, 0
    %s72 = sadd.s32 %s71, 1
    %s73 = scalar_select %p70, %s71, %s72
    %p76 = pneg %p70
    %p77 = scmp.eq.s32.totalorder %s10, 1
    %p78 = por %p76, %p77
    %p79 = scmp.ne.s32.totalorder %s71, %s74
    %p80 = scmp.eq.s32.totalorder %s10, 0
    %p81 = por %p79, %p80
    %p82 = scmp.ne.s32.totalorder %s71, %s74
    %p83 = scmp.eq.s32.totalorder %s15, 1
    %p84 = por %p82, %p83
    %p85 = scmp.ne.s32.totalorder %s74, %s75
    %p86 = scmp.eq.s32.totalorder %s15, 0
    %p87 = por %p85, %p86
    %p88 = scmp.ne.s32.totalorder %s74, %s75
    %p89 = scmp.eq.s32.totalorder %s16, 1
    %p90 = por %p88, %p89
    %p92 = scmp.ne.s32.totalorder %s75, %s91
    %p93 = scmp.eq.s32.totalorder %s16, 0
    %p94 = por %p92, %p93
    %s96 = sadd.s32 %s95, 1
    %p99 = scmp.eq.s32.totalorder %s10, 1
    %p100 = scmp.ne.s32.totalorder %s95, %s97
    %p101 = scmp.eq.s32.totalorder %s10, 0
    %p102 = por %p100, %p101
    %p103 = scmp.ne.s32.totalorder %s95, %s97
    %p104 = scmp.eq.s32.totalorder %s15, 1
    %p105 = por %p103, %p104
    %p106 = scmp.ne.s32.totalorder %s97, %s98
    %p107 = scmp.eq.s32.totalorder %s15, 0
    %p108 = por %p106, %p107
    %p109 = scmp.ne.s32.totalorder %s97, %s98
    %p110 = scmp.eq.s32.totalorder %s16, 1
    %p111 = por %p109, %p110
    %p113 = scmp.ne.s32.totalorder %s98, %s112
    %p114 = scmp.eq.s32.totalorder %s16, 0
    %p115 = por %p113, %p114
    %s117 = sadd.s32 %s116, 1
    %p120 = scmp.eq.s32.totalorder %s10, 1
    %p121 = scmp.ne.s32.totalorder %s116, %s118
    %p122 = scmp.eq.s32.totalorder %s10, 0
    %p123 = por %p121, %p122
    %p124 = scmp.ne.s32.totalorder %s116, %s118
    %p125 = scmp.eq.s32.totalorder %s15, 1
    %p126 = por %p124, %p125
    %p127 = scmp.ne.s32.totalorder %s118, %s119
    %p128 = scmp.eq.s32.totalorder %s15, 0
    %p129 = por %p127, %p128
    %p130 = scmp.ne.s32.totalorder %s118, %s119
    %p131 = scmp.eq.s32.totalorder %s16, 1
    %p132 = por %p130, %p131
    %p134 = scmp.ne.s32.totalorder %s119, %s133
    %p135 = scmp.eq.s32.totalorder %s16, 0
    %p136 = por %p134, %p135
    %s137 = ssub.s32 %s17, %s36
    %s138 = ssub.s32 %s18, %s32
    %s139 = sor.u32 %s137, %s138
    %p140 = scmp.eq.s32.totalorder %s139, 0
    %s142 = sadd.s32 %s141, 1
    %s143 = scalar_select %p140, %s141, %s142
    %p146 = pneg %p140
    %p147 = scmp.eq.s32.totalorder %s10, 1
    %p148 = por %p146, %p147
    %p149 = scmp.ne.s32.totalorder %s141, %s144
    %p150 = scmp.eq.s32.totalorder %s10, 0
    %p151 = por %p149, %p150
    %p152 = scmp.ne.s32.totalorder %s141, %s144
    %p153 = scmp.eq.s32.totalorder %s15, 1
    %p154 = por %p152, %p153
    %p155 = scmp.ne.s32.totalorder %s144, %s145
    %p156 = scmp.eq.s32.totalorder %s15, 0
    %p157 = por %p155, %p156
    %p158 = scmp.ne.s32.totalorder %s144, %s145
    %p159 = scmp.eq.s32.totalorder %s16, 1
    %p160 = por %p158, %p159
    %p162 = scmp.ne.s32.totalorder %s145, %s161
    %p163 = scmp.eq.s32.totalorder %s16, 0
    %p164 = por %p162, %p163
    %p165 = scmp.le.s32.totalorder 1, %s10
    %p166 = scmp.lt.s32.totalorder %s10, 3
    %p167 = pnand %p165, %p166
    %p168 = pneg %p167
    // Predicated region
    $region9: #{vn_dgcnn_encoder.12} parent=5 // pred_check
      _
    $region10: #{vn_dgcnn_encoder.12} parent=5 // pred_check_branch
      %170 = sbr.rel (%p167) target = $region12
    $region11: #{vn_dgcnn_encoder.12} parent=5 // pred_region
      %s171 = ssub.s32 %s10, 1
      // Predicated region
      $region13: #{vn_dgcnn_encoder.12} parent=11 // pred_check
        %p172 = pneg %p108
      $region14: #{vn_dgcnn_encoder.12} parent=11 // pred_check_branch
        %174 = sbr.rel (%p172) target = $region16
      $region15: #{vn_dgcnn_encoder.12} parent=11 // pred_region
        _
      $region16: #{vn_dgcnn_encoder.12} parent=11 // pred_fallthru
        _
      // Predicated region
      $region17: #{vn_dgcnn_encoder.12} parent=11 // pred_check
        %p175 = pneg %p129
      $region18: #{vn_dgcnn_encoder.12} parent=11 // pred_check_branch
        %177 = sbr.rel (%p175) target = $region20
      $region19: #{vn_dgcnn_encoder.12} parent=11 // pred_region
        _
      $region20: #{vn_dgcnn_encoder.12} parent=11 // pred_fallthru
        _
    $region12: #{vn_dgcnn_encoder.12} parent=5 // pred_fallthru
      _
    %p178 = scmp.lt.s32.totalorder %s10, 2
    // Predicated region
    $region21: #{vn_dgcnn_encoder.12} parent=5 // pred_check
      %p179 = pneg %p178
    $region22: #{vn_dgcnn_encoder.12} parent=5 // pred_check_branch
      %181 = sbr.rel (%p179) target = $region24
    $region23: #{vn_dgcnn_encoder.12} parent=5 // pred_region
      // Predicated region
      $region25: #{vn_dgcnn_encoder.12} parent=23 // pred_check
        %p182 = pneg %p53
      $region26: #{vn_dgcnn_encoder.12} parent=23 // pred_check_branch
        %184 = sbr.rel (%p182) target = $region28
      $region27: #{vn_dgcnn_encoder.12} parent=23 // pred_region
        %s185 = smul.u32 4, %s19
        %s186 = smul.u32 2, %s18
        %p187 = scmp.lt.s32.totalorder %s17, 1
        %s188 = scalar_select %p187, %s17, 1
        %p189 = scmp.lt.s32.totalorder %s185, 3
        %s190 = scalar_select %p189, %s185, 3
        %p191 = scmp.lt.s32.totalorder %s186, 1
        %s192 = scalar_select %p191, %s186, 1
        %s193 = smul.addr %s190, 6
        %s194 = sadd.s32 %s192, %s193
        %s195 = smul.addr %s188, 24
        %s196 = sadd.s32 %s194, %s195
        %s197 = smul.addr %s196, 4
        %s198 = scalar_lea.vmem %s0, %s197
        %s199 = smul.u32 4, %s19
        %s200 = smul.u32 2, %s18
      $region28: #{vn_dgcnn_encoder.12} parent=23 // pred_fallthru
        _
      // Predicated region
      $region29: #{vn_dgcnn_encoder.12} parent=23 // pred_check
        %p201 = pneg %p81
      $region30: #{vn_dgcnn_encoder.12} parent=23 // pred_check_branch
        %203 = sbr.rel (%p201) target = $region32
      $region31: #{vn_dgcnn_encoder.12} parent=23 // pred_region
        %s204 = smul.u32 2, %s18
        %p205 = scmp.lt.s32.totalorder %s17, 1
        %s206 = scalar_select %p205, %s17, 1
        %p207 = scmp.lt.s32.totalorder %s204, 1
        %s208 = scalar_select %p207, %s204, 1
        %s209 = smul.addr %s206, 6
        %s210 = sadd.s32 %s208, %s209
        %s211 = smul.addr %s210, 4
        %s212 = scalar_lea.vmem %s1, %s211
        %s213 = smul.u32 2, %s18
      $region32: #{vn_dgcnn_encoder.12} parent=23 // pred_fallthru
        _
    $region24: #{vn_dgcnn_encoder.12} parent=5 // pred_fallthru
      _
    %p214 = scmp.le.s32.totalorder 1, %s10
    %p215 = scmp.lt.s32.totalorder %s10, 3
    %p216 = pnand %p214, %p215
    %p217 = pneg %p216
    // Predicated region
    $region33: #{vn_dgcnn_encoder.12} parent=5 // pred_check
      _
    $region34: #{vn_dgcnn_encoder.12} parent=5 // pred_check_branch
      %219 = sbr.rel (%p216) target = $region36
    $region35: #{vn_dgcnn_encoder.12} parent=5 // pred_region
      %s220 = ssub.s32 %s10, 1
      %s221 = smul.u32 4, %s22
      %s222 = smul.u32 2, %s21
      %p223 = scmp.lt.s32.totalorder %s20, 1
      %s224 = scalar_select %p223, %s20, 1
      %p225 = scmp.lt.s32.totalorder %s221, 3
      %s226 = scalar_select %p225, %s221, 3
      %p227 = scmp.lt.s32.totalorder %s222, 1
      %s228 = scalar_select %p227, %s222, 1
      %s229 = smul.addr %s226, 6
      %s230 = sadd.s32 %s228, %s229
      %s231 = smul.addr %s224, 24
      %s232 = sadd.s32 %s230, %s231
      %s233 = smul.addr %s232, 4
      %s234 = scalar_lea.vmem %s0, %s233
      %p235 = pneg %p59
      %p236 = pneg %p56
      %s237 = smul.u32 2, %s21
      %p238 = scmp.lt.s32.totalorder %s20, 1
      %s239 = scalar_select %p238, %s20, 1
      %p240 = scmp.lt.s32.totalorder %s237, 1
      %s241 = scalar_select %p240, %s237, 1
      %s242 = smul.addr %s239, 6
      %s243 = sadd.s32 %s241, %s242
      %s244 = smul.addr %s243, 4
      %s245 = scalar_lea.vmem %s1, %s244
      %p246 = pneg %p87
      %p247 = pneg %p84
      %p248 = pneg %p108
      %p249 = pneg %p105
      %p250 = pneg %p129
      %p251 = pneg %p126
      %p252 = pneg %p157
      %p253 = pneg %p154
      %s254 = smul.u32 2, %s21
      %p255 = scmp.lt.s32.totalorder %s20, 1
      %s256 = scalar_select %p255, %s20, 1
      %p257 = scmp.lt.s32.totalorder %s254, 1
      %s258 = scalar_select %p257, %s254, 1
      %s259 = smul.addr %s256, 6
      %s260 = sadd.s32 %s258, %s259
      %s261 = smul.addr %s260, 8
      %s262 = scalar_lea.vmem %s4, %s261
      %s263 = smul.u32 4, %s22
      %s264 = smul.u32 2, %s21
      %p265 = scmp.lt.s32.totalorder %s20, 1
      %s266 = scalar_select %p265, %s20, 1
      %p267 = scmp.lt.s32.totalorder %s263, 3
      %s268 = scalar_select %p267, %s263, 3
      %p269 = scmp.lt.s32.totalorder %s264, 1
      %s270 = scalar_select %p269, %s264, 1
      %s271 = smul.addr %s268, 6
      %s272 = sadd.s32 %s270, %s271
      %s273 = smul.addr %s266, 24
      %s274 = sadd.s32 %s272, %s273
      %s275 = smul.addr %s274, 4
      %s276 = scalar_lea.vmem %s0, %s275
      %s277 = smul.u32 4, %s22
      %s278 = smul.u32 2, %s21
      %s279 = smul.u32 2, %s21
      %p280 = scmp.lt.s32.totalorder %s20, 1
      %s281 = scalar_select %p280, %s20, 1
      %p282 = scmp.lt.s32.totalorder %s279, 1
      %s283 = scalar_select %p282, %s279, 1
      %s284 = smul.addr %s281, 6
      %s285 = sadd.s32 %s283, %s284
      %s286 = smul.addr %s285, 4
      %s287 = scalar_lea.vmem %s1, %s286
      %s288 = smul.u32 2, %s21
      %s289 = smul.u32 2, %s21
      %p290 = scmp.lt.s32.totalorder %s20, 1
      %s291 = scalar_select %p290, %s20, 1
      %p292 = scmp.lt.s32.totalorder %s289, 1
      %s293 = scalar_select %p292, %s289, 1
      %s294 = smul.addr %s291, 6
      %s295 = sadd.s32 %s293, %s294
      %s296 = smul.addr %s295, 8
      %s297 = scalar_lea.vmem %s4, %s296
      %s298 = smul.u32 2, %s21
      %p300 = scmp.eq.s32.totalorder %s22, 0
      // Predicated region
      $region37: #{vn_dgcnn_encoder.12} parent=35 // pred_check
        %p301 = pneg %p300
      $region38: #{vn_dgcnn_encoder.12} parent=35 // pred_check_branch
        %303 = sbr.rel (%p301) target = $region40
      $region39: #{vn_dgcnn_encoder.12} parent=35 // pred_region
        %304 = vst [vmem:[%s297] sm:$0xff] 0.0
        %305 = vst [vmem:[%s297 + $0x8] sm:$0xff] 0.0
        %306 = vst [vmem:[%s297 + $0x10] sm:$0xff] 0.0
        %307 = vst [vmem:[%s297 + $0x18] sm:$0xff] 0.0
        %308 = vst [vmem:[%s297 + $0x20] sm:$0xff] 0.0
        %309 = vst [vmem:[%s297 + $0x28] sm:$0xff] 0.0
        %v310 = vld [vmem:[%s287] sm:$0xf]
        %v311 = vld [vmem:[%s287 + $0x4] sm:$0xf]
        %v312 = vld [vmem:[%s287 + $0x8] sm:$0xf]
        %v313 = vld [vmem:[%s287 + $0xc] sm:$0xf]
        %v314 = vld [vmem:[%s287 + $0x10] sm:$0xf]
        %v315 = vld [vmem:[%s287 + $0x14] sm:$0xf]
        %v316 = vld [vmem:[%s3] sm:$0xff]
        %v323 = vunpack.c.l.b16 %v310
        %v324 = vunpack.c.l.b16 %v311
        %v325 = vunpack.c.l.b16 %v312
        %v326 = vunpack.c.l.b16 %v313
        %v327 = vunpack.c.l.b16 %v314
        %v328 = vunpack.c.l.b16 %v315
        %v329 = vpack.c.b16 %v324, %v323
        %v330 = vpack.c.b16 %v326, %v325
        %v331 = vpack.c.b16 %v328, %v327
        %v333 = vunpack.c.l.b16 %v316
        %v334 = vunpack.c.h.b16 %v316
        %v335 = vpack.c.b16 %v333, %v333
        %v336 = vpack.c.b16 %v334, %v334
        %vm337 = vcmask 64512
        %v339 = vsel %vm337, %v329, 0
        %v342 = vsel %vm337, %v330, 0
        %v345 = vsel %vm337, %v331, 0
        %vm347 = vcmask 1043456
        %v349 = vsel %vm347, %v335, 0
        %v352 = vsel %vm347, %v336, 0
        %354 = vmatprep.subr.bf16.mxu0 %v352
        %355 = vmatpush1.bf16.msra.mxu0 %v349
        %356 = vmatprep.subr.bf16.mxu0 0
        %357 = vmatpush1.bf16.msra.mxu0 0
        %358 = vmatprep.subr.bf16.mxu0 0
        %359 = vmatpush1.bf16.msra.mxu0 0
        %360 = vmatprep.subr.bf16.mxu0 0
        %361 = vmatpush1.bf16.msra.mxu0 0
        %362 = vmatprep.subr.bf16.mxu0 0
        %363 = vmatpush1.bf16.msra.mxu0 0
        %364 = vmatprep.subr.bf16.mxu0 0
        %365 = vmatpush1.bf16.msra.mxu0 0
        %366 = vmatprep.subr.bf16.mxu0 0
        %367 = vmatpush1.bf16.msra.mxu0 0
        %368 = vmatprep.subr.bf16.mxu0 0
        %369 = vmatpush1.bf16.msra.mxu0 0
        %370 = vmatprep.subr.bf16.mxu0 0
        %371 = vmatpush1.bf16.msra.mxu0 0
        %372 = vmatprep.subr.bf16.mxu0 0
        %373 = vmatpush1.bf16.msra.mxu0 0
        %374 = vmatprep.subr.bf16.mxu0 0
        %375 = vmatpush1.bf16.msra.mxu0 0
        %376 = vmatprep.subr.bf16.mxu0 0
        %377 = vmatpush1.bf16.msra.mxu0 0
        %378 = vmatprep.subr.bf16.mxu0 0
        %379 = vmatpush1.bf16.msra.mxu0 0
        %380 = vmatprep.subr.bf16.mxu0 0
        %381 = vmatpush1.bf16.msra.mxu0 0
        %382 = vmatprep.subr.bf16.mxu0 0
        %383 = vmatpush1.bf16.msra.mxu0 0
        %384 = vmatprep.subr.bf16.mxu0 0
        %385 = vmatpush1.bf16.msra.mxu0 0
        %386 = vmatprep.mubr.bf16.mxu0 0
        %387 = vmatmul.mubr.bf16.gmra.mrb[0].mxu0 %v339
        %v388 = vpop.f32.mrb[0].mxu0
        %v389 = vadd.f32 0.0, %v388
        %v390 = vpop.f32.mrb[0].mxu0
        %v391 = vadd.f32 0.0, %v390
        %v392 = vpop.f32.mrb[0].mxu0
        %v393 = vadd.f32 0.0, %v392
        %v394 = vpop.f32.mrb[0].mxu0
        %v395 = vadd.f32 0.0, %v394
        %396 = vmatprep.mubr.bf16.mxu0 0
        %397 = vmatmul.mubr.bf16.gmra.mrb[0].mxu0 %v342
        %v398 = vpop.f32.mrb[0].mxu0
        %v399 = vadd.f32 0.0, %v398
        %v400 = vpop.f32.mrb[0].mxu0
        %v401 = vadd.f32 0.0, %v400
        %v402 = vpop.f32.mrb[0].mxu0
        %v403 = vadd.f32 0.0, %v402
        %v404 = vpop.f32.mrb[0].mxu0
        %v405 = vadd.f32 0.0, %v404
        %406 = vmatprep.mubr.bf16.mxu0 0
        %407 = vmatmul.mubr.bf16.gmra.mrb[0].mxu0 %v345
        %v408 = vpop.f32.mrb[0].mxu0
        %v409 = vadd.f32 0.0, %v408
        %v410 = vpop.f32.mrb[0].mxu0
        %v411 = vadd.f32 0.0, %v410
        %v412 = vpop.f32.mrb[0].mxu0
        %v413 = vadd.f32 0.0, %v412
        %v414 = vpop.f32.mrb[0].mxu0
        %v415 = vadd.f32 0.0, %v414
        %416 = vdwg.mxu0
        %417 = vst [vmem:[#allocation2] sm:$0xff] %v389
        %418 = vst [vmem:[#allocation2 + $0x8] sm:$0xff] %v391
        %419 = vst [vmem:[#allocation2 + $0x10] sm:$0xff] %v393
        %420 = vst [vmem:[#allocation2 + $0x18] sm:$0xff] %v395
        %421 = vst [vmem:[#allocation2 + $0x20] sm:$0xff] %v399
        %422 = vst [vmem:[#allocation2 + $0x28] sm:$0xff] %v401
        %423 = vst [vmem:[#allocation2 + $0x30] sm:$0xff] %v403
        %424 = vst [vmem:[#allocation2 + $0x38] sm:$0xff] %v405
        %425 = vst [vmem:[#allocation2 + $0x40] sm:$0xff] %v409
        %426 = vst [vmem:[#allocation2 + $0x48] sm:$0xff] %v411
        %427 = vst [vmem:[#allocation2 + $0x50] sm:$0xff] %v413
        %428 = vst [vmem:[#allocation2 + $0x58] sm:$0xff] %v415
      $region40: #{vn_dgcnn_encoder.12} parent=35 // pred_fallthru
        _
      %v429 = vld [vmem:[%s276] sm:$0xf]
      %v430 = vld [vmem:[%s276 + $0x4] sm:$0xf]
      %v431 = vld [vmem:[%s276 + $0x8] sm:$0xf]
      %v432 = vld [vmem:[%s276 + $0xc] sm:$0xf]
      %v433 = vld [vmem:[%s276 + $0x10] sm:$0xf]
      %v434 = vld [vmem:[%s276 + $0x14] sm:$0xf]
      %v435 = vld [vmem:[%s2] sm:$0xff]
      %v442 = vunpack.c.l.b16 %v429
      %v443 = vunpack.c.l.b16 %v430
      %v444 = vunpack.c.l.b16 %v431
      %v445 = vunpack.c.l.b16 %v432
      %v446 = vunpack.c.l.b16 %v433
      %v447 = vunpack.c.l.b16 %v434
      %v448 = vpack.c.b16 %v443, %v442
      %v449 = vpack.c.b16 %v445, %v444
      %v450 = vpack.c.b16 %v447, %v446
      %v452 = vunpack.c.l.b16 %v435
      %v453 = vunpack.c.h.b16 %v435
      %v454 = vpack.c.b16 %v452, %v452
      %v455 = vpack.c.b16 %v453, %v453
      %vm456 = vcmask 64512
      %v458 = vsel %vm456, %v448, 0
      %v461 = vsel %vm456, %v449, 0
      %v464 = vsel %vm456, %v450, 0
      %vm466 = vcmask 1043456
      %v468 = vsel %vm466, %v454, 0
      %v471 = vsel %vm466, %v455, 0
      %473 = vmatprep.subr.bf16.mxu0 %v471
      %474 = vmatpush1.bf16.msra.mxu0 %v468
      %475 = vmatprep.subr.bf16.mxu0 0
      %476 = vmatpush1.bf16.msra.mxu0 0
      %477 = vmatprep.subr.bf16.mxu0 0
      %478 = vmatpush1.bf16.msra.mxu0 0
      %479 = vmatprep.subr.bf16.mxu0 0
      %480 = vmatpush1.bf16.msra.mxu0 0
      %481 = vmatprep.subr.bf16.mxu0 0
      %482 = vmatpush1.bf16.msra.mxu0 0
      %483 = vmatprep.subr.bf16.mxu0 0
      %484 = vmatpush1.bf16.msra.mxu0 0
      %485 = vmatprep.subr.bf16.mxu0 0
      %486 = vmatpush1.bf16.msra.mxu0 0
      %487 = vmatprep.subr.bf16.mxu0 0
      %488 = vmatpush1.bf16.msra.mxu0 0
      %489 = vmatprep.subr.bf16.mxu0 0
      %490 = vmatpush1.bf16.msra.mxu0 0
      %491 = vmatprep.subr.bf16.mxu0 0
      %492 = vmatpush1.bf16.msra.mxu0 0
      %493 = vmatprep.subr.bf16.mxu0 0
      %494 = vmatpush1.bf16.msra.mxu0 0
      %495 = vmatprep.subr.bf16.mxu0 0
      %496 = vmatpush1.bf16.msra.mxu0 0
      %497 = vmatprep.subr.bf16.mxu0 0
      %498 = vmatpush1.bf16.msra.mxu0 0
      %499 = vmatprep.subr.bf16.mxu0 0
      %500 = vmatpush1.bf16.msra.mxu0 0
      %501 = vmatprep.subr.bf16.mxu0 0
      %502 = vmatpush1.bf16.msra.mxu0 0
      %503 = vmatprep.subr.bf16.mxu0 0
      %504 = vmatpush1.bf16.msra.mxu0 0
      %505 = vmatprep.mubr.bf16.mxu0 0
      %506 = vmatmul.mubr.bf16.gmra.mrb[0].mxu0 %v458
      %v507 = vpop.f32.mrb[0].mxu0
      %v508 = vadd.f32 0.0, %v507
      %v509 = vpop.f32.mrb[0].mxu0
      %v510 = vadd.f32 0.0, %v509
      %v511 = vpop.f32.mrb[0].mxu0
      %v512 = vadd.f32 0.0, %v511
      %v513 = vpop.f32.mrb[0].mxu0
      %v514 = vadd.f32 0.0, %v513
      %515 = vmatprep.mubr.bf16.mxu0 0
      %516 = vmatmul.mubr.bf16.gmra.mrb[0].mxu0 %v461
      %v517 = vpop.f32.mrb[0].mxu0
      %v518 = vadd.f32 0.0, %v517
      %v519 = vpop.f32.mrb[0].mxu0
      %v520 = vadd.f32 0.0, %v519
      %v521 = vpop.f32.mrb[0].mxu0
      %v522 = vadd.f32 0.0, %v521
      %v523 = vpop.f32.mrb[0].mxu0
      %v524 = vadd.f32 0.0, %v523
      %525 = vmatprep.mubr.bf16.mxu0 0
      %526 = vmatmul.mubr.bf16.gmra.mrb[0].mxu0 %v464
      %v527 = vpop.f32.mrb[0].mxu0
      %v528 = vadd.f32 0.0, %v527
      %v529 = vpop.f32.mrb[0].mxu0
      %v530 = vadd.f32 0.0, %v529
      %v531 = vpop.f32.mrb[0].mxu0
      %v532 = vadd.f32 0.0, %v531
      %v533 = vpop.f32.mrb[0].mxu0
      %v534 = vadd.f32 0.0, %v533
      %535 = vdwg.mxu0
      %v536 = vld [vmem:[#allocation2] sm:$0xff]
      %v537 = vld [vmem:[#allocation2 + $0x8] sm:$0xff]
      %v538 = vld [vmem:[#allocation2 + $0x10] sm:$0xff]
      %v539 = vld [vmem:[#allocation2 + $0x18] sm:$0xff]
      %v540 = vld [vmem:[#allocation2 + $0x20] sm:$0xff]
      %v541 = vld [vmem:[#allocation2 + $0x28] sm:$0xff]
      %v542 = vld [vmem:[#allocation2 + $0x30] sm:$0xff]
      %v543 = vld [vmem:[#allocation2 + $0x38] sm:$0xff]
      %v544 = vld [vmem:[#allocation2 + $0x40] sm:$0xff]
      %v545 = vld [vmem:[#allocation2 + $0x48] sm:$0xff]
      %v546 = vld [vmem:[#allocation2 + $0x50] sm:$0xff]
      %v547 = vld [vmem:[#allocation2 + $0x58] sm:$0xff]
      %v548 = vadd.f32 %v508, %v536
      %v549 = vadd.f32 %v510, %v537
      %v550 = vadd.f32 %v512, %v538
      %v551 = vadd.f32 %v514, %v539
      %v552 = vadd.f32 %v518, %v540
      %v553 = vadd.f32 %v520, %v541
      %v554 = vadd.f32 %v522, %v542
      %v555 = vadd.f32 %v524, %v543
      %v556 = vadd.f32 %v528, %v544
      %v557 = vadd.f32 %v530, %v545
      %v558 = vadd.f32 %v532, %v546
      %v559 = vadd.f32 %v534, %v547
      %v560 = vld [vmem:[%s297] sm:$0xff]
      %v561 = vld [vmem:[%s297 + $0x8] sm:$0xff]
      %v562 = vld [vmem:[%s297 + $0x10] sm:$0xff]
      %v563 = vld [vmem:[%s297 + $0x18] sm:$0xff]
      %v564 = vld [vmem:[%s297 + $0x20] sm:$0xff]
      %v565 = vld [vmem:[%s297 + $0x28] sm:$0xff]
      %v566 = vmul.f32 %v548, %v549
      %v567 = vmul.f32 %v550, %v551
      %v568 = vmul.f32 %v552, %v553
      %v569 = vmul.f32 %v554, %v555
      %v570 = vmul.f32 %v556, %v557
      %v571 = vmul.f32 %v558, %v559
      %v572 = vadd.f32 %v566, %v568
      %v573 = vadd.f32 %v572, %v570
      %v574 = vadd.f32 %v567, %v569
      %v575 = vadd.f32 %v574, %v571
      %v576 = vmul.f32 %v549, %v549
      %v577 = vmul.f32 %v551, %v551
      %v578 = vmul.f32 %v553, %v553
      %v579 = vmul.f32 %v555, %v555
      %v580 = vmul.f32 %v557, %v557
      %v581 = vmul.f32 %v559, %v559
      %v582 = vadd.f32 %v576, %v578
      %v583 = vadd.f32 %v582, %v580
      %v584 = vadd.f32 %v577, %v579
      %v585 = vadd.f32 %v584, %v581
      %vm586 = vcmp.lt.f32.partialorder %v573, 0.0
      %vm587 = vcmp.lt.f32.partialorder %v575, 0.0
      %v588 = vsel %vm586, %v573, 0.0
      %v589 = vsel %vm587, %v575, 0.0
      %v590 = vadd.f32 %v583, 1e-06
      %v591 = vadd.f32 %v585, 1e-06
      %v592 = vrcp.pop %v590
      %v593 = vrcp.pop %v591
      %v594 = vmul.f32 %v588, %v592
      %v595 = vmul.f32 %v589, %v593
      %v596 = vmul.f32 %v594, 0.8
      %v597 = vmul.f32 %v595, 0.8
      %v598 = vmul.f32 %v596, %v549
      %v599 = vmul.f32 %v597, %v551
      %v600 = vmul.f32 %v596, %v553
      %v601 = vmul.f32 %v597, %v555
      %v602 = vmul.f32 %v596, %v557
      %v603 = vmul.f32 %v597, %v559
      %v604 = vsub.f32 %v548, %v598
      %v605 = vsub.f32 %v550, %v599
      %v606 = vsub.f32 %v552, %v600
      %v607 = vsub.f32 %v554, %v601
      %v608 = vsub.f32 %v556, %v602
      %v609 = vsub.f32 %v558, %v603
      %v610 = vadd.f32 %v560, %v604
      %v611 = vadd.f32 %v561, %v605
      %v612 = vadd.f32 %v562, %v606
      %v613 = vadd.f32 %v563, %v607
      %v614 = vadd.f32 %v564, %v608
      %v615 = vadd.f32 %v565, %v609
      %616 = vst [vmem:[%s297] sm:$0xff] %v610
      %617 = vst [vmem:[%s297 + $0x8] sm:$0xff] %v611
      %618 = vst [vmem:[%s297 + $0x10] sm:$0xff] %v612
      %619 = vst [vmem:[%s297 + $0x18] sm:$0xff] %v613
      %620 = vst [vmem:[%s297 + $0x20] sm:$0xff] %v614
      %621 = vst [vmem:[%s297 + $0x28] sm:$0xff] %v615
      %s622 = scalar_lea.vmem %s276, 24
      %v623 = vld [vmem:[%s622] sm:$0xf]
      %v624 = vld [vmem:[%s622 + $0x4] sm:$0xf]
      %v625 = vld [vmem:[%s622 + $0x8] sm:$0xf]
      %v626 = vld [vmem:[%s622 + $0xc] sm:$0xf]
      %v627 = vld [vmem:[%s622 + $0x10] sm:$0xf]
      %v628 = vld [vmem:[%s622 + $0x14] sm:$0xf]
      %v629 = vld [vmem:[%s2] sm:$0xff]
      %v636 = vunpack.c.l.b16 %v623
      %v637 = vunpack.c.l.b16 %v624
      %v638 = vunpack.c.l.b16 %v625
      %v639 = vunpack.c.l.b16 %v626
      %v640 = vunpack.c.l.b16 %v627
      %v641 = vunpack.c.l.b16 %v628
      %v642 = vpack.c.b16 %v637, %v636
      %v643 = vpack.c.b16 %v639, %v638
      %v644 = vpack.c.b16 %v641, %v640
      %v646 = vunpack.c.l.b16 %v629
      %v647 = vunpack.c.h.b16 %v629
      %v648 = vpack.c.b16 %v646, %v646
      %v649 = vpack.c.b16 %v647, %v647
      %v651 = vsel %vm456, %v642, 0
      %v654 = vsel %vm456, %v643, 0
      %v657 = vsel %vm456, %v644, 0
      %v660 = vsel %vm466, %v648, 0
      %v663 = vsel %vm466, %v649, 0
      %665 = vmatprep.subr.bf16.mxu0 %v663
      %666 = vmatpush1.bf16.msra.mxu0 %v660
      %667 = vmatprep.subr.bf16.mxu0 0
      %668 = vmatpush1.bf16.msra.mxu0 0
      %669 = vmatprep.subr.bf16.mxu0 0
      %670 = vmatpush1.bf16.msra.mxu0 0
      %671 = vmatprep.subr.bf16.mxu0 0
      %672 = vmatpush1.bf16.msra.mxu0 0
      %673 = vmatprep.subr.bf16.mxu0 0
      %674 = vmatpush1.bf16.msra.mxu0 0
      %675 = vmatprep.subr.bf16.mxu0 0
      %676 = vmatpush1.bf16.msra.mxu0 0
      %677 = vmatprep.subr.bf16.mxu0 0
      %678 = vmatpush1.bf16.msra.mxu0 0
      %679 = vmatprep.subr.bf16.mxu0 0
      %680 = vmatpush1.bf16.msra.mxu0 0
      %681 = vmatprep.subr.bf16.mxu0 0
      %682 = vmatpush1.bf16.msra.mxu0 0
      %683 = vmatprep.subr.bf16.mxu0 0
      %684 = vmatpush1.bf16.msra.mxu0 0
      %685 = vmatprep.subr.bf16.mxu0 0
      %686 = vmatpush1.bf16.msra.mxu0 0
      %687 = vmatprep.subr.bf16.mxu0 0
      %688 = vmatpush1.bf16.msra.mxu0 0
      %689 = vmatprep.subr.bf16.mxu0 0
      %690 = vmatpush1.bf16.msra.mxu0 0
      %691 = vmatprep.subr.bf16.mxu0 0
      %692 = vmatpush1.bf16.msra.mxu0 0
      %693 = vmatprep.subr.bf16.mxu0 0
      %694 = vmatpush1.bf16.msra.mxu0 0
      %695 = vmatprep.subr.bf16.mxu0 0
      %696 = vmatpush1.bf16.msra.mxu0 0
      %697 = vmatprep.mubr.bf16.mxu0 0
      %698 = vmatmul.mubr.bf16.gmra.mrb[0].mxu0 %v651
      %v699 = vpop.f32.mrb[0].mxu0
      %v700 = vadd.f32 0.0, %v699
      %v701 = vpop.f32.mrb[0].mxu0
      %v702 = vadd.f32 0.0, %v701
      %v703 = vpop.f32.mrb[0].mxu0
      %v704 = vadd.f32 0.0, %v703
      %v705 = vpop.f32.mrb[0].mxu0
      %v706 = vadd.f32 0.0, %v705
      %707 = vmatprep.mubr.bf16.mxu0 0
      %708 = vmatmul.mubr.bf16.gmra.mrb[0].mxu0 %v654
      %v709 = vpop.f32.mrb[0].mxu0
      %v710 = vadd.f32 0.0, %v709
      %v711 = vpop.f32.mrb[0].mxu0
      %v712 = vadd.f32 0.0, %v711
      %v713 = vpop.f32.mrb[0].mxu0
      %v714 = vadd.f32 0.0, %v713
      %v715 = vpop.f32.mrb[0].mxu0
      %v716 = vadd.f32 0.0, %v715
      %717 = vmatprep.mubr.bf16.mxu0 0
      %718 = vmatmul.mubr.bf16.gmra.mrb[0].mxu0 %v657
      %v719 = vpop.f32.mrb[0].mxu0
      %v720 = vadd.f32 0.0, %v719
      %v721 = vpop.f32.mrb[0].mxu0
      %v722 = vadd.f32 0.0, %v721
      %v723 = vpop.f32.mrb[0].mxu0
      %v724 = vadd.f32 0.0, %v723
      %v725 = vpop.f32.mrb[0].mxu0
      %v726 = vadd.f32 0.0, %v725
      %727 = vdwg.mxu0
      %v728 = vld [vmem:[#allocation2] sm:$0xff]
      %v729 = vld [vmem:[#allocation2 + $0x8] sm:$0xff]
      %v730 = vld [vmem:[#allocation2 + $0x10] sm:$0xff]
      %v731 = vld [vmem:[#allocation2 + $0x18] sm:$0xff]
      %v732 = vld [vmem:[#allocation2 + $0x20] sm:$0xff]
      %v733 = vld [vmem:[#allocation2 + $0x28] sm:$0xff]
      %v734 = vld [vmem:[#allocation2 + $0x30] sm:$0xff]
      %v735 = vld [vmem:[#allocation2 + $0x38] sm:$0xff]
      %v736 = vld [vmem:[#allocation2 + $0x40] sm:$0xff]
      %v737 = vld [vmem:[#allocation2 + $0x48] sm:$0xff]
      %v738 = vld [vmem:[#allocation2 + $0x50] sm:$0xff]
      %v739 = vld [vmem:[#allocation2 + $0x58] sm:$0xff]
      %v740 = vadd.f32 %v700, %v728
      %v741 = vadd.f32 %v702, %v729
      %v742 = vadd.f32 %v704, %v730
      %v743 = vadd.f32 %v706, %v731
      %v744 = vadd.f32 %v710, %v732
      %v745 = vadd.f32 %v712, %v733
      %v746 = vadd.f32 %v714, %v734
      %v747 = vadd.f32 %v716, %v735
      %v748 = vadd.f32 %v720, %v736
      %v749 = vadd.f32 %v722, %v737
      %v750 = vadd.f32 %v724, %v738
      %v751 = vadd.f32 %v726, %v739
      %v752 = vld [vmem:[%s297] sm:$0xff]
      %v753 = vld [vmem:[%s297 + $0x8] sm:$0xff]
      %v754 = vld [vmem:[%s297 + $0x10] sm:$0xff]
      %v755 = vld [vmem:[%s297 + $0x18] sm:$0xff]
      %v756 = vld [vmem:[%s297 + $0x20] sm:$0xff]
      %v757 = vld [vmem:[%s297 + $0x28] sm:$0xff]
      %v758 = vmul.f32 %v740, %v741
      %v759 = vmul.f32 %v742, %v743
      %v760 = vmul.f32 %v744, %v745
      %v761 = vmul.f32 %v746, %v747
      %v762 = vmul.f32 %v748, %v749
      %v763 = vmul.f32 %v750, %v751
      %v764 = vadd.f32 %v758, %v760
      %v765 = vadd.f32 %v764, %v762
      %v766 = vadd.f32 %v759, %v761
      %v767 = vadd.f32 %v766, %v763
      %v768 = vmul.f32 %v741, %v741
      %v769 = vmul.f32 %v743, %v743
      %v770 = vmul.f32 %v745, %v745
      %v771 = vmul.f32 %v747, %v747
      %v772 = vmul.f32 %v749, %v749
      %v773 = vmul.f32 %v751, %v751
      %v774 = vadd.f32 %v768, %v770
      %v775 = vadd.f32 %v774, %v772
      %v776 = vadd.f32 %v769, %v771
      %v777 = vadd.f32 %v776, %v773
      %vm778 = vcmp.lt.f32.partialorder %v765, 0.0
      %vm779 = vcmp.lt.f32.partialorder %v767, 0.0
      %v780 = vsel %vm778, %v765, 0.0
      %v781 = vsel %vm779, %v767, 0.0
      %v782 = vadd.f32 %v775, 1e-06
      %v783 = vadd.f32 %v777, 1e-06
      %v784 = vrcp.pop %v782
      %v785 = vrcp.pop %v783
      %v786 = vmul.f32 %v780, %v784
      %v787 = vmul.f32 %v781, %v785
      %v788 = vmul.f32 %v786, 0.8
      %v789 = vmul.f32 %v787, 0.8
      %v790 = vmul.f32 %v788, %v741
      %v791 = vmul.f32 %v789, %v743
      %v792 = vmul.f32 %v788, %v745
      %v793 = vmul.f32 %v789, %v747
      %v794 = vmul.f32 %v788, %v749
      %v795 = vmul.f32 %v789, %v751
      %v796 = vsub.f32 %v740, %v790
      %v797 = vsub.f32 %v742, %v791
      %v798 = vsub.f32 %v744, %v792
      %v799 = vsub.f32 %v746, %v793
      %v800 = vsub.f32 %v748, %v794
      %v801 = vsub.f32 %v750, %v795
      %v802 = vadd.f32 %v752, %v796
      %v803 = vadd.f32 %v753, %v797
      %v804 = vadd.f32 %v754, %v798
      %v805 = vadd.f32 %v755, %v799
      %v806 = vadd.f32 %v756, %v800
      %v807 = vadd.f32 %v757, %v801
      %808 = vst [vmem:[%s297] sm:$0xff] %v802
      %809 = vst [vmem:[%s297 + $0x8] sm:$0xff] %v803
      %810 = vst [vmem:[%s297 + $0x10] sm:$0xff] %v804
      %811 = vst [vmem:[%s297 + $0x18] sm:$0xff] %v805
      %812 = vst [vmem:[%s297 + $0x20] sm:$0xff] %v806
      %813 = vst [vmem:[%s297 + $0x28] sm:$0xff] %v807
      %s814 = scalar_lea.vmem %s276, 48
      %v815 = vld [vmem:[%s814] sm:$0xf]
      %v816 = vld [vmem:[%s814 + $0x4] sm:$0xf]
      %v817 = vld [vmem:[%s814 + $0x8] sm:$0xf]
      %v818 = vld [vmem:[%s814 + $0xc] sm:$0xf]
      %v819 = vld [vmem:[%s814 + $0x10] sm:$0xf]
      %v820 = vld [vmem:[%s814 + $0x14] sm:$0xf]
      %v821 = vld [vmem:[%s2] sm:$0xff]
      %v828 = vunpack.c.l.b16 %v815
      %v829 = vunpack.c.l.b16 %v816
      %v830 = vunpack.c.l.b16 %v817
      %v831 = vunpack.c.l.b16 %v818
      %v832 = vunpack.c.l.b16 %v819
      %v833 = vunpack.c.l.b16 %v820
      %v834 = vpack.c.b16 %v829, %v828
      %v835 = vpack.c.b16 %v831, %v830
      %v836 = vpack.c.b16 %v833, %v832
      %v838 = vunpack.c.l.b16 %v821
      %v839 = vunpack.c.h.b16 %v821
      %v840 = vpack.c.b16 %v838, %v838
      %v841 = vpack.c.b16 %v839, %v839
      %v843 = vsel %vm456, %v834, 0
      %v846 = vsel %vm456, %v835, 0
      %v849 = vsel %vm456, %v836, 0
      %v852 = vsel %vm466, %v840, 0
      %v855 = vsel %vm466, %v841, 0
      %857 = vmatprep.subr.bf16.mxu0 %v855
      %858 = vmatpush1.bf16.msra.mxu0 %v852
      %859 = vmatprep.subr.bf16.mxu0 0
      %860 = vmatpush1.bf16.msra.mxu0 0
      %861 = vmatprep.subr.bf16.mxu0 0
      %862 = vmatpush1.bf16.msra.mxu0 0
      %863 = vmatprep.subr.bf16.mxu0 0
      %864 = vmatpush1.bf16.msra.mxu0 0
      %865 = vmatprep.subr.bf16.mxu0 0
      %866 = vmatpush1.bf16.msra.mxu0 0
      %867 = vmatprep.subr.bf16.mxu0 0
      %868 = vmatpush1.bf16.msra.mxu0 0
      %869 = vmatprep.subr.bf16.mxu0 0
      %870 = vmatpush1.bf16.msra.mxu0 0
      %871 = vmatprep.subr.bf16.mxu0 0
      %872 = vmatpush1.bf16.msra.mxu0 0
      %873 = vmatprep.subr.bf16.mxu0 0
      %874 = vmatpush1.bf16.msra.mxu0 0
      %875 = vmatprep.subr.bf16.mxu0 0
      %876 = vmatpush1.bf16.msra.mxu0 0
      %877 = vmatprep.subr.bf16.mxu0 0
      %878 = vmatpush1.bf16.msra.mxu0 0
      %879 = vmatprep.subr.bf16.mxu0 0
      %880 = vmatpush1.bf16.msra.mxu0 0
      %881 = vmatprep.subr.bf16.mxu0 0
      %882 = vmatpush1.bf16.msra.mxu0 0
      %883 = vmatprep.subr.bf16.mxu0 0
      %884 = vmatpush1.bf16.msra.mxu0 0
      %885 = vmatprep.subr.bf16.mxu0 0
      %886 = vmatpush1.bf16.msra.mxu0 0
      %887 = vmatprep.subr.bf16.mxu0 0
      %888 = vmatpush1.bf16.msra.mxu0 0
      %889 = vmatprep.mubr.bf16.mxu0 0
      %890 = vmatmul.mubr.bf16.gmra.mrb[0].mxu0 %v843
      %v891 = vpop.f32.mrb[0].mxu0
      %v892 = vadd.f32 0.0, %v891
      %v893 = vpop.f32.mrb[0].mxu0
      %v894 = vadd.f32 0.0, %v893
      %v895 = vpop.f32.mrb[0].mxu0
      %v896 = vadd.f32 0.0, %v895
      %v897 = vpop.f32.mrb[0].mxu0
      %v898 = vadd.f32 0.0, %v897
      %899 = vmatprep.mubr.bf16.mxu0 0
      %900 = vmatmul.mubr.bf16.gmra.mrb[0].mxu0 %v846
      %v901 = vpop.f32.mrb[0].mxu0
      %v902 = vadd.f32 0.0, %v901
      %v903 = vpop.f32.mrb[0].mxu0
      %v904 = vadd.f32 0.0, %v903
      %v905 = vpop.f32.mrb[0].mxu0
      %v906 = vadd.f32 0.0, %v905
      %v907 = vpop.f32.mrb[0].mxu0
      %v908 = vadd.f32 0.0, %v907
      %909 = vmatprep.mubr.bf16.mxu0 0
      %910 = vmatmul.mubr.bf16.gmra.mrb[0].mxu0 %v849
      %v911 = vpop.f32.mrb[0].mxu0
      %v912 = vadd.f32 0.0, %v911
      %v913 = vpop.f32.mrb[0].mxu0
      %v914 = vadd.f32 0.0, %v913
      %v915 = vpop.f32.mrb[0].mxu0
      %v916 = vadd.f32 0.0, %v915
      %v917 = vpop.f32.mrb[0].mxu0
      %v918 = vadd.f32 0.0, %v917
      %919 = vdwg.mxu0
      %v920 = vld [vmem:[#allocation2] sm:$0xff]
      %v921 = vld [vmem:[#allocation2 + $0x8] sm:$0xff]
      %v922 = vld [vmem:[#allocation2 + $0x10] sm:$0xff]
      %v923 = vld [vmem:[#allocation2 + $0x18] sm:$0xff]
      %v924 = vld [vmem:[#allocation2 + $0x20] sm:$0xff]
      %v925 = vld [vmem:[#allocation2 + $0x28] sm:$0xff]
      %v926 = vld [vmem:[#allocation2 + $0x30] sm:$0xff]
      %v927 = vld [vmem:[#allocation2 + $0x38] sm:$0xff]
      %v928 = vld [vmem:[#allocation2 + $0x40] sm:$0xff]
      %v929 = vld [vmem:[#allocation2 + $0x48] sm:$0xff]
      %v930 = vld [vmem:[#allocation2 + $0x50] sm:$0xff]
      %v931 = vld [vmem:[#allocation2 + $0x58] sm:$0xff]
      %v932 = vadd.f32 %v892, %v920
      %v933 = vadd.f32 %v894, %v921
      %v934 = vadd.f32 %v896, %v922
      %v935 = vadd.f32 %v898, %v923
      %v936 = vadd.f32 %v902, %v924
      %v937 = vadd.f32 %v904, %v925
      %v938 = vadd.f32 %v906, %v926
      %v939 = vadd.f32 %v908, %v927
      %v940 = vadd.f32 %v912, %v928
      %v941 = vadd.f32 %v914, %v929
      %v942 = vadd.f32 %v916, %v930
      %v943 = vadd.f32 %v918, %v931
      %v944 = vld [vmem:[%s297] sm:$0xff]
      %v945 = vld [vmem:[%s297 + $0x8] sm:$0xff]
      %v946 = vld [vmem:[%s297 + $0x10] sm:$0xff]
      %v947 = vld [vmem:[%s297 + $0x18] sm:$0xff]
      %v948 = vld [vmem:[%s297 + $0x20] sm:$0xff]
      %v949 = vld [vmem:[%s297 + $0x28] sm:$0xff]
      %v950 = vmul.f32 %v932, %v933
      %v951 = vmul.f32 %v934, %v935
      %v952 = vmul.f32 %v936, %v937
      %v953 = vmul.f32 %v938, %v939
      %v954 = vmul.f32 %v940, %v941
      %v955 = vmul.f32 %v942, %v943
      %v956 = vadd.f32 %v950, %v952
      %v957 = vadd.f32 %v956, %v954
      %v958 = vadd.f32 %v951, %v953
      %v959 = vadd.f32 %v958, %v955
      %v960 = vmul.f32 %v933, %v933
      %v961 = vmul.f32 %v935, %v935
      %v962 = vmul.f32 %v937, %v937
      %v963 = vmul.f32 %v939, %v939
      %v964 = vmul.f32 %v941, %v941
      %v965 = vmul.f32 %v943, %v943
      %v966 = vadd.f32 %v960, %v962
      %v967 = vadd.f32 %v966, %v964
      %v968 = vadd.f32 %v961, %v963
      %v969 = vadd.f32 %v968, %v965
      %vm970 = vcmp.lt.f32.partialorder %v957, 0.0
      %vm971 = vcmp.lt.f32.partialorder %v959, 0.0
      %v972 = vsel %vm970, %v957, 0.0
      %v973 = vsel %vm971, %v959, 0.0
      %v974 = vadd.f32 %v967, 1e-06
      %v975 = vadd.f32 %v969, 1e-06
      %v976 = vrcp.pop %v974
      %v977 = vrcp.pop %v975
      %v978 = vmul.f32 %v972, %v976
      %v979 = vmul.f32 %v973, %v977
      %v980 = vmul.f32 %v978, 0.8
      %v981 = vmul.f32 %v979, 0.8
      %v982 = vmul.f32 %v980, %v933
      %v983 = vmul.f32 %v981, %v935
      %v984 = vmul.f32 %v980, %v937
      %v985 = vmul.f32 %v981, %v939
      %v986 = vmul.f32 %v980, %v941
      %v987 = vmul.f32 %v981, %v943
      %v988 = vsub.f32 %v932, %v982
      %v989 = vsub.f32 %v934, %v983
      %v990 = vsub.f32 %v936, %v984
      %v991 = vsub.f32 %v938, %v985
      %v992 = vsub.f32 %v940, %v986
      %v993 = vsub.f32 %v942, %v987
      %v994 = vadd.f32 %v944, %v988
      %v995 = vadd.f32 %v945, %v989
      %v996 = vadd.f32 %v946, %v990
      %v997 = vadd.f32 %v947, %v991
      %v998 = vadd.f32 %v948, %v992
      %v999 = vadd.f32 %v949, %v993
      %1000 = vst [vmem:[%s297] sm:$0xff] %v994
      %1001 = vst [vmem:[%s297 + $0x8] sm:$0xff] %v995
      %1002 = vst [vmem:[%s297 + $0x10] sm:$0xff] %v996
      %1003 = vst [vmem:[%s297 + $0x18] sm:$0xff] %v997
      %1004 = vst [vmem:[%s297 + $0x20] sm:$0xff] %v998
      %1005 = vst [vmem:[%s297 + $0x28] sm:$0xff] %v999
      %s1006 = scalar_lea.vmem %s276, 72
      %v1007 = vld [vmem:[%s1006] sm:$0xf]
      %v1008 = vld [vmem:[%s1006 + $0x4] sm:$0xf]
      %v1009 = vld [vmem:[%s1006 + $0x8] sm:$0xf]
      %v1010 = vld [vmem:[%s1006 + $0xc] sm:$0xf]
      %v1011 = vld [vmem:[%s1006 + $0x10] sm:$0xf]
      %v1012 = vld [vmem:[%s1006 + $0x14] sm:$0xf]
      %v1013 = vld [vmem:[%s2] sm:$0xff]
      %v1020 = vunpack.c.l.b16 %v1007
      %v1021 = vunpack.c.l.b16 %v1008
      %v1022 = vunpack.c.l.b16 %v1009
      %v1023 = vunpack.c.l.b16 %v1010
      %v1024 = vunpack.c.l.b16 %v1011
      %v1025 = vunpack.c.l.b16 %v1012
      %v1026 = vpack.c.b16 %v1021, %v1020
      %v1027 = vpack.c.b16 %v1023, %v1022
      %v1028 = vpack.c.b16 %v1025, %v1024
      %v1030 = vunpack.c.l.b16 %v1013
      %v1031 = vunpack.c.h.b16 %v1013
      %v1032 = vpack.c.b16 %v1030, %v1030
      %v1033 = vpack.c.b16 %v1031, %v1031
      %v1035 = vsel %vm456, %v1026, 0
      %v1038 = vsel %vm456, %v1027, 0
      %v1041 = vsel %vm456, %v1028, 0
      %v1044 = vsel %vm466, %v1032, 0
      %v1047 = vsel %vm466, %v1033, 0
      %1049 = vmatprep.subr.bf16.mxu0 %v1047
      %1050 = vmatpush1.bf16.msra.mxu0 %v1044
      %1051 = vmatprep.subr.bf16.mxu0 0
      %1052 = vmatpush1.bf16.msra.mxu0 0
      %1053 = vmatprep.subr.bf16.mxu0 0
      %1054 = vmatpush1.bf16.msra.mxu0 0
      %1055 = vmatprep.subr.bf16.mxu0 0
      %1056 = vmatpush1.bf16.msra.mxu0 0
      %1057 = vmatprep.subr.bf16.mxu0 0
      %1058 = vmatpush1.bf16.msra.mxu0 0
      %1059 = vmatprep.subr.bf16.mxu0 0
      %1060 = vmatpush1.bf16.msra.mxu0 0
      %1061 = vmatprep.subr.bf16.mxu0 0
      %1062 = vmatpush1.bf16.msra.mxu0 0
      %1063 = vmatprep.subr.bf16.mxu0 0
      %1064 = vmatpush1.bf16.msra.mxu0 0
      %1065 = vmatprep.subr.bf16.mxu0 0
      %1066 = vmatpush1.bf16.msra.mxu0 0
      %1067 = vmatprep.subr.bf16.mxu0 0
      %1068 = vmatpush1.bf16.msra.mxu0 0
      %1069 = vmatprep.subr.bf16.mxu0 0
      %1070 = vmatpush1.bf16.msra.mxu0 0
      %1071 = vmatprep.subr.bf16.mxu0 0
      %1072 = vmatpush1.bf16.msra.mxu0 0
      %1073 = vmatprep.subr.bf16.mxu0 0
      %1074 = vmatpush1.bf16.msra.mxu0 0
      %1075 = vmatprep.subr.bf16.mxu0 0
      %1076 = vmatpush1.bf16.msra.mxu0 0
      %1077 = vmatprep.subr.bf16.mxu0 0
      %1078 = vmatpush1.bf16.msra.mxu0 0
      %1079 = vmatprep.subr.bf16.mxu0 0
      %1080 = vmatpush1.bf16.msra.mxu0 0
      %1081 = vmatprep.mubr.bf16.mxu0 0
      %1082 = vmatmul.mubr.bf16.gmra.mrb[0].mxu0 %v1035
      %v1083 = vpop.f32.mrb[0].mxu0
      %v1084 = vadd.f32 0.0, %v1083
      %v1085 = vpop.f32.mrb[0].mxu0
      %v1086 = vadd.f32 0.0, %v1085
      %v1087 = vpop.f32.mrb[0].mxu0
      %v1088 = vadd.f32 0.0, %v1087
      %v1089 = vpop.f32.mrb[0].mxu0
      %v1090 = vadd.f32 0.0, %v1089
      %1091 = vmatprep.mubr.bf16.mxu0 0
      %1092 = vmatmul.mubr.bf16.gmra.mrb[0].mxu0 %v1038
      %v1093 = vpop.f32.mrb[0].mxu0
      %v1094 = vadd.f32 0.0, %v1093
      %v1095 = vpop.f32.mrb[0].mxu0
      %v1096 = vadd.f32 0.0, %v1095
      %v1097 = vpop.f32.mrb[0].mxu0
      %v1098 = vadd.f32 0.0, %v1097
      %v1099 = vpop.f32.mrb[0].mxu0
      %v1100 = vadd.f32 0.0, %v1099
      %1101 = vmatprep.mubr.bf16.mxu0 0
      %1102 = vmatmul.mubr.bf16.gmra.mrb[0].mxu0 %v1041
      %v1103 = vpop.f32.mrb[0].mxu0
      %v1104 = vadd.f32 0.0, %v1103
      %v1105 = vpop.f32.mrb[0].mxu0
      %v1106 = vadd.f32 0.0, %v1105
      %v1107 = vpop.f32.mrb[0].mxu0
      %v1108 = vadd.f32 0.0, %v1107
      %v1109 = vpop.f32.mrb[0].mxu0
      %v1110 = vadd.f32 0.0, %v1109
      %1111 = vdwg.mxu0
      %v1112 = vld [vmem:[#allocation2] sm:$0xff]
      %v1113 = vld [vmem:[#allocation2 + $0x8] sm:$0xff]
      %v1114 = vld [vmem:[#allocation2 + $0x10] sm:$0xff]
      %v1115 = vld [vmem:[#allocation2 + $0x18] sm:$0xff]
      %v1116 = vld [vmem:[#allocation2 + $0x20] sm:$0xff]
      %v1117 = vld [vmem:[#allocation2 + $0x28] sm:$0xff]
      %v1118 = vld [vmem:[#allocation2 + $0x30] sm:$0xff]
      %v1119 = vld [vmem:[#allocation2 + $0x38] sm:$0xff]
      %v1120 = vld [vmem:[#allocation2 + $0x40] sm:$0xff]
      %v1121 = vld [vmem:[#allocation2 + $0x48] sm:$0xff]
      %v1122 = vld [vmem:[#allocation2 + $0x50] sm:$0xff]
      %v1123 = vld [vmem:[#allocation2 + $0x58] sm:$0xff]
      %v1124 = vadd.f32 %v1084, %v1112
      %v1125 = vadd.f32 %v1086, %v1113
      %v1126 = vadd.f32 %v1088, %v1114
      %v1127 = vadd.f32 %v1090, %v1115
      %v1128 = vadd.f32 %v1094, %v1116
      %v1129 = vadd.f32 %v1096, %v1117
      %v1130 = vadd.f32 %v1098, %v1118
      %v1131 = vadd.f32 %v1100, %v1119
      %v1132 = vadd.f32 %v1104, %v1120
      %v1133 = vadd.f32 %v1106, %v1121
      %v1134 = vadd.f32 %v1108, %v1122
      %v1135 = vadd.f32 %v1110, %v1123
      %v1136 = vld [vmem:[%s297] sm:$0xff]
      %v1137 = vld [vmem:[%s297 + $0x8] sm:$0xff]
      %v1138 = vld [vmem:[%s297 + $0x10] sm:$0xff]
      %v1139 = vld [vmem:[%s297 + $0x18] sm:$0xff]
      %v1140 = vld [vmem:[%s297 + $0x20] sm:$0xff]
      %v1141 = vld [vmem:[%s297 + $0x28] sm:$0xff]
      %v1142 = vmul.f32 %v1124, %v1125
      %v1143 = vmul.f32 %v1126, %v1127
      %v1144 = vmul.f32 %v1128, %v1129
      %v1145 = vmul.f32 %v1130, %v1131
      %v1146 = vmul.f32 %v1132, %v1133
      %v1147 = vmul.f32 %v1134, %v1135
      %v1148 = vadd.f32 %v1142, %v1144
      %v1149 = vadd.f32 %v1148, %v1146
      %v1150 = vadd.f32 %v1143, %v1145
      %v1151 = vadd.f32 %v1150, %v1147
      %v1152 = vmul.f32 %v1125, %v1125
      %v1153 = vmul.f32 %v1127, %v1127
      %v1154 = vmul.f32 %v1129, %v1129
      %v1155 = vmul.f32 %v1131, %v1131
      %v1156 = vmul.f32 %v1133, %v1133
      %v1157 = vmul.f32 %v1135, %v1135
      %v1158 = vadd.f32 %v1152, %v1154
      %v1159 = vadd.f32 %v1158, %v1156
      %v1160 = vadd.f32 %v1153, %v1155
      %v1161 = vadd.f32 %v1160, %v1157
      %vm1162 = vcmp.lt.f32.partialorder %v1149, 0.0
      %vm1163 = vcmp.lt.f32.partialorder %v1151, 0.0
      %v1164 = vsel %vm1162, %v1149, 0.0
      %v1165 = vsel %vm1163, %v1151, 0.0
      %v1166 = vadd.f32 %v1159, 1e-06
      %v1167 = vadd.f32 %v1161, 1e-06
      %v1168 = vrcp.pop %v1166
      %v1169 = vrcp.pop %v1167
      %v1170 = vmul.f32 %v1164, %v1168
      %v1171 = vmul.f32 %v1165, %v1169
      %v1172 = vmul.f32 %v1170, 0.8
      %v1173 = vmul.f32 %v1171, 0.8
      %v1174 = vmul.f32 %v1172, %v1125
      %v1175 = vmul.f32 %v1173, %v1127
      %v1176 = vmul.f32 %v1172, %v1129
      %v1177 = vmul.f32 %v1173, %v1131
      %v1178 = vmul.f32 %v1172, %v1133
      %v1179 = vmul.f32 %v1173, %v1135
      %v1180 = vsub.f32 %v1124, %v1174
      %v1181 = vsub.f32 %v1126, %v1175
      %v1182 = vsub.f32 %v1128, %v1176
      %v1183 = vsub.f32 %v1130, %v1177
      %v1184 = vsub.f32 %v1132, %v1178
      %v1185 = vsub.f32 %v1134, %v1179
      %v1186 = vadd.f32 %v1136, %v1180
      %v1187 = vadd.f32 %v1137, %v1181
      %v1188 = vadd.f32 %v1138, %v1182
      %v1189 = vadd.f32 %v1139, %v1183
      %v1190 = vadd.f32 %v1140, %v1184
      %v1191 = vadd.f32 %v1141, %v1185
      %1192 = vst [vmem:[%s297] sm:$0xff] %v1186
      %1193 = vst [vmem:[%s297 + $0x8] sm:$0xff] %v1187
      %1194 = vst [vmem:[%s297 + $0x10] sm:$0xff] %v1188
      %1195 = vst [vmem:[%s297 + $0x18] sm:$0xff] %v1189
      %1196 = vst [vmem:[%s297 + $0x20] sm:$0xff] %v1190
      %1197 = vst [vmem:[%s297 + $0x28] sm:$0xff] %v1191
      // Predicated region
      $region41: #{vn_dgcnn_encoder.12} parent=35 // pred_check
        %p1198 = pneg %p300
      $region42: #{vn_dgcnn_encoder.12} parent=35 // pred_check_branch
        %1200 = sbr.rel (%p1198) target = $region44
      $region43: #{vn_dgcnn_encoder.12} parent=35 // pred_region
        %v1201 = vld [vmem:[%s297] sm:$0xff]
        %v1202 = vld [vmem:[%s297 + $0x8] sm:$0xff]
        %v1203 = vld [vmem:[%s297 + $0x10] sm:$0xff]
        %v1204 = vld [vmem:[%s297 + $0x18] sm:$0xff]
        %v1205 = vld [vmem:[%s297 + $0x20] sm:$0xff]
        %v1206 = vld [vmem:[%s297 + $0x28] sm:$0xff]
        %v1207 = vmul.f32 %v1201, 0.25
        %v1208 = vmul.f32 %v1202, 0.25
        %v1209 = vmul.f32 %v1203, 0.25
        %v1210 = vmul.f32 %v1204, 0.25
        %v1211 = vmul.f32 %v1205, 0.25
        %v1212 = vmul.f32 %v1206, 0.25
        %1213 = vst [vmem:[%s297] sm:$0xff] %v1207
        %1214 = vst [vmem:[%s297 + $0x8] sm:$0xff] %v1208
        %1215 = vst [vmem:[%s297 + $0x10] sm:$0xff] %v1209
        %1216 = vst [vmem:[%s297 + $0x18] sm:$0xff] %v1210
        %1217 = vst [vmem:[%s297 + $0x20] sm:$0xff] %v1211
        %1218 = vst [vmem:[%s297 + $0x28] sm:$0xff] %v1212
      $region44: #{vn_dgcnn_encoder.12} parent=35 // pred_fallthru
        _
      %s1219 = smul.u32 2, %s21
      %p1220 = scmp.lt.s32.totalorder %s20, 1
      %s1221 = scalar_select %p1220, %s20, 1
      %p1222 = scmp.lt.s32.totalorder %s1219, 1
      %s1223 = scalar_select %p1222, %s1219, 1
      %s1224 = smul.addr %s1221, 6
      %s1225 = sadd.s32 %s1223, %s1224
      %s1226 = smul.addr %s1225, 8
      %s1227 = scalar_lea.vmem %s4, %s1226
      // Predicated region
      $region45: #{vn_dgcnn_encoder.12} parent=35 // pred_check
        %p1228 = pneg %p154
      $region46: #{vn_dgcnn_encoder.12} parent=35 // pred_check_branch
        %1230 = sbr.rel (%p1228) target = $region48
      $region47: #{vn_dgcnn_encoder.12} parent=35 // pred_region
        %s1231 = smul.u32 2, %s21
      $region48: #{vn_dgcnn_encoder.12} parent=35 // pred_fallthru
        _
    $region36: #{vn_dgcnn_encoder.12} parent=5 // pred_fallthru
      _
    %p1232 = scmp.le.s32.totalorder 2, %s10
    // Predicated region
    $region49: #{vn_dgcnn_encoder.12} parent=5 // pred_check
      %p1233 = pneg %p1232
    $region50: #{vn_dgcnn_encoder.12} parent=5 // pred_check_branch
      %1235 = sbr.rel (%p1233) target = $region52
    $region51: #{vn_dgcnn_encoder.12} parent=5 // pred_region
      %s1236 = ssub.s32 %s10, 2
      // Predicated region
      $region53: #{vn_dgcnn_encoder.12} parent=51 // pred_check
        %p1237 = pneg %p160
      $region54: #{vn_dgcnn_encoder.12} parent=51 // pred_check_branch
        %1239 = sbr.rel (%p1237) target = $region56
      $region55: #{vn_dgcnn_encoder.12} parent=51 // pred_region
        %s1240 = smul.u32 2, %s24
        %p1241 = scmp.lt.s32.totalorder %s23, 1
        %s1242 = scalar_select %p1241, %s23, 1
        %p1243 = scmp.lt.s32.totalorder %s1240, 1
        %s1244 = scalar_select %p1243, %s1240, 1
        %s1245 = smul.addr %s1242, 6
        %s1246 = sadd.s32 %s1244, %s1245
        %s1247 = smul.addr %s1246, 8
        %s1248 = scalar_lea.vmem %s4, %s1247
      $region56: #{vn_dgcnn_encoder.12} parent=51 // pred_fallthru
        _
    $region52: #{vn_dgcnn_encoder.12} parent=5 // pred_fallthru
      _
  $region6: #{vn_dgcnn_encoder.12} parent=0 // loop_footer
    %s14 = sadd.s32 1, %s10
  $region7: #{vn_dgcnn_encoder.12} parent=0 // loop_footer_branch
    %9 = sbr.rel target = $region3
  $region8: #{vn_dgcnn_encoder.12} parent=0 // loop_exit
    _

// kernel: vn_dgcnn_encoder.17
$region0: #{vn_dgcnn_encoder.17}
  #allocation0 [shape = 'u32[]', space=smem, size = 0x4, offset = 0x4, fixed_abs, tag = 'smem constant byte address 0x4 - core index']
  #allocation1 [shape = 'u32[144,128]{1,0:T(1,128)}', space=vmem, size = 0x12000, scoped, tag = 'internal scratch']
  %s0 = inlined_call_operand.vmem [shape: bf16[2,3,16,64], index: 0, kind: input, shape index: {}]
  %s1 = inlined_call_operand.vmem [shape: bf16[64,256], index: 1, kind: input, shape index: {}]
  %s2 = inlined_call_operand.vmem [shape: f32[2,3,128], index: 2, kind: output, shape index: {}]
  %s3 = sld [smem:[#allocation0]]
  $region49: #{vn_dgcnn_encoder.17} parent=0
    _
  %s5 = ssub.s32 1, %s3
  %s6 = scalar_select 0, %s5, %s3
  loop: start=0, step=1, limit=4
  $region2: #{vn_dgcnn_encoder.17} parent=0 // loop_pre_header
    _
  $region3: #{vn_dgcnn_encoder.17} parent=0 // loop_header
    %s8 = sphi 0, %s12
    %p9 = scmp.ge.s32.totalorder %s8, 4
    %s15 = sphi 0, %s27
    %s16 = sphi 0, %s23
    %s17 = sphi 0, %s15
    %s18 = sphi 0, %s16
    %s19 = sphi 0, %s17
    %s20 = sphi 0, %s18
    %s32 = sphi 0, %s34
    %s35 = sphi 0, %s32
    %s36 = sphi 0, %s35
    %s52 = sphi 0, %s36
    %s56 = sphi 0, %s56
    %s58 = sphi 0, %s56
    %s59 = sphi 0, %s58
    %s73 = sphi 0, %s59
    %s79 = sphi 0, %s81
    %s82 = sphi 0, %s79
    %s83 = sphi 0, %s82
    %s99 = sphi 0, %s83
  $region4: #{vn_dgcnn_encoder.17} parent=0 // loop_header_branch
    %11 = sbr.rel (%p9) target = $region8
  $region5: #{vn_dgcnn_encoder.17} parent=0 // loop_body
    %s13 = ssub.s32 %s8, 1
    %s14 = ssub.s32 %s8, 2
    %s21 = sadd.s32 1, %s16
    %p22 = scmp.ge.s32.totalorder %s21, 1
    %s23 = scalar_select %p22, 0, %s21
    %s24 = sadd.s32 1, %s15
    %s25 = scalar_select %p22, %s24, %s15
    %p26 = scmp.ge.s32.totalorder %s25, 2
    %s27 = scalar_select %p26, 0, %s25
    %s28 = ssub.s32 %s15, %s27
    %s29 = ssub.s32 %s16, %s23
    %s30 = sor.u32 %s28, %s29
    %p31 = scmp.eq.s32.totalorder %s30, 0
    %s33 = sadd.s32 %s32, 1
    %s34 = scalar_select %p31, %s32, %s33
    %p37 = pneg %p31
    %p38 = scmp.eq.s32.totalorder %s8, 1
    %p39 = por %p37, %p38
    %p40 = scmp.ne.s32.totalorder %s32, %s35
    %p41 = scmp.eq.s32.totalorder %s8, 0
    %p42 = por %p40, %p41
    %p43 = scmp.ne.s32.totalorder %s32, %s35
    %p44 = scmp.eq.s32.totalorder %s13, 1
    %p45 = por %p43, %p44
    %p46 = scmp.ne.s32.totalorder %s35, %s36
    %p47 = scmp.eq.s32.totalorder %s13, 0
    %p48 = por %p46, %p47
    %p49 = scmp.ne.s32.totalorder %s35, %s36
    %p50 = scmp.eq.s32.totalorder %s14, 1
    %p51 = por %p49, %p50
    %p53 = scmp.ne.s32.totalorder %s36, %s52
    %p54 = scmp.eq.s32.totalorder %s14, 0
    %p55 = por %p53, %p54
    %s57 = sadd.s32 %s56, 1
    %p60 = scmp.eq.s32.totalorder %s8, 1
    %p61 = scmp.ne.s32.totalorder %s56, %s58
    %p62 = scmp.eq.s32.totalorder %s8, 0
    %p63 = por %p61, %p62
    %p64 = scmp.ne.s32.totalorder %s56, %s58
    %p65 = scmp.eq.s32.totalorder %s13, 1
    %p66 = por %p64, %p65
    %p67 = scmp.ne.s32.totalorder %s58, %s59
    %p68 = scmp.eq.s32.totalorder %s13, 0
    %p69 = por %p67, %p68
    %p70 = scmp.ne.s32.totalorder %s58, %s59
    %p71 = scmp.eq.s32.totalorder %s14, 1
    %p72 = por %p70, %p71
    %p74 = scmp.ne.s32.totalorder %s59, %s73
    %p75 = scmp.eq.s32.totalorder %s14, 0
    %p76 = por %p74, %p75
    %s77 = ssub.s32 %s15, %s27
    %p78 = scmp.eq.s32.totalorder %s77, 0
    %s80 = sadd.s32 %s79, 1
    %s81 = scalar_select %p78, %s79, %s80
    %p84 = pneg %p78
    %p85 = scmp.eq.s32.totalorder %s8, 1
    %p86 = por %p84, %p85
    %p87 = scmp.ne.s32.totalorder %s79, %s82
    %p88 = scmp.eq.s32.totalorder %s8, 0
    %p89 = por %p87, %p88
    %p90 = scmp.ne.s32.totalorder %s79, %s82
    %p91 = scmp.eq.s32.totalorder %s13, 1
    %p92 = por %p90, %p91
    %p93 = scmp.ne.s32.totalorder %s82, %s83
    %p94 = scmp.eq.s32.totalorder %s13, 0
    %p95 = por %p93, %p94
    %p96 = scmp.ne.s32.totalorder %s82, %s83
    %p97 = scmp.eq.s32.totalorder %s14, 1
    %p98 = por %p96, %p97
    %p100 = scmp.ne.s32.totalorder %s83, %s99
    %p101 = scmp.eq.s32.totalorder %s14, 0
    %p102 = por %p100, %p101
    %p103 = scmp.le.s32.totalorder 1, %s8
    %p104 = scmp.lt.s32.totalorder %s8, 3
    %p105 = pnand %p103, %p104
    %p106 = pneg %p105
    // Predicated region
    $region9: #{vn_dgcnn_encoder.17} parent=5 // pred_check
      _
    $region10: #{vn_dgcnn_encoder.17} parent=5 // pred_check_branch
      %108 = sbr.rel (%p105) target = $region12
    $region11: #{vn_dgcnn_encoder.17} parent=5 // pred_region
      %s109 = ssub.s32 %s8, 1
      // Predicated region
      $region13: #{vn_dgcnn_encoder.17} parent=11 // pred_check
        %p110 = pneg %p69
      $region14: #{vn_dgcnn_encoder.17} parent=11 // pred_check_branch
        %112 = sbr.rel (%p110) target = $region16
      $region15: #{vn_dgcnn_encoder.17} parent=11 // pred_region
        _
      $region16: #{vn_dgcnn_encoder.17} parent=11 // pred_fallthru
        _
    $region12: #{vn_dgcnn_encoder.17} parent=5 // pred_fallthru
      _
    %p113 = scmp.lt.s32.totalorder %s8, 2
    // Predicated region
    $region17: #{vn_dgcnn_encoder.17} parent=5 // pred_check
      %p114 = pneg %p113
    $region18: #{vn_dgcnn_encoder.17} parent=5 // pred_check_branch
      %116 = sbr.rel (%p114) target = $region20
    $region19: #{vn_dgcnn_encoder.17} parent=5 // pred_region
      // Predicated region
      $region21: #{vn_dgcnn_encoder.17} parent=19 // pred_check
        %p117 = pneg %p42
      $region22: #{vn_dgcnn_encoder.17} parent=19 // pred_check_branch
        %119 = sbr.rel (%p117) target = $region24
      $region23: #{vn_dgcnn_encoder.17} parent=19 // pred_region
        %s120 = smul.u32 2, %s16
        %p121 = scmp.lt.s32.totalorder %s15, 1
        %s122 = scalar_select %p121, %s15, 1
        %p123 = scmp.lt.s32.totalorder %s120, 1
        %s124 = scalar_select %p123, %s120, 1
        %s125 = smul.addr %s122, 6
        %s126 = sadd.s32 %s124, %s125
        %s127 = smul.addr %s126, 4
        %s128 = scalar_lea.vmem %s0, %s127
        %s129 = smul.u32 2, %s16
      $region24: #{vn_dgcnn_encoder.17} parent=19 // pred_fallthru
        _
    $region20: #{vn_dgcnn_encoder.17} parent=5 // pred_fallthru
      _
    %p130 = scmp.le.s32.totalorder 1, %s8
    %p131 = scmp.lt.s32.totalorder %s8, 3
    %p132 = pnand %p130, %p131
    %p133 = pneg %p132
    // Predicated region
    $region25: #{vn_dgcnn_encoder.17} parent=5 // pred_check
      _
    $region26: #{vn_dgcnn_encoder.17} parent=5 // pred_check_branch
      %135 = sbr.rel (%p132) target = $region28
    $region27: #{vn_dgcnn_encoder.17} parent=5 // pred_region
      %s136 = ssub.s32 %s8, 1
      %s137 = smul.u32 2, %s18
      %p138 = scmp.lt.s32.totalorder %s17, 1
      %s139 = scalar_select %p138, %s17, 1
      %p140 = scmp.lt.s32.totalorder %s137, 1
      %s141 = scalar_select %p140, %s137, 1
      %s142 = smul.addr %s139, 6
      %s143 = sadd.s32 %s141, %s142
      %s144 = smul.addr %s143, 4
      %s145 = scalar_lea.vmem %s0, %s144
      %p146 = pneg %p48
      %p147 = pneg %p45
      %p148 = pneg %p69
      %p149 = pneg %p66
      %p150 = pneg %p95
      %p151 = pneg %p92
      %p152 = scmp.lt.s32.totalorder %s17, 1
      %s153 = scalar_select %p152, %s17, 1
      %s154 = smul.addr %s153, 4
      %s155 = scalar_lea.vmem %s2, %s154
      %s156 = smul.u32 2, %s18
      %p157 = scmp.lt.s32.totalorder %s17, 1
      %s158 = scalar_select %p157, %s17, 1
      %p159 = scmp.lt.s32.totalorder %s156, 1
      %s160 = scalar_select %p159, %s156, 1
      %s161 = smul.addr %s158, 6
      %s162 = sadd.s32 %s160, %s161
      %s163 = smul.addr %s162, 4
      %s164 = scalar_lea.vmem %s0, %s163
      %s165 = smul.u32 2, %s18
      %p166 = scmp.lt.s32.totalorder %s17, 1
      %s167 = scalar_select %p166, %s17, 1
      %s168 = smul.addr %s167, 4
      %s169 = scalar_lea.vmem %s2, %s168
      %p171 = scmp.eq.s32.totalorder %s18, 0
      // Predicated region
      $region29: #{vn_dgcnn_encoder.17} parent=27 // pred_check
        %p172 = pneg %p171
      $region30: #{vn_dgcnn_encoder.17} parent=27 // pred_check_branch
        %174 = sbr.rel (%p172) target = $region32
      $region31: #{vn_dgcnn_encoder.17} parent=27 // pred_region
        %175 = vst [vmem:[%s169] sm:$0x7] 0.0
      $region32: #{vn_dgcnn_encoder.17} parent=27 // pred_fallthru
        _
      %v176 = vld [vmem:[%s164] sm:$0xf]
      %v177 = vld [vmem:[%s164 + $0x4] sm:$0xf]
      %v178 = vld [vmem:[%s164 + $0x8] sm:$0xf]
      %v179 = vld [vmem:[%s164 + $0xc] sm:$0xf]
      %v180 = vld [vmem:[%s164 + $0x10] sm:$0xf]
      %v181 = vld [vmem:[%s164 + $0x14] sm:$0xf]
      %v182 = vld [vmem:[%s1] sm:$0xff]
      %v183 = vld [vmem:[%s1 + $0x8] sm:$0xff]
      %v184 = vld [vmem:[%s1 + $0x10] sm:$0xff]
      %v185 = vld [vmem:[%s1 + $0x18] sm:$0xff]
      %v186 = vld [vmem:[%s1 + $0x20] sm:$0xff]
      %v187 = vld [vmem:[%s1 + $0x28] sm:$0xff]
      %v188 = vld [vmem:[%s1 + $0x30] sm:$0xff]
      %v189 = vld [vmem:[%s1 + $0x38] sm:$0xff]
      %v196 = vunpack.c.l.b16 %v176
      %v197 = vunpack.c.l.b16 %v177
      %v198 = vunpack.c.l.b16 %v178
      %v199 = vunpack.c.l.b16 %v179
      %v200 = vunpack.c.l.b16 %v180
      %v201 = vunpack.c.l.b16 %v181
      %v202 = vpack.c.b16 %v197, %v196
      %v203 = vpack.c.b16 %v199, %v198
      %v204 = vpack.c.b16 %v201, %v200
      %v213 = vunpack.c.l.b16 %v182
      %v214 = vunpack.c.h.b16 %v182
      %v215 = vunpack.c.l.b16 %v183
      %v216 = vunpack.c.h.b16 %v183
      %v217 = vunpack.c.l.b16 %v184
      %v218 = vunpack.c.h.b16 %v184
      %v219 = vunpack.c.l.b16 %v185
      %v220 = vunpack.c.h.b16 %v185
      %v221 = vunpack.c.l.b16 %v186
      %v222 = vunpack.c.h.b16 %v186
      %v223 = vunpack.c.l.b16 %v187
      %v224 = vunpack.c.h.b16 %v187
      %v225 = vunpack.c.l.b16 %v188
      %v226 = vunpack.c.h.b16 %v188
      %v227 = vunpack.c.l.b16 %v189
      %v228 = vunpack.c.h.b16 %v189
      %v229 = vpack.c.b16 %v215, %v213
      %v230 = vpack.c.b16 %v216, %v214
      %v231 = vpack.c.b16 %v219, %v217
      %v232 = vpack.c.b16 %v220, %v218
      %v233 = vpack.c.b16 %v223, %v221
      %v234 = vpack.c.b16 %v224, %v222
      %v235 = vpack.c.b16 %v227, %v225
      %v236 = vpack.c.b16 %v228, %v226
      %vm245 = vcmask 523264
      %v247 = vsel %vm245, %v202, 0
      %v250 = vsel %vm245, %v203, 0
      %v253 = vsel %vm245, %v204, 0
      %255 = vmatprep.subr.bf16.mxu0 %v230
      %256 = vmatpush1.bf16.msra.mxu0 %v229
      %257 = vmatprep.subr.bf16.mxu0 %v232
      %258 = vmatpush1.bf16.msra.mxu0 %v231
      %259 = vmatprep.subr.bf16.mxu0 %v234
      %260 = vmatpush1.bf16.msra.mxu0 %v233
      %261 = vmatprep.subr.bf16.mxu0 %v236
      %262 = vmatpush1.bf16.msra.mxu0 %v235
      %263 = vmatprep.subr.bf16.mxu0 0
      %264 = vmatpush1.bf16.msra.mxu0 0
      %265 = vmatprep.subr.bf16.mxu0 0
      %266 = vmatpush1.bf16.msra.mxu0 0
      %267 = vmatprep.subr.bf16.mxu0 0
      %268 = vmatpush1.bf16.msra.mxu0 0
      %269 = vmatprep.subr.bf16.mxu0 0
      %270 = vmatpush1.bf16.msra.mxu0 0
      %271 = vmatprep.subr.bf16.mxu0 0
      %272 = vmatpush1.bf16.msra.mxu0 0
      %273 = vmatprep.subr.bf16.mxu0 0
      %274 = vmatpush1.bf16.msra.mxu0 0
      %275 = vmatprep.subr.bf16.mxu0 0
      %276 = vmatpush1.bf16.msra.mxu0 0
      %277 = vmatprep.subr.bf16.mxu0 0
      %278 = vmatpush1.bf16.msra.mxu0 0
      %279 = vmatprep.subr.bf16.mxu0 0
      %280 = vmatpush1.bf16.msra.mxu0 0
      %281 = vmatprep.subr.bf16.mxu0 0
      %282 = vmatpush1.bf16.msra.mxu0 0
      %283 = vmatprep.subr.bf16.mxu0 0
      %284 = vmatpush1.bf16.msra.mxu0 0
      %285 = vmatprep.subr.bf16.mxu0 0
      %286 = vmatpush1.bf16.msra.mxu0 0
      %287 = vmatprep.mubr.bf16.mxu0 0
      %288 = vmatmul.mubr.bf16.gmra.mrb[0].mxu0 %v247
      %v289 = vpop.f32.mrb[0].mxu0
      %v290 = vadd.f32 0.0, %v289
      %v291 = vpop.f32.mrb[0].mxu0
      %v292 = vadd.f32 0.0, %v291
      %v293 = vpop.f32.mrb[0].mxu0
      %v294 = vadd.f32 0.0, %v293
      %v295 = vpop.f32.mrb[0].mxu0
      %v296 = vadd.f32 0.0, %v295
      %297 = vmatprep.mubr.bf16.mxu0 0
      %298 = vmatmul.mubr.bf16.gmra.mrb[0].mxu0 %v250
      %v299 = vpop.f32.mrb[0].mxu0
      %v300 = vadd.f32 0.0, %v299
      %v301 = vpop.f32.mrb[0].mxu0
      %v302 = vadd.f32 0.0, %v301
      %v303 = vpop.f32.mrb[0].mxu0
      %v304 = vadd.f32 0.0, %v303
      %v305 = vpop.f32.mrb[0].mxu0
      %v306 = vadd.f32 0.0, %v305
      %307 = vmatprep.mubr.bf16.mxu0 0
      %308 = vmatmul.mubr.bf16.gmra.mrb[0].mxu0 %v253
      %v309 = vpop.f32.mrb[0].mxu0
      %v310 = vadd.f32 0.0, %v309
      %v311 = vpop.f32.mrb[0].mxu0
      %v312 = vadd.f32 0.0, %v311
      %v313 = vpop.f32.mrb[0].mxu0
      %v314 = vadd.f32 0.0, %v313
      %v315 = vpop.f32.mrb[0].mxu0
      %v316 = vadd.f32 0.0, %v315
      %317 = vdwg.mxu0
      %319 = vset.pattern.permute.xlu0 0
      %320 = vperm.xlu0 %319, %v292
      %v321 = vpop.permute.xlu0 %320
      %324 = vset.pattern.permute.xlu0 0
      %325 = vperm.xlu0 %324, %v296
      %v326 = vpop.permute.xlu0 %325
      %329 = vset.pattern.permute.xlu0 0
      %330 = vperm.xlu0 %329, %v302
      %v331 = vpop.permute.xlu0 %330
      %334 = vset.pattern.permute.xlu0 0
      %335 = vperm.xlu0 %334, %v306
      %v336 = vpop.permute.xlu0 %335
      %339 = vset.pattern.permute.xlu0 0
      %340 = vperm.xlu0 %339, %v312
      %v341 = vpop.permute.xlu0 %340
      %344 = vset.pattern.permute.xlu0 0
      %345 = vperm.xlu0 %344, %v316
      %v346 = vpop.permute.xlu0 %345
      %v348 = vmul.f32 %v290, %v321
      %v349 = vmul.f32 %v294, %v326
      %v350 = vmul.f32 %v300, %v331
      %v351 = vmul.f32 %v304, %v336
      %v352 = vmul.f32 %v310, %v341
      %v353 = vmul.f32 %v314, %v346
      %v354 = vadd.f32 %v348, %v350
      %v355 = vadd.f32 %v354, %v352
      %v356 = vadd.f32 %v349, %v351
      %v357 = vadd.f32 %v356, %v353
      %v358 = vmul.f32 %v292, %v292
      %v359 = vmul.f32 %v296, %v296
      %v360 = vmul.f32 %v302, %v302
      %v361 = vmul.f32 %v306, %v306
      %v362 = vmul.f32 %v312, %v312
      %v363 = vmul.f32 %v316, %v316
      %vm364 = vcmask 7168
      %v365 = vsel %vm364, %v358, 0.0
      %v366 = vsel %vm364, %v360, 0.0
      %v367 = vadd.f32 %v365, %v366
      %v368 = vsel %vm364, %v362, 0.0
      %v369 = vadd.f32 %v367, %v368
      %v370 = vsel %vm364, %v359, 0.0
      %v371 = vsel %vm364, %v361, 0.0
      %v372 = vadd.f32 %v370, %v371
      %v373 = vsel %vm364, %v363, 0.0
      %v374 = vadd.f32 %v372, %v373
      %vm375 = vcmp.lt.f32.partialorder %v355, 0.0
      %vm376 = vcmp.lt.f32.partialorder %v357, 0.0
      %v377 = vsel %vm375, %v355, 0.0
      %v378 = vsel %vm376, %v357, 0.0
      %v379 = vadd.f32 %v369, 1e-06
      %v380 = vadd.f32 %v374, 1e-06
      %v381 = vrcp.pop %v379
      %v382 = vrcp.pop %v380
      %384 = vset.pattern.permute.xlu0 0
      %385 = vperm.xlu0 %384, %v381
      %v386 = vpop.permute.xlu0 %385
      %389 = vset.pattern.permute.xlu0 0
      %390 = vperm.xlu0 %389, %v382
      %v391 = vpop.permute.xlu0 %390
      %v393 = vmul.f32 %v377, %v386
      %v394 = vmul.f32 %v378, %v391
      %v395 = vmul.f32 %v393, 0.8
      %v396 = vmul.f32 %v394, 0.8
      %v397 = vmul.f32 %v395, %v321
      %v398 = vmul.f32 %v396, %v326
      %v399 = vmul.f32 %v395, %v331
      %v400 = vmul.f32 %v396, %v336
      %v401 = vmul.f32 %v395, %v341
      %v402 = vmul.f32 %v396, %v346
      %v403 = vsub.f32 %v290, %v397
      %v404 = vsub.f32 %v294, %v398
      %v405 = vsub.f32 %v300, %v399
      %v406 = vsub.f32 %v304, %v400
      %v407 = vsub.f32 %v310, %v401
      %v408 = vsub.f32 %v314, %v402
      %v409 = vld [vmem:[%s169] sm:$0x7]
      %v410 = vadd.f32 %v403, %v404
      %v411 = vrot.slane %v410, 4
      %v412 = vadd.f32 %v410, %v411
      %v413 = vrot.slane %v412, 2
      %v414 = vadd.f32 %v412, %v413
      %v415 = vrot.slane %v414, 1
      %v416 = vadd.f32 %v414, %v415
      %v417 = vadd.f32 %v405, %v406
      %v418 = vrot.slane %v417, 4
      %v419 = vadd.f32 %v417, %v418
      %v420 = vrot.slane %v419, 2
      %v421 = vadd.f32 %v419, %v420
      %v422 = vrot.slane %v421, 1
      %v423 = vadd.f32 %v421, %v422
      %v424 = vadd.f32 %v407, %v408
      %v425 = vrot.slane %v424, 4
      %v426 = vadd.f32 %v424, %v425
      %v427 = vrot.slane %v426, 2
      %v428 = vadd.f32 %v426, %v427
      %v429 = vrot.slane %v428, 1
      %v430 = vadd.f32 %v428, %v429
      %vm434 = vcmask 1041409
      %v435 = vsel %vm434, %v423, %v416
      %vm436 = vcmask 1042434
      %v437 = vsel %vm436, %v430, %v435
      %v439 = vadd.f32 %v409, %v437
      %440 = vst [vmem:[%s169] sm:$0x7] %v439
      // Predicated region
      $region33: #{vn_dgcnn_encoder.17} parent=27 // pred_check
        %p441 = pneg %p171
      $region34: #{vn_dgcnn_encoder.17} parent=27 // pred_check_branch
        %443 = sbr.rel (%p441) target = $region36
      $region35: #{vn_dgcnn_encoder.17} parent=27 // pred_region
        %v444 = vld [vmem:[%s169] sm:$0x7]
        %v445 = vmul.f32 %v444, 0.0625
        %446 = vst [vmem:[%s169] sm:$0x7] %v445
      $region36: #{vn_dgcnn_encoder.17} parent=27 // pred_fallthru
        _
      %p447 = scmp.lt.s32.totalorder %s17, 1
      %s448 = scalar_select %p447, %s17, 1
      %s449 = smul.addr %s448, 4
      %s450 = scalar_lea.vmem %s2, %s449
      // Predicated region
      $region37: #{vn_dgcnn_encoder.17} parent=27 // pred_check
        %p451 = pneg %p92
      $region38: #{vn_dgcnn_encoder.17} parent=27 // pred_check_branch
        %453 = sbr.rel (%p451) target = $region40
      $region39: #{vn_dgcnn_encoder.17} parent=27 // pred_region
        _
      $region40: #{vn_dgcnn_encoder.17} parent=27 // pred_fallthru
        _
    $region28: #{vn_dgcnn_encoder.17} parent=5 // pred_fallthru
      _
    %p454 = scmp.le.s32.totalorder 2, %s8
    // Predicated region
    $region41: #{vn_dgcnn_encoder.17} parent=5 // pred_check
      %p455 = pneg %p454
    $region42: #{vn_dgcnn_encoder.17} parent=5 // pred_check_branch
      %457 = sbr.rel (%p455) target = $region44
    $region43: #{vn_dgcnn_encoder.17} parent=5 // pred_region
      %s458 = ssub.s32 %s8, 2
      // Predicated region
      $region45: #{vn_dgcnn_encoder.17} parent=43 // pred_check
        %p459 = pneg %p98
      $region46: #{vn_dgcnn_encoder.17} parent=43 // pred_check_branch
        %461 = sbr.rel (%p459) target = $region48
      $region47: #{vn_dgcnn_encoder.17} parent=43 // pred_region
        %p462 = scmp.lt.s32.totalorder %s19, 1
        %s463 = scalar_select %p462, %s19, 1
        %s464 = smul.addr %s463, 4
        %s465 = scalar_lea.vmem %s2, %s464
      $region48: #{vn_dgcnn_encoder.17} parent=43 // pred_fallthru
        _
    $region44: #{vn_dgcnn_encoder.17} parent=5 // pred_fallthru
      _
  $region6: #{vn_dgcnn_encoder.17} parent=0 // loop_footer
    %s12 = sadd.s32 1, %s8
  $region7: #{vn_dgcnn_encoder.17} parent=0 // loop_footer_branch
    %7 = sbr.rel target = $region3
  $region8: #{vn_dgcnn_encoder.17} parent=0 // loop_exit
    _

// kernel: vn_dgcnn_encoder.16
$region0: #{vn_dgcnn_encoder.16}
  #allocation0 [shape = 'u32[]', space=smem, size = 0x4, offset = 0x4, fixed_abs, tag = 'smem constant byte address 0x4 - core index']
  #allocation1 [shape = 'u32[144,128]{1,0:T(1,128)}', space=vmem, size = 0x12000, scoped, tag = 'internal scratch']
  #allocation2 [shape = 'f32[3,16,256]{2,1,0:T(8,128)}', space=vmem, size = 0xc000, scoped, tag = 'scratch operand']
  %s0 = inlined_call_operand.vmem [shape: bf16[2,4,3,16,16], index: 0, kind: input, shape index: {}]
  %s1 = inlined_call_operand.vmem [shape: bf16[2,3,16,16], index: 1, kind: input, shape index: {}]
  %s2 = inlined_call_operand.vmem [shape: bf16[16,256], index: 2, kind: input, shape index: {}]
  %s3 = inlined_call_operand.vmem [shape: bf16[16,256], index: 3, kind: input, shape index: {}]
  %s4 = inlined_call_operand.vmem [shape: f32[2,3,16,128], index: 4, kind: output, shape index: {}]
  %s5 = sld [smem:[#allocation0]]
  $region57: #{vn_dgcnn_encoder.16} parent=0
    _
  %s7 = ssub.s32 1, %s5
  %s8 = scalar_select 0, %s7, %s5
  loop: start=0, step=1, limit=4
  $region2: #{vn_dgcnn_encoder.16} parent=0 // loop_pre_header
    _
  $region3: #{vn_dgcnn_encoder.16} parent=0 // loop_header
    %s10 = sphi 0, %s14
    %p11 = scmp.ge.s32.totalorder %s10, 4
    %s17 = sphi 0, %s36
    %s18 = sphi 0, %s32
    %s19 = sphi 0, %s28
    %s20 = sphi 0, %s17
    %s21 = sphi 0, %s18
    %s22 = sphi 0, %s19
    %s23 = sphi 0, %s20
    %s24 = sphi 0, %s21
    %s25 = sphi 0, %s22
    %s43 = sphi 0, %s45
    %s46 = sphi 0, %s43
    %s47 = sphi 0, %s46
    %s63 = sphi 0, %s47
    %s71 = sphi 0, %s73
    %s74 = sphi 0, %s71
    %s75 = sphi 0, %s74
    %s91 = sphi 0, %s75
    %s95 = sphi 0, %s95
    %s97 = sphi 0, %s95
    %s98 = sphi 0, %s97
    %s112 = sphi 0, %s98
    %s116 = sphi 0, %s116
    %s118 = sphi 0, %s116
    %s119 = sphi 0, %s118
    %s133 = sphi 0, %s119
    %s141 = sphi 0, %s143
    %s144 = sphi 0, %s141
    %s145 = sphi 0, %s144
    %s161 = sphi 0, %s145
  $region4: #{vn_dgcnn_encoder.16} parent=0 // loop_header_branch
    %13 = sbr.rel (%p11) target = $region8
  $region5: #{vn_dgcnn_encoder.16} parent=0 // loop_body
    %s15 = ssub.s32 %s10, 1
    %s16 = ssub.s32 %s10, 2
    %s26 = sadd.s32 1, %s19
    %p27 = scmp.ge.s32.totalorder %s26, 1
    %s28 = scalar_select %p27, 0, %s26
    %s29 = sadd.s32 1, %s18
    %s30 = scalar_select %p27, %s29, %s18
    %p31 = scmp.ge.s32.totalorder %s30, 1
    %s32 = scalar_select %p31, 0, %s30
    %s33 = sadd.s32 1, %s17
    %s34 = scalar_select %p31, %s33, %s17
    %p35 = scmp.ge.s32.totalorder %s34, 2
    %s36 = scalar_select %p35, 0, %s34
    %s37 = ssub.s32 %s17, %s36
    %s38 = ssub.s32 %s19, %s28
    %s39 = sor.u32 %s37, %s38
    %s40 = ssub.s32 %s18, %s32
    %s41 = sor.u32 %s39, %s40
    %p42 = scmp.eq.s32.totalorder %s41, 0
    %s44 = sadd.s32 %s43, 1
    %s45 = scalar_select %p42, %s43, %s44
    %p48 = pneg %p42
    %p49 = scmp.eq.s32.totalorder %s10, 1
    %p50 = por %p48, %p49
    %p51 = scmp.ne.s32.totalorder %s43, %s46
    %p52 = scmp.eq.s32.totalorder %s10, 0
    %p53 = por %p51, %p52
    %p54 = scmp.ne.s32.totalorder %s43, %s46
    %p55 = scmp.eq.s32.totalorder %s15, 1
    %p56 = por %p54, %p55
    %p57 = scmp.ne.s32.totalorder %s46, %s47
    %p58 = scmp.eq.s32.totalorder %s15, 0
    %p59 = por %p57, %p58
    %p60 = scmp.ne.s32.totalorder %s46, %s47
    %p61 = scmp.eq.s32.totalorder %s16, 1
    %p62 = por %p60, %p61
    %p64 = scmp.ne.s32.totalorder %s47, %s63
    %p65 = scmp.eq.s32.totalorder %s16, 0
    %p66 = por %p64, %p65
    %s67 = ssub.s32 %s17, %s36
    %s68 = ssub.s32 %s18, %s32
    %s69 = sor.u32 %s67, %s68
    %p70 = scmp.eq.s32.totalorder %s69, 0
    %s72 = sadd.s32 %s71, 1
    %s73 = scalar_select %p70, %s71, %s72
    %p76 = pneg %p70
    %p77 = scmp.eq.s32.totalorder %s10, 1
    %p78 = por %p76, %p77
    %p79 = scmp.ne.s32.totalorder %s71, %s74
    %p80 = scmp.eq.s32.totalorder %s10, 0
    %p81 = por %p79, %p80
    %p82 = scmp.ne.s32.totalorder %s71, %s74
    %p83 = scmp.eq.s32.totalorder %s15, 1
    %p84 = por %p82, %p83
    %p85 = scmp.ne.s32.totalorder %s74, %s75
    %p86 = scmp.eq.s32.totalorder %s15, 0
    %p87 = por %p85, %p86
    %p88 = scmp.ne.s32.totalorder %s74, %s75
    %p89 = scmp.eq.s32.totalorder %s16, 1
    %p90 = por %p88, %p89
    %p92 = scmp.ne.s32.totalorder %s75, %s91
    %p93 = scmp.eq.s32.totalorder %s16, 0
    %p94 = por %p92, %p93
    %s96 = sadd.s32 %s95, 1
    %p99 = scmp.eq.s32.totalorder %s10, 1
    %p100 = scmp.ne.s32.totalorder %s95, %s97
    %p101 = scmp.eq.s32.totalorder %s10, 0
    %p102 = por %p100, %p101
    %p103 = scmp.ne.s32.totalorder %s95, %s97
    %p104 = scmp.eq.s32.totalorder %s15, 1
    %p105 = por %p103, %p104
    %p106 = scmp.ne.s32.totalorder %s97, %s98
    %p107 = scmp.eq.s32.totalorder %s15, 0
    %p108 = por %p106, %p107
    %p109 = scmp.ne.s32.totalorder %s97, %s98
    %p110 = scmp.eq.s32.totalorder %s16, 1
    %p111 = por %p109, %p110
    %p113 = scmp.ne.s32.totalorder %s98, %s112
    %p114 = scmp.eq.s32.totalorder %s16, 0
    %p115 = por %p113, %p114
    %s117 = sadd.s32 %s116, 1
    %p120 = scmp.eq.s32.totalorder %s10, 1
    %p121 = scmp.ne.s32.totalorder %s116, %s118
    %p122 = scmp.eq.s32.totalorder %s10, 0
    %p123 = por %p121, %p122
    %p124 = scmp.ne.s32.totalorder %s116, %s118
    %p125 = scmp.eq.s32.totalorder %s15, 1
    %p126 = por %p124, %p125
    %p127 = scmp.ne.s32.totalorder %s118, %s119
    %p128 = scmp.eq.s32.totalorder %s15, 0
    %p129 = por %p127, %p128
    %p130 = scmp.ne.s32.totalorder %s118, %s119
    %p131 = scmp.eq.s32.totalorder %s16, 1
    %p132 = por %p130, %p131
    %p134 = scmp.ne.s32.totalorder %s119, %s133
    %p135 = scmp.eq.s32.totalorder %s16, 0
    %p136 = por %p134, %p135
    %s137 = ssub.s32 %s17, %s36
    %s138 = ssub.s32 %s18, %s32
    %s139 = sor.u32 %s137, %s138
    %p140 = scmp.eq.s32.totalorder %s139, 0
    %s142 = sadd.s32 %s141, 1
    %s143 = scalar_select %p140, %s141, %s142
    %p146 = pneg %p140
    %p147 = scmp.eq.s32.totalorder %s10, 1
    %p148 = por %p146, %p147
    %p149 = scmp.ne.s32.totalorder %s141, %s144
    %p150 = scmp.eq.s32.totalorder %s10, 0
    %p151 = por %p149, %p150
    %p152 = scmp.ne.s32.totalorder %s141, %s144
    %p153 = scmp.eq.s32.totalorder %s15, 1
    %p154 = por %p152, %p153
    %p155 = scmp.ne.s32.totalorder %s144, %s145
    %p156 = scmp.eq.s32.totalorder %s15, 0
    %p157 = por %p155, %p156
    %p158 = scmp.ne.s32.totalorder %s144, %s145
    %p159 = scmp.eq.s32.totalorder %s16, 1
    %p160 = por %p158, %p159
    %p162 = scmp.ne.s32.totalorder %s145, %s161
    %p163 = scmp.eq.s32.totalorder %s16, 0
    %p164 = por %p162, %p163
    %p165 = scmp.le.s32.totalorder 1, %s10
    %p166 = scmp.lt.s32.totalorder %s10, 3
    %p167 = pnand %p165, %p166
    %p168 = pneg %p167
    // Predicated region
    $region9: #{vn_dgcnn_encoder.16} parent=5 // pred_check
      _
    $region10: #{vn_dgcnn_encoder.16} parent=5 // pred_check_branch
      %170 = sbr.rel (%p167) target = $region12
    $region11: #{vn_dgcnn_encoder.16} parent=5 // pred_region
      %s171 = ssub.s32 %s10, 1
      // Predicated region
      $region13: #{vn_dgcnn_encoder.16} parent=11 // pred_check
        %p172 = pneg %p108
      $region14: #{vn_dgcnn_encoder.16} parent=11 // pred_check_branch
        %174 = sbr.rel (%p172) target = $region16
      $region15: #{vn_dgcnn_encoder.16} parent=11 // pred_region
        _
      $region16: #{vn_dgcnn_encoder.16} parent=11 // pred_fallthru
        _
      // Predicated region
      $region17: #{vn_dgcnn_encoder.16} parent=11 // pred_check
        %p175 = pneg %p129
      $region18: #{vn_dgcnn_encoder.16} parent=11 // pred_check_branch
        %177 = sbr.rel (%p175) target = $region20
      $region19: #{vn_dgcnn_encoder.16} parent=11 // pred_region
        _
      $region20: #{vn_dgcnn_encoder.16} parent=11 // pred_fallthru
        _
    $region12: #{vn_dgcnn_encoder.16} parent=5 // pred_fallthru
      _
    %p178 = scmp.lt.s32.totalorder %s10, 2
    // Predicated region
    $region21: #{vn_dgcnn_encoder.16} parent=5 // pred_check
      %p179 = pneg %p178
    $region22: #{vn_dgcnn_encoder.16} parent=5 // pred_check_branch
      %181 = sbr.rel (%p179) target = $region24
    $region23: #{vn_dgcnn_encoder.16} parent=5 // pred_region
      // Predicated region
      $region25: #{vn_dgcnn_encoder.16} parent=23 // pred_check
        %p182 = pneg %p53
      $region26: #{vn_dgcnn_encoder.16} parent=23 // pred_check_branch
        %184 = sbr.rel (%p182) target = $region28
      $region27: #{vn_dgcnn_encoder.16} parent=23 // pred_region
        %s185 = smul.u32 4, %s19
        %s186 = smul.u32 2, %s18
        %p187 = scmp.lt.s32.totalorder %s17, 1
        %s188 = scalar_select %p187, %s17, 1
        %p189 = scmp.lt.s32.totalorder %s185, 3
        %s190 = scalar_select %p189, %s185, 3
        %p191 = scmp.lt.s32.totalorder %s186, 1
        %s192 = scalar_select %p191, %s186, 1
        %s193 = smul.addr %s190, 6
        %s194 = sadd.s32 %s192, %s193
        %s195 = smul.addr %s188, 24
        %s196 = sadd.s32 %s194, %s195
        %s197 = smul.addr %s196, 4
        %s198 = scalar_lea.vmem %s0, %s197
        %s199 = smul.u32 4, %s19
        %s200 = smul.u32 2, %s18
      $region28: #{vn_dgcnn_encoder.16} parent=23 // pred_fallthru
        _
      // Predicated region
      $region29: #{vn_dgcnn_encoder.16} parent=23 // pred_check
        %p201 = pneg %p81
      $region30: #{vn_dgcnn_encoder.16} parent=23 // pred_check_branch
        %203 = sbr.rel (%p201) target = $region32
      $region31: #{vn_dgcnn_encoder.16} parent=23 // pred_region
        %s204 = smul.u32 2, %s18
        %p205 = scmp.lt.s32.totalorder %s17, 1
        %s206 = scalar_select %p205, %s17, 1
        %p207 = scmp.lt.s32.totalorder %s204, 1
        %s208 = scalar_select %p207, %s204, 1
        %s209 = smul.addr %s206, 6
        %s210 = sadd.s32 %s208, %s209
        %s211 = smul.addr %s210, 4
        %s212 = scalar_lea.vmem %s1, %s211
        %s213 = smul.u32 2, %s18
      $region32: #{vn_dgcnn_encoder.16} parent=23 // pred_fallthru
        _
    $region24: #{vn_dgcnn_encoder.16} parent=5 // pred_fallthru
      _
    %p214 = scmp.le.s32.totalorder 1, %s10
    %p215 = scmp.lt.s32.totalorder %s10, 3
    %p216 = pnand %p214, %p215
    %p217 = pneg %p216
    // Predicated region
    $region33: #{vn_dgcnn_encoder.16} parent=5 // pred_check
      _
    $region34: #{vn_dgcnn_encoder.16} parent=5 // pred_check_branch
      %219 = sbr.rel (%p216) target = $region36
    $region35: #{vn_dgcnn_encoder.16} parent=5 // pred_region
      %s220 = ssub.s32 %s10, 1
      %s221 = smul.u32 4, %s22
      %s222 = smul.u32 2, %s21
      %p223 = scmp.lt.s32.totalorder %s20, 1
      %s224 = scalar_select %p223, %s20, 1
      %p225 = scmp.lt.s32.totalorder %s221, 3
      %s226 = scalar_select %p225, %s221, 3
      %p227 = scmp.lt.s32.totalorder %s222, 1
      %s228 = scalar_select %p227, %s222, 1
      %s229 = smul.addr %s226, 6
      %s230 = sadd.s32 %s228, %s229
      %s231 = smul.addr %s224, 24
      %s232 = sadd.s32 %s230, %s231
      %s233 = smul.addr %s232, 4
      %s234 = scalar_lea.vmem %s0, %s233
      %p235 = pneg %p59
      %p236 = pneg %p56
      %s237 = smul.u32 2, %s21
      %p238 = scmp.lt.s32.totalorder %s20, 1
      %s239 = scalar_select %p238, %s20, 1
      %p240 = scmp.lt.s32.totalorder %s237, 1
      %s241 = scalar_select %p240, %s237, 1
      %s242 = smul.addr %s239, 6
      %s243 = sadd.s32 %s241, %s242
      %s244 = smul.addr %s243, 4
      %s245 = scalar_lea.vmem %s1, %s244
      %p246 = pneg %p87
      %p247 = pneg %p84
      %p248 = pneg %p108
      %p249 = pneg %p105
      %p250 = pneg %p129
      %p251 = pneg %p126
      %p252 = pneg %p157
      %p253 = pneg %p154
      %s254 = smul.u32 2, %s21
      %p255 = scmp.lt.s32.totalorder %s20, 1
      %s256 = scalar_select %p255, %s20, 1
      %p257 = scmp.lt.s32.totalorder %s254, 1
      %s258 = scalar_select %p257, %s254, 1
      %s259 = smul.addr %s256, 6
      %s260 = sadd.s32 %s258, %s259
      %s261 = smul.addr %s260, 8
      %s262 = scalar_lea.vmem %s4, %s261
      %s263 = smul.u32 4, %s22
      %s264 = smul.u32 2, %s21
      %p265 = scmp.lt.s32.totalorder %s20, 1
      %s266 = scalar_select %p265, %s20, 1
      %p267 = scmp.lt.s32.totalorder %s263, 3
      %s268 = scalar_select %p267, %s263, 3
      %p269 = scmp.lt.s32.totalorder %s264, 1
      %s270 = scalar_select %p269, %s264, 1
      %s271 = smul.addr %s268, 6
      %s272 = sadd.s32 %s270, %s271
      %s273 = smul.addr %s266, 24
      %s274 = sadd.s32 %s272, %s273
      %s275 = smul.addr %s274, 4
      %s276 = scalar_lea.vmem %s0, %s275
      %s277 = smul.u32 4, %s22
      %s278 = smul.u32 2, %s21
      %s279 = smul.u32 2, %s21
      %p280 = scmp.lt.s32.totalorder %s20, 1
      %s281 = scalar_select %p280, %s20, 1
      %p282 = scmp.lt.s32.totalorder %s279, 1
      %s283 = scalar_select %p282, %s279, 1
      %s284 = smul.addr %s281, 6
      %s285 = sadd.s32 %s283, %s284
      %s286 = smul.addr %s285, 4
      %s287 = scalar_lea.vmem %s1, %s286
      %s288 = smul.u32 2, %s21
      %s289 = smul.u32 2, %s21
      %p290 = scmp.lt.s32.totalorder %s20, 1
      %s291 = scalar_select %p290, %s20, 1
      %p292 = scmp.lt.s32.totalorder %s289, 1
      %s293 = scalar_select %p292, %s289, 1
      %s294 = smul.addr %s291, 6
      %s295 = sadd.s32 %s293, %s294
      %s296 = smul.addr %s295, 8
      %s297 = scalar_lea.vmem %s4, %s296
      %s298 = smul.u32 2, %s21
      %p300 = scmp.eq.s32.totalorder %s22, 0
      // Predicated region
      $region37: #{vn_dgcnn_encoder.16} parent=35 // pred_check
        %p301 = pneg %p300
      $region38: #{vn_dgcnn_encoder.16} parent=35 // pred_check_branch
        %303 = sbr.rel (%p301) target = $region40
      $region39: #{vn_dgcnn_encoder.16} parent=35 // pred_region
        %304 = vst [vmem:[%s297] sm:$0xff] 0.0
        %305 = vst [vmem:[%s297 + $0x8] sm:$0xff] 0.0
        %306 = vst [vmem:[%s297 + $0x10] sm:$0xff] 0.0
        %307 = vst [vmem:[%s297 + $0x18] sm:$0xff] 0.0
        %308 = vst [vmem:[%s297 + $0x20] sm:$0xff] 0.0
        %309 = vst [vmem:[%s297 + $0x28] sm:$0xff] 0.0
        %v310 = vld [vmem:[%s287] sm:$0xf]
        %v311 = vld [vmem:[%s287 + $0x4] sm:$0xf]
        %v312 = vld [vmem:[%s287 + $0x8] sm:$0xf]
        %v313 = vld [vmem:[%s287 + $0xc] sm:$0xf]
        %v314 = vld [vmem:[%s287 + $0x10] sm:$0xf]
        %v315 = vld [vmem:[%s287 + $0x14] sm:$0xf]
        %v316 = vld [vmem:[%s3] sm:$0xff]
        %v317 = vld [vmem:[%s3 + $0x8] sm:$0xff]
        %v324 = vunpack.c.l.b16 %v310
        %v325 = vunpack.c.l.b16 %v311
        %v326 = vunpack.c.l.b16 %v312
        %v327 = vunpack.c.l.b16 %v313
        %v328 = vunpack.c.l.b16 %v314
        %v329 = vunpack.c.l.b16 %v315
        %v330 = vpack.c.b16 %v325, %v324
        %v331 = vpack.c.b16 %v327, %v326
        %v332 = vpack.c.b16 %v329, %v328
        %v335 = vunpack.c.l.b16 %v316
        %v336 = vunpack.c.h.b16 %v316
        %v337 = vunpack.c.l.b16 %v317
        %v338 = vunpack.c.h.b16 %v317
        %v339 = vpack.c.b16 %v337, %v335
        %v340 = vpack.c.b16 %v338, %v336
        %vm343 = vcmask 130048
        %v345 = vsel %vm343, %v330, 0
        %v348 = vsel %vm343, %v331, 0
        %v351 = vsel %vm343, %v332, 0
        %353 = vmatprep.subr.bf16.mxu0 %v340
        %354 = vmatpush1.bf16.msra.mxu0 %v339
        %355 = vmatprep.subr.bf16.mxu0 0
        %356 = vmatpush1.bf16.msra.mxu0 0
        %357 = vmatprep.subr.bf16.mxu0 0
        %358 = vmatpush1.bf16.msra.mxu0 0
        %359 = vmatprep.subr.bf16.mxu0 0
        %360 = vmatpush1.bf16.msra.mxu0 0
        %361 = vmatprep.subr.bf16.mxu0 0
        %362 = vmatpush1.bf16.msra.mxu0 0
        %363 = vmatprep.subr.bf16.mxu0 0
        %364 = vmatpush1.bf16.msra.mxu0 0
        %365 = vmatprep.subr.bf16.mxu0 0
        %366 = vmatpush1.bf16.msra.mxu0 0
        %367 = vmatprep.subr.bf16.mxu0 0
        %368 = vmatpush1.bf16.msra.mxu0 0
        %369 = vmatprep.subr.bf16.mxu0 0
        %370 = vmatpush1.bf16.msra.mxu0 0
        %371 = vmatprep.subr.bf16.mxu0 0
        %372 = vmatpush1.bf16.msra.mxu0 0
        %373 = vmatprep.subr.bf16.mxu0 0
        %374 = vmatpush1.bf16.msra.mxu0 0
        %375 = vmatprep.subr.bf16.mxu0 0
        %376 = vmatpush1.bf16.msra.mxu0 0
        %377 = vmatprep.subr.bf16.mxu0 0
        %378 = vmatpush1.bf16.msra.mxu0 0
        %379 = vmatprep.subr.bf16.mxu0 0
        %380 = vmatpush1.bf16.msra.mxu0 0
        %381 = vmatprep.subr.bf16.mxu0 0
        %382 = vmatpush1.bf16.msra.mxu0 0
        %383 = vmatprep.subr.bf16.mxu0 0
        %384 = vmatpush1.bf16.msra.mxu0 0
        %385 = vmatprep.mubr.bf16.mxu0 0
        %386 = vmatmul.mubr.bf16.gmra.mrb[0].mxu0 %v345
        %v387 = vpop.f32.mrb[0].mxu0
        %v388 = vadd.f32 0.0, %v387
        %v389 = vpop.f32.mrb[0].mxu0
        %v390 = vadd.f32 0.0, %v389
        %v391 = vpop.f32.mrb[0].mxu0
        %v392 = vadd.f32 0.0, %v391
        %v393 = vpop.f32.mrb[0].mxu0
        %v394 = vadd.f32 0.0, %v393
        %395 = vmatprep.mubr.bf16.mxu0 0
        %396 = vmatmul.mubr.bf16.gmra.mrb[0].mxu0 %v348
        %v397 = vpop.f32.mrb[0].mxu0
        %v398 = vadd.f32 0.0, %v397
        %v399 = vpop.f32.mrb[0].mxu0
        %v400 = vadd.f32 0.0, %v399
        %v401 = vpop.f32.mrb[0].mxu0
        %v402 = vadd.f32 0.0, %v401
        %v403 = vpop.f32.mrb[0].mxu0
        %v404 = vadd.f32 0.0, %v403
        %405 = vmatprep.mubr.bf16.mxu0 0
        %406 = vmatmul.mubr.bf16.gmra.mrb[0].mxu0 %v351
        %v407 = vpop.f32.mrb[0].mxu0
        %v408 = vadd.f32 0.0, %v407
        %v409 = vpop.f32.mrb[0].mxu0
        %v410 = vadd.f32 0.0, %v409
        %v411 = vpop.f32.mrb[0].mxu0
        %v412 = vadd.f32 0.0, %v411
        %v413 = vpop.f32.mrb[0].mxu0
        %v414 = vadd.f32 0.0, %v413
        %415 = vdwg.mxu0
        %416 = vst [vmem:[#allocation2] sm:$0xff] %v388
        %417 = vst [vmem:[#allocation2 + $0x8] sm:$0xff] %v390
        %418 = vst [vmem:[#allocation2 + $0x10] sm:$0xff] %v392
        %419 = vst [vmem:[#allocation2 + $0x18] sm:$0xff] %v394
        %420 = vst [vmem:[#allocation2 + $0x20] sm:$0xff] %v398
        %421 = vst [vmem:[#allocation2 + $0x28] sm:$0xff] %v400
        %422 = vst [vmem:[#allocation2 + $0x30] sm:$0xff] %v402
        %423 = vst [vmem:[#allocation2 + $0x38] sm:$0xff] %v404
        %424 = vst [vmem:[#allocation2 + $0x40] sm:$0xff] %v408
        %425 = vst [vmem:[#allocation2 + $0x48] sm:$0xff] %v410
        %426 = vst [vmem:[#allocation2 + $0x50] sm:$0xff] %v412
        %427 = vst [vmem:[#allocation2 + $0x58] sm:$0xff] %v414
      $region40: #{vn_dgcnn_encoder.16} parent=35 // pred_fallthru
        _
      %v428 = vld [vmem:[%s276] sm:$0xf]
      %v429 = vld [vmem:[%s276 + $0x4] sm:$0xf]
      %v430 = vld [vmem:[%s276 + $0x8] sm:$0xf]
      %v431 = vld [vmem:[%s276 + $0xc] sm:$0xf]
      %v432 = vld [vmem:[%s276 + $0x10] sm:$0xf]
      %v433 = vld [vmem:[%s276 + $0x14] sm:$0xf]
      %v434 = vld [vmem:[%s2] sm:$0xff]
      %v435 = vld [vmem:[%s2 + $0x8] sm:$0xff]
      %v442 = vunpack.c.l.b16 %v428
      %v443 = vunpack.c.l.b16 %v429
      %v444 = vunpack.c.l.b16 %v430
      %v445 = vunpack.c.l.b16 %v431
      %v446 = vunpack.c.l.b16 %v432
      %v447 = vunpack.c.l.b16 %v433
      %v448 = vpack.c.b16 %v443, %v442
      %v449 = vpack.c.b16 %v445, %v444
      %v450 = vpack.c.b16 %v447, %v446
      %v453 = vunpack.c.l.b16 %v434
      %v454 = vunpack.c.h.b16 %v434
      %v455 = vunpack.c.l.b16 %v435
      %v456 = vunpack.c.h.b16 %v435
      %v457 = vpack.c.b16 %v455, %v453
      %v458 = vpack.c.b16 %v456, %v454
      %vm461 = vcmask 130048
      %v463 = vsel %vm461, %v448, 0
      %v466 = vsel %vm461, %v449, 0
      %v469 = vsel %vm461, %v450, 0
      %471 = vmatprep.subr.bf16.mxu0 %v458
      %472 = vmatpush1.bf16.msra.mxu0 %v457
      %473 = vmatprep.subr.bf16.mxu0 0
      %474 = vmatpush1.bf16.msra.mxu0 0
      %475 = vmatprep.subr.bf16.mxu0 0
      %476 = vmatpush1.bf16.msra.mxu0 0
      %477 = vmatprep.subr.bf16.mxu0 0
      %478 = vmatpush1.bf16.msra.mxu0 0
      %479 = vmatprep.subr.bf16.mxu0 0
      %480 = vmatpush1.bf16.msra.mxu0 0
      %481 = vmatprep.subr.bf16.mxu0 0
      %482 = vmatpush1.bf16.msra.mxu0 0
      %483 = vmatprep.subr.bf16.mxu0 0
      %484 = vmatpush1.bf16.msra.mxu0 0
      %485 = vmatprep.subr.bf16.mxu0 0
      %486 = vmatpush1.bf16.msra.mxu0 0
      %487 = vmatprep.subr.bf16.mxu0 0
      %488 = vmatpush1.bf16.msra.mxu0 0
      %489 = vmatprep.subr.bf16.mxu0 0
      %490 = vmatpush1.bf16.msra.mxu0 0
      %491 = vmatprep.subr.bf16.mxu0 0
      %492 = vmatpush1.bf16.msra.mxu0 0
      %493 = vmatprep.subr.bf16.mxu0 0
      %494 = vmatpush1.bf16.msra.mxu0 0
      %495 = vmatprep.subr.bf16.mxu0 0
      %496 = vmatpush1.bf16.msra.mxu0 0
      %497 = vmatprep.subr.bf16.mxu0 0
      %498 = vmatpush1.bf16.msra.mxu0 0
      %499 = vmatprep.subr.bf16.mxu0 0
      %500 = vmatpush1.bf16.msra.mxu0 0
      %501 = vmatprep.subr.bf16.mxu0 0
      %502 = vmatpush1.bf16.msra.mxu0 0
      %503 = vmatprep.mubr.bf16.mxu0 0
      %504 = vmatmul.mubr.bf16.gmra.mrb[0].mxu0 %v463
      %v505 = vpop.f32.mrb[0].mxu0
      %v506 = vadd.f32 0.0, %v505
      %v507 = vpop.f32.mrb[0].mxu0
      %v508 = vadd.f32 0.0, %v507
      %v509 = vpop.f32.mrb[0].mxu0
      %v510 = vadd.f32 0.0, %v509
      %v511 = vpop.f32.mrb[0].mxu0
      %v512 = vadd.f32 0.0, %v511
      %513 = vmatprep.mubr.bf16.mxu0 0
      %514 = vmatmul.mubr.bf16.gmra.mrb[0].mxu0 %v466
      %v515 = vpop.f32.mrb[0].mxu0
      %v516 = vadd.f32 0.0, %v515
      %v517 = vpop.f32.mrb[0].mxu0
      %v518 = vadd.f32 0.0, %v517
      %v519 = vpop.f32.mrb[0].mxu0
      %v520 = vadd.f32 0.0, %v519
      %v521 = vpop.f32.mrb[0].mxu0
      %v522 = vadd.f32 0.0, %v521
      %523 = vmatprep.mubr.bf16.mxu0 0
      %524 = vmatmul.mubr.bf16.gmra.mrb[0].mxu0 %v469
      %v525 = vpop.f32.mrb[0].mxu0
      %v526 = vadd.f32 0.0, %v525
      %v527 = vpop.f32.mrb[0].mxu0
      %v528 = vadd.f32 0.0, %v527
      %v529 = vpop.f32.mrb[0].mxu0
      %v530 = vadd.f32 0.0, %v529
      %v531 = vpop.f32.mrb[0].mxu0
      %v532 = vadd.f32 0.0, %v531
      %533 = vdwg.mxu0
      %v534 = vld [vmem:[#allocation2] sm:$0xff]
      %v535 = vld [vmem:[#allocation2 + $0x8] sm:$0xff]
      %v536 = vld [vmem:[#allocation2 + $0x10] sm:$0xff]
      %v537 = vld [vmem:[#allocation2 + $0x18] sm:$0xff]
      %v538 = vld [vmem:[#allocation2 + $0x20] sm:$0xff]
      %v539 = vld [vmem:[#allocation2 + $0x28] sm:$0xff]
      %v540 = vld [vmem:[#allocation2 + $0x30] sm:$0xff]
      %v541 = vld [vmem:[#allocation2 + $0x38] sm:$0xff]
      %v542 = vld [vmem:[#allocation2 + $0x40] sm:$0xff]
      %v543 = vld [vmem:[#allocation2 + $0x48] sm:$0xff]
      %v544 = vld [vmem:[#allocation2 + $0x50] sm:$0xff]
      %v545 = vld [vmem:[#allocation2 + $0x58] sm:$0xff]
      %v546 = vadd.f32 %v506, %v534
      %v547 = vadd.f32 %v508, %v535
      %v548 = vadd.f32 %v510, %v536
      %v549 = vadd.f32 %v512, %v537
      %v550 = vadd.f32 %v516, %v538
      %v551 = vadd.f32 %v518, %v539
      %v552 = vadd.f32 %v520, %v540
      %v553 = vadd.f32 %v522, %v541
      %v554 = vadd.f32 %v526, %v542
      %v555 = vadd.f32 %v528, %v543
      %v556 = vadd.f32 %v530, %v544
      %v557 = vadd.f32 %v532, %v545
      %v558 = vld [vmem:[%s297] sm:$0xff]
      %v559 = vld [vmem:[%s297 + $0x8] sm:$0xff]
      %v560 = vld [vmem:[%s297 + $0x10] sm:$0xff]
      %v561 = vld [vmem:[%s297 + $0x18] sm:$0xff]
      %v562 = vld [vmem:[%s297 + $0x20] sm:$0xff]
      %v563 = vld [vmem:[%s297 + $0x28] sm:$0xff]
      %v564 = vmul.f32 %v546, %v547
      %v565 = vmul.f32 %v548, %v549
      %v566 = vmul.f32 %v550, %v551
      %v567 = vmul.f32 %v552, %v553
      %v568 = vmul.f32 %v554, %v555
      %v569 = vmul.f32 %v556, %v557
      %v570 = vadd.f32 %v564, %v566
      %v571 = vadd.f32 %v570, %v568
      %v572 = vadd.f32 %v565, %v567
      %v573 = vadd.f32 %v572, %v569
      %v574 = vmul.f32 %v547, %v547
      %v575 = vmul.f32 %v549, %v549
      %v576 = vmul.f32 %v551, %v551
      %v577 = vmul.f32 %v553, %v553
      %v578 = vmul.f32 %v555, %v555
      %v579 = vmul.f32 %v557, %v557
      %v580 = vadd.f32 %v574, %v576
      %v581 = vadd.f32 %v580, %v578
      %v582 = vadd.f32 %v575, %v577
      %v583 = vadd.f32 %v582, %v579
      %vm584 = vcmp.lt.f32.partialorder %v571, 0.0
      %vm585 = vcmp.lt.f32.partialorder %v573, 0.0
      %v586 = vsel %vm584, %v571, 0.0
      %v587 = vsel %vm585, %v573, 0.0
      %v588 = vadd.f32 %v581, 1e-06
      %v589 = vadd.f32 %v583, 1e-06
      %v590 = vrcp.pop %v588
      %v591 = vrcp.pop %v589
      %v592 = vmul.f32 %v586, %v590
      %v593 = vmul.f32 %v587, %v591
      %v594 = vmul.f32 %v592, 0.8
      %v595 = vmul.f32 %v593, 0.8
      %v596 = vmul.f32 %v594, %v547
      %v597 = vmul.f32 %v595, %v549
      %v598 = vmul.f32 %v594, %v551
      %v599 = vmul.f32 %v595, %v553
      %v600 = vmul.f32 %v594, %v555
      %v601 = vmul.f32 %v595, %v557
      %v602 = vsub.f32 %v546, %v596
      %v603 = vsub.f32 %v548, %v597
      %v604 = vsub.f32 %v550, %v598
      %v605 = vsub.f32 %v552, %v599
      %v606 = vsub.f32 %v554, %v600
      %v607 = vsub.f32 %v556, %v601
      %v608 = vadd.f32 %v558, %v602
      %v609 = vadd.f32 %v559, %v603
      %v610 = vadd.f32 %v560, %v604
      %v611 = vadd.f32 %v561, %v605
      %v612 = vadd.f32 %v562, %v606
      %v613 = vadd.f32 %v563, %v607
      %614 = vst [vmem:[%s297] sm:$0xff] %v608
      %615 = vst [vmem:[%s297 + $0x8] sm:$0xff] %v609
      %616 = vst [vmem:[%s297 + $0x10] sm:$0xff] %v610
      %617 = vst [vmem:[%s297 + $0x18] sm:$0xff] %v611
      %618 = vst [vmem:[%s297 + $0x20] sm:$0xff] %v612
      %619 = vst [vmem:[%s297 + $0x28] sm:$0xff] %v613
      %s620 = scalar_lea.vmem %s276, 24
      %v621 = vld [vmem:[%s620] sm:$0xf]
      %v622 = vld [vmem:[%s620 + $0x4] sm:$0xf]
      %v623 = vld [vmem:[%s620 + $0x8] sm:$0xf]
      %v624 = vld [vmem:[%s620 + $0xc] sm:$0xf]
      %v625 = vld [vmem:[%s620 + $0x10] sm:$0xf]
      %v626 = vld [vmem:[%s620 + $0x14] sm:$0xf]
      %v627 = vld [vmem:[%s2] sm:$0xff]
      %v628 = vld [vmem:[%s2 + $0x8] sm:$0xff]
      %v635 = vunpack.c.l.b16 %v621
      %v636 = vunpack.c.l.b16 %v622
      %v637 = vunpack.c.l.b16 %v623
      %v638 = vunpack.c.l.b16 %v624
      %v639 = vunpack.c.l.b16 %v625
      %v640 = vunpack.c.l.b16 %v626
      %v641 = vpack.c.b16 %v636, %v635
      %v642 = vpack.c.b16 %v638, %v637
      %v643 = vpack.c.b16 %v640, %v639
      %v646 = vunpack.c.l.b16 %v627
      %v647 = vunpack.c.h.b16 %v627
      %v648 = vunpack.c.l.b16 %v628
      %v649 = vunpack.c.h.b16 %v628
      %v650 = vpack.c.b16 %v648, %v646
      %v651 = vpack.c.b16 %v649, %v647
      %v655 = vsel %vm461, %v641, 0
      %v658 = vsel %vm461, %v642, 0
      %v661 = vsel %vm461, %v643, 0
      %663 = vmatprep.subr.bf16.mxu0 %v651
      %664 = vmatpush1.bf16.msra.mxu0 %v650
      %665 = vmatprep.subr.bf16.mxu0 0
      %666 = vmatpush1.bf16.msra.mxu0 0
      %667 = vmatprep.subr.bf16.mxu0 0
      %668 = vmatpush1.bf16.msra.mxu0 0
      %669 = vmatprep.subr.bf16.mxu0 0
      %670 = vmatpush1.bf16.msra.mxu0 0
      %671 = vmatprep.subr.bf16.mxu0 0
      %672 = vmatpush1.bf16.msra.mxu0 0
      %673 = vmatprep.subr.bf16.mxu0 0
      %674 = vmatpush1.bf16.msra.mxu0 0
      %675 = vmatprep.subr.bf16.mxu0 0
      %676 = vmatpush1.bf16.msra.mxu0 0
      %677 = vmatprep.subr.bf16.mxu0 0
      %678 = vmatpush1.bf16.msra.mxu0 0
      %679 = vmatprep.subr.bf16.mxu0 0
      %680 = vmatpush1.bf16.msra.mxu0 0
      %681 = vmatprep.subr.bf16.mxu0 0
      %682 = vmatpush1.bf16.msra.mxu0 0
      %683 = vmatprep.subr.bf16.mxu0 0
      %684 = vmatpush1.bf16.msra.mxu0 0
      %685 = vmatprep.subr.bf16.mxu0 0
      %686 = vmatpush1.bf16.msra.mxu0 0
      %687 = vmatprep.subr.bf16.mxu0 0
      %688 = vmatpush1.bf16.msra.mxu0 0
      %689 = vmatprep.subr.bf16.mxu0 0
      %690 = vmatpush1.bf16.msra.mxu0 0
      %691 = vmatprep.subr.bf16.mxu0 0
      %692 = vmatpush1.bf16.msra.mxu0 0
      %693 = vmatprep.subr.bf16.mxu0 0
      %694 = vmatpush1.bf16.msra.mxu0 0
      %695 = vmatprep.mubr.bf16.mxu0 0
      %696 = vmatmul.mubr.bf16.gmra.mrb[0].mxu0 %v655
      %v697 = vpop.f32.mrb[0].mxu0
      %v698 = vadd.f32 0.0, %v697
      %v699 = vpop.f32.mrb[0].mxu0
      %v700 = vadd.f32 0.0, %v699
      %v701 = vpop.f32.mrb[0].mxu0
      %v702 = vadd.f32 0.0, %v701
      %v703 = vpop.f32.mrb[0].mxu0
      %v704 = vadd.f32 0.0, %v703
      %705 = vmatprep.mubr.bf16.mxu0 0
      %706 = vmatmul.mubr.bf16.gmra.mrb[0].mxu0 %v658
      %v707 = vpop.f32.mrb[0].mxu0
      %v708 = vadd.f32 0.0, %v707
      %v709 = vpop.f32.mrb[0].mxu0
      %v710 = vadd.f32 0.0, %v709
      %v711 = vpop.f32.mrb[0].mxu0
      %v712 = vadd.f32 0.0, %v711
      %v713 = vpop.f32.mrb[0].mxu0
      %v714 = vadd.f32 0.0, %v713
      %715 = vmatprep.mubr.bf16.mxu0 0
      %716 = vmatmul.mubr.bf16.gmra.mrb[0].mxu0 %v661
      %v717 = vpop.f32.mrb[0].mxu0
      %v718 = vadd.f32 0.0, %v717
      %v719 = vpop.f32.mrb[0].mxu0
      %v720 = vadd.f32 0.0, %v719
      %v721 = vpop.f32.mrb[0].mxu0
      %v722 = vadd.f32 0.0, %v721
      %v723 = vpop.f32.mrb[0].mxu0
      %v724 = vadd.f32 0.0, %v723
      %725 = vdwg.mxu0
      %v726 = vld [vmem:[#allocation2] sm:$0xff]
      %v727 = vld [vmem:[#allocation2 + $0x8] sm:$0xff]
      %v728 = vld [vmem:[#allocation2 + $0x10] sm:$0xff]
      %v729 = vld [vmem:[#allocation2 + $0x18] sm:$0xff]
      %v730 = vld [vmem:[#allocation2 + $0x20] sm:$0xff]
      %v731 = vld [vmem:[#allocation2 + $0x28] sm:$0xff]
      %v732 = vld [vmem:[#allocation2 + $0x30] sm:$0xff]
      %v733 = vld [vmem:[#allocation2 + $0x38] sm:$0xff]
      %v734 = vld [vmem:[#allocation2 + $0x40] sm:$0xff]
      %v735 = vld [vmem:[#allocation2 + $0x48] sm:$0xff]
      %v736 = vld [vmem:[#allocation2 + $0x50] sm:$0xff]
      %v737 = vld [vmem:[#allocation2 + $0x58] sm:$0xff]
      %v738 = vadd.f32 %v698, %v726
      %v739 = vadd.f32 %v700, %v727
      %v740 = vadd.f32 %v702, %v728
      %v741 = vadd.f32 %v704, %v729
      %v742 = vadd.f32 %v708, %v730
      %v743 = vadd.f32 %v710, %v731
      %v744 = vadd.f32 %v712, %v732
      %v745 = vadd.f32 %v714, %v733
      %v746 = vadd.f32 %v718, %v734
      %v747 = vadd.f32 %v720, %v735
      %v748 = vadd.f32 %v722, %v736
      %v749 = vadd.f32 %v724, %v737
      %v750 = vld [vmem:[%s297] sm:$0xff]
      %v751 = vld [vmem:[%s297 + $0x8] sm:$0xff]
      %v752 = vld [vmem:[%s297 + $0x10] sm:$0xff]
      %v753 = vld [vmem:[%s297 + $0x18] sm:$0xff]
      %v754 = vld [vmem:[%s297 + $0x20] sm:$0xff]
      %v755 = vld [vmem:[%s297 + $0x28] sm:$0xff]
      %v756 = vmul.f32 %v738, %v739
      %v757 = vmul.f32 %v740, %v741
      %v758 = vmul.f32 %v742, %v743
      %v759 = vmul.f32 %v744, %v745
      %v760 = vmul.f32 %v746, %v747
      %v761 = vmul.f32 %v748, %v749
      %v762 = vadd.f32 %v756, %v758
      %v763 = vadd.f32 %v762, %v760
      %v764 = vadd.f32 %v757, %v759
      %v765 = vadd.f32 %v764, %v761
      %v766 = vmul.f32 %v739, %v739
      %v767 = vmul.f32 %v741, %v741
      %v768 = vmul.f32 %v743, %v743
      %v769 = vmul.f32 %v745, %v745
      %v770 = vmul.f32 %v747, %v747
      %v771 = vmul.f32 %v749, %v749
      %v772 = vadd.f32 %v766, %v768
      %v773 = vadd.f32 %v772, %v770
      %v774 = vadd.f32 %v767, %v769
      %v775 = vadd.f32 %v774, %v771
      %vm776 = vcmp.lt.f32.partialorder %v763, 0.0
      %vm777 = vcmp.lt.f32.partialorder %v765, 0.0
      %v778 = vsel %vm776, %v763, 0.0
      %v779 = vsel %vm777, %v765, 0.0
      %v780 = vadd.f32 %v773, 1e-06
      %v781 = vadd.f32 %v775, 1e-06
      %v782 = vrcp.pop %v780
      %v783 = vrcp.pop %v781
      %v784 = vmul.f32 %v778, %v782
      %v785 = vmul.f32 %v779, %v783
      %v786 = vmul.f32 %v784, 0.8
      %v787 = vmul.f32 %v785, 0.8
      %v788 = vmul.f32 %v786, %v739
      %v789 = vmul.f32 %v787, %v741
      %v790 = vmul.f32 %v786, %v743
      %v791 = vmul.f32 %v787, %v745
      %v792 = vmul.f32 %v786, %v747
      %v793 = vmul.f32 %v787, %v749
      %v794 = vsub.f32 %v738, %v788
      %v795 = vsub.f32 %v740, %v789
      %v796 = vsub.f32 %v742, %v790
      %v797 = vsub.f32 %v744, %v791
      %v798 = vsub.f32 %v746, %v792
      %v799 = vsub.f32 %v748, %v793
      %v800 = vadd.f32 %v750, %v794
      %v801 = vadd.f32 %v751, %v795
      %v802 = vadd.f32 %v752, %v796
      %v803 = vadd.f32 %v753, %v797
      %v804 = vadd.f32 %v754, %v798
      %v805 = vadd.f32 %v755, %v799
      %806 = vst [vmem:[%s297] sm:$0xff] %v800
      %807 = vst [vmem:[%s297 + $0x8] sm:$0xff] %v801
      %808 = vst [vmem:[%s297 + $0x10] sm:$0xff] %v802
      %809 = vst [vmem:[%s297 + $0x18] sm:$0xff] %v803
      %810 = vst [vmem:[%s297 + $0x20] sm:$0xff] %v804
      %811 = vst [vmem:[%s297 + $0x28] sm:$0xff] %v805
      %s812 = scalar_lea.vmem %s276, 48
      %v813 = vld [vmem:[%s812] sm:$0xf]
      %v814 = vld [vmem:[%s812 + $0x4] sm:$0xf]
      %v815 = vld [vmem:[%s812 + $0x8] sm:$0xf]
      %v816 = vld [vmem:[%s812 + $0xc] sm:$0xf]
      %v817 = vld [vmem:[%s812 + $0x10] sm:$0xf]
      %v818 = vld [vmem:[%s812 + $0x14] sm:$0xf]
      %v819 = vld [vmem:[%s2] sm:$0xff]
      %v820 = vld [vmem:[%s2 + $0x8] sm:$0xff]
      %v827 = vunpack.c.l.b16 %v813
      %v828 = vunpack.c.l.b16 %v814
      %v829 = vunpack.c.l.b16 %v815
      %v830 = vunpack.c.l.b16 %v816
      %v831 = vunpack.c.l.b16 %v817
      %v832 = vunpack.c.l.b16 %v818
      %v833 = vpack.c.b16 %v828, %v827
      %v834 = vpack.c.b16 %v830, %v829
      %v835 = vpack.c.b16 %v832, %v831
      %v838 = vunpack.c.l.b16 %v819
      %v839 = vunpack.c.h.b16 %v819
      %v840 = vunpack.c.l.b16 %v820
      %v841 = vunpack.c.h.b16 %v820
      %v842 = vpack.c.b16 %v840, %v838
      %v843 = vpack.c.b16 %v841, %v839
      %v847 = vsel %vm461, %v833, 0
      %v850 = vsel %vm461, %v834, 0
      %v853 = vsel %vm461, %v835, 0
      %855 = vmatprep.subr.bf16.mxu0 %v843
      %856 = vmatpush1.bf16.msra.mxu0 %v842
      %857 = vmatprep.subr.bf16.mxu0 0
      %858 = vmatpush1.bf16.msra.mxu0 0
      %859 = vmatprep.subr.bf16.mxu0 0
      %860 = vmatpush1.bf16.msra.mxu0 0
      %861 = vmatprep.subr.bf16.mxu0 0
      %862 = vmatpush1.bf16.msra.mxu0 0
      %863 = vmatprep.subr.bf16.mxu0 0
      %864 = vmatpush1.bf16.msra.mxu0 0
      %865 = vmatprep.subr.bf16.mxu0 0
      %866 = vmatpush1.bf16.msra.mxu0 0
      %867 = vmatprep.subr.bf16.mxu0 0
      %868 = vmatpush1.bf16.msra.mxu0 0
      %869 = vmatprep.subr.bf16.mxu0 0
      %870 = vmatpush1.bf16.msra.mxu0 0
      %871 = vmatprep.subr.bf16.mxu0 0
      %872 = vmatpush1.bf16.msra.mxu0 0
      %873 = vmatprep.subr.bf16.mxu0 0
      %874 = vmatpush1.bf16.msra.mxu0 0
      %875 = vmatprep.subr.bf16.mxu0 0
      %876 = vmatpush1.bf16.msra.mxu0 0
      %877 = vmatprep.subr.bf16.mxu0 0
      %878 = vmatpush1.bf16.msra.mxu0 0
      %879 = vmatprep.subr.bf16.mxu0 0
      %880 = vmatpush1.bf16.msra.mxu0 0
      %881 = vmatprep.subr.bf16.mxu0 0
      %882 = vmatpush1.bf16.msra.mxu0 0
      %883 = vmatprep.subr.bf16.mxu0 0
      %884 = vmatpush1.bf16.msra.mxu0 0
      %885 = vmatprep.subr.bf16.mxu0 0
      %886 = vmatpush1.bf16.msra.mxu0 0
      %887 = vmatprep.mubr.bf16.mxu0 0
      %888 = vmatmul.mubr.bf16.gmra.mrb[0].mxu0 %v847
      %v889 = vpop.f32.mrb[0].mxu0
      %v890 = vadd.f32 0.0, %v889
      %v891 = vpop.f32.mrb[0].mxu0
      %v892 = vadd.f32 0.0, %v891
      %v893 = vpop.f32.mrb[0].mxu0
      %v894 = vadd.f32 0.0, %v893
      %v895 = vpop.f32.mrb[0].mxu0
      %v896 = vadd.f32 0.0, %v895
      %897 = vmatprep.mubr.bf16.mxu0 0
      %898 = vmatmul.mubr.bf16.gmra.mrb[0].mxu0 %v850
      %v899 = vpop.f32.mrb[0].mxu0
      %v900 = vadd.f32 0.0, %v899
      %v901 = vpop.f32.mrb[0].mxu0
      %v902 = vadd.f32 0.0, %v901
      %v903 = vpop.f32.mrb[0].mxu0
      %v904 = vadd.f32 0.0, %v903
      %v905 = vpop.f32.mrb[0].mxu0
      %v906 = vadd.f32 0.0, %v905
      %907 = vmatprep.mubr.bf16.mxu0 0
      %908 = vmatmul.mubr.bf16.gmra.mrb[0].mxu0 %v853
      %v909 = vpop.f32.mrb[0].mxu0
      %v910 = vadd.f32 0.0, %v909
      %v911 = vpop.f32.mrb[0].mxu0
      %v912 = vadd.f32 0.0, %v911
      %v913 = vpop.f32.mrb[0].mxu0
      %v914 = vadd.f32 0.0, %v913
      %v915 = vpop.f32.mrb[0].mxu0
      %v916 = vadd.f32 0.0, %v915
      %917 = vdwg.mxu0
      %v918 = vld [vmem:[#allocation2] sm:$0xff]
      %v919 = vld [vmem:[#allocation2 + $0x8] sm:$0xff]
      %v920 = vld [vmem:[#allocation2 + $0x10] sm:$0xff]
      %v921 = vld [vmem:[#allocation2 + $0x18] sm:$0xff]
      %v922 = vld [vmem:[#allocation2 + $0x20] sm:$0xff]
      %v923 = vld [vmem:[#allocation2 + $0x28] sm:$0xff]
      %v924 = vld [vmem:[#allocation2 + $0x30] sm:$0xff]
      %v925 = vld [vmem:[#allocation2 + $0x38] sm:$0xff]
      %v926 = vld [vmem:[#allocation2 + $0x40] sm:$0xff]
      %v927 = vld [vmem:[#allocation2 + $0x48] sm:$0xff]
      %v928 = vld [vmem:[#allocation2 + $0x50] sm:$0xff]
      %v929 = vld [vmem:[#allocation2 + $0x58] sm:$0xff]
      %v930 = vadd.f32 %v890, %v918
      %v931 = vadd.f32 %v892, %v919
      %v932 = vadd.f32 %v894, %v920
      %v933 = vadd.f32 %v896, %v921
      %v934 = vadd.f32 %v900, %v922
      %v935 = vadd.f32 %v902, %v923
      %v936 = vadd.f32 %v904, %v924
      %v937 = vadd.f32 %v906, %v925
      %v938 = vadd.f32 %v910, %v926
      %v939 = vadd.f32 %v912, %v927
      %v940 = vadd.f32 %v914, %v928
      %v941 = vadd.f32 %v916, %v929
      %v942 = vld [vmem:[%s297] sm:$0xff]
      %v943 = vld [vmem:[%s297 + $0x8] sm:$0xff]
      %v944 = vld [vmem:[%s297 + $0x10] sm:$0xff]
      %v945 = vld [vmem:[%s297 + $0x18] sm:$0xff]
      %v946 = vld [vmem:[%s297 + $0x20] sm:$0xff]
      %v947 = vld [vmem:[%s297 + $0x28] sm:$0xff]
      %v948 = vmul.f32 %v930, %v931
      %v949 = vmul.f32 %v932, %v933
      %v950 = vmul.f32 %v934, %v935
      %v951 = vmul.f32 %v936, %v937
      %v952 = vmul.f32 %v938, %v939
      %v953 = vmul.f32 %v940, %v941
      %v954 = vadd.f32 %v948, %v950
      %v955 = vadd.f32 %v954, %v952
      %v956 = vadd.f32 %v949, %v951
      %v957 = vadd.f32 %v956, %v953
      %v958 = vmul.f32 %v931, %v931
      %v959 = vmul.f32 %v933, %v933
      %v960 = vmul.f32 %v935, %v935
      %v961 = vmul.f32 %v937, %v937
      %v962 = vmul.f32 %v939, %v939
      %v963 = vmul.f32 %v941, %v941
      %v964 = vadd.f32 %v958, %v960
      %v965 = vadd.f32 %v964, %v962
      %v966 = vadd.f32 %v959, %v961
      %v967 = vadd.f32 %v966, %v963
      %vm968 = vcmp.lt.f32.partialorder %v955, 0.0
      %vm969 = vcmp.lt.f32.partialorder %v957, 0.0
      %v970 = vsel %vm968, %v955, 0.0
      %v971 = vsel %vm969, %v957, 0.0
      %v972 = vadd.f32 %v965, 1e-06
      %v973 = vadd.f32 %v967, 1e-06
      %v974 = vrcp.pop %v972
      %v975 = vrcp.pop %v973
      %v976 = vmul.f32 %v970, %v974
      %v977 = vmul.f32 %v971, %v975
      %v978 = vmul.f32 %v976, 0.8
      %v979 = vmul.f32 %v977, 0.8
      %v980 = vmul.f32 %v978, %v931
      %v981 = vmul.f32 %v979, %v933
      %v982 = vmul.f32 %v978, %v935
      %v983 = vmul.f32 %v979, %v937
      %v984 = vmul.f32 %v978, %v939
      %v985 = vmul.f32 %v979, %v941
      %v986 = vsub.f32 %v930, %v980
      %v987 = vsub.f32 %v932, %v981
      %v988 = vsub.f32 %v934, %v982
      %v989 = vsub.f32 %v936, %v983
      %v990 = vsub.f32 %v938, %v984
      %v991 = vsub.f32 %v940, %v985
      %v992 = vadd.f32 %v942, %v986
      %v993 = vadd.f32 %v943, %v987
      %v994 = vadd.f32 %v944, %v988
      %v995 = vadd.f32 %v945, %v989
      %v996 = vadd.f32 %v946, %v990
      %v997 = vadd.f32 %v947, %v991
      %998 = vst [vmem:[%s297] sm:$0xff] %v992
      %999 = vst [vmem:[%s297 + $0x8] sm:$0xff] %v993
      %1000 = vst [vmem:[%s297 + $0x10] sm:$0xff] %v994
      %1001 = vst [vmem:[%s297 + $0x18] sm:$0xff] %v995
      %1002 = vst [vmem:[%s297 + $0x20] sm:$0xff] %v996
      %1003 = vst [vmem:[%s297 + $0x28] sm:$0xff] %v997
      %s1004 = scalar_lea.vmem %s276, 72
      %v1005 = vld [vmem:[%s1004] sm:$0xf]
      %v1006 = vld [vmem:[%s1004 + $0x4] sm:$0xf]
      %v1007 = vld [vmem:[%s1004 + $0x8] sm:$0xf]
      %v1008 = vld [vmem:[%s1004 + $0xc] sm:$0xf]
      %v1009 = vld [vmem:[%s1004 + $0x10] sm:$0xf]
      %v1010 = vld [vmem:[%s1004 + $0x14] sm:$0xf]
      %v1011 = vld [vmem:[%s2] sm:$0xff]
      %v1012 = vld [vmem:[%s2 + $0x8] sm:$0xff]
      %v1019 = vunpack.c.l.b16 %v1005
      %v1020 = vunpack.c.l.b16 %v1006
      %v1021 = vunpack.c.l.b16 %v1007
      %v1022 = vunpack.c.l.b16 %v1008
      %v1023 = vunpack.c.l.b16 %v1009
      %v1024 = vunpack.c.l.b16 %v1010
      %v1025 = vpack.c.b16 %v1020, %v1019
      %v1026 = vpack.c.b16 %v1022, %v1021
      %v1027 = vpack.c.b16 %v1024, %v1023
      %v1030 = vunpack.c.l.b16 %v1011
      %v1031 = vunpack.c.h.b16 %v1011
      %v1032 = vunpack.c.l.b16 %v1012
      %v1033 = vunpack.c.h.b16 %v1012
      %v1034 = vpack.c.b16 %v1032, %v1030
      %v1035 = vpack.c.b16 %v1033, %v1031
      %v1039 = vsel %vm461, %v1025, 0
      %v1042 = vsel %vm461, %v1026, 0
      %v1045 = vsel %vm461, %v1027, 0
      %1047 = vmatprep.subr.bf16.mxu0 %v1035
      %1048 = vmatpush1.bf16.msra.mxu0 %v1034
      %1049 = vmatprep.subr.bf16.mxu0 0
      %1050 = vmatpush1.bf16.msra.mxu0 0
      %1051 = vmatprep.subr.bf16.mxu0 0
      %1052 = vmatpush1.bf16.msra.mxu0 0
      %1053 = vmatprep.subr.bf16.mxu0 0
      %1054 = vmatpush1.bf16.msra.mxu0 0
      %1055 = vmatprep.subr.bf16.mxu0 0
      %1056 = vmatpush1.bf16.msra.mxu0 0
      %1057 = vmatprep.subr.bf16.mxu0 0
      %1058 = vmatpush1.bf16.msra.mxu0 0
      %1059 = vmatprep.subr.bf16.mxu0 0
      %1060 = vmatpush1.bf16.msra.mxu0 0
      %1061 = vmatprep.subr.bf16.mxu0 0
      %1062 = vmatpush1.bf16.msra.mxu0 0
      %1063 = vmatprep.subr.bf16.mxu0 0
      %1064 = vmatpush1.bf16.msra.mxu0 0
      %1065 = vmatprep.subr.bf16.mxu0 0
      %1066 = vmatpush1.bf16.msra.mxu0 0
      %1067 = vmatprep.subr.bf16.mxu0 0
      %1068 = vmatpush1.bf16.msra.mxu0 0
      %1069 = vmatprep.subr.bf16.mxu0 0
      %1070 = vmatpush1.bf16.msra.mxu0 0
      %1071 = vmatprep.subr.bf16.mxu0 0
      %1072 = vmatpush1.bf16.msra.mxu0 0
      %1073 = vmatprep.subr.bf16.mxu0 0
      %1074 = vmatpush1.bf16.msra.mxu0 0
      %1075 = vmatprep.subr.bf16.mxu0 0
      %1076 = vmatpush1.bf16.msra.mxu0 0
      %1077 = vmatprep.subr.bf16.mxu0 0
      %1078 = vmatpush1.bf16.msra.mxu0 0
      %1079 = vmatprep.mubr.bf16.mxu0 0
      %1080 = vmatmul.mubr.bf16.gmra.mrb[0].mxu0 %v1039
      %v1081 = vpop.f32.mrb[0].mxu0
      %v1082 = vadd.f32 0.0, %v1081
      %v1083 = vpop.f32.mrb[0].mxu0
      %v1084 = vadd.f32 0.0, %v1083
      %v1085 = vpop.f32.mrb[0].mxu0
      %v1086 = vadd.f32 0.0, %v1085
      %v1087 = vpop.f32.mrb[0].mxu0
      %v1088 = vadd.f32 0.0, %v1087
      %1089 = vmatprep.mubr.bf16.mxu0 0
      %1090 = vmatmul.mubr.bf16.gmra.mrb[0].mxu0 %v1042
      %v1091 = vpop.f32.mrb[0].mxu0
      %v1092 = vadd.f32 0.0, %v1091
      %v1093 = vpop.f32.mrb[0].mxu0
      %v1094 = vadd.f32 0.0, %v1093
      %v1095 = vpop.f32.mrb[0].mxu0
      %v1096 = vadd.f32 0.0, %v1095
      %v1097 = vpop.f32.mrb[0].mxu0
      %v1098 = vadd.f32 0.0, %v1097
      %1099 = vmatprep.mubr.bf16.mxu0 0
      %1100 = vmatmul.mubr.bf16.gmra.mrb[0].mxu0 %v1045
      %v1101 = vpop.f32.mrb[0].mxu0
      %v1102 = vadd.f32 0.0, %v1101
      %v1103 = vpop.f32.mrb[0].mxu0
      %v1104 = vadd.f32 0.0, %v1103
      %v1105 = vpop.f32.mrb[0].mxu0
      %v1106 = vadd.f32 0.0, %v1105
      %v1107 = vpop.f32.mrb[0].mxu0
      %v1108 = vadd.f32 0.0, %v1107
      %1109 = vdwg.mxu0
      %v1110 = vld [vmem:[#allocation2] sm:$0xff]
      %v1111 = vld [vmem:[#allocation2 + $0x8] sm:$0xff]
      %v1112 = vld [vmem:[#allocation2 + $0x10] sm:$0xff]
      %v1113 = vld [vmem:[#allocation2 + $0x18] sm:$0xff]
      %v1114 = vld [vmem:[#allocation2 + $0x20] sm:$0xff]
      %v1115 = vld [vmem:[#allocation2 + $0x28] sm:$0xff]
      %v1116 = vld [vmem:[#allocation2 + $0x30] sm:$0xff]
      %v1117 = vld [vmem:[#allocation2 + $0x38] sm:$0xff]
      %v1118 = vld [vmem:[#allocation2 + $0x40] sm:$0xff]
      %v1119 = vld [vmem:[#allocation2 + $0x48] sm:$0xff]
      %v1120 = vld [vmem:[#allocation2 + $0x50] sm:$0xff]
      %v1121 = vld [vmem:[#allocation2 + $0x58] sm:$0xff]
      %v1122 = vadd.f32 %v1082, %v1110
      %v1123 = vadd.f32 %v1084, %v1111
      %v1124 = vadd.f32 %v1086, %v1112
      %v1125 = vadd.f32 %v1088, %v1113
      %v1126 = vadd.f32 %v1092, %v1114
      %v1127 = vadd.f32 %v1094, %v1115
      %v1128 = vadd.f32 %v1096, %v1116
      %v1129 = vadd.f32 %v1098, %v1117
      %v1130 = vadd.f32 %v1102, %v1118
      %v1131 = vadd.f32 %v1104, %v1119
      %v1132 = vadd.f32 %v1106, %v1120
      %v1133 = vadd.f32 %v1108, %v1121
      %v1134 = vld [vmem:[%s297] sm:$0xff]
      %v1135 = vld [vmem:[%s297 + $0x8] sm:$0xff]
      %v1136 = vld [vmem:[%s297 + $0x10] sm:$0xff]
      %v1137 = vld [vmem:[%s297 + $0x18] sm:$0xff]
      %v1138 = vld [vmem:[%s297 + $0x20] sm:$0xff]
      %v1139 = vld [vmem:[%s297 + $0x28] sm:$0xff]
      %v1140 = vmul.f32 %v1122, %v1123
      %v1141 = vmul.f32 %v1124, %v1125
      %v1142 = vmul.f32 %v1126, %v1127
      %v1143 = vmul.f32 %v1128, %v1129
      %v1144 = vmul.f32 %v1130, %v1131
      %v1145 = vmul.f32 %v1132, %v1133
      %v1146 = vadd.f32 %v1140, %v1142
      %v1147 = vadd.f32 %v1146, %v1144
      %v1148 = vadd.f32 %v1141, %v1143
      %v1149 = vadd.f32 %v1148, %v1145
      %v1150 = vmul.f32 %v1123, %v1123
      %v1151 = vmul.f32 %v1125, %v1125
      %v1152 = vmul.f32 %v1127, %v1127
      %v1153 = vmul.f32 %v1129, %v1129
      %v1154 = vmul.f32 %v1131, %v1131
      %v1155 = vmul.f32 %v1133, %v1133
      %v1156 = vadd.f32 %v1150, %v1152
      %v1157 = vadd.f32 %v1156, %v1154
      %v1158 = vadd.f32 %v1151, %v1153
      %v1159 = vadd.f32 %v1158, %v1155
      %vm1160 = vcmp.lt.f32.partialorder %v1147, 0.0
      %vm1161 = vcmp.lt.f32.partialorder %v1149, 0.0
      %v1162 = vsel %vm1160, %v1147, 0.0
      %v1163 = vsel %vm1161, %v1149, 0.0
      %v1164 = vadd.f32 %v1157, 1e-06
      %v1165 = vadd.f32 %v1159, 1e-06
      %v1166 = vrcp.pop %v1164
      %v1167 = vrcp.pop %v1165
      %v1168 = vmul.f32 %v1162, %v1166
      %v1169 = vmul.f32 %v1163, %v1167
      %v1170 = vmul.f32 %v1168, 0.8
      %v1171 = vmul.f32 %v1169, 0.8
      %v1172 = vmul.f32 %v1170, %v1123
      %v1173 = vmul.f32 %v1171, %v1125
      %v1174 = vmul.f32 %v1170, %v1127
      %v1175 = vmul.f32 %v1171, %v1129
      %v1176 = vmul.f32 %v1170, %v1131
      %v1177 = vmul.f32 %v1171, %v1133
      %v1178 = vsub.f32 %v1122, %v1172
      %v1179 = vsub.f32 %v1124, %v1173
      %v1180 = vsub.f32 %v1126, %v1174
      %v1181 = vsub.f32 %v1128, %v1175
      %v1182 = vsub.f32 %v1130, %v1176
      %v1183 = vsub.f32 %v1132, %v1177
      %v1184 = vadd.f32 %v1134, %v1178
      %v1185 = vadd.f32 %v1135, %v1179
      %v1186 = vadd.f32 %v1136, %v1180
      %v1187 = vadd.f32 %v1137, %v1181
      %v1188 = vadd.f32 %v1138, %v1182
      %v1189 = vadd.f32 %v1139, %v1183
      %1190 = vst [vmem:[%s297] sm:$0xff] %v1184
      %1191 = vst [vmem:[%s297 + $0x8] sm:$0xff] %v1185
      %1192 = vst [vmem:[%s297 + $0x10] sm:$0xff] %v1186
      %1193 = vst [vmem:[%s297 + $0x18] sm:$0xff] %v1187
      %1194 = vst [vmem:[%s297 + $0x20] sm:$0xff] %v1188
      %1195 = vst [vmem:[%s297 + $0x28] sm:$0xff] %v1189
      // Predicated region
      $region41: #{vn_dgcnn_encoder.16} parent=35 // pred_check
        %p1196 = pneg %p300
      $region42: #{vn_dgcnn_encoder.16} parent=35 // pred_check_branch
        %1198 = sbr.rel (%p1196) target = $region44
      $region43: #{vn_dgcnn_encoder.16} parent=35 // pred_region
        %v1199 = vld [vmem:[%s297] sm:$0xff]
        %v1200 = vld [vmem:[%s297 + $0x8] sm:$0xff]
        %v1201 = vld [vmem:[%s297 + $0x10] sm:$0xff]
        %v1202 = vld [vmem:[%s297 + $0x18] sm:$0xff]
        %v1203 = vld [vmem:[%s297 + $0x20] sm:$0xff]
        %v1204 = vld [vmem:[%s297 + $0x28] sm:$0xff]
        %v1205 = vmul.f32 %v1199, 0.25
        %v1206 = vmul.f32 %v1200, 0.25
        %v1207 = vmul.f32 %v1201, 0.25
        %v1208 = vmul.f32 %v1202, 0.25
        %v1209 = vmul.f32 %v1203, 0.25
        %v1210 = vmul.f32 %v1204, 0.25
        %1211 = vst [vmem:[%s297] sm:$0xff] %v1205
        %1212 = vst [vmem:[%s297 + $0x8] sm:$0xff] %v1206
        %1213 = vst [vmem:[%s297 + $0x10] sm:$0xff] %v1207
        %1214 = vst [vmem:[%s297 + $0x18] sm:$0xff] %v1208
        %1215 = vst [vmem:[%s297 + $0x20] sm:$0xff] %v1209
        %1216 = vst [vmem:[%s297 + $0x28] sm:$0xff] %v1210
      $region44: #{vn_dgcnn_encoder.16} parent=35 // pred_fallthru
        _
      %s1217 = smul.u32 2, %s21
      %p1218 = scmp.lt.s32.totalorder %s20, 1
      %s1219 = scalar_select %p1218, %s20, 1
      %p1220 = scmp.lt.s32.totalorder %s1217, 1
      %s1221 = scalar_select %p1220, %s1217, 1
      %s1222 = smul.addr %s1219, 6
      %s1223 = sadd.s32 %s1221, %s1222
      %s1224 = smul.addr %s1223, 8
      %s1225 = scalar_lea.vmem %s4, %s1224
      // Predicated region
      $region45: #{vn_dgcnn_encoder.16} parent=35 // pred_check
        %p1226 = pneg %p154
      $region46: #{vn_dgcnn_encoder.16} parent=35 // pred_check_branch
        %1228 = sbr.rel (%p1226) target = $region48
      $region47: #{vn_dgcnn_encoder.16} parent=35 // pred_region
        %s1229 = smul.u32 2, %s21
      $region48: #{vn_dgcnn_encoder.16} parent=35 // pred_fallthru
        _
    $region36: #{vn_dgcnn_encoder.16} parent=5 // pred_fallthru
      _
    %p1230 = scmp.le.s32.totalorder 2, %s10
    // Predicated region
    $region49: #{vn_dgcnn_encoder.16} parent=5 // pred_check
      %p1231 = pneg %p1230
    $region50: #{vn_dgcnn_encoder.16} parent=5 // pred_check_branch
      %1233 = sbr.rel (%p1231) target = $region52
    $region51: #{vn_dgcnn_encoder.16} parent=5 // pred_region
      %s1234 = ssub.s32 %s10, 2
      // Predicated region
      $region53: #{vn_dgcnn_encoder.16} parent=51 // pred_check
        %p1235 = pneg %p160
      $region54: #{vn_dgcnn_encoder.16} parent=51 // pred_check_branch
        %1237 = sbr.rel (%p1235) target = $region56
      $region55: #{vn_dgcnn_encoder.16} parent=51 // pred_region
        %s1238 = smul.u32 2, %s24
        %p1239 = scmp.lt.s32.totalorder %s23, 1
        %s1240 = scalar_select %p1239, %s23, 1
        %p1241 = scmp.lt.s32.totalorder %s1238, 1
        %s1242 = scalar_select %p1241, %s1238, 1
        %s1243 = smul.addr %s1240, 6
        %s1244 = sadd.s32 %s1242, %s1243
        %s1245 = smul.addr %s1244, 8
        %s1246 = scalar_lea.vmem %s4, %s1245
      $region56: #{vn_dgcnn_encoder.16} parent=51 // pred_fallthru
        _
    $region52: #{vn_dgcnn_encoder.16} parent=5 // pred_fallthru
      _
  $region6: #{vn_dgcnn_encoder.16} parent=0 // loop_footer
    %s14 = sadd.s32 1, %s10
  $region7: #{vn_dgcnn_encoder.16} parent=0 // loop_footer_branch
    %9 = sbr.rel target = $region3
  $region8: #{vn_dgcnn_encoder.16} parent=0 // loop_exit
    _

</llo_original>
